<compile_context>
chip_gen: v7x
topology: tpu7x:2x2x1
jax: 0.10.0
libtpu: 0.0.40
codegen_flags: <defaults>
</compile_context>

<pallas_src>
import jax
import jax.numpy as jnp
from jax.experimental import pallas as pl
from jax.experimental.pallas import tpu as pltpu

BN_EPS = 1e-5
LEAKY_SLOPE = 0.01
MXU_PRECISION = jax.lax.Precision.HIGHEST  # see header note (2-row BN stability)

VMEM_SPEC = pl.BlockSpec(memory_space=pltpu.MemorySpace.VMEM)


# ----------------------------- static model plan -----------------------------

def gener_conv1d_dims(input_dim, output_dim, inter_ratio=(1.0, 2.0, -1.0)):
    dims = []
    old = input_dim
    for r in inter_ratio:
        if isinstance(r, int) and r > 0:
            d = r
        else:
            d = int(r * input_dim if r > 0 else -1 * r * output_dim)
        dims.append((old, d))
        old = d
    dims.append((old, output_dim))
    return dims


def build_plan(cfg):
    """Static (Python-level) description of the whole forward pass."""
    input_dim = cfg["input_dim"]
    num0, dim0 = cfg["head_shape"]
    ratio, ratio_shape = cfg["ratio"], cfg["ratio_shape"]
    depth, ksz = cfg["depth"], cfg["kernel_size"]

    bodies = []
    outputs = [dict(kind="head", L=num0, C=dim0)]
    L, C = num0, dim0                      # channels-last (length, channels)
    for i in range(depth):
        indim = int(dim0 * (ratio / ratio_shape) ** i)
        outdim = indim * ratio
        num = num0 * ratio ** (i + 1)
        K = 1 if num < 7 else ksz
        endwithact = i < depth - 1
        assert C == indim, (C, indim)
        dims = gener_conv1d_dims(indim, outdim, (1.0, 2.0, -1.0))
        acts = ["leaky_relu"] * (len(dims) - 1) + (["tanh"] if endwithact else ["identity"])
        layers = []
        for (cin, cout), act in zip(dims, acts):
            lout = L - K + 1
            layers.append(dict(K=K, cin=cin, cout=cout, act=act, L=L, Lout=lout))
            L, C = lout, cout
        dnew = C // ratio_shape
        bodies.append(dict(layers=layers, ratio=ratio_shape, dnew=dnew,
                           last=(i == depth - 1)))
        outputs.append(dict(kind="body", L=L, C=C, ratio=ratio_shape, dnew=dnew))
        L, C = ratio_shape * L, dnew       # einops rearrange for the next body
    return dict(input_dim=input_dim, num0=num0, dim0=dim0, head_dim=num0 * dim0,
                ratio_shape=ratio_shape, bodies=bodies, outputs=outputs)


# --------------------------------- parameters ---------------------------------

def build_params(key, plan):
    """PyTorch-layout parameters (Linear: (out,in); Conv1d: (out,in,K))."""
    input_dim, head_dim = plan["input_dim"], plan["head_dim"]
    key, kw, kb = jax.random.split(key, 3)
    params = {"head_w": 0.2 * jax.random.normal(kw, (head_dim, input_dim), jnp.float32),
              "head_b": 0.1 * jax.random.normal(kb, (head_dim,), jnp.float32),
              "bodies": []}
    for body in plan["bodies"]:
        layers = []
        for ly in body["layers"]:
            K, cin, cout = ly["K"], ly["cin"], ly["cout"]
            key, k1, k2, k3, k4 = jax.random.split(key, 5)
            scale = 0.3 / float(cin * K) ** 0.5
            layers.append({
                "w": scale * jax.random.normal(k1, (cout, cin, K), jnp.float32),
                "b": 0.1 * jax.random.normal(k2, (cout,), jnp.float32),
                "gamma": 1.0 + 0.1 * jax.random.normal(k3, (cout,), jnp.float32),
                "beta": 0.1 * jax.random.normal(k4, (cout,), jnp.float32),
            })
        params["bodies"].append(layers)
    return params


def prepare_kernel_params(params):
    """One-time layout pass (hoisted out of the forward path):
    head weight -> (Din, Dout); conv weights -> (K*Cin, Cout); vectors -> (1, C)."""
    flat = [jnp.transpose(params["head_w"]),
            params["head_b"].reshape(1, -1)]
    for layers in params["bodies"]:
        for ly in layers:
            cout, cin, K = ly["w"].shape
            w_kc = jnp.transpose(ly["w"], (2, 1, 0)).reshape(K * cin, cout)
            flat.extend([w_kc,
                         ly["b"].reshape(1, -1),
                         ly["gamma"].reshape(1, -1),
                         ly["beta"].reshape(1, -1)])
    return flat


# ------------------------------- fused kernel --------------------------------

def _bn_act(y, gamma, beta, act):
    """Training-mode BatchNorm1d over rows (= batch*length) + activation."""
    mean = jnp.mean(y, axis=0, keepdims=True)
    var = jnp.mean(jnp.square(y - mean), axis=0, keepdims=True)
    y = (y - mean) * jax.lax.rsqrt(var + BN_EPS)
    y = y * gamma + beta
    if act == "leaky_relu":
        return jnp.where(y >= 0.0, y, LEAKY_SLOPE * y)
    if act == "tanh":
        return jnp.tanh(y)
    return y


def make_fused_kernel(plan, B):
    bodies = plan["bodies"]
    num0 = plan["num0"]
    n_layers = sum(len(bd["layers"]) for bd in bodies)

    def kernel(*refs):
        x_ref, hw_ref, hb_ref = refs[:3]
        p_refs = refs[3:3 + 4 * n_layers]
        o_refs = refs[3 + 4 * n_layers:]

        # ---- head: Linear + Tanh; channels-last rows = (batch, position) ----
        h = jnp.dot(x_ref[...], hw_ref[...],
                    preferred_element_type=jnp.float32, precision=MXU_PRECISION)
        h = jnp.tanh(h + hb_ref[...])                       # (B, num0*dim0)
        if num0 == 1:
            x2 = h                                          # (B*num0, dim0)
        else:
            # TODO(synk): num0 > 1 channel/position unzip path is untested
            # (the configuration under test uses num0 = 1).
            x2 = jnp.concatenate(
                [h[bb:bb + 1, n::num0] for bb in range(B) for n in range(num0)],
                axis=0)
        o_refs[0][...] = x2                                 # lane-dense slab
        L = num0

        # ---- bodies: Conv1d + BN + act, channels-last, all in VMEM ----
        pi = 0
        for bi, body in enumerate(bodies):
            for ly in body["layers"]:
                K, lout = ly["K"], ly["Lout"]
                w = p_refs[pi][...]        # (K*Cin, Cout)
                bias = p_refs[pi + 1][...]
                gam = p_refs[pi + 2][...]
                bet = p_refs[pi + 3][...]
                pi += 4
                if K == 1:
                    xw = x2                                 # (B*L, Cin)
                else:
                    # In-VMEM im2col: K shifted windows per batch row block,
                    # folded into one (B*Lout, K*Cin) slab -> single contraction.
                    cols = []
                    for k in range(K):
                        rows = [x2[bb * L + k: bb * L + k + lout, :]
                                for bb in range(B)]
                        cols.append(rows[0] if B == 1
                                    else jnp.concatenate(rows, axis=0))
                    xw = jnp.concatenate(cols, axis=1)      # (B*Lout, K*Cin)
                y = jnp.dot(xw, w, preferred_element_type=jnp.float32,
                            precision=MXU_PRECISION) + bias
                x2 = _bn_act(y, gam, bet, ly["act"])        # (B*Lout, Cout)
                L = lout

            # Emit the lane-dense pre-rearrange slab as this stage's output.
            o_refs[bi + 1][...] = x2

            # einops 'b (ratio dim) num -> b dim (ratio num)', channels-last:
            # only needed in-kernel to feed the next body.
            if not body["last"]:
                ratio, dnew = body["ratio"], body["dnew"]
                x2 = jnp.concatenate(
                    [x2[bb * L:(bb + 1) * L, r * dnew:(r + 1) * dnew]
                     for bb in range(B) for r in range(ratio)],
                    axis=0)                                 # (B*ratio*L, dnew)
                L = ratio * L

    return kernel


def make_forward(plan, B):
    kernel = make_fused_kernel(plan, B)
    n_layers = sum(len(bd["layers"]) for bd in plan["bodies"])
    n_in = 3 + 4 * n_layers
    out_shapes = tuple(jax.ShapeDtypeStruct((B * o["L"], o["C"]), jnp.float32)
                       for o in plan["outputs"])

    fused = pl.pallas_call(
        kernel,
        out_shape=out_shapes,
        in_specs=[VMEM_SPEC] * n_in,
        out_specs=tuple(VMEM_SPEC for _ in out_shapes),
    )

    def forward(x, flat_params):
        slabs = fused(x, *flat_params)
        # Only now (outside the hot path) convert lane-dense slabs to the
        # module's NCL (B, C, L) outputs, folding in the einops rearrange.
        outs = []
        for slab, o in zip(slabs, plan["outputs"]):
            L, C = o["L"], o["C"]
            if o["kind"] == "head":
                outs.append(jnp.transpose(slab.reshape(B, L, C), (0, 2, 1)))
            else:
                r, d = o["ratio"], o["dnew"]
                t = slab.reshape(B, L, r, d)
                outs.append(jnp.transpose(t, (0, 3, 2, 1)).reshape(B, d, r * L))
        return outs

    return jax.jit(forward)


# ----------------------------- pure-JAX reference -----------------------------

def ref_conv_bn_act(x_ncl, w, b, gamma, beta, act):
    B, cin, L = x_ncl.shape
    cout, _, K = w.shape
    lout = L - K + 1
    y = jnp.zeros((B, cout, lout), jnp.float32)
    for k in range(K):
        y = y + jnp.einsum("bcl,oc->bol", x_ncl[:, :, k:k + lout], w[:, :, k],
                           precision=jax.lax.Precision.HIGHEST)
    y = y + b[None, :, None]
    mean = jnp.mean(y, axis=(0, 2), keepdims=True)
    var = jnp.mean(jnp.square(y - mean), axis=(0, 2), keepdims=True)
    y = (y - mean) * jax.lax.rsqrt(var + BN_EPS)
    y = y * gamma[None, :, None] + beta[None, :, None]
    if act == "leaky_relu":
        y = jnp.where(y >= 0.0, y, LEAKY_SLOPE * y)
    elif act == "tanh":
        y = jnp.tanh(y)
    return y


def ref_forward(x, params, plan):
    num0, dim0 = plan["num0"], plan["dim0"]
    ratio_shape = plan["ratio_shape"]
    B = x.shape[0]
    h = jnp.tanh(jnp.dot(x, params["head_w"].T,
                         precision=jax.lax.Precision.HIGHEST)
                 + params["head_b"][None, :])
    xn = h.reshape(B, dim0, num0)
    outs = [xn]
    for body_plan, body_params in zip(plan["bodies"], params["bodies"]):
        for ly_plan, ly in zip(body_plan["layers"], body_params):
            xn = ref_conv_bn_act(xn, ly["w"], ly["b"], ly["gamma"], ly["beta"],
                                 ly_plan["act"])
        Bc, C, N = xn.shape
        d = C // ratio_shape
        xn = (xn.reshape(Bc, ratio_shape, d, N)
                .transpose(0, 2, 1, 3)
                .reshape(Bc, d, ratio_shape * N))
        outs.append(xn)
    return outs


# ------------------------------------ main ------------------------------------

if __name__ == "__main__":
    cfg = dict(input_dim=32, head_shape=(1, 64), ratio=2, ratio_shape=4,
               depth=3, kernel_size=3)
    batch = 2

    plan = build_plan(cfg)

    key = jax.random.PRNGKey(0)
    key, kp, kx = jax.random.split(key, 3)
    params = build_params(kp, plan)
    x = jax.random.normal(kx, (batch, cfg["input_dim"]), jnp.float32)

    flat_params = prepare_kernel_params(params)   # one-time layout pass
    fwd = make_forward(plan, batch)

    outs = jax.block_until_ready(fwd(x, flat_params))

    refs = ref_forward(x, params, plan)
    # b,32 -> (b,64,1) -> (b,32,4) -> (b,16,16) -> (b,8,32)
    expected_shapes = [(batch, 64, 1), (batch, 32, 4), (batch, 16, 16), (batch, 8, 32)]
    assert len(outs) == len(refs) == len(expected_shapes)
    for o, r, es in zip(outs, refs, expected_shapes):
        assert o.shape == es and r.shape == es, (o.shape, r.shape, es)
        assert bool(jnp.all(jnp.isfinite(o)))
        assert bool(jnp.allclose(o, r, atol=5e-3, rtol=5e-3)), \
            float(jnp.max(jnp.abs(o - r)))

    print("KERNEL_OK")
</pallas_src>

<mosaic_0001>
module attributes {stable_mosaic.version = 11 : i64} {
  func.func @kernel(%arg0: memref<2x32xf32, #tpu.memory_space<vmem>>, %arg1: memref<32x64xf32, #tpu.memory_space<vmem>>, %arg2: memref<1x64xf32, #tpu.memory_space<vmem>>, %arg3: memref<64x64xf32, #tpu.memory_space<vmem>>, %arg4: memref<1x64xf32, #tpu.memory_space<vmem>>, %arg5: memref<1x64xf32, #tpu.memory_space<vmem>>, %arg6: memref<1x64xf32, #tpu.memory_space<vmem>>, %arg7: memref<64x128xf32, #tpu.memory_space<vmem>>, %arg8: memref<1x128xf32, #tpu.memory_space<vmem>>, %arg9: memref<1x128xf32, #tpu.memory_space<vmem>>, %arg10: memref<1x128xf32, #tpu.memory_space<vmem>>, %arg11: memref<128x128xf32, #tpu.memory_space<vmem>>, %arg12: memref<1x128xf32, #tpu.memory_space<vmem>>, %arg13: memref<1x128xf32, #tpu.memory_space<vmem>>, %arg14: memref<1x128xf32, #tpu.memory_space<vmem>>, %arg15: memref<128x128xf32, #tpu.memory_space<vmem>>, %arg16: memref<1x128xf32, #tpu.memory_space<vmem>>, %arg17: memref<1x128xf32, #tpu.memory_space<vmem>>, %arg18: memref<1x128xf32, #tpu.memory_space<vmem>>, %arg19: memref<32x32xf32, #tpu.memory_space<vmem>>, %arg20: memref<1x32xf32, #tpu.memory_space<vmem>>, %arg21: memref<1x32xf32, #tpu.memory_space<vmem>>, %arg22: memref<1x32xf32, #tpu.memory_space<vmem>>, %arg23: memref<32x64xf32, #tpu.memory_space<vmem>>, %arg24: memref<1x64xf32, #tpu.memory_space<vmem>>, %arg25: memref<1x64xf32, #tpu.memory_space<vmem>>, %arg26: memref<1x64xf32, #tpu.memory_space<vmem>>, %arg27: memref<64x64xf32, #tpu.memory_space<vmem>>, %arg28: memref<1x64xf32, #tpu.memory_space<vmem>>, %arg29: memref<1x64xf32, #tpu.memory_space<vmem>>, %arg30: memref<1x64xf32, #tpu.memory_space<vmem>>, %arg31: memref<64x64xf32, #tpu.memory_space<vmem>>, %arg32: memref<1x64xf32, #tpu.memory_space<vmem>>, %arg33: memref<1x64xf32, #tpu.memory_space<vmem>>, %arg34: memref<1x64xf32, #tpu.memory_space<vmem>>, %arg35: memref<48x16xf32, #tpu.memory_space<vmem>>, %arg36: memref<1x16xf32, #tpu.memory_space<vmem>>, %arg37: memref<1x16xf32, #tpu.memory_space<vmem>>, %arg38: memref<1x16xf32, #tpu.memory_space<vmem>>, %arg39: memref<48x32xf32, #tpu.memory_space<vmem>>, %arg40: memref<1x32xf32, #tpu.memory_space<vmem>>, %arg41: memref<1x32xf32, #tpu.memory_space<vmem>>, %arg42: memref<1x32xf32, #tpu.memory_space<vmem>>, %arg43: memref<96x32xf32, #tpu.memory_space<vmem>>, %arg44: memref<1x32xf32, #tpu.memory_space<vmem>>, %arg45: memref<1x32xf32, #tpu.memory_space<vmem>>, %arg46: memref<1x32xf32, #tpu.memory_space<vmem>>, %arg47: memref<96x32xf32, #tpu.memory_space<vmem>>, %arg48: memref<1x32xf32, #tpu.memory_space<vmem>>, %arg49: memref<1x32xf32, #tpu.memory_space<vmem>>, %arg50: memref<1x32xf32, #tpu.memory_space<vmem>>, %arg51: memref<2x64xf32, #tpu.memory_space<vmem>>, %arg52: memref<2x128xf32, #tpu.memory_space<vmem>>, %arg53: memref<8x64xf32, #tpu.memory_space<vmem>>, %arg54: memref<16x32xf32, #tpu.memory_space<vmem>>) attributes {dimension_semantics = [], scalar_prefetch = 0 : i64, scratch_operands = 0 : i64, tpu.core_type = #tpu.core_type<tc>} {
    %c0 = arith.constant 0 : index
    %c0_0 = arith.constant 0 : index
    %0 = vector.load %arg0[%c0, %c0_0] : memref<2x32xf32, #tpu.memory_space<vmem>>, vector<2x32xf32>
    %c0_1 = arith.constant 0 : index
    %c0_2 = arith.constant 0 : index
    %1 = vector.load %arg1[%c0_1, %c0_2] : memref<32x64xf32, #tpu.memory_space<vmem>>, vector<32x64xf32>
    %cst = arith.constant dense<0.000000e+00> : vector<2x64xf32>
    %2 = tpu.matmul %0, %1, %cst {dimension_numbers = #tpu.dot_dimension_numbers<[1], [0], [0], [1], [0, 0, 1, 1], [], []>, precision = #tpu.contract_precision<fp32>} : vector<2x32xf32>, vector<32x64xf32>, vector<2x64xf32> -> vector<2x64xf32>
    %c0_3 = arith.constant 0 : index
    %c0_4 = arith.constant 0 : index
    %3 = vector.load %arg2[%c0_3, %c0_4] : memref<1x64xf32, #tpu.memory_space<vmem>>, vector<1x64xf32>
    %4 = vector.broadcast %3 : vector<1x64xf32> to vector<2x64xf32>
    %5 = arith.addf %2, %4 : vector<2x64xf32>
    %6 = math.tanh %5 : vector<2x64xf32>
    %c0_5 = arith.constant 0 : index
    %c0_6 = arith.constant 0 : index
    %7 = vector.load %arg51[%c0_5, %c0_6] : memref<2x64xf32, #tpu.memory_space<vmem>>, vector<2x64xf32>
    tpu.vector_store %arg51[%c0_5, %c0_6], %6 {strides = array<i32>} : memref<2x64xf32, #tpu.memory_space<vmem>>, vector<2x64xf32>,
    %c0_7 = arith.constant 0 : index
    %c0_8 = arith.constant 0 : index
    %8 = vector.load %arg3[%c0_7, %c0_8] : memref<64x64xf32, #tpu.memory_space<vmem>>, vector<64x64xf32>
    %c0_9 = arith.constant 0 : index
    %c0_10 = arith.constant 0 : index
    %9 = vector.load %arg4[%c0_9, %c0_10] : memref<1x64xf32, #tpu.memory_space<vmem>>, vector<1x64xf32>
    %c0_11 = arith.constant 0 : index
    %c0_12 = arith.constant 0 : index
    %10 = vector.load %arg5[%c0_11, %c0_12] : memref<1x64xf32, #tpu.memory_space<vmem>>, vector<1x64xf32>
    %c0_13 = arith.constant 0 : index
    %c0_14 = arith.constant 0 : index
    %11 = vector.load %arg6[%c0_13, %c0_14] : memref<1x64xf32, #tpu.memory_space<vmem>>, vector<1x64xf32>
    %cst_15 = arith.constant dense<0.000000e+00> : vector<2x64xf32>
    %12 = tpu.matmul %6, %8, %cst_15 {dimension_numbers = #tpu.dot_dimension_numbers<[1], [0], [0], [1], [0, 0, 1, 1], [], []>, precision = #tpu.contract_precision<fp32>} : vector<2x64xf32>, vector<64x64xf32>, vector<2x64xf32> -> vector<2x64xf32>
    %13 = vector.broadcast %9 : vector<1x64xf32> to vector<2x64xf32>
    %14 = arith.addf %12, %13 : vector<2x64xf32>
    %cst_16 = arith.constant dense<0.000000e+00> : vector<64xf32>
    %15 = vector.multi_reduction <add>, %14, %cst_16 [0] : vector<2x64xf32> to vector<64xf32>
    %16 = vector.shape_cast %15 : vector<64xf32> to vector<1x64xf32>
    %cst_17 = arith.constant 2.000000e+00 : f32
    %17 = vector.broadcast %cst_17 : f32 to vector<1x64xf32>
    %18 = arith.divf %16, %17 : vector<1x64xf32>
    %19 = vector.broadcast %18 : vector<1x64xf32> to vector<2x64xf32>
    %20 = arith.subf %14, %19 : vector<2x64xf32>
    %21 = arith.mulf %20, %20 : vector<2x64xf32>
    %cst_18 = arith.constant dense<0.000000e+00> : vector<64xf32>
    %22 = vector.multi_reduction <add>, %21, %cst_18 [0] : vector<2x64xf32> to vector<64xf32>
    %23 = vector.shape_cast %22 : vector<64xf32> to vector<1x64xf32>
    %cst_19 = arith.constant 2.000000e+00 : f32
    %24 = vector.broadcast %cst_19 : f32 to vector<1x64xf32>
    %25 = arith.divf %23, %24 : vector<1x64xf32>
    %26 = vector.broadcast %18 : vector<1x64xf32> to vector<2x64xf32>
    %27 = arith.subf %14, %26 : vector<2x64xf32>
    %cst_20 = arith.constant 9.99999974E-6 : f32
    %28 = vector.broadcast %cst_20 : f32 to vector<1x64xf32>
    %29 = arith.addf %25, %28 : vector<1x64xf32>
    %30 = math.rsqrt %29 : vector<1x64xf32>
    %31 = vector.broadcast %30 : vector<1x64xf32> to vector<2x64xf32>
    %32 = arith.mulf %27, %31 : vector<2x64xf32>
    %33 = vector.broadcast %10 : vector<1x64xf32> to vector<2x64xf32>
    %34 = arith.mulf %32, %33 : vector<2x64xf32>
    %35 = vector.broadcast %11 : vector<1x64xf32> to vector<2x64xf32>
    %36 = arith.addf %34, %35 : vector<2x64xf32>
    %cst_21 = arith.constant 0.000000e+00 : f32
    %37 = vector.broadcast %cst_21 : f32 to vector<2x64xf32>
    %38 = arith.cmpf oge, %36, %37 : vector<2x64xf32>
    %cst_22 = arith.constant 0.00999999977 : f32
    %39 = vector.broadcast %cst_22 : f32 to vector<2x64xf32>
    %40 = arith.mulf %39, %36 : vector<2x64xf32>
    %41 = arith.select %38, %36, %40 : vector<2x64xi1>, vector<2x64xf32>
    %c0_23 = arith.constant 0 : index
    %c0_24 = arith.constant 0 : index
    %42 = vector.load %arg7[%c0_23, %c0_24] : memref<64x128xf32, #tpu.memory_space<vmem>>, vector<64x128xf32>
    %c0_25 = arith.constant 0 : index
    %c0_26 = arith.constant 0 : index
    %43 = vector.load %arg8[%c0_25, %c0_26] : memref<1x128xf32, #tpu.memory_space<vmem>>, vector<1x128xf32>
    %c0_27 = arith.constant 0 : index
    %c0_28 = arith.constant 0 : index
    %44 = vector.load %arg9[%c0_27, %c0_28] : memref<1x128xf32, #tpu.memory_space<vmem>>, vector<1x128xf32>
    %c0_29 = arith.constant 0 : index
    %c0_30 = arith.constant 0 : index
    %45 = vector.load %arg10[%c0_29, %c0_30] : memref<1x128xf32, #tpu.memory_space<vmem>>, vector<1x128xf32>
    %cst_31 = arith.constant dense<0.000000e+00> : vector<2x128xf32>
    %46 = tpu.matmul %41, %42, %cst_31 {dimension_numbers = #tpu.dot_dimension_numbers<[1], [0], [0], [1], [0, 0, 1, 1], [], []>, precision = #tpu.contract_precision<fp32>} : vector<2x64xf32>, vector<64x128xf32>, vector<2x128xf32> -> vector<2x128xf32>
    %47 = vector.broadcast %43 : vector<1x128xf32> to vector<2x128xf32>
    %48 = arith.addf %46, %47 : vector<2x128xf32>
    %cst_32 = arith.constant dense<0.000000e+00> : vector<128xf32>
    %49 = vector.multi_reduction <add>, %48, %cst_32 [0] : vector<2x128xf32> to vector<128xf32>
    %50 = vector.shape_cast %49 : vector<128xf32> to vector<1x128xf32>
    %cst_33 = arith.constant 2.000000e+00 : f32
    %51 = vector.broadcast %cst_33 : f32 to vector<1x128xf32>
    %52 = arith.divf %50, %51 : vector<1x128xf32>
    %53 = vector.broadcast %52 : vector<1x128xf32> to vector<2x128xf32>
    %54 = arith.subf %48, %53 : vector<2x128xf32>
    %55 = arith.mulf %54, %54 : vector<2x128xf32>
    %cst_34 = arith.constant dense<0.000000e+00> : vector<128xf32>
    %56 = vector.multi_reduction <add>, %55, %cst_34 [0] : vector<2x128xf32> to vector<128xf32>
    %57 = vector.shape_cast %56 : vector<128xf32> to vector<1x128xf32>
    %cst_35 = arith.constant 2.000000e+00 : f32
    %58 = vector.broadcast %cst_35 : f32 to vector<1x128xf32>
    %59 = arith.divf %57, %58 : vector<1x128xf32>
    %60 = vector.broadcast %52 : vector<1x128xf32> to vector<2x128xf32>
    %61 = arith.subf %48, %60 : vector<2x128xf32>
    %cst_36 = arith.constant 9.99999974E-6 : f32
    %62 = vector.broadcast %cst_36 : f32 to vector<1x128xf32>
    %63 = arith.addf %59, %62 : vector<1x128xf32>
    %64 = math.rsqrt %63 : vector<1x128xf32>
    %65 = vector.broadcast %64 : vector<1x128xf32> to vector<2x128xf32>
    %66 = arith.mulf %61, %65 : vector<2x128xf32>
    %67 = vector.broadcast %44 : vector<1x128xf32> to vector<2x128xf32>
    %68 = arith.mulf %66, %67 : vector<2x128xf32>
    %69 = vector.broadcast %45 : vector<1x128xf32> to vector<2x128xf32>
    %70 = arith.addf %68, %69 : vector<2x128xf32>
    %cst_37 = arith.constant 0.000000e+00 : f32
    %71 = vector.broadcast %cst_37 : f32 to vector<2x128xf32>
    %72 = arith.cmpf oge, %70, %71 : vector<2x128xf32>
    %cst_38 = arith.constant 0.00999999977 : f32
    %73 = vector.broadcast %cst_38 : f32 to vector<2x128xf32>
    %74 = arith.mulf %73, %70 : vector<2x128xf32>
    %75 = arith.select %72, %70, %74 : vector<2x128xi1>, vector<2x128xf32>
    %c0_39 = arith.constant 0 : index
    %c0_40 = arith.constant 0 : index
    %76 = vector.load %arg11[%c0_39, %c0_40] : memref<128x128xf32, #tpu.memory_space<vmem>>, vector<128x128xf32>
    %c0_41 = arith.constant 0 : index
    %c0_42 = arith.constant 0 : index
    %77 = vector.load %arg12[%c0_41, %c0_42] : memref<1x128xf32, #tpu.memory_space<vmem>>, vector<1x128xf32>
    %c0_43 = arith.constant 0 : index
    %c0_44 = arith.constant 0 : index
    %78 = vector.load %arg13[%c0_43, %c0_44] : memref<1x128xf32, #tpu.memory_space<vmem>>, vector<1x128xf32>
    %c0_45 = arith.constant 0 : index
    %c0_46 = arith.constant 0 : index
    %79 = vector.load %arg14[%c0_45, %c0_46] : memref<1x128xf32, #tpu.memory_space<vmem>>, vector<1x128xf32>
    %cst_47 = arith.constant dense<0.000000e+00> : vector<2x128xf32>
    %80 = tpu.matmul %75, %76, %cst_47 {dimension_numbers = #tpu.dot_dimension_numbers<[1], [0], [0], [1], [0, 0, 1, 1], [], []>, precision = #tpu.contract_precision<fp32>} : vector<2x128xf32>, vector<128x128xf32>, vector<2x128xf32> -> vector<2x128xf32>
    %81 = vector.broadcast %77 : vector<1x128xf32> to vector<2x128xf32>
    %82 = arith.addf %80, %81 : vector<2x128xf32>
    %cst_48 = arith.constant dense<0.000000e+00> : vector<128xf32>
    %83 = vector.multi_reduction <add>, %82, %cst_48 [0] : vector<2x128xf32> to vector<128xf32>
    %84 = vector.shape_cast %83 : vector<128xf32> to vector<1x128xf32>
    %cst_49 = arith.constant 2.000000e+00 : f32
    %85 = vector.broadcast %cst_49 : f32 to vector<1x128xf32>
    %86 = arith.divf %84, %85 : vector<1x128xf32>
    %87 = vector.broadcast %86 : vector<1x128xf32> to vector<2x128xf32>
    %88 = arith.subf %82, %87 : vector<2x128xf32>
    %89 = arith.mulf %88, %88 : vector<2x128xf32>
    %cst_50 = arith.constant dense<0.000000e+00> : vector<128xf32>
    %90 = vector.multi_reduction <add>, %89, %cst_50 [0] : vector<2x128xf32> to vector<128xf32>
    %91 = vector.shape_cast %90 : vector<128xf32> to vector<1x128xf32>
    %cst_51 = arith.constant 2.000000e+00 : f32
    %92 = vector.broadcast %cst_51 : f32 to vector<1x128xf32>
    %93 = arith.divf %91, %92 : vector<1x128xf32>
    %94 = vector.broadcast %86 : vector<1x128xf32> to vector<2x128xf32>
    %95 = arith.subf %82, %94 : vector<2x128xf32>
    %cst_52 = arith.constant 9.99999974E-6 : f32
    %96 = vector.broadcast %cst_52 : f32 to vector<1x128xf32>
    %97 = arith.addf %93, %96 : vector<1x128xf32>
    %98 = math.rsqrt %97 : vector<1x128xf32>
    %99 = vector.broadcast %98 : vector<1x128xf32> to vector<2x128xf32>
    %100 = arith.mulf %95, %99 : vector<2x128xf32>
    %101 = vector.broadcast %78 : vector<1x128xf32> to vector<2x128xf32>
    %102 = arith.mulf %100, %101 : vector<2x128xf32>
    %103 = vector.broadcast %79 : vector<1x128xf32> to vector<2x128xf32>
    %104 = arith.addf %102, %103 : vector<2x128xf32>
    %cst_53 = arith.constant 0.000000e+00 : f32
    %105 = vector.broadcast %cst_53 : f32 to vector<2x128xf32>
    %106 = arith.cmpf oge, %104, %105 : vector<2x128xf32>
    %cst_54 = arith.constant 0.00999999977 : f32
    %107 = vector.broadcast %cst_54 : f32 to vector<2x128xf32>
    %108 = arith.mulf %107, %104 : vector<2x128xf32>
    %109 = arith.select %106, %104, %108 : vector<2x128xi1>, vector<2x128xf32>
    %c0_55 = arith.constant 0 : index
    %c0_56 = arith.constant 0 : index
    %110 = vector.load %arg15[%c0_55, %c0_56] : memref<128x128xf32, #tpu.memory_space<vmem>>, vector<128x128xf32>
    %c0_57 = arith.constant 0 : index
    %c0_58 = arith.constant 0 : index
    %111 = vector.load %arg16[%c0_57, %c0_58] : memref<1x128xf32, #tpu.memory_space<vmem>>, vector<1x128xf32>
    %c0_59 = arith.constant 0 : index
    %c0_60 = arith.constant 0 : index
    %112 = vector.load %arg17[%c0_59, %c0_60] : memref<1x128xf32, #tpu.memory_space<vmem>>, vector<1x128xf32>
    %c0_61 = arith.constant 0 : index
    %c0_62 = arith.constant 0 : index
    %113 = vector.load %arg18[%c0_61, %c0_62] : memref<1x128xf32, #tpu.memory_space<vmem>>, vector<1x128xf32>
    %cst_63 = arith.constant dense<0.000000e+00> : vector<2x128xf32>
    %114 = tpu.matmul %109, %110, %cst_63 {dimension_numbers = #tpu.dot_dimension_numbers<[1], [0], [0], [1], [0, 0, 1, 1], [], []>, precision = #tpu.contract_precision<fp32>} : vector<2x128xf32>, vector<128x128xf32>, vector<2x128xf32> -> vector<2x128xf32>
    %115 = vector.broadcast %111 : vector<1x128xf32> to vector<2x128xf32>
    %116 = arith.addf %114, %115 : vector<2x128xf32>
    %cst_64 = arith.constant dense<0.000000e+00> : vector<128xf32>
    %117 = vector.multi_reduction <add>, %116, %cst_64 [0] : vector<2x128xf32> to vector<128xf32>
    %118 = vector.shape_cast %117 : vector<128xf32> to vector<1x128xf32>
    %cst_65 = arith.constant 2.000000e+00 : f32
    %119 = vector.broadcast %cst_65 : f32 to vector<1x128xf32>
    %120 = arith.divf %118, %119 : vector<1x128xf32>
    %121 = vector.broadcast %120 : vector<1x128xf32> to vector<2x128xf32>
    %122 = arith.subf %116, %121 : vector<2x128xf32>
    %123 = arith.mulf %122, %122 : vector<2x128xf32>
    %cst_66 = arith.constant dense<0.000000e+00> : vector<128xf32>
    %124 = vector.multi_reduction <add>, %123, %cst_66 [0] : vector<2x128xf32> to vector<128xf32>
    %125 = vector.shape_cast %124 : vector<128xf32> to vector<1x128xf32>
    %cst_67 = arith.constant 2.000000e+00 : f32
    %126 = vector.broadcast %cst_67 : f32 to vector<1x128xf32>
    %127 = arith.divf %125, %126 : vector<1x128xf32>
    %128 = vector.broadcast %120 : vector<1x128xf32> to vector<2x128xf32>
    %129 = arith.subf %116, %128 : vector<2x128xf32>
    %cst_68 = arith.constant 9.99999974E-6 : f32
    %130 = vector.broadcast %cst_68 : f32 to vector<1x128xf32>
    %131 = arith.addf %127, %130 : vector<1x128xf32>
    %132 = math.rsqrt %131 : vector<1x128xf32>
    %133 = vector.broadcast %132 : vector<1x128xf32> to vector<2x128xf32>
    %134 = arith.mulf %129, %133 : vector<2x128xf32>
    %135 = vector.broadcast %112 : vector<1x128xf32> to vector<2x128xf32>
    %136 = arith.mulf %134, %135 : vector<2x128xf32>
    %137 = vector.broadcast %113 : vector<1x128xf32> to vector<2x128xf32>
    %138 = arith.addf %136, %137 : vector<2x128xf32>
    %139 = math.tanh %138 : vector<2x128xf32>
    %c0_69 = arith.constant 0 : index
    %c0_70 = arith.constant 0 : index
    %140 = vector.load %arg52[%c0_69, %c0_70] : memref<2x128xf32, #tpu.memory_space<vmem>>, vector<2x128xf32>
    tpu.vector_store %arg52[%c0_69, %c0_70], %139 {strides = array<i32>} : memref<2x128xf32, #tpu.memory_space<vmem>>, vector<2x128xf32>,
    %141 = vector.extract_strided_slice %139 {offsets = [0, 0], sizes = [1, 32], strides = [1, 1]} : vector<2x128xf32> to vector<1x32xf32>
    %142 = vector.extract_strided_slice %139 {offsets = [0, 32], sizes = [1, 32], strides = [1, 1]} : vector<2x128xf32> to vector<1x32xf32>
    %143 = vector.extract_strided_slice %139 {offsets = [0, 64], sizes = [1, 32], strides = [1, 1]} : vector<2x128xf32> to vector<1x32xf32>
    %144 = vector.extract_strided_slice %139 {offsets = [0, 96], sizes = [1, 32], strides = [1, 1]} : vector<2x128xf32> to vector<1x32xf32>
    %145 = vector.extract_strided_slice %139 {offsets = [1, 0], sizes = [1, 32], strides = [1, 1]} : vector<2x128xf32> to vector<1x32xf32>
    %146 = vector.extract_strided_slice %139 {offsets = [1, 32], sizes = [1, 32], strides = [1, 1]} : vector<2x128xf32> to vector<1x32xf32>
    %147 = vector.extract_strided_slice %139 {offsets = [1, 64], sizes = [1, 32], strides = [1, 1]} : vector<2x128xf32> to vector<1x32xf32>
    %148 = vector.extract_strided_slice %139 {offsets = [1, 96], sizes = [1, 32], strides = [1, 1]} : vector<2x128xf32> to vector<1x32xf32>
    %149 = tpu.concatenate %141, %142, %143, %144, %145, %146, %147, %148 in 0 : vector<1x32xf32>, vector<1x32xf32>, vector<1x32xf32>, vector<1x32xf32>, vector<1x32xf32>, vector<1x32xf32>, vector<1x32xf32>, vector<1x32xf32> -> vector<8x32xf32>
    %c0_71 = arith.constant 0 : index
    %c0_72 = arith.constant 0 : index
    %150 = vector.load %arg19[%c0_71, %c0_72] : memref<32x32xf32, #tpu.memory_space<vmem>>, vector<32x32xf32>
    %c0_73 = arith.constant 0 : index
    %c0_74 = arith.constant 0 : index
    %151 = vector.load %arg20[%c0_73, %c0_74] : memref<1x32xf32, #tpu.memory_space<vmem>>, vector<1x32xf32>
    %c0_75 = arith.constant 0 : index
    %c0_76 = arith.constant 0 : index
    %152 = vector.load %arg21[%c0_75, %c0_76] : memref<1x32xf32, #tpu.memory_space<vmem>>, vector<1x32xf32>
    %c0_77 = arith.constant 0 : index
    %c0_78 = arith.constant 0 : index
    %153 = vector.load %arg22[%c0_77, %c0_78] : memref<1x32xf32, #tpu.memory_space<vmem>>, vector<1x32xf32>
    %cst_79 = arith.constant dense<0.000000e+00> : vector<8x32xf32>
    %154 = tpu.matmul %149, %150, %cst_79 {dimension_numbers = #tpu.dot_dimension_numbers<[1], [0], [0], [1], [0, 0, 1, 1], [], []>, precision = #tpu.contract_precision<fp32>} : vector<8x32xf32>, vector<32x32xf32>, vector<8x32xf32> -> vector<8x32xf32>
    %155 = vector.broadcast %151 : vector<1x32xf32> to vector<8x32xf32>
    %156 = arith.addf %154, %155 : vector<8x32xf32>
    %cst_80 = arith.constant dense<0.000000e+00> : vector<32xf32>
    %157 = vector.multi_reduction <add>, %156, %cst_80 [0] : vector<8x32xf32> to vector<32xf32>
    %158 = vector.shape_cast %157 : vector<32xf32> to vector<1x32xf32>
    %cst_81 = arith.constant 8.000000e+00 : f32
    %159 = vector.broadcast %cst_81 : f32 to vector<1x32xf32>
    %160 = arith.divf %158, %159 : vector<1x32xf32>
    %161 = vector.broadcast %160 : vector<1x32xf32> to vector<8x32xf32>
    %162 = arith.subf %156, %161 : vector<8x32xf32>
    %163 = arith.mulf %162, %162 : vector<8x32xf32>
    %cst_82 = arith.constant dense<0.000000e+00> : vector<32xf32>
    %164 = vector.multi_reduction <add>, %163, %cst_82 [0] : vector<8x32xf32> to vector<32xf32>
    %165 = vector.shape_cast %164 : vector<32xf32> to vector<1x32xf32>
    %cst_83 = arith.constant 8.000000e+00 : f32
    %166 = vector.broadcast %cst_83 : f32 to vector<1x32xf32>
    %167 = arith.divf %165, %166 : vector<1x32xf32>
    %168 = vector.broadcast %160 : vector<1x32xf32> to vector<8x32xf32>
    %169 = arith.subf %156, %168 : vector<8x32xf32>
    %cst_84 = arith.constant 9.99999974E-6 : f32
    %170 = vector.broadcast %cst_84 : f32 to vector<1x32xf32>
    %171 = arith.addf %167, %170 : vector<1x32xf32>
    %172 = math.rsqrt %171 : vector<1x32xf32>
    %173 = vector.broadcast %172 : vector<1x32xf32> to vector<8x32xf32>
    %174 = arith.mulf %169, %173 : vector<8x32xf32>
    %175 = vector.broadcast %152 : vector<1x32xf32> to vector<8x32xf32>
    %176 = arith.mulf %174, %175 : vector<8x32xf32>
    %177 = vector.broadcast %153 : vector<1x32xf32> to vector<8x32xf32>
    %178 = arith.addf %176, %177 : vector<8x32xf32>
    %cst_85 = arith.constant 0.000000e+00 : f32
    %179 = vector.broadcast %cst_85 : f32 to vector<8x32xf32>
    %180 = arith.cmpf oge, %178, %179 : vector<8x32xf32>
    %cst_86 = arith.constant 0.00999999977 : f32
    %181 = vector.broadcast %cst_86 : f32 to vector<8x32xf32>
    %182 = arith.mulf %181, %178 : vector<8x32xf32>
    %183 = arith.select %180, %178, %182 : vector<8x32xi1>, vector<8x32xf32>
    %c0_87 = arith.constant 0 : index
    %c0_88 = arith.constant 0 : index
    %184 = vector.load %arg23[%c0_87, %c0_88] : memref<32x64xf32, #tpu.memory_space<vmem>>, vector<32x64xf32>
    %c0_89 = arith.constant 0 : index
    %c0_90 = arith.constant 0 : index
    %185 = vector.load %arg24[%c0_89, %c0_90] : memref<1x64xf32, #tpu.memory_space<vmem>>, vector<1x64xf32>
    %c0_91 = arith.constant 0 : index
    %c0_92 = arith.constant 0 : index
    %186 = vector.load %arg25[%c0_91, %c0_92] : memref<1x64xf32, #tpu.memory_space<vmem>>, vector<1x64xf32>
    %c0_93 = arith.constant 0 : index
    %c0_94 = arith.constant 0 : index
    %187 = vector.load %arg26[%c0_93, %c0_94] : memref<1x64xf32, #tpu.memory_space<vmem>>, vector<1x64xf32>
    %cst_95 = arith.constant dense<0.000000e+00> : vector<8x64xf32>
    %188 = tpu.matmul %183, %184, %cst_95 {dimension_numbers = #tpu.dot_dimension_numbers<[1], [0], [0], [1], [0, 0, 1, 1], [], []>, precision = #tpu.contract_precision<fp32>} : vector<8x32xf32>, vector<32x64xf32>, vector<8x64xf32> -> vector<8x64xf32>
    %189 = vector.broadcast %185 : vector<1x64xf32> to vector<8x64xf32>
    %190 = arith.addf %188, %189 : vector<8x64xf32>
    %cst_96 = arith.constant dense<0.000000e+00> : vector<64xf32>
    %191 = vector.multi_reduction <add>, %190, %cst_96 [0] : vector<8x64xf32> to vector<64xf32>
    %192 = vector.shape_cast %191 : vector<64xf32> to vector<1x64xf32>
    %cst_97 = arith.constant 8.000000e+00 : f32
    %193 = vector.broadcast %cst_97 : f32 to vector<1x64xf32>
    %194 = arith.divf %192, %193 : vector<1x64xf32>
    %195 = vector.broadcast %194 : vector<1x64xf32> to vector<8x64xf32>
    %196 = arith.subf %190, %195 : vector<8x64xf32>
    %197 = arith.mulf %196, %196 : vector<8x64xf32>
    %cst_98 = arith.constant dense<0.000000e+00> : vector<64xf32>
    %198 = vector.multi_reduction <add>, %197, %cst_98 [0] : vector<8x64xf32> to vector<64xf32>
    %199 = vector.shape_cast %198 : vector<64xf32> to vector<1x64xf32>
    %cst_99 = arith.constant 8.000000e+00 : f32
    %200 = vector.broadcast %cst_99 : f32 to vector<1x64xf32>
    %201 = arith.divf %199, %200 : vector<1x64xf32>
    %202 = vector.broadcast %194 : vector<1x64xf32> to vector<8x64xf32>
    %203 = arith.subf %190, %202 : vector<8x64xf32>
    %cst_100 = arith.constant 9.99999974E-6 : f32
    %204 = vector.broadcast %cst_100 : f32 to vector<1x64xf32>
    %205 = arith.addf %201, %204 : vector<1x64xf32>
    %206 = math.rsqrt %205 : vector<1x64xf32>
    %207 = vector.broadcast %206 : vector<1x64xf32> to vector<8x64xf32>
    %208 = arith.mulf %203, %207 : vector<8x64xf32>
    %209 = vector.broadcast %186 : vector<1x64xf32> to vector<8x64xf32>
    %210 = arith.mulf %208, %209 : vector<8x64xf32>
    %211 = vector.broadcast %187 : vector<1x64xf32> to vector<8x64xf32>
    %212 = arith.addf %210, %211 : vector<8x64xf32>
    %cst_101 = arith.constant 0.000000e+00 : f32
    %213 = vector.broadcast %cst_101 : f32 to vector<8x64xf32>
    %214 = arith.cmpf oge, %212, %213 : vector<8x64xf32>
    %cst_102 = arith.constant 0.00999999977 : f32
    %215 = vector.broadcast %cst_102 : f32 to vector<8x64xf32>
    %216 = arith.mulf %215, %212 : vector<8x64xf32>
    %217 = arith.select %214, %212, %216 : vector<8x64xi1>, vector<8x64xf32>
    %c0_103 = arith.constant 0 : index
    %c0_104 = arith.constant 0 : index
    %218 = vector.load %arg27[%c0_103, %c0_104] : memref<64x64xf32, #tpu.memory_space<vmem>>, vector<64x64xf32>
    %c0_105 = arith.constant 0 : index
    %c0_106 = arith.constant 0 : index
    %219 = vector.load %arg28[%c0_105, %c0_106] : memref<1x64xf32, #tpu.memory_space<vmem>>, vector<1x64xf32>
    %c0_107 = arith.constant 0 : index
    %c0_108 = arith.constant 0 : index
    %220 = vector.load %arg29[%c0_107, %c0_108] : memref<1x64xf32, #tpu.memory_space<vmem>>, vector<1x64xf32>
    %c0_109 = arith.constant 0 : index
    %c0_110 = arith.constant 0 : index
    %221 = vector.load %arg30[%c0_109, %c0_110] : memref<1x64xf32, #tpu.memory_space<vmem>>, vector<1x64xf32>
    %cst_111 = arith.constant dense<0.000000e+00> : vector<8x64xf32>
    %222 = tpu.matmul %217, %218, %cst_111 {dimension_numbers = #tpu.dot_dimension_numbers<[1], [0], [0], [1], [0, 0, 1, 1], [], []>, precision = #tpu.contract_precision<fp32>} : vector<8x64xf32>, vector<64x64xf32>, vector<8x64xf32> -> vector<8x64xf32>
    %223 = vector.broadcast %219 : vector<1x64xf32> to vector<8x64xf32>
    %224 = arith.addf %222, %223 : vector<8x64xf32>
    %cst_112 = arith.constant dense<0.000000e+00> : vector<64xf32>
    %225 = vector.multi_reduction <add>, %224, %cst_112 [0] : vector<8x64xf32> to vector<64xf32>
    %226 = vector.shape_cast %225 : vector<64xf32> to vector<1x64xf32>
    %cst_113 = arith.constant 8.000000e+00 : f32
    %227 = vector.broadcast %cst_113 : f32 to vector<1x64xf32>
    %228 = arith.divf %226, %227 : vector<1x64xf32>
    %229 = vector.broadcast %228 : vector<1x64xf32> to vector<8x64xf32>
    %230 = arith.subf %224, %229 : vector<8x64xf32>
    %231 = arith.mulf %230, %230 : vector<8x64xf32>
    %cst_114 = arith.constant dense<0.000000e+00> : vector<64xf32>
    %232 = vector.multi_reduction <add>, %231, %cst_114 [0] : vector<8x64xf32> to vector<64xf32>
    %233 = vector.shape_cast %232 : vector<64xf32> to vector<1x64xf32>
    %cst_115 = arith.constant 8.000000e+00 : f32
    %234 = vector.broadcast %cst_115 : f32 to vector<1x64xf32>
    %235 = arith.divf %233, %234 : vector<1x64xf32>
    %236 = vector.broadcast %228 : vector<1x64xf32> to vector<8x64xf32>
    %237 = arith.subf %224, %236 : vector<8x64xf32>
    %cst_116 = arith.constant 9.99999974E-6 : f32
    %238 = vector.broadcast %cst_116 : f32 to vector<1x64xf32>
    %239 = arith.addf %235, %238 : vector<1x64xf32>
    %240 = math.rsqrt %239 : vector<1x64xf32>
    %241 = vector.broadcast %240 : vector<1x64xf32> to vector<8x64xf32>
    %242 = arith.mulf %237, %241 : vector<8x64xf32>
    %243 = vector.broadcast %220 : vector<1x64xf32> to vector<8x64xf32>
    %244 = arith.mulf %242, %243 : vector<8x64xf32>
    %245 = vector.broadcast %221 : vector<1x64xf32> to vector<8x64xf32>
    %246 = arith.addf %244, %245 : vector<8x64xf32>
    %cst_117 = arith.constant 0.000000e+00 : f32
    %247 = vector.broadcast %cst_117 : f32 to vector<8x64xf32>
    %248 = arith.cmpf oge, %246, %247 : vector<8x64xf32>
    %cst_118 = arith.constant 0.00999999977 : f32
    %249 = vector.broadcast %cst_118 : f32 to vector<8x64xf32>
    %250 = arith.mulf %249, %246 : vector<8x64xf32>
    %251 = arith.select %248, %246, %250 : vector<8x64xi1>, vector<8x64xf32>
    %c0_119 = arith.constant 0 : index
    %c0_120 = arith.constant 0 : index
    %252 = vector.load %arg31[%c0_119, %c0_120] : memref<64x64xf32, #tpu.memory_space<vmem>>, vector<64x64xf32>
    %c0_121 = arith.constant 0 : index
    %c0_122 = arith.constant 0 : index
    %253 = vector.load %arg32[%c0_121, %c0_122] : memref<1x64xf32, #tpu.memory_space<vmem>>, vector<1x64xf32>
    %c0_123 = arith.constant 0 : index
    %c0_124 = arith.constant 0 : index
    %254 = vector.load %arg33[%c0_123, %c0_124] : memref<1x64xf32, #tpu.memory_space<vmem>>, vector<1x64xf32>
    %c0_125 = arith.constant 0 : index
    %c0_126 = arith.constant 0 : index
    %255 = vector.load %arg34[%c0_125, %c0_126] : memref<1x64xf32, #tpu.memory_space<vmem>>, vector<1x64xf32>
    %cst_127 = arith.constant dense<0.000000e+00> : vector<8x64xf32>
    %256 = tpu.matmul %251, %252, %cst_127 {dimension_numbers = #tpu.dot_dimension_numbers<[1], [0], [0], [1], [0, 0, 1, 1], [], []>, precision = #tpu.contract_precision<fp32>} : vector<8x64xf32>, vector<64x64xf32>, vector<8x64xf32> -> vector<8x64xf32>
    %257 = vector.broadcast %253 : vector<1x64xf32> to vector<8x64xf32>
    %258 = arith.addf %256, %257 : vector<8x64xf32>
    %cst_128 = arith.constant dense<0.000000e+00> : vector<64xf32>
    %259 = vector.multi_reduction <add>, %258, %cst_128 [0] : vector<8x64xf32> to vector<64xf32>
    %260 = vector.shape_cast %259 : vector<64xf32> to vector<1x64xf32>
    %cst_129 = arith.constant 8.000000e+00 : f32
    %261 = vector.broadcast %cst_129 : f32 to vector<1x64xf32>
    %262 = arith.divf %260, %261 : vector<1x64xf32>
    %263 = vector.broadcast %262 : vector<1x64xf32> to vector<8x64xf32>
    %264 = arith.subf %258, %263 : vector<8x64xf32>
    %265 = arith.mulf %264, %264 : vector<8x64xf32>
    %cst_130 = arith.constant dense<0.000000e+00> : vector<64xf32>
    %266 = vector.multi_reduction <add>, %265, %cst_130 [0] : vector<8x64xf32> to vector<64xf32>
    %267 = vector.shape_cast %266 : vector<64xf32> to vector<1x64xf32>
    %cst_131 = arith.constant 8.000000e+00 : f32
    %268 = vector.broadcast %cst_131 : f32 to vector<1x64xf32>
    %269 = arith.divf %267, %268 : vector<1x64xf32>
    %270 = vector.broadcast %262 : vector<1x64xf32> to vector<8x64xf32>
    %271 = arith.subf %258, %270 : vector<8x64xf32>
    %cst_132 = arith.constant 9.99999974E-6 : f32
    %272 = vector.broadcast %cst_132 : f32 to vector<1x64xf32>
    %273 = arith.addf %269, %272 : vector<1x64xf32>
    %274 = math.rsqrt %273 : vector<1x64xf32>
    %275 = vector.broadcast %274 : vector<1x64xf32> to vector<8x64xf32>
    %276 = arith.mulf %271, %275 : vector<8x64xf32>
    %277 = vector.broadcast %254 : vector<1x64xf32> to vector<8x64xf32>
    %278 = arith.mulf %276, %277 : vector<8x64xf32>
    %279 = vector.broadcast %255 : vector<1x64xf32> to vector<8x64xf32>
    %280 = arith.addf %278, %279 : vector<8x64xf32>
    %281 = math.tanh %280 : vector<8x64xf32>
    %c0_133 = arith.constant 0 : index
    %c0_134 = arith.constant 0 : index
    %282 = vector.load %arg53[%c0_133, %c0_134] : memref<8x64xf32, #tpu.memory_space<vmem>>, vector<8x64xf32>
    tpu.vector_store %arg53[%c0_133, %c0_134], %281 {strides = array<i32>} : memref<8x64xf32, #tpu.memory_space<vmem>>, vector<8x64xf32>,
    %283 = vector.extract_strided_slice %281 {offsets = [0, 0], sizes = [4, 16], strides = [1, 1]} : vector<8x64xf32> to vector<4x16xf32>
    %284 = vector.extract_strided_slice %281 {offsets = [0, 16], sizes = [4, 16], strides = [1, 1]} : vector<8x64xf32> to vector<4x16xf32>
    %285 = vector.extract_strided_slice %281 {offsets = [0, 32], sizes = [4, 16], strides = [1, 1]} : vector<8x64xf32> to vector<4x16xf32>
    %286 = vector.extract_strided_slice %281 {offsets = [0, 48], sizes = [4, 16], strides = [1, 1]} : vector<8x64xf32> to vector<4x16xf32>
    %287 = vector.extract_strided_slice %281 {offsets = [4, 0], sizes = [4, 16], strides = [1, 1]} : vector<8x64xf32> to vector<4x16xf32>
    %288 = vector.extract_strided_slice %281 {offsets = [4, 16], sizes = [4, 16], strides = [1, 1]} : vector<8x64xf32> to vector<4x16xf32>
    %289 = vector.extract_strided_slice %281 {offsets = [4, 32], sizes = [4, 16], strides = [1, 1]} : vector<8x64xf32> to vector<4x16xf32>
    %290 = vector.extract_strided_slice %281 {offsets = [4, 48], sizes = [4, 16], strides = [1, 1]} : vector<8x64xf32> to vector<4x16xf32>
    %291 = tpu.concatenate %283, %284, %285, %286, %287, %288, %289, %290 in 0 : vector<4x16xf32>, vector<4x16xf32>, vector<4x16xf32>, vector<4x16xf32>, vector<4x16xf32>, vector<4x16xf32>, vector<4x16xf32>, vector<4x16xf32> -> vector<32x16xf32>
    %c0_135 = arith.constant 0 : index
    %c0_136 = arith.constant 0 : index
    %292 = vector.load %arg35[%c0_135, %c0_136] : memref<48x16xf32, #tpu.memory_space<vmem>>, vector<48x16xf32>
    %c0_137 = arith.constant 0 : index
    %c0_138 = arith.constant 0 : index
    %293 = vector.load %arg36[%c0_137, %c0_138] : memref<1x16xf32, #tpu.memory_space<vmem>>, vector<1x16xf32>
    %c0_139 = arith.constant 0 : index
    %c0_140 = arith.constant 0 : index
    %294 = vector.load %arg37[%c0_139, %c0_140] : memref<1x16xf32, #tpu.memory_space<vmem>>, vector<1x16xf32>
    %c0_141 = arith.constant 0 : index
    %c0_142 = arith.constant 0 : index
    %295 = vector.load %arg38[%c0_141, %c0_142] : memref<1x16xf32, #tpu.memory_space<vmem>>, vector<1x16xf32>
    %296 = vector.extract_strided_slice %291 {offsets = [0, 0], sizes = [14, 16], strides = [1, 1]} : vector<32x16xf32> to vector<14x16xf32>
    %297 = vector.extract_strided_slice %291 {offsets = [16, 0], sizes = [14, 16], strides = [1, 1]} : vector<32x16xf32> to vector<14x16xf32>
    %298 = tpu.concatenate %296, %297 in 0 : vector<14x16xf32>, vector<14x16xf32> -> vector<28x16xf32>
    %299 = vector.extract_strided_slice %291 {offsets = [1, 0], sizes = [14, 16], strides = [1, 1]} : vector<32x16xf32> to vector<14x16xf32>
    %300 = vector.extract_strided_slice %291 {offsets = [17, 0], sizes = [14, 16], strides = [1, 1]} : vector<32x16xf32> to vector<14x16xf32>
    %301 = tpu.concatenate %299, %300 in 0 : vector<14x16xf32>, vector<14x16xf32> -> vector<28x16xf32>
    %302 = vector.extract_strided_slice %291 {offsets = [2, 0], sizes = [14, 16], strides = [1, 1]} : vector<32x16xf32> to vector<14x16xf32>
    %303 = vector.extract_strided_slice %291 {offsets = [18, 0], sizes = [14, 16], strides = [1, 1]} : vector<32x16xf32> to vector<14x16xf32>
    %304 = tpu.concatenate %302, %303 in 0 : vector<14x16xf32>, vector<14x16xf32> -> vector<28x16xf32>
    %305 = tpu.concatenate %298, %301, %304 in 1 : vector<28x16xf32>, vector<28x16xf32>, vector<28x16xf32> -> vector<28x48xf32>
    %cst_143 = arith.constant dense<0.000000e+00> : vector<28x16xf32>
    %306 = tpu.matmul %305, %292, %cst_143 {dimension_numbers = #tpu.dot_dimension_numbers<[1], [0], [0], [1], [0, 0, 1, 1], [], []>, precision = #tpu.contract_precision<fp32>} : vector<28x48xf32>, vector<48x16xf32>, vector<28x16xf32> -> vector<28x16xf32>
    %307 = vector.broadcast %293 : vector<1x16xf32> to vector<28x16xf32>
    %308 = arith.addf %306, %307 : vector<28x16xf32>
    %cst_144 = arith.constant dense<0.000000e+00> : vector<16xf32>
    %309 = vector.multi_reduction <add>, %308, %cst_144 [0] : vector<28x16xf32> to vector<16xf32>
    %310 = vector.shape_cast %309 : vector<16xf32> to vector<1x16xf32>
    %cst_145 = arith.constant 2.800000e+01 : f32
    %311 = vector.broadcast %cst_145 : f32 to vector<1x16xf32>
    %312 = arith.divf %310, %311 : vector<1x16xf32>
    %313 = vector.broadcast %312 : vector<1x16xf32> to vector<28x16xf32>
    %314 = arith.subf %308, %313 : vector<28x16xf32>
    %315 = arith.mulf %314, %314 : vector<28x16xf32>
    %cst_146 = arith.constant dense<0.000000e+00> : vector<16xf32>
    %316 = vector.multi_reduction <add>, %315, %cst_146 [0] : vector<28x16xf32> to vector<16xf32>
    %317 = vector.shape_cast %316 : vector<16xf32> to vector<1x16xf32>
    %cst_147 = arith.constant 2.800000e+01 : f32
    %318 = vector.broadcast %cst_147 : f32 to vector<1x16xf32>
    %319 = arith.divf %317, %318 : vector<1x16xf32>
    %320 = vector.broadcast %312 : vector<1x16xf32> to vector<28x16xf32>
    %321 = arith.subf %308, %320 : vector<28x16xf32>
    %cst_148 = arith.constant 9.99999974E-6 : f32
    %322 = vector.broadcast %cst_148 : f32 to vector<1x16xf32>
    %323 = arith.addf %319, %322 : vector<1x16xf32>
    %324 = math.rsqrt %323 : vector<1x16xf32>
    %325 = vector.broadcast %324 : vector<1x16xf32> to vector<28x16xf32>
    %326 = arith.mulf %321, %325 : vector<28x16xf32>
    %327 = vector.broadcast %294 : vector<1x16xf32> to vector<28x16xf32>
    %328 = arith.mulf %326, %327 : vector<28x16xf32>
    %329 = vector.broadcast %295 : vector<1x16xf32> to vector<28x16xf32>
    %330 = arith.addf %328, %329 : vector<28x16xf32>
    %cst_149 = arith.constant 0.000000e+00 : f32
    %331 = vector.broadcast %cst_149 : f32 to vector<28x16xf32>
    %332 = arith.cmpf oge, %330, %331 : vector<28x16xf32>
    %cst_150 = arith.constant 0.00999999977 : f32
    %333 = vector.broadcast %cst_150 : f32 to vector<28x16xf32>
    %334 = arith.mulf %333, %330 : vector<28x16xf32>
    %335 = arith.select %332, %330, %334 : vector<28x16xi1>, vector<28x16xf32>
    %c0_151 = arith.constant 0 : index
    %c0_152 = arith.constant 0 : index
    %336 = vector.load %arg39[%c0_151, %c0_152] : memref<48x32xf32, #tpu.memory_space<vmem>>, vector<48x32xf32>
    %c0_153 = arith.constant 0 : index
    %c0_154 = arith.constant 0 : index
    %337 = vector.load %arg40[%c0_153, %c0_154] : memref<1x32xf32, #tpu.memory_space<vmem>>, vector<1x32xf32>
    %c0_155 = arith.constant 0 : index
    %c0_156 = arith.constant 0 : index
    %338 = vector.load %arg41[%c0_155, %c0_156] : memref<1x32xf32, #tpu.memory_space<vmem>>, vector<1x32xf32>
    %c0_157 = arith.constant 0 : index
    %c0_158 = arith.constant 0 : index
    %339 = vector.load %arg42[%c0_157, %c0_158] : memref<1x32xf32, #tpu.memory_space<vmem>>, vector<1x32xf32>
    %340 = vector.extract_strided_slice %335 {offsets = [0, 0], sizes = [12, 16], strides = [1, 1]} : vector<28x16xf32> to vector<12x16xf32>
    %341 = vector.extract_strided_slice %335 {offsets = [14, 0], sizes = [12, 16], strides = [1, 1]} : vector<28x16xf32> to vector<12x16xf32>
    %342 = tpu.concatenate %340, %341 in 0 : vector<12x16xf32>, vector<12x16xf32> -> vector<24x16xf32>
    %343 = vector.extract_strided_slice %335 {offsets = [1, 0], sizes = [12, 16], strides = [1, 1]} : vector<28x16xf32> to vector<12x16xf32>
    %344 = vector.extract_strided_slice %335 {offsets = [15, 0], sizes = [12, 16], strides = [1, 1]} : vector<28x16xf32> to vector<12x16xf32>
    %345 = tpu.concatenate %343, %344 in 0 : vector<12x16xf32>, vector<12x16xf32> -> vector<24x16xf32>
    %346 = vector.extract_strided_slice %335 {offsets = [2, 0], sizes = [12, 16], strides = [1, 1]} : vector<28x16xf32> to vector<12x16xf32>
    %347 = vector.extract_strided_slice %335 {offsets = [16, 0], sizes = [12, 16], strides = [1, 1]} : vector<28x16xf32> to vector<12x16xf32>
    %348 = tpu.concatenate %346, %347 in 0 : vector<12x16xf32>, vector<12x16xf32> -> vector<24x16xf32>
    %349 = tpu.concatenate %342, %345, %348 in 1 : vector<24x16xf32>, vector<24x16xf32>, vector<24x16xf32> -> vector<24x48xf32>
    %cst_159 = arith.constant dense<0.000000e+00> : vector<24x32xf32>
    %350 = tpu.matmul %349, %336, %cst_159 {dimension_numbers = #tpu.dot_dimension_numbers<[1], [0], [0], [1], [0, 0, 1, 1], [], []>, precision = #tpu.contract_precision<fp32>} : vector<24x48xf32>, vector<48x32xf32>, vector<24x32xf32> -> vector<24x32xf32>
    %351 = vector.broadcast %337 : vector<1x32xf32> to vector<24x32xf32>
    %352 = arith.addf %350, %351 : vector<24x32xf32>
    %cst_160 = arith.constant dense<0.000000e+00> : vector<32xf32>
    %353 = vector.multi_reduction <add>, %352, %cst_160 [0] : vector<24x32xf32> to vector<32xf32>
    %354 = vector.shape_cast %353 : vector<32xf32> to vector<1x32xf32>
    %cst_161 = arith.constant 2.400000e+01 : f32
    %355 = vector.broadcast %cst_161 : f32 to vector<1x32xf32>
    %356 = arith.divf %354, %355 : vector<1x32xf32>
    %357 = vector.broadcast %356 : vector<1x32xf32> to vector<24x32xf32>
    %358 = arith.subf %352, %357 : vector<24x32xf32>
    %359 = arith.mulf %358, %358 : vector<24x32xf32>
    %cst_162 = arith.constant dense<0.000000e+00> : vector<32xf32>
    %360 = vector.multi_reduction <add>, %359, %cst_162 [0] : vector<24x32xf32> to vector<32xf32>
    %361 = vector.shape_cast %360 : vector<32xf32> to vector<1x32xf32>
    %cst_163 = arith.constant 2.400000e+01 : f32
    %362 = vector.broadcast %cst_163 : f32 to vector<1x32xf32>
    %363 = arith.divf %361, %362 : vector<1x32xf32>
    %364 = vector.broadcast %356 : vector<1x32xf32> to vector<24x32xf32>
    %365 = arith.subf %352, %364 : vector<24x32xf32>
    %cst_164 = arith.constant 9.99999974E-6 : f32
    %366 = vector.broadcast %cst_164 : f32 to vector<1x32xf32>
    %367 = arith.addf %363, %366 : vector<1x32xf32>
    %368 = math.rsqrt %367 : vector<1x32xf32>
    %369 = vector.broadcast %368 : vector<1x32xf32> to vector<24x32xf32>
    %370 = arith.mulf %365, %369 : vector<24x32xf32>
    %371 = vector.broadcast %338 : vector<1x32xf32> to vector<24x32xf32>
    %372 = arith.mulf %370, %371 : vector<24x32xf32>
    %373 = vector.broadcast %339 : vector<1x32xf32> to vector<24x32xf32>
    %374 = arith.addf %372, %373 : vector<24x32xf32>
    %cst_165 = arith.constant 0.000000e+00 : f32
    %375 = vector.broadcast %cst_165 : f32 to vector<24x32xf32>
    %376 = arith.cmpf oge, %374, %375 : vector<24x32xf32>
    %cst_166 = arith.constant 0.00999999977 : f32
    %377 = vector.broadcast %cst_166 : f32 to vector<24x32xf32>
    %378 = arith.mulf %377, %374 : vector<24x32xf32>
    %379 = arith.select %376, %374, %378 : vector<24x32xi1>, vector<24x32xf32>
    %c0_167 = arith.constant 0 : index
    %c0_168 = arith.constant 0 : index
    %380 = vector.load %arg43[%c0_167, %c0_168] : memref<96x32xf32, #tpu.memory_space<vmem>>, vector<96x32xf32>
    %c0_169 = arith.constant 0 : index
    %c0_170 = arith.constant 0 : index
    %381 = vector.load %arg44[%c0_169, %c0_170] : memref<1x32xf32, #tpu.memory_space<vmem>>, vector<1x32xf32>
    %c0_171 = arith.constant 0 : index
    %c0_172 = arith.constant 0 : index
    %382 = vector.load %arg45[%c0_171, %c0_172] : memref<1x32xf32, #tpu.memory_space<vmem>>, vector<1x32xf32>
    %c0_173 = arith.constant 0 : index
    %c0_174 = arith.constant 0 : index
    %383 = vector.load %arg46[%c0_173, %c0_174] : memref<1x32xf32, #tpu.memory_space<vmem>>, vector<1x32xf32>
    %384 = vector.extract_strided_slice %379 {offsets = [0, 0], sizes = [10, 32], strides = [1, 1]} : vector<24x32xf32> to vector<10x32xf32>
    %385 = vector.extract_strided_slice %379 {offsets = [12, 0], sizes = [10, 32], strides = [1, 1]} : vector<24x32xf32> to vector<10x32xf32>
    %386 = tpu.concatenate %384, %385 in 0 : vector<10x32xf32>, vector<10x32xf32> -> vector<20x32xf32>
    %387 = vector.extract_strided_slice %379 {offsets = [1, 0], sizes = [10, 32], strides = [1, 1]} : vector<24x32xf32> to vector<10x32xf32>
    %388 = vector.extract_strided_slice %379 {offsets = [13, 0], sizes = [10, 32], strides = [1, 1]} : vector<24x32xf32> to vector<10x32xf32>
    %389 = tpu.concatenate %387, %388 in 0 : vector<10x32xf32>, vector<10x32xf32> -> vector<20x32xf32>
    %390 = vector.extract_strided_slice %379 {offsets = [2, 0], sizes = [10, 32], strides = [1, 1]} : vector<24x32xf32> to vector<10x32xf32>
    %391 = vector.extract_strided_slice %379 {offsets = [14, 0], sizes = [10, 32], strides = [1, 1]} : vector<24x32xf32> to vector<10x32xf32>
    %392 = tpu.concatenate %390, %391 in 0 : vector<10x32xf32>, vector<10x32xf32> -> vector<20x32xf32>
    %393 = tpu.concatenate %386, %389, %392 in 1 : vector<20x32xf32>, vector<20x32xf32>, vector<20x32xf32> -> vector<20x96xf32>
    %cst_175 = arith.constant dense<0.000000e+00> : vector<20x32xf32>
    %394 = tpu.matmul %393, %380, %cst_175 {dimension_numbers = #tpu.dot_dimension_numbers<[1], [0], [0], [1], [0, 0, 1, 1], [], []>, precision = #tpu.contract_precision<fp32>} : vector<20x96xf32>, vector<96x32xf32>, vector<20x32xf32> -> vector<20x32xf32>
    %395 = vector.broadcast %381 : vector<1x32xf32> to vector<20x32xf32>
    %396 = arith.addf %394, %395 : vector<20x32xf32>
    %cst_176 = arith.constant dense<0.000000e+00> : vector<32xf32>
    %397 = vector.multi_reduction <add>, %396, %cst_176 [0] : vector<20x32xf32> to vector<32xf32>
    %398 = vector.shape_cast %397 : vector<32xf32> to vector<1x32xf32>
    %cst_177 = arith.constant 2.000000e+01 : f32
    %399 = vector.broadcast %cst_177 : f32 to vector<1x32xf32>
    %400 = arith.divf %398, %399 : vector<1x32xf32>
    %401 = vector.broadcast %400 : vector<1x32xf32> to vector<20x32xf32>
    %402 = arith.subf %396, %401 : vector<20x32xf32>
    %403 = arith.mulf %402, %402 : vector<20x32xf32>
    %cst_178 = arith.constant dense<0.000000e+00> : vector<32xf32>
    %404 = vector.multi_reduction <add>, %403, %cst_178 [0] : vector<20x32xf32> to vector<32xf32>
    %405 = vector.shape_cast %404 : vector<32xf32> to vector<1x32xf32>
    %cst_179 = arith.constant 2.000000e+01 : f32
    %406 = vector.broadcast %cst_179 : f32 to vector<1x32xf32>
    %407 = arith.divf %405, %406 : vector<1x32xf32>
    %408 = vector.broadcast %400 : vector<1x32xf32> to vector<20x32xf32>
    %409 = arith.subf %396, %408 : vector<20x32xf32>
    %cst_180 = arith.constant 9.99999974E-6 : f32
    %410 = vector.broadcast %cst_180 : f32 to vector<1x32xf32>
    %411 = arith.addf %407, %410 : vector<1x32xf32>
    %412 = math.rsqrt %411 : vector<1x32xf32>
    %413 = vector.broadcast %412 : vector<1x32xf32> to vector<20x32xf32>
    %414 = arith.mulf %409, %413 : vector<20x32xf32>
    %415 = vector.broadcast %382 : vector<1x32xf32> to vector<20x32xf32>
    %416 = arith.mulf %414, %415 : vector<20x32xf32>
    %417 = vector.broadcast %383 : vector<1x32xf32> to vector<20x32xf32>
    %418 = arith.addf %416, %417 : vector<20x32xf32>
    %cst_181 = arith.constant 0.000000e+00 : f32
    %419 = vector.broadcast %cst_181 : f32 to vector<20x32xf32>
    %420 = arith.cmpf oge, %418, %419 : vector<20x32xf32>
    %cst_182 = arith.constant 0.00999999977 : f32
    %421 = vector.broadcast %cst_182 : f32 to vector<20x32xf32>
    %422 = arith.mulf %421, %418 : vector<20x32xf32>
    %423 = arith.select %420, %418, %422 : vector<20x32xi1>, vector<20x32xf32>
    %c0_183 = arith.constant 0 : index
    %c0_184 = arith.constant 0 : index
    %424 = vector.load %arg47[%c0_183, %c0_184] : memref<96x32xf32, #tpu.memory_space<vmem>>, vector<96x32xf32>
    %c0_185 = arith.constant 0 : index
    %c0_186 = arith.constant 0 : index
    %425 = vector.load %arg48[%c0_185, %c0_186] : memref<1x32xf32, #tpu.memory_space<vmem>>, vector<1x32xf32>
    %c0_187 = arith.constant 0 : index
    %c0_188 = arith.constant 0 : index
    %426 = vector.load %arg49[%c0_187, %c0_188] : memref<1x32xf32, #tpu.memory_space<vmem>>, vector<1x32xf32>
    %c0_189 = arith.constant 0 : index
    %c0_190 = arith.constant 0 : index
    %427 = vector.load %arg50[%c0_189, %c0_190] : memref<1x32xf32, #tpu.memory_space<vmem>>, vector<1x32xf32>
    %428 = vector.extract_strided_slice %423 {offsets = [0, 0], sizes = [8, 32], strides = [1, 1]} : vector<20x32xf32> to vector<8x32xf32>
    %429 = vector.extract_strided_slice %423 {offsets = [10, 0], sizes = [8, 32], strides = [1, 1]} : vector<20x32xf32> to vector<8x32xf32>
    %430 = tpu.concatenate %428, %429 in 0 : vector<8x32xf32>, vector<8x32xf32> -> vector<16x32xf32>
    %431 = vector.extract_strided_slice %423 {offsets = [1, 0], sizes = [8, 32], strides = [1, 1]} : vector<20x32xf32> to vector<8x32xf32>
    %432 = vector.extract_strided_slice %423 {offsets = [11, 0], sizes = [8, 32], strides = [1, 1]} : vector<20x32xf32> to vector<8x32xf32>
    %433 = tpu.concatenate %431, %432 in 0 : vector<8x32xf32>, vector<8x32xf32> -> vector<16x32xf32>
    %434 = vector.extract_strided_slice %423 {offsets = [2, 0], sizes = [8, 32], strides = [1, 1]} : vector<20x32xf32> to vector<8x32xf32>
    %435 = vector.extract_strided_slice %423 {offsets = [12, 0], sizes = [8, 32], strides = [1, 1]} : vector<20x32xf32> to vector<8x32xf32>
    %436 = tpu.concatenate %434, %435 in 0 : vector<8x32xf32>, vector<8x32xf32> -> vector<16x32xf32>
    %437 = tpu.concatenate %430, %433, %436 in 1 : vector<16x32xf32>, vector<16x32xf32>, vector<16x32xf32> -> vector<16x96xf32>
    %cst_191 = arith.constant dense<0.000000e+00> : vector<16x32xf32>
    %438 = tpu.matmul %437, %424, %cst_191 {dimension_numbers = #tpu.dot_dimension_numbers<[1], [0], [0], [1], [0, 0, 1, 1], [], []>, precision = #tpu.contract_precision<fp32>} : vector<16x96xf32>, vector<96x32xf32>, vector<16x32xf32> -> vector<16x32xf32>
    %439 = vector.broadcast %425 : vector<1x32xf32> to vector<16x32xf32>
    %440 = arith.addf %438, %439 : vector<16x32xf32>
    %cst_192 = arith.constant dense<0.000000e+00> : vector<32xf32>
    %441 = vector.multi_reduction <add>, %440, %cst_192 [0] : vector<16x32xf32> to vector<32xf32>
    %442 = vector.shape_cast %441 : vector<32xf32> to vector<1x32xf32>
    %cst_193 = arith.constant 1.600000e+01 : f32
    %443 = vector.broadcast %cst_193 : f32 to vector<1x32xf32>
    %444 = arith.divf %442, %443 : vector<1x32xf32>
    %445 = vector.broadcast %444 : vector<1x32xf32> to vector<16x32xf32>
    %446 = arith.subf %440, %445 : vector<16x32xf32>
    %447 = arith.mulf %446, %446 : vector<16x32xf32>
    %cst_194 = arith.constant dense<0.000000e+00> : vector<32xf32>
    %448 = vector.multi_reduction <add>, %447, %cst_194 [0] : vector<16x32xf32> to vector<32xf32>
    %449 = vector.shape_cast %448 : vector<32xf32> to vector<1x32xf32>
    %cst_195 = arith.constant 1.600000e+01 : f32
    %450 = vector.broadcast %cst_195 : f32 to vector<1x32xf32>
    %451 = arith.divf %449, %450 : vector<1x32xf32>
    %452 = vector.broadcast %444 : vector<1x32xf32> to vector<16x32xf32>
    %453 = arith.subf %440, %452 : vector<16x32xf32>
    %cst_196 = arith.constant 9.99999974E-6 : f32
    %454 = vector.broadcast %cst_196 : f32 to vector<1x32xf32>
    %455 = arith.addf %451, %454 : vector<1x32xf32>
    %456 = math.rsqrt %455 : vector<1x32xf32>
    %457 = vector.broadcast %456 : vector<1x32xf32> to vector<16x32xf32>
    %458 = arith.mulf %453, %457 : vector<16x32xf32>
    %459 = vector.broadcast %426 : vector<1x32xf32> to vector<16x32xf32>
    %460 = arith.mulf %458, %459 : vector<16x32xf32>
    %461 = vector.broadcast %427 : vector<1x32xf32> to vector<16x32xf32>
    %462 = arith.addf %460, %461 : vector<16x32xf32>
    %c0_197 = arith.constant 0 : index
    %c0_198 = arith.constant 0 : index
    %463 = vector.load %arg54[%c0_197, %c0_198] : memref<16x32xf32, #tpu.memory_space<vmem>>, vector<16x32xf32>
    tpu.vector_store %arg54[%c0_197, %c0_198], %462 {strides = array<i32>} : memref<16x32xf32, #tpu.memory_space<vmem>>, vector<16x32xf32>,
    return
  }
}

</mosaic_0001>

<llo_original>
// kernel: forward.1
$region0: #{forward.1}
  #allocation0 [shape = 'u32[]', space=smem, size = 0x4, offset = 0x4, fixed_abs, tag = 'smem constant byte address 0x4 - core index']
  #allocation1 [shape = 'u32[144,128]{1,0:T(1,128)}', space=vmem, size = 0x12000, scoped, tag = 'internal scratch']
  %s0 = inlined_call_operand.smem [shape: u32[55], index: -1, kind: input, shape index: {}]
  %s1 = sld [smem:[%s0]]
  %s2 = scalar_lea.smem %s0, 1
  %s3 = sld [smem:[%s2]]
  %s4 = scalar_lea.smem %s0, 2
  %s5 = sld [smem:[%s4]]
  %s6 = scalar_lea.smem %s0, 3
  %s7 = sld [smem:[%s6]]
  %s8 = scalar_lea.smem %s0, 4
  %s9 = sld [smem:[%s8]]
  %s10 = scalar_lea.smem %s0, 5
  %s11 = sld [smem:[%s10]]
  %s12 = scalar_lea.smem %s0, 6
  %s13 = sld [smem:[%s12]]
  %s14 = scalar_lea.smem %s0, 7
  %s15 = sld [smem:[%s14]]
  %s16 = scalar_lea.smem %s0, 8
  %s17 = sld [smem:[%s16]]
  %s18 = scalar_lea.smem %s0, 9
  %s19 = sld [smem:[%s18]]
  %s20 = scalar_lea.smem %s0, 10
  %s21 = sld [smem:[%s20]]
  %s22 = scalar_lea.smem %s0, 11
  %s23 = sld [smem:[%s22]]
  %s24 = scalar_lea.smem %s0, 12
  %s25 = sld [smem:[%s24]]
  %s26 = scalar_lea.smem %s0, 13
  %s27 = sld [smem:[%s26]]
  %s28 = scalar_lea.smem %s0, 14
  %s29 = sld [smem:[%s28]]
  %s30 = scalar_lea.smem %s0, 15
  %s31 = sld [smem:[%s30]]
  %s32 = scalar_lea.smem %s0, 16
  %s33 = sld [smem:[%s32]]
  %s34 = scalar_lea.smem %s0, 17
  %s35 = sld [smem:[%s34]]
  %s36 = scalar_lea.smem %s0, 18
  %s37 = sld [smem:[%s36]]
  %s38 = scalar_lea.smem %s0, 19
  %s39 = sld [smem:[%s38]]
  %s40 = scalar_lea.smem %s0, 20
  %s41 = sld [smem:[%s40]]
  %s42 = scalar_lea.smem %s0, 21
  %s43 = sld [smem:[%s42]]
  %s44 = scalar_lea.smem %s0, 22
  %s45 = sld [smem:[%s44]]
  %s46 = scalar_lea.smem %s0, 23
  %s47 = sld [smem:[%s46]]
  %s48 = scalar_lea.smem %s0, 24
  %s49 = sld [smem:[%s48]]
  %s50 = scalar_lea.smem %s0, 25
  %s51 = sld [smem:[%s50]]
  %s52 = scalar_lea.smem %s0, 26
  %s53 = sld [smem:[%s52]]
  %s54 = scalar_lea.smem %s0, 27
  %s55 = sld [smem:[%s54]]
  %s56 = scalar_lea.smem %s0, 28
  %s57 = sld [smem:[%s56]]
  %s58 = scalar_lea.smem %s0, 29
  %s59 = sld [smem:[%s58]]
  %s60 = scalar_lea.smem %s0, 30
  %s61 = sld [smem:[%s60]]
  %s62 = scalar_lea.smem %s0, 31
  %s63 = sld [smem:[%s62]]
  %s64 = scalar_lea.smem %s0, 32
  %s65 = sld [smem:[%s64]]
  %s66 = scalar_lea.smem %s0, 33
  %s67 = sld [smem:[%s66]]
  %s68 = scalar_lea.smem %s0, 34
  %s69 = sld [smem:[%s68]]
  %s70 = scalar_lea.smem %s0, 35
  %s71 = sld [smem:[%s70]]
  %s72 = scalar_lea.smem %s0, 36
  %s73 = sld [smem:[%s72]]
  %s74 = scalar_lea.smem %s0, 37
  %s75 = sld [smem:[%s74]]
  %s76 = scalar_lea.smem %s0, 38
  %s77 = sld [smem:[%s76]]
  %s78 = scalar_lea.smem %s0, 39
  %s79 = sld [smem:[%s78]]
  %s80 = scalar_lea.smem %s0, 40
  %s81 = sld [smem:[%s80]]
  %s82 = scalar_lea.smem %s0, 41
  %s83 = sld [smem:[%s82]]
  %s84 = scalar_lea.smem %s0, 42
  %s85 = sld [smem:[%s84]]
  %s86 = scalar_lea.smem %s0, 43
  %s87 = sld [smem:[%s86]]
  %s88 = scalar_lea.smem %s0, 44
  %s89 = sld [smem:[%s88]]
  %s90 = scalar_lea.smem %s0, 45
  %s91 = sld [smem:[%s90]]
  %s92 = scalar_lea.smem %s0, 46
  %s93 = sld [smem:[%s92]]
  %s94 = scalar_lea.smem %s0, 47
  %s95 = sld [smem:[%s94]]
  %s96 = scalar_lea.smem %s0, 48
  %s97 = sld [smem:[%s96]]
  %s98 = scalar_lea.smem %s0, 49
  %s99 = sld [smem:[%s98]]
  %s100 = scalar_lea.smem %s0, 50
  %s101 = sld [smem:[%s100]]
  %s102 = scalar_lea.smem %s0, 51
  %s103 = sld [smem:[%s102]]
  %s104 = scalar_lea.smem %s0, 52
  %s105 = sld [smem:[%s104]]
  %s106 = scalar_lea.smem %s0, 53
  %s107 = sld [smem:[%s106]]
  %s108 = scalar_lea.smem %s0, 54
  %s109 = sld [smem:[%s108]]
  %110 = xla_tuple %s103, %s105, %s107, %s109
  %s111 = sld [smem:[#allocation0]]
  $region354: #{forward.1} parent=0
    _
  %s113 = ssub.s32 1, %s111
  %s114 = scalar_select 0, %s113, %s111
  $region1: #{forward.1} parent=0
    #allocation2 [shape = 'u8[1024]{0}', space=vmem, size = 0x400, scoped, tag = 'input window, operand 0, single buffered']
    #allocation3 [shape = 's32[1]{0}', space=sflag, size = 0x4, scoped, tag = 'scoped memory for forward.1']
    #allocation4 [shape = 's32[1]{0}', space=sflag, size = 0x4, scoped, tag = 'scoped memory for forward.1']
    #allocation5 [shape = 'u8[16384]{0}', space=vmem, size = 0x4000, scoped, tag = 'input window, operand 1, single buffered']
    #allocation6 [shape = 's32[1]{0}', space=sflag, size = 0x4, scoped, tag = 'scoped memory for forward.1']
    #allocation7 [shape = 'u8[512]{0}', space=vmem, size = 0x400, scoped, tag = 'input window, operand 4, single buffered']
    #allocation8 [shape = 'u8[512]{0}', space=vmem, size = 0x400, scoped, tag = 'input window, operand 5, single buffered']
    #allocation9 [shape = 's32[1]{0}', space=sflag, size = 0x4, scoped, tag = 'scoped memory for forward.1']
    #allocation10 [shape = 'u8[512]{0}', space=vmem, size = 0x400, scoped, tag = 'input window, operand 6, single buffered']
    #allocation11 [shape = 'u8[512]{0}', space=vmem, size = 0x400, scoped, tag = 'input window, operand 8, single buffered']
    #allocation12 [shape = 's32[1]{0}', space=sflag, size = 0x4, scoped, tag = 'scoped memory for forward.1']
    #allocation13 [shape = 'u8[512]{0}', space=vmem, size = 0x400, scoped, tag = 'input window, operand 9, single buffered']
    #allocation14 [shape = 'u8[512]{0}', space=vmem, size = 0x400, scoped, tag = 'input window, operand 10, single buffered']
    #allocation15 [shape = 's32[1]{0}', space=sflag, size = 0x4, scoped, tag = 'scoped memory for forward.1']
    #allocation16 [shape = 'u8[512]{0}', space=vmem, size = 0x400, scoped, tag = 'input window, operand 12, single buffered']
    #allocation17 [shape = 'u8[512]{0}', space=vmem, size = 0x400, scoped, tag = 'input window, operand 13, single buffered']
    #allocation18 [shape = 's32[1]{0}', space=sflag, size = 0x4, scoped, tag = 'scoped memory for forward.1']
    #allocation19 [shape = 'u8[512]{0}', space=vmem, size = 0x400, scoped, tag = 'input window, operand 14, single buffered']
    #allocation20 [shape = 'u8[512]{0}', space=vmem, size = 0x400, scoped, tag = 'input window, operand 16, single buffered']
    #allocation21 [shape = 's32[1]{0}', space=sflag, size = 0x4, scoped, tag = 'scoped memory for forward.1']
    #allocation22 [shape = 'u8[512]{0}', space=vmem, size = 0x400, scoped, tag = 'input window, operand 17, single buffered']
    #allocation23 [shape = 'u8[512]{0}', space=vmem, size = 0x400, scoped, tag = 'input window, operand 18, single buffered']
    #allocation24 [shape = 's32[1]{0}', space=sflag, size = 0x4, scoped, tag = 'scoped memory for forward.1']
    #allocation25 [shape = 'u8[16384]{0}', space=vmem, size = 0x4000, scoped, tag = 'input window, operand 19, single buffered']
    #allocation26 [shape = 'u8[512]{0}', space=vmem, size = 0x400, scoped, tag = 'input window, operand 20, single buffered']
    #allocation27 [shape = 's32[1]{0}', space=sflag, size = 0x4, scoped, tag = 'scoped memory for forward.1']
    #allocation28 [shape = 'u8[512]{0}', space=vmem, size = 0x400, scoped, tag = 'input window, operand 21, single buffered']
    #allocation29 [shape = 'u8[512]{0}', space=vmem, size = 0x400, scoped, tag = 'input window, operand 22, single buffered']
    #allocation30 [shape = 's32[1]{0}', space=sflag, size = 0x4, scoped, tag = 'scoped memory for forward.1']
    #allocation31 [shape = 'u8[16384]{0}', space=vmem, size = 0x4000, scoped, tag = 'input window, operand 23, single buffered']
    #allocation32 [shape = 'u8[512]{0}', space=vmem, size = 0x400, scoped, tag = 'input window, operand 24, single buffered']
    #allocation33 [shape = 's32[1]{0}', space=sflag, size = 0x4, scoped, tag = 'scoped memory for forward.1']
    #allocation34 [shape = 'u8[512]{0}', space=vmem, size = 0x400, scoped, tag = 'input window, operand 25, single buffered']
    #allocation35 [shape = 'u8[512]{0}', space=vmem, size = 0x400, scoped, tag = 'input window, operand 26, single buffered']
    #allocation36 [shape = 's32[1]{0}', space=sflag, size = 0x4, scoped, tag = 'scoped memory for forward.1']
    #allocation37 [shape = 'u8[512]{0}', space=vmem, size = 0x400, scoped, tag = 'input window, operand 28, single buffered']
    #allocation38 [shape = 'u8[512]{0}', space=vmem, size = 0x400, scoped, tag = 'input window, operand 29, single buffered']
    #allocation39 [shape = 's32[1]{0}', space=sflag, size = 0x4, scoped, tag = 'scoped memory for forward.1']
    #allocation40 [shape = 'u8[512]{0}', space=vmem, size = 0x400, scoped, tag = 'input window, operand 30, single buffered']
    #allocation41 [shape = 'u8[512]{0}', space=vmem, size = 0x400, scoped, tag = 'input window, operand 34, single buffered']
    #allocation42 [shape = 's32[1]{0}', space=sflag, size = 0x4, scoped, tag = 'scoped memory for forward.1']
    #allocation43 [shape = 'u8[512]{0}', space=vmem, size = 0x400, scoped, tag = 'input window, operand 36, single buffered']
    #allocation44 [shape = 'u8[512]{0}', space=vmem, size = 0x400, scoped, tag = 'input window, operand 37, single buffered']
    #allocation45 [shape = 's32[1]{0}', space=sflag, size = 0x4, scoped, tag = 'scoped memory for forward.1']
    #allocation46 [shape = 'u8[512]{0}', space=vmem, size = 0x400, scoped, tag = 'input window, operand 38, single buffered']
    #allocation47 [shape = 'u8[1024]{0}', space=vmem, size = 0x400, scoped, tag = 'output window, operand 0, single buffered']
    %115 = vsyncpa [#allocation3], 0
    %116 = vsyncpa [#allocation6], 0
    %117 = vsyncpa [#allocation9], 0
    %118 = vsyncpa [#allocation12], 0
    %119 = vsyncpa [#allocation15], 0
    %120 = vsyncpa [#allocation18], 0
    %121 = vsyncpa [#allocation21], 0
    %122 = vsyncpa [#allocation24], 0
    %123 = vsyncpa [#allocation27], 0
    %124 = vsyncpa [#allocation30], 0
    %125 = vsyncpa [#allocation33], 0
    %126 = vsyncpa [#allocation36], 0
    %127 = vsyncpa [#allocation39], 0
    %128 = vsyncpa [#allocation42], 0
    %129 = vsyncpa [#allocation45], 0
    %130 = vsyncpa [#allocation4], 0
    // Predicated region
    $region2: #{forward.1} parent=1 // pred_check
      _
    $region3: #{forward.1} parent=1 // pred_check_branch
      %132 = sbr.rel (0) target = $region5
    $region4: #{forward.1} parent=1 // pred_region
      %s134 = ssub.s32 32, 32
      %135 = vsyncadd [#allocation3], %s134
      %s137 = sshll.u32 [#allocation2], 4
      %s138 = int_to_ptr.vmem [resolvable:$true] %s137
      %140 = dma.hbm_to_vmem [thread:$0]  %s1, 32, %s138, [#allocation3]
    $region5: #{forward.1} parent=1 // pred_fallthru
      _
    // Predicated region
    $region6: #{forward.1} parent=1 // pred_check
      _
    $region7: #{forward.1} parent=1 // pred_check_branch
      %142 = sbr.rel (0) target = $region9
    $region8: #{forward.1} parent=1 // pred_region
      %s144 = ssub.s32 512, 512
      %145 = vsyncadd [#allocation6], %s144
      %s146 = sshll.u32 [#allocation5], 4
      %s147 = int_to_ptr.vmem [resolvable:$true] %s146
      %152 = dma.hbm_to_vmem [thread:$0]  %s3, 512, %s147, [#allocation6], 128, 128, 8
    $region9: #{forward.1} parent=1 // pred_fallthru
      _
    // Predicated region
    $region10: #{forward.1} parent=1 // pred_check
      _
    $region11: #{forward.1} parent=1 // pred_check_branch
      %154 = sbr.rel (0) target = $region13
    $region12: #{forward.1} parent=1 // pred_region
      _
    $region13: #{forward.1} parent=1 // pred_fallthru
      _
    // Predicated region
    $region14: #{forward.1} parent=1 // pred_check
      _
    $region15: #{forward.1} parent=1 // pred_check_branch
      %156 = sbr.rel (0) target = $region17
    $region16: #{forward.1} parent=1 // pred_region
      _
    $region17: #{forward.1} parent=1 // pred_fallthru
      _
    // Predicated region
    $region18: #{forward.1} parent=1 // pred_check
      _
    $region19: #{forward.1} parent=1 // pred_check_branch
      %158 = sbr.rel (0) target = $region21
    $region20: #{forward.1} parent=1 // pred_region
      %s160 = ssub.s32 16, 16
      %161 = vsyncadd [#allocation6], %s160
      %s163 = sshll.u32 [#allocation7], 4
      %s164 = int_to_ptr.vmem [resolvable:$true] %s163
      %166 = dma.hbm_to_vmem [thread:$0]  %s9, 16, %s164, [#allocation6]
    $region21: #{forward.1} parent=1 // pred_fallthru
      _
    // Predicated region
    $region22: #{forward.1} parent=1 // pred_check
      _
    $region23: #{forward.1} parent=1 // pred_check_branch
      %168 = sbr.rel (0) target = $region25
    $region24: #{forward.1} parent=1 // pred_region
      %s170 = ssub.s32 16, 16
      %171 = vsyncadd [#allocation9], %s170
      %s173 = sshll.u32 [#allocation8], 4
      %s174 = int_to_ptr.vmem [resolvable:$true] %s173
      %176 = dma.hbm_to_vmem [thread:$0]  %s11, 16, %s174, [#allocation9]
    $region25: #{forward.1} parent=1 // pred_fallthru
      _
    // Predicated region
    $region26: #{forward.1} parent=1 // pred_check
      _
    $region27: #{forward.1} parent=1 // pred_check_branch
      %178 = sbr.rel (0) target = $region29
    $region28: #{forward.1} parent=1 // pred_region
      %s180 = ssub.s32 16, 16
      %181 = vsyncadd [#allocation9], %s180
      %s183 = sshll.u32 [#allocation10], 4
      %s184 = int_to_ptr.vmem [resolvable:$true] %s183
      %186 = dma.hbm_to_vmem [thread:$0]  %s13, 16, %s184, [#allocation9]
    $region29: #{forward.1} parent=1 // pred_fallthru
      _
    // Predicated region
    $region30: #{forward.1} parent=1 // pred_check
      _
    $region31: #{forward.1} parent=1 // pred_check_branch
      %188 = sbr.rel (0) target = $region33
    $region32: #{forward.1} parent=1 // pred_region
      _
    $region33: #{forward.1} parent=1 // pred_fallthru
      _
    // Predicated region
    $region34: #{forward.1} parent=1 // pred_check
      _
    $region35: #{forward.1} parent=1 // pred_check_branch
      %190 = sbr.rel (0) target = $region37
    $region36: #{forward.1} parent=1 // pred_region
      %s192 = ssub.s32 16, 16
      %193 = vsyncadd [#allocation12], %s192
      %s195 = sshll.u32 [#allocation11], 4
      %s196 = int_to_ptr.vmem [resolvable:$true] %s195
      %198 = dma.hbm_to_vmem [thread:$0]  %s17, 16, %s196, [#allocation12]
    $region37: #{forward.1} parent=1 // pred_fallthru
      _
    // Predicated region
    $region38: #{forward.1} parent=1 // pred_check
      _
    $region39: #{forward.1} parent=1 // pred_check_branch
      %200 = sbr.rel (0) target = $region41
    $region40: #{forward.1} parent=1 // pred_region
      %s202 = ssub.s32 16, 16
      %203 = vsyncadd [#allocation12], %s202
      %s205 = sshll.u32 [#allocation13], 4
      %s206 = int_to_ptr.vmem [resolvable:$true] %s205
      %208 = dma.hbm_to_vmem [thread:$0]  %s19, 16, %s206, [#allocation12]
    $region41: #{forward.1} parent=1 // pred_fallthru
      _
    // Predicated region
    $region42: #{forward.1} parent=1 // pred_check
      _
    $region43: #{forward.1} parent=1 // pred_check_branch
      %210 = sbr.rel (0) target = $region45
    $region44: #{forward.1} parent=1 // pred_region
      %s212 = ssub.s32 16, 16
      %213 = vsyncadd [#allocation15], %s212
      %s215 = sshll.u32 [#allocation14], 4
      %s216 = int_to_ptr.vmem [resolvable:$true] %s215
      %218 = dma.hbm_to_vmem [thread:$0]  %s21, 16, %s216, [#allocation15]
    $region45: #{forward.1} parent=1 // pred_fallthru
      _
    // Predicated region
    $region46: #{forward.1} parent=1 // pred_check
      _
    $region47: #{forward.1} parent=1 // pred_check_branch
      %220 = sbr.rel (0) target = $region49
    $region48: #{forward.1} parent=1 // pred_region
      _
    $region49: #{forward.1} parent=1 // pred_fallthru
      _
    // Predicated region
    $region50: #{forward.1} parent=1 // pred_check
      _
    $region51: #{forward.1} parent=1 // pred_check_branch
      %222 = sbr.rel (0) target = $region53
    $region52: #{forward.1} parent=1 // pred_region
      %s224 = ssub.s32 16, 16
      %225 = vsyncadd [#allocation15], %s224
      %s227 = sshll.u32 [#allocation16], 4
      %s228 = int_to_ptr.vmem [resolvable:$true] %s227
      %230 = dma.hbm_to_vmem [thread:$0]  %s25, 16, %s228, [#allocation15]
    $region53: #{forward.1} parent=1 // pred_fallthru
      _
    // Predicated region
    $region54: #{forward.1} parent=1 // pred_check
      _
    $region55: #{forward.1} parent=1 // pred_check_branch
      %232 = sbr.rel (0) target = $region57
    $region56: #{forward.1} parent=1 // pred_region
      %s234 = ssub.s32 16, 16
      %235 = vsyncadd [#allocation18], %s234
      %s237 = sshll.u32 [#allocation17], 4
      %s238 = int_to_ptr.vmem [resolvable:$true] %s237
      %240 = dma.hbm_to_vmem [thread:$0]  %s27, 16, %s238, [#allocation18]
    $region57: #{forward.1} parent=1 // pred_fallthru
      _
    // Predicated region
    $region58: #{forward.1} parent=1 // pred_check
      _
    $region59: #{forward.1} parent=1 // pred_check_branch
      %242 = sbr.rel (0) target = $region61
    $region60: #{forward.1} parent=1 // pred_region
      %s244 = ssub.s32 16, 16
      %245 = vsyncadd [#allocation18], %s244
      %s247 = sshll.u32 [#allocation19], 4
      %s248 = int_to_ptr.vmem [resolvable:$true] %s247
      %250 = dma.hbm_to_vmem [thread:$0]  %s29, 16, %s248, [#allocation18]
    $region61: #{forward.1} parent=1 // pred_fallthru
      _
    // Predicated region
    $region62: #{forward.1} parent=1 // pred_check
      _
    $region63: #{forward.1} parent=1 // pred_check_branch
      %252 = sbr.rel (0) target = $region65
    $region64: #{forward.1} parent=1 // pred_region
      _
    $region65: #{forward.1} parent=1 // pred_fallthru
      _
    // Predicated region
    $region66: #{forward.1} parent=1 // pred_check
      _
    $region67: #{forward.1} parent=1 // pred_check_branch
      %254 = sbr.rel (0) target = $region69
    $region68: #{forward.1} parent=1 // pred_region
      %s256 = ssub.s32 16, 16
      %257 = vsyncadd [#allocation21], %s256
      %s259 = sshll.u32 [#allocation20], 4
      %s260 = int_to_ptr.vmem [resolvable:$true] %s259
      %262 = dma.hbm_to_vmem [thread:$0]  %s33, 16, %s260, [#allocation21]
    $region69: #{forward.1} parent=1 // pred_fallthru
      _
    // Predicated region
    $region70: #{forward.1} parent=1 // pred_check
      _
    $region71: #{forward.1} parent=1 // pred_check_branch
      %264 = sbr.rel (0) target = $region73
    $region72: #{forward.1} parent=1 // pred_region
      %s266 = ssub.s32 16, 16
      %267 = vsyncadd [#allocation21], %s266
      %s269 = sshll.u32 [#allocation22], 4
      %s270 = int_to_ptr.vmem [resolvable:$true] %s269
      %272 = dma.hbm_to_vmem [thread:$0]  %s35, 16, %s270, [#allocation21]
    $region73: #{forward.1} parent=1 // pred_fallthru
      _
    // Predicated region
    $region74: #{forward.1} parent=1 // pred_check
      _
    $region75: #{forward.1} parent=1 // pred_check_branch
      %274 = sbr.rel (0) target = $region77
    $region76: #{forward.1} parent=1 // pred_region
      %s276 = ssub.s32 16, 16
      %277 = vsyncadd [#allocation24], %s276
      %s279 = sshll.u32 [#allocation23], 4
      %s280 = int_to_ptr.vmem [resolvable:$true] %s279
      %282 = dma.hbm_to_vmem [thread:$0]  %s37, 16, %s280, [#allocation24]
    $region77: #{forward.1} parent=1 // pred_fallthru
      _
    // Predicated region
    $region78: #{forward.1} parent=1 // pred_check
      _
    $region79: #{forward.1} parent=1 // pred_check_branch
      %284 = sbr.rel (0) target = $region81
    $region80: #{forward.1} parent=1 // pred_region
      %s286 = ssub.s32 512, 512
      %287 = vsyncadd [#allocation24], %s286
      %s288 = sshll.u32 [#allocation25], 4
      %s289 = int_to_ptr.vmem [resolvable:$true] %s288
      %294 = dma.hbm_to_vmem [thread:$0]  %s39, 512, %s289, [#allocation24], 128, 128, 8
    $region81: #{forward.1} parent=1 // pred_fallthru
      _
    // Predicated region
    $region82: #{forward.1} parent=1 // pred_check
      _
    $region83: #{forward.1} parent=1 // pred_check_branch
      %296 = sbr.rel (0) target = $region85
    $region84: #{forward.1} parent=1 // pred_region
      %s298 = ssub.s32 16, 16
      %299 = vsyncadd [#allocation27], %s298
      %s301 = sshll.u32 [#allocation26], 4
      %s302 = int_to_ptr.vmem [resolvable:$true] %s301
      %304 = dma.hbm_to_vmem [thread:$0]  %s41, 16, %s302, [#allocation27]
    $region85: #{forward.1} parent=1 // pred_fallthru
      _
    // Predicated region
    $region86: #{forward.1} parent=1 // pred_check
      _
    $region87: #{forward.1} parent=1 // pred_check_branch
      %306 = sbr.rel (0) target = $region89
    $region88: #{forward.1} parent=1 // pred_region
      %s308 = ssub.s32 16, 16
      %309 = vsyncadd [#allocation27], %s308
      %s311 = sshll.u32 [#allocation28], 4
      %s312 = int_to_ptr.vmem [resolvable:$true] %s311
      %314 = dma.hbm_to_vmem [thread:$0]  %s43, 16, %s312, [#allocation27]
    $region89: #{forward.1} parent=1 // pred_fallthru
      _
    // Predicated region
    $region90: #{forward.1} parent=1 // pred_check
      _
    $region91: #{forward.1} parent=1 // pred_check_branch
      %316 = sbr.rel (0) target = $region93
    $region92: #{forward.1} parent=1 // pred_region
      %s318 = ssub.s32 16, 16
      %319 = vsyncadd [#allocation30], %s318
      %s321 = sshll.u32 [#allocation29], 4
      %s322 = int_to_ptr.vmem [resolvable:$true] %s321
      %324 = dma.hbm_to_vmem [thread:$0]  %s45, 16, %s322, [#allocation30]
    $region93: #{forward.1} parent=1 // pred_fallthru
      _
    // Predicated region
    $region94: #{forward.1} parent=1 // pred_check
      _
    $region95: #{forward.1} parent=1 // pred_check_branch
      %326 = sbr.rel (0) target = $region97
    $region96: #{forward.1} parent=1 // pred_region
      %s328 = ssub.s32 512, 512
      %329 = vsyncadd [#allocation30], %s328
      %s330 = sshll.u32 [#allocation31], 4
      %s331 = int_to_ptr.vmem [resolvable:$true] %s330
      %336 = dma.hbm_to_vmem [thread:$0]  %s47, 512, %s331, [#allocation30], 128, 128, 8
    $region97: #{forward.1} parent=1 // pred_fallthru
      _
    // Predicated region
    $region98: #{forward.1} parent=1 // pred_check
      _
    $region99: #{forward.1} parent=1 // pred_check_branch
      %338 = sbr.rel (0) target = $region101
    $region100: #{forward.1} parent=1 // pred_region
      %s340 = ssub.s32 16, 16
      %341 = vsyncadd [#allocation33], %s340
      %s343 = sshll.u32 [#allocation32], 4
      %s344 = int_to_ptr.vmem [resolvable:$true] %s343
      %346 = dma.hbm_to_vmem [thread:$0]  %s49, 16, %s344, [#allocation33]
    $region101: #{forward.1} parent=1 // pred_fallthru
      _
    // Predicated region
    $region102: #{forward.1} parent=1 // pred_check
      _
    $region103: #{forward.1} parent=1 // pred_check_branch
      %348 = sbr.rel (0) target = $region105
    $region104: #{forward.1} parent=1 // pred_region
      %s350 = ssub.s32 16, 16
      %351 = vsyncadd [#allocation33], %s350
      %s353 = sshll.u32 [#allocation34], 4
      %s354 = int_to_ptr.vmem [resolvable:$true] %s353
      %356 = dma.hbm_to_vmem [thread:$0]  %s51, 16, %s354, [#allocation33]
    $region105: #{forward.1} parent=1 // pred_fallthru
      _
    // Predicated region
    $region106: #{forward.1} parent=1 // pred_check
      _
    $region107: #{forward.1} parent=1 // pred_check_branch
      %358 = sbr.rel (0) target = $region109
    $region108: #{forward.1} parent=1 // pred_region
      %s360 = ssub.s32 16, 16
      %361 = vsyncadd [#allocation36], %s360
      %s363 = sshll.u32 [#allocation35], 4
      %s364 = int_to_ptr.vmem [resolvable:$true] %s363
      %366 = dma.hbm_to_vmem [thread:$0]  %s53, 16, %s364, [#allocation36]
    $region109: #{forward.1} parent=1 // pred_fallthru
      _
    // Predicated region
    $region110: #{forward.1} parent=1 // pred_check
      _
    $region111: #{forward.1} parent=1 // pred_check_branch
      %368 = sbr.rel (0) target = $region113
    $region112: #{forward.1} parent=1 // pred_region
      _
    $region113: #{forward.1} parent=1 // pred_fallthru
      _
    // Predicated region
    $region114: #{forward.1} parent=1 // pred_check
      _
    $region115: #{forward.1} parent=1 // pred_check_branch
      %370 = sbr.rel (0) target = $region117
    $region116: #{forward.1} parent=1 // pred_region
      %s372 = ssub.s32 16, 16
      %373 = vsyncadd [#allocation36], %s372
      %s375 = sshll.u32 [#allocation37], 4
      %s376 = int_to_ptr.vmem [resolvable:$true] %s375
      %378 = dma.hbm_to_vmem [thread:$0]  %s57, 16, %s376, [#allocation36]
    $region117: #{forward.1} parent=1 // pred_fallthru
      _
    // Predicated region
    $region118: #{forward.1} parent=1 // pred_check
      _
    $region119: #{forward.1} parent=1 // pred_check_branch
      %380 = sbr.rel (0) target = $region121
    $region120: #{forward.1} parent=1 // pred_region
      %s382 = ssub.s32 16, 16
      %383 = vsyncadd [#allocation39], %s382
      %s385 = sshll.u32 [#allocation38], 4
      %s386 = int_to_ptr.vmem [resolvable:$true] %s385
      %388 = dma.hbm_to_vmem [thread:$0]  %s59, 16, %s386, [#allocation39]
    $region121: #{forward.1} parent=1 // pred_fallthru
      _
    // Predicated region
    $region122: #{forward.1} parent=1 // pred_check
      _
    $region123: #{forward.1} parent=1 // pred_check_branch
      %390 = sbr.rel (0) target = $region125
    $region124: #{forward.1} parent=1 // pred_region
      %s392 = ssub.s32 16, 16
      %393 = vsyncadd [#allocation39], %s392
      %s395 = sshll.u32 [#allocation40], 4
      %s396 = int_to_ptr.vmem [resolvable:$true] %s395
      %398 = dma.hbm_to_vmem [thread:$0]  %s61, 16, %s396, [#allocation39]
    $region125: #{forward.1} parent=1 // pred_fallthru
      _
    // Predicated region
    $region126: #{forward.1} parent=1 // pred_check
      _
    $region127: #{forward.1} parent=1 // pred_check_branch
      %400 = sbr.rel (0) target = $region129
    $region128: #{forward.1} parent=1 // pred_region
      _
    $region129: #{forward.1} parent=1 // pred_fallthru
      _
    // Predicated region
    $region130: #{forward.1} parent=1 // pred_check
      _
    $region131: #{forward.1} parent=1 // pred_check_branch
      %402 = sbr.rel (0) target = $region133
    $region132: #{forward.1} parent=1 // pred_region
      _
    $region133: #{forward.1} parent=1 // pred_fallthru
      _
    // Predicated region
    $region134: #{forward.1} parent=1 // pred_check
      _
    $region135: #{forward.1} parent=1 // pred_check_branch
      %404 = sbr.rel (0) target = $region137
    $region136: #{forward.1} parent=1 // pred_region
      _
    $region137: #{forward.1} parent=1 // pred_fallthru
      _
    // Predicated region
    $region138: #{forward.1} parent=1 // pred_check
      _
    $region139: #{forward.1} parent=1 // pred_check_branch
      %406 = sbr.rel (0) target = $region141
    $region140: #{forward.1} parent=1 // pred_region
      %s408 = ssub.s32 16, 16
      %409 = vsyncadd [#allocation42], %s408
      %s411 = sshll.u32 [#allocation41], 4
      %s412 = int_to_ptr.vmem [resolvable:$true] %s411
      %414 = dma.hbm_to_vmem [thread:$0]  %s69, 16, %s412, [#allocation42]
    $region141: #{forward.1} parent=1 // pred_fallthru
      _
    // Predicated region
    $region142: #{forward.1} parent=1 // pred_check
      _
    $region143: #{forward.1} parent=1 // pred_check_branch
      %416 = sbr.rel (0) target = $region145
    $region144: #{forward.1} parent=1 // pred_region
      _
    $region145: #{forward.1} parent=1 // pred_fallthru
      _
    // Predicated region
    $region146: #{forward.1} parent=1 // pred_check
      _
    $region147: #{forward.1} parent=1 // pred_check_branch
      %418 = sbr.rel (0) target = $region149
    $region148: #{forward.1} parent=1 // pred_region
      %s420 = ssub.s32 16, 16
      %421 = vsyncadd [#allocation42], %s420
      %s423 = sshll.u32 [#allocation43], 4
      %s424 = int_to_ptr.vmem [resolvable:$true] %s423
      %426 = dma.hbm_to_vmem [thread:$0]  %s73, 16, %s424, [#allocation42]
    $region149: #{forward.1} parent=1 // pred_fallthru
      _
    // Predicated region
    $region150: #{forward.1} parent=1 // pred_check
      _
    $region151: #{forward.1} parent=1 // pred_check_branch
      %428 = sbr.rel (0) target = $region153
    $region152: #{forward.1} parent=1 // pred_region
      %s430 = ssub.s32 16, 16
      %431 = vsyncadd [#allocation45], %s430
      %s433 = sshll.u32 [#allocation44], 4
      %s434 = int_to_ptr.vmem [resolvable:$true] %s433
      %436 = dma.hbm_to_vmem [thread:$0]  %s75, 16, %s434, [#allocation45]
    $region153: #{forward.1} parent=1 // pred_fallthru
      _
    // Predicated region
    $region154: #{forward.1} parent=1 // pred_check
      _
    $region155: #{forward.1} parent=1 // pred_check_branch
      %438 = sbr.rel (0) target = $region157
    $region156: #{forward.1} parent=1 // pred_region
      %s440 = ssub.s32 16, 16
      %441 = vsyncadd [#allocation45], %s440
      %s443 = sshll.u32 [#allocation46], 4
      %s444 = int_to_ptr.vmem [resolvable:$true] %s443
      %446 = dma.hbm_to_vmem [thread:$0]  %s77, 16, %s444, [#allocation45]
    $region157: #{forward.1} parent=1 // pred_fallthru
      _
    // Predicated region
    $region158: #{forward.1} parent=1 // pred_check
      _
    $region159: #{forward.1} parent=1 // pred_check_branch
      %448 = sbr.rel (0) target = $region161
    $region160: #{forward.1} parent=1 // pred_region
      _
    $region161: #{forward.1} parent=1 // pred_fallthru
      _
    // Predicated region
    $region162: #{forward.1} parent=1 // pred_check
      _
    $region163: #{forward.1} parent=1 // pred_check_branch
      %450 = sbr.rel (0) target = $region165
    $region164: #{forward.1} parent=1 // pred_region
      _
    $region165: #{forward.1} parent=1 // pred_fallthru
      _
    // Predicated region
    $region166: #{forward.1} parent=1 // pred_check
      _
    $region167: #{forward.1} parent=1 // pred_check_branch
      %452 = sbr.rel (0) target = $region169
    $region168: #{forward.1} parent=1 // pred_region
      _
    $region169: #{forward.1} parent=1 // pred_fallthru
      _
    // Predicated region
    $region170: #{forward.1} parent=1 // pred_check
      _
    $region171: #{forward.1} parent=1 // pred_check_branch
      %454 = sbr.rel (0) target = $region173
    $region172: #{forward.1} parent=1 // pred_region
      _
    $region173: #{forward.1} parent=1 // pred_fallthru
      _
    // Predicated region
    $region174: #{forward.1} parent=1 // pred_check
      _
    $region175: #{forward.1} parent=1 // pred_check_branch
      %456 = sbr.rel (0) target = $region177
    $region176: #{forward.1} parent=1 // pred_region
      _
    $region177: #{forward.1} parent=1 // pred_fallthru
      _
    // Predicated region
    $region178: #{forward.1} parent=1 // pred_check
      _
    $region179: #{forward.1} parent=1 // pred_check_branch
      %458 = sbr.rel (0) target = $region181
    $region180: #{forward.1} parent=1 // pred_region
      _
    $region181: #{forward.1} parent=1 // pred_fallthru
      _
    // Predicated region
    $region182: #{forward.1} parent=1 // pred_check
      _
    $region183: #{forward.1} parent=1 // pred_check_branch
      %460 = sbr.rel (0) target = $region185
    $region184: #{forward.1} parent=1 // pred_region
      _
    $region185: #{forward.1} parent=1 // pred_fallthru
      _
    // Predicated region
    $region186: #{forward.1} parent=1 // pred_check
      _
    $region187: #{forward.1} parent=1 // pred_check_branch
      %462 = sbr.rel (0) target = $region189
    $region188: #{forward.1} parent=1 // pred_region
      _
    $region189: #{forward.1} parent=1 // pred_fallthru
      _
    // Predicated region
    $region190: #{forward.1} parent=1 // pred_check
      _
    $region191: #{forward.1} parent=1 // pred_check_branch
      %464 = sbr.rel (0) target = $region193
    $region192: #{forward.1} parent=1 // pred_region
      _
    $region193: #{forward.1} parent=1 // pred_fallthru
      _
    // Predicated region
    $region194: #{forward.1} parent=1 // pred_check
      _
    $region195: #{forward.1} parent=1 // pred_check_branch
      %466 = sbr.rel (0) target = $region197
    $region196: #{forward.1} parent=1 // pred_region
      _
    $region197: #{forward.1} parent=1 // pred_fallthru
      _
    // Predicated region
    $region198: #{forward.1} parent=1 // pred_check
      _
    $region199: #{forward.1} parent=1 // pred_check_branch
      %468 = sbr.rel (0) target = $region201
    $region200: #{forward.1} parent=1 // pred_region
      _
    $region201: #{forward.1} parent=1 // pred_fallthru
      _
    // Predicated region
    $region202: #{forward.1} parent=1 // pred_check
      _
    $region203: #{forward.1} parent=1 // pred_check_branch
      %470 = sbr.rel (0) target = $region205
    $region204: #{forward.1} parent=1 // pred_region
      _
    $region205: #{forward.1} parent=1 // pred_fallthru
      _
    // Predicated region
    $region206: #{forward.1} parent=1 // pred_check
      _
    $region207: #{forward.1} parent=1 // pred_check_branch
      %472 = sbr.rel (0) target = $region209
    $region208: #{forward.1} parent=1 // pred_region
      %473 = dma.done [#allocation3], 32
    $region209: #{forward.1} parent=1 // pred_fallthru
      _
    // Predicated region
    $region210: #{forward.1} parent=1 // pred_check
      _
    $region211: #{forward.1} parent=1 // pred_check_branch
      %475 = sbr.rel (0) target = $region213
    $region212: #{forward.1} parent=1 // pred_region
      %476 = dma.done [#allocation6], 512
    $region213: #{forward.1} parent=1 // pred_fallthru
      _
    // Predicated region
    $region214: #{forward.1} parent=1 // pred_check
      _
    $region215: #{forward.1} parent=1 // pred_check_branch
      %478 = sbr.rel (0) target = $region217
    $region216: #{forward.1} parent=1 // pred_region
      %479 = dma.done [#allocation6], 16
    $region217: #{forward.1} parent=1 // pred_fallthru
      _
    // Predicated region
    $region218: #{forward.1} parent=1 // pred_check
      _
    $region219: #{forward.1} parent=1 // pred_check_branch
      %481 = sbr.rel (0) target = $region221
    $region220: #{forward.1} parent=1 // pred_region
      %482 = dma.done [#allocation9], 16
    $region221: #{forward.1} parent=1 // pred_fallthru
      _
    // Predicated region
    $region222: #{forward.1} parent=1 // pred_check
      _
    $region223: #{forward.1} parent=1 // pred_check_branch
      %484 = sbr.rel (0) target = $region225
    $region224: #{forward.1} parent=1 // pred_region
      %485 = dma.done [#allocation9], 16
    $region225: #{forward.1} parent=1 // pred_fallthru
      _
    // Predicated region
    $region226: #{forward.1} parent=1 // pred_check
      _
    $region227: #{forward.1} parent=1 // pred_check_branch
      %487 = sbr.rel (0) target = $region229
    $region228: #{forward.1} parent=1 // pred_region
      %488 = dma.done [#allocation12], 16
    $region229: #{forward.1} parent=1 // pred_fallthru
      _
    // Predicated region
    $region230: #{forward.1} parent=1 // pred_check
      _
    $region231: #{forward.1} parent=1 // pred_check_branch
      %490 = sbr.rel (0) target = $region233
    $region232: #{forward.1} parent=1 // pred_region
      %491 = dma.done [#allocation12], 16
    $region233: #{forward.1} parent=1 // pred_fallthru
      _
    // Predicated region
    $region234: #{forward.1} parent=1 // pred_check
      _
    $region235: #{forward.1} parent=1 // pred_check_branch
      %493 = sbr.rel (0) target = $region237
    $region236: #{forward.1} parent=1 // pred_region
      %494 = dma.done [#allocation15], 16
    $region237: #{forward.1} parent=1 // pred_fallthru
      _
    // Predicated region
    $region238: #{forward.1} parent=1 // pred_check
      _
    $region239: #{forward.1} parent=1 // pred_check_branch
      %496 = sbr.rel (0) target = $region241
    $region240: #{forward.1} parent=1 // pred_region
      %497 = dma.done [#allocation15], 16
    $region241: #{forward.1} parent=1 // pred_fallthru
      _
    // Predicated region
    $region242: #{forward.1} parent=1 // pred_check
      _
    $region243: #{forward.1} parent=1 // pred_check_branch
      %499 = sbr.rel (0) target = $region245
    $region244: #{forward.1} parent=1 // pred_region
      %500 = dma.done [#allocation18], 16
    $region245: #{forward.1} parent=1 // pred_fallthru
      _
    // Predicated region
    $region246: #{forward.1} parent=1 // pred_check
      _
    $region247: #{forward.1} parent=1 // pred_check_branch
      %502 = sbr.rel (0) target = $region249
    $region248: #{forward.1} parent=1 // pred_region
      %503 = dma.done [#allocation18], 16
    $region249: #{forward.1} parent=1 // pred_fallthru
      _
    // Predicated region
    $region250: #{forward.1} parent=1 // pred_check
      _
    $region251: #{forward.1} parent=1 // pred_check_branch
      %505 = sbr.rel (0) target = $region253
    $region252: #{forward.1} parent=1 // pred_region
      %506 = dma.done [#allocation21], 16
    $region253: #{forward.1} parent=1 // pred_fallthru
      _
    // Predicated region
    $region254: #{forward.1} parent=1 // pred_check
      _
    $region255: #{forward.1} parent=1 // pred_check_branch
      %508 = sbr.rel (0) target = $region257
    $region256: #{forward.1} parent=1 // pred_region
      %509 = dma.done [#allocation21], 16
    $region257: #{forward.1} parent=1 // pred_fallthru
      _
    // Predicated region
    $region258: #{forward.1} parent=1 // pred_check
      _
    $region259: #{forward.1} parent=1 // pred_check_branch
      %511 = sbr.rel (0) target = $region261
    $region260: #{forward.1} parent=1 // pred_region
      %512 = dma.done [#allocation24], 16
    $region261: #{forward.1} parent=1 // pred_fallthru
      _
    // Predicated region
    $region262: #{forward.1} parent=1 // pred_check
      _
    $region263: #{forward.1} parent=1 // pred_check_branch
      %514 = sbr.rel (0) target = $region265
    $region264: #{forward.1} parent=1 // pred_region
      %515 = dma.done [#allocation24], 512
    $region265: #{forward.1} parent=1 // pred_fallthru
      _
    // Predicated region
    $region266: #{forward.1} parent=1 // pred_check
      _
    $region267: #{forward.1} parent=1 // pred_check_branch
      %517 = sbr.rel (0) target = $region269
    $region268: #{forward.1} parent=1 // pred_region
      %518 = dma.done [#allocation27], 16
    $region269: #{forward.1} parent=1 // pred_fallthru
      _
    // Predicated region
    $region270: #{forward.1} parent=1 // pred_check
      _
    $region271: #{forward.1} parent=1 // pred_check_branch
      %520 = sbr.rel (0) target = $region273
    $region272: #{forward.1} parent=1 // pred_region
      %521 = dma.done [#allocation27], 16
    $region273: #{forward.1} parent=1 // pred_fallthru
      _
    // Predicated region
    $region274: #{forward.1} parent=1 // pred_check
      _
    $region275: #{forward.1} parent=1 // pred_check_branch
      %523 = sbr.rel (0) target = $region277
    $region276: #{forward.1} parent=1 // pred_region
      %524 = dma.done [#allocation30], 16
    $region277: #{forward.1} parent=1 // pred_fallthru
      _
    // Predicated region
    $region278: #{forward.1} parent=1 // pred_check
      _
    $region279: #{forward.1} parent=1 // pred_check_branch
      %526 = sbr.rel (0) target = $region281
    $region280: #{forward.1} parent=1 // pred_region
      %527 = dma.done [#allocation30], 512
    $region281: #{forward.1} parent=1 // pred_fallthru
      _
    // Predicated region
    $region282: #{forward.1} parent=1 // pred_check
      _
    $region283: #{forward.1} parent=1 // pred_check_branch
      %529 = sbr.rel (0) target = $region285
    $region284: #{forward.1} parent=1 // pred_region
      %530 = dma.done [#allocation33], 16
    $region285: #{forward.1} parent=1 // pred_fallthru
      _
    // Predicated region
    $region286: #{forward.1} parent=1 // pred_check
      _
    $region287: #{forward.1} parent=1 // pred_check_branch
      %532 = sbr.rel (0) target = $region289
    $region288: #{forward.1} parent=1 // pred_region
      %533 = dma.done [#allocation33], 16
    $region289: #{forward.1} parent=1 // pred_fallthru
      _
    // Predicated region
    $region290: #{forward.1} parent=1 // pred_check
      _
    $region291: #{forward.1} parent=1 // pred_check_branch
      %535 = sbr.rel (0) target = $region293
    $region292: #{forward.1} parent=1 // pred_region
      %536 = dma.done [#allocation36], 16
    $region293: #{forward.1} parent=1 // pred_fallthru
      _
    // Predicated region
    $region294: #{forward.1} parent=1 // pred_check
      _
    $region295: #{forward.1} parent=1 // pred_check_branch
      %538 = sbr.rel (0) target = $region297
    $region296: #{forward.1} parent=1 // pred_region
      %539 = dma.done [#allocation36], 16
    $region297: #{forward.1} parent=1 // pred_fallthru
      _
    // Predicated region
    $region298: #{forward.1} parent=1 // pred_check
      _
    $region299: #{forward.1} parent=1 // pred_check_branch
      %541 = sbr.rel (0) target = $region301
    $region300: #{forward.1} parent=1 // pred_region
      %542 = dma.done [#allocation39], 16
    $region301: #{forward.1} parent=1 // pred_fallthru
      _
    // Predicated region
    $region302: #{forward.1} parent=1 // pred_check
      _
    $region303: #{forward.1} parent=1 // pred_check_branch
      %544 = sbr.rel (0) target = $region305
    $region304: #{forward.1} parent=1 // pred_region
      %545 = dma.done [#allocation39], 16
    $region305: #{forward.1} parent=1 // pred_fallthru
      _
    // Predicated region
    $region306: #{forward.1} parent=1 // pred_check
      _
    $region307: #{forward.1} parent=1 // pred_check_branch
      %547 = sbr.rel (0) target = $region309
    $region308: #{forward.1} parent=1 // pred_region
      %548 = dma.done [#allocation42], 16
    $region309: #{forward.1} parent=1 // pred_fallthru
      _
    // Predicated region
    $region310: #{forward.1} parent=1 // pred_check
      _
    $region311: #{forward.1} parent=1 // pred_check_branch
      %550 = sbr.rel (0) target = $region313
    $region312: #{forward.1} parent=1 // pred_region
      %551 = dma.done [#allocation42], 16
    $region313: #{forward.1} parent=1 // pred_fallthru
      _
    // Predicated region
    $region314: #{forward.1} parent=1 // pred_check
      _
    $region315: #{forward.1} parent=1 // pred_check_branch
      %553 = sbr.rel (0) target = $region317
    $region316: #{forward.1} parent=1 // pred_region
      %554 = dma.done [#allocation45], 16
    $region317: #{forward.1} parent=1 // pred_fallthru
      _
    // Predicated region
    $region318: #{forward.1} parent=1 // pred_check
      _
    $region319: #{forward.1} parent=1 // pred_check_branch
      %556 = sbr.rel (0) target = $region321
    $region320: #{forward.1} parent=1 // pred_region
      %557 = dma.done [#allocation45], 16
    $region321: #{forward.1} parent=1 // pred_fallthru
      _
    %v558 = vld [vmem:[#allocation2] sm:$0x3]
    %v559 = vld [vmem:[#allocation5] sm:$0xff]
    %v560 = vld [vmem:[#allocation5 + $0x8] sm:$0xff]
    %v561 = vld [vmem:[#allocation5 + $0x10] sm:$0xff]
    %v562 = vld [vmem:[#allocation5 + $0x18] sm:$0xff]
    %v563 = vld [vmem:[%s5] sm:$0x1]
    %v565 = vlaneseq
    %v566 = vshrl.u32 %v565, 7
    %v567 = vsub.s32 0, %v566
    %v568 = vrot.slane %v563, %v567
    %vm570 = vcmask 261120
    %v572 = vsel %vm570, %v558, 0
    %574 = vmatprep.subr.mxu0 0.0
    %v575 = vand.u32 %v559, 4294901760
    %576 = vmatpush1.msra.mxu0 %v575
    %577 = vmatprep.subr.mxu0 0.0
    %v578 = vand.u32 %v560, 4294901760
    %579 = vmatpush1.msra.mxu0 %v578
    %580 = vmatprep.subr.mxu0 0.0
    %v581 = vand.u32 %v561, 4294901760
    %582 = vmatpush1.msra.mxu0 %v581
    %583 = vmatprep.subr.mxu0 0.0
    %v584 = vand.u32 %v562, 4294901760
    %585 = vmatpush1.msra.mxu0 %v584
    %586 = vmatprep.subr.mxu0 0.0
    %587 = vmatpush1.msra.mxu0 0.0
    %588 = vmatprep.subr.mxu0 0.0
    %589 = vmatpush1.msra.mxu0 0.0
    %590 = vmatprep.subr.mxu0 0.0
    %591 = vmatpush1.msra.mxu0 0.0
    %592 = vmatprep.subr.mxu0 0.0
    %593 = vmatpush1.msra.mxu0 0.0
    %594 = vmatprep.subr.mxu0 0.0
    %595 = vmatpush1.msra.mxu0 0.0
    %596 = vmatprep.subr.mxu0 0.0
    %597 = vmatpush1.msra.mxu0 0.0
    %598 = vmatprep.subr.mxu0 0.0
    %599 = vmatpush1.msra.mxu0 0.0
    %600 = vmatprep.subr.mxu0 0.0
    %601 = vmatpush1.msra.mxu0 0.0
    %602 = vmatprep.subr.mxu0 0.0
    %603 = vmatpush1.msra.mxu0 0.0
    %604 = vmatprep.subr.mxu0 0.0
    %605 = vmatpush1.msra.mxu0 0.0
    %606 = vmatprep.subr.mxu0 0.0
    %607 = vmatpush1.msra.mxu0 0.0
    %608 = vmatprep.subr.mxu0 0.0
    %609 = vmatpush1.msra.mxu0 0.0
    %610 = vmatprep.subr.mxu0 0.0
    %611 = vmatpush1.msra.mxu0 0.0
    %612 = vmatprep.subr.mxu0 0.0
    %613 = vmatpush1.msra.mxu0 0.0
    %614 = vmatprep.subr.mxu0 0.0
    %615 = vmatpush1.msra.mxu0 0.0
    %616 = vmatprep.subr.mxu0 0.0
    %617 = vmatpush1.msra.mxu0 0.0
    %618 = vmatprep.subr.mxu0 0.0
    %619 = vmatpush1.msra.mxu0 0.0
    %620 = vmatprep.subr.mxu0 0.0
    %621 = vmatpush1.msra.mxu0 0.0
    %622 = vmatprep.subr.mxu0 0.0
    %623 = vmatpush1.msra.mxu0 0.0
    %624 = vmatprep.subr.mxu0 0.0
    %625 = vmatpush1.msra.mxu0 0.0
    %626 = vmatprep.subr.mxu0 0.0
    %627 = vmatpush1.msra.mxu0 0.0
    %628 = vmatprep.subr.mxu0 0.0
    %629 = vmatpush1.msra.mxu0 0.0
    %630 = vmatprep.subr.mxu0 0.0
    %631 = vmatpush1.msra.mxu0 0.0
    %632 = vmatprep.subr.mxu0 0.0
    %633 = vmatpush1.msra.mxu0 0.0
    %634 = vmatprep.subr.mxu0 0.0
    %635 = vmatpush1.msra.mxu0 0.0
    %636 = vmatprep.subr.mxu0 0.0
    %637 = vmatpush1.msra.mxu0 0.0
    %638 = vmatprep.subr.mxu0 0.0
    %639 = vmatpush1.msra.mxu0 0.0
    %640 = vmatprep.subr.mxu0 0.0
    %641 = vmatpush1.msra.mxu0 0.0
    %642 = vmatprep.mubr.f32.mxu0 0.0
    %v643 = vand.u32 %v572, 4294901760
    %v644 = vsub.f32 %v572, %v643
    %v645 = vand.u32 %v644, 4294901760
    %v646 = vsub.f32 %v644, %v645
    %v647 = vand.u32 %v646, 4294901760
    %648 = vmatmul.mubr.f32.gmra.mrb[0].mxu0 %v647
    %v649 = vpop.f32.mrb[0].mxu0
    %v650 = vadd.f32 %v568, %v649
    %v651 = vpop.f32.mrb[0].mxu0
    %652 = vdwg.mxu0
    %653 = vmatprep.subr.mxu0 0.0
    %v654 = vand.u32 %v559, 4294901760
    %v655 = vsub.f32 %v559, %v654
    %v656 = vand.u32 %v655, 4294901760
    %v657 = vsub.f32 %v655, %v656
    %v658 = vand.u32 %v657, 4294901760
    %659 = vmatpush1.msra.mxu0 %v658
    %660 = vmatprep.subr.mxu0 0.0
    %v661 = vand.u32 %v560, 4294901760
    %v662 = vsub.f32 %v560, %v661
    %v663 = vand.u32 %v662, 4294901760
    %v664 = vsub.f32 %v662, %v663
    %v665 = vand.u32 %v664, 4294901760
    %666 = vmatpush1.msra.mxu0 %v665
    %667 = vmatprep.subr.mxu0 0.0
    %v668 = vand.u32 %v561, 4294901760
    %v669 = vsub.f32 %v561, %v668
    %v670 = vand.u32 %v669, 4294901760
    %v671 = vsub.f32 %v669, %v670
    %v672 = vand.u32 %v671, 4294901760
    %673 = vmatpush1.msra.mxu0 %v672
    %674 = vmatprep.subr.mxu0 0.0
    %v675 = vand.u32 %v562, 4294901760
    %v676 = vsub.f32 %v562, %v675
    %v677 = vand.u32 %v676, 4294901760
    %v678 = vsub.f32 %v676, %v677
    %v679 = vand.u32 %v678, 4294901760
    %680 = vmatpush1.msra.mxu0 %v679
    %681 = vmatprep.subr.mxu0 0.0
    %682 = vmatpush1.msra.mxu0 0.0
    %683 = vmatprep.subr.mxu0 0.0
    %684 = vmatpush1.msra.mxu0 0.0
    %685 = vmatprep.subr.mxu0 0.0
    %686 = vmatpush1.msra.mxu0 0.0
    %687 = vmatprep.subr.mxu0 0.0
    %688 = vmatpush1.msra.mxu0 0.0
    %689 = vmatprep.subr.mxu0 0.0
    %690 = vmatpush1.msra.mxu0 0.0
    %691 = vmatprep.subr.mxu0 0.0
    %692 = vmatpush1.msra.mxu0 0.0
    %693 = vmatprep.subr.mxu0 0.0
    %694 = vmatpush1.msra.mxu0 0.0
    %695 = vmatprep.subr.mxu0 0.0
    %696 = vmatpush1.msra.mxu0 0.0
    %697 = vmatprep.subr.mxu0 0.0
    %698 = vmatpush1.msra.mxu0 0.0
    %699 = vmatprep.subr.mxu0 0.0
    %700 = vmatpush1.msra.mxu0 0.0
    %701 = vmatprep.subr.mxu0 0.0
    %702 = vmatpush1.msra.mxu0 0.0
    %703 = vmatprep.subr.mxu0 0.0
    %704 = vmatpush1.msra.mxu0 0.0
    %705 = vmatprep.subr.mxu0 0.0
    %706 = vmatpush1.msra.mxu0 0.0
    %707 = vmatprep.subr.mxu0 0.0
    %708 = vmatpush1.msra.mxu0 0.0
    %709 = vmatprep.subr.mxu0 0.0
    %710 = vmatpush1.msra.mxu0 0.0
    %711 = vmatprep.subr.mxu0 0.0
    %712 = vmatpush1.msra.mxu0 0.0
    %713 = vmatprep.subr.mxu0 0.0
    %714 = vmatpush1.msra.mxu0 0.0
    %715 = vmatprep.subr.mxu0 0.0
    %716 = vmatpush1.msra.mxu0 0.0
    %717 = vmatprep.subr.mxu0 0.0
    %718 = vmatpush1.msra.mxu0 0.0
    %719 = vmatprep.subr.mxu0 0.0
    %720 = vmatpush1.msra.mxu0 0.0
    %721 = vmatprep.subr.mxu0 0.0
    %722 = vmatpush1.msra.mxu0 0.0
    %723 = vmatprep.subr.mxu0 0.0
    %724 = vmatpush1.msra.mxu0 0.0
    %725 = vmatprep.subr.mxu0 0.0
    %726 = vmatpush1.msra.mxu0 0.0
    %727 = vmatprep.subr.mxu0 0.0
    %728 = vmatpush1.msra.mxu0 0.0
    %729 = vmatprep.subr.mxu0 0.0
    %730 = vmatpush1.msra.mxu0 0.0
    %731 = vmatprep.subr.mxu0 0.0
    %732 = vmatpush1.msra.mxu0 0.0
    %733 = vmatprep.subr.mxu0 0.0
    %734 = vmatpush1.msra.mxu0 0.0
    %735 = vmatprep.subr.mxu0 0.0
    %736 = vmatpush1.msra.mxu0 0.0
    %737 = vmatprep.mubr.f32.mxu0 0.0
    %v738 = vand.u32 %v572, 4294901760
    %739 = vmatmul.mubr.f32.gmra.mrb[0].mxu0 %v738
    %v740 = vpop.f32.mrb[0].mxu0
    %v741 = vadd.f32 %v650, %v740
    %v742 = vpop.f32.mrb[0].mxu0
    %743 = vdwg.mxu0
    %744 = vmatprep.subr.mxu0 0.0
    %v745 = vand.u32 %v559, 4294901760
    %v746 = vsub.f32 %v559, %v745
    %747 = vmatpush1.msra.mxu0 %v746
    %748 = vmatprep.subr.mxu0 0.0
    %v749 = vand.u32 %v560, 4294901760
    %v750 = vsub.f32 %v560, %v749
    %751 = vmatpush1.msra.mxu0 %v750
    %752 = vmatprep.subr.mxu0 0.0
    %v753 = vand.u32 %v561, 4294901760
    %v754 = vsub.f32 %v561, %v753
    %755 = vmatpush1.msra.mxu0 %v754
    %756 = vmatprep.subr.mxu0 0.0
    %v757 = vand.u32 %v562, 4294901760
    %v758 = vsub.f32 %v562, %v757
    %759 = vmatpush1.msra.mxu0 %v758
    %760 = vmatprep.subr.mxu0 0.0
    %761 = vmatpush1.msra.mxu0 0.0
    %762 = vmatprep.subr.mxu0 0.0
    %763 = vmatpush1.msra.mxu0 0.0
    %764 = vmatprep.subr.mxu0 0.0
    %765 = vmatpush1.msra.mxu0 0.0
    %766 = vmatprep.subr.mxu0 0.0
    %767 = vmatpush1.msra.mxu0 0.0
    %768 = vmatprep.subr.mxu0 0.0
    %769 = vmatpush1.msra.mxu0 0.0
    %770 = vmatprep.subr.mxu0 0.0
    %771 = vmatpush1.msra.mxu0 0.0
    %772 = vmatprep.subr.mxu0 0.0
    %773 = vmatpush1.msra.mxu0 0.0
    %774 = vmatprep.subr.mxu0 0.0
    %775 = vmatpush1.msra.mxu0 0.0
    %776 = vmatprep.subr.mxu0 0.0
    %777 = vmatpush1.msra.mxu0 0.0
    %778 = vmatprep.subr.mxu0 0.0
    %779 = vmatpush1.msra.mxu0 0.0
    %780 = vmatprep.subr.mxu0 0.0
    %781 = vmatpush1.msra.mxu0 0.0
    %782 = vmatprep.subr.mxu0 0.0
    %783 = vmatpush1.msra.mxu0 0.0
    %784 = vmatprep.subr.mxu0 0.0
    %785 = vmatpush1.msra.mxu0 0.0
    %786 = vmatprep.subr.mxu0 0.0
    %787 = vmatpush1.msra.mxu0 0.0
    %788 = vmatprep.subr.mxu0 0.0
    %789 = vmatpush1.msra.mxu0 0.0
    %790 = vmatprep.subr.mxu0 0.0
    %791 = vmatpush1.msra.mxu0 0.0
    %792 = vmatprep.subr.mxu0 0.0
    %793 = vmatpush1.msra.mxu0 0.0
    %794 = vmatprep.subr.mxu0 0.0
    %795 = vmatpush1.msra.mxu0 0.0
    %796 = vmatprep.subr.mxu0 0.0
    %797 = vmatpush1.msra.mxu0 0.0
    %798 = vmatprep.subr.mxu0 0.0
    %799 = vmatpush1.msra.mxu0 0.0
    %800 = vmatprep.subr.mxu0 0.0
    %801 = vmatpush1.msra.mxu0 0.0
    %802 = vmatprep.subr.mxu0 0.0
    %803 = vmatpush1.msra.mxu0 0.0
    %804 = vmatprep.subr.mxu0 0.0
    %805 = vmatpush1.msra.mxu0 0.0
    %806 = vmatprep.subr.mxu0 0.0
    %807 = vmatpush1.msra.mxu0 0.0
    %808 = vmatprep.subr.mxu0 0.0
    %809 = vmatpush1.msra.mxu0 0.0
    %810 = vmatprep.subr.mxu0 0.0
    %811 = vmatpush1.msra.mxu0 0.0
    %812 = vmatprep.subr.mxu0 0.0
    %813 = vmatpush1.msra.mxu0 0.0
    %814 = vmatprep.subr.mxu0 0.0
    %815 = vmatpush1.msra.mxu0 0.0
    %816 = vmatprep.mubr.f32.mxu0 0.0
    %v817 = vand.u32 %v572, 4294901760
    %v818 = vsub.f32 %v572, %v817
    %819 = vmatmul.mubr.f32.gmra.mrb[0].mxu0 %v818
    %v820 = vpop.f32.mrb[0].mxu0
    %v821 = vadd.f32 %v741, %v820
    %v822 = vpop.f32.mrb[0].mxu0
    %823 = vdwg.mxu0
    %824 = vmatprep.subr.mxu0 0.0
    %v825 = vand.u32 %v559, 4294901760
    %826 = vmatpush1.msra.mxu0 %v825
    %827 = vmatprep.subr.mxu0 0.0
    %v828 = vand.u32 %v560, 4294901760
    %829 = vmatpush1.msra.mxu0 %v828
    %830 = vmatprep.subr.mxu0 0.0
    %v831 = vand.u32 %v561, 4294901760
    %832 = vmatpush1.msra.mxu0 %v831
    %833 = vmatprep.subr.mxu0 0.0
    %v834 = vand.u32 %v562, 4294901760
    %835 = vmatpush1.msra.mxu0 %v834
    %836 = vmatprep.subr.mxu0 0.0
    %837 = vmatpush1.msra.mxu0 0.0
    %838 = vmatprep.subr.mxu0 0.0
    %839 = vmatpush1.msra.mxu0 0.0
    %840 = vmatprep.subr.mxu0 0.0
    %841 = vmatpush1.msra.mxu0 0.0
    %842 = vmatprep.subr.mxu0 0.0
    %843 = vmatpush1.msra.mxu0 0.0
    %844 = vmatprep.subr.mxu0 0.0
    %845 = vmatpush1.msra.mxu0 0.0
    %846 = vmatprep.subr.mxu0 0.0
    %847 = vmatpush1.msra.mxu0 0.0
    %848 = vmatprep.subr.mxu0 0.0
    %849 = vmatpush1.msra.mxu0 0.0
    %850 = vmatprep.subr.mxu0 0.0
    %851 = vmatpush1.msra.mxu0 0.0
    %852 = vmatprep.subr.mxu0 0.0
    %853 = vmatpush1.msra.mxu0 0.0
    %854 = vmatprep.subr.mxu0 0.0
    %855 = vmatpush1.msra.mxu0 0.0
    %856 = vmatprep.subr.mxu0 0.0
    %857 = vmatpush1.msra.mxu0 0.0
    %858 = vmatprep.subr.mxu0 0.0
    %859 = vmatpush1.msra.mxu0 0.0
    %860 = vmatprep.subr.mxu0 0.0
    %861 = vmatpush1.msra.mxu0 0.0
    %862 = vmatprep.subr.mxu0 0.0
    %863 = vmatpush1.msra.mxu0 0.0
    %864 = vmatprep.subr.mxu0 0.0
    %865 = vmatpush1.msra.mxu0 0.0
    %866 = vmatprep.subr.mxu0 0.0
    %867 = vmatpush1.msra.mxu0 0.0
    %868 = vmatprep.subr.mxu0 0.0
    %869 = vmatpush1.msra.mxu0 0.0
    %870 = vmatprep.subr.mxu0 0.0
    %871 = vmatpush1.msra.mxu0 0.0
    %872 = vmatprep.subr.mxu0 0.0
    %873 = vmatpush1.msra.mxu0 0.0
    %874 = vmatprep.subr.mxu0 0.0
    %875 = vmatpush1.msra.mxu0 0.0
    %876 = vmatprep.subr.mxu0 0.0
    %877 = vmatpush1.msra.mxu0 0.0
    %878 = vmatprep.subr.mxu0 0.0
    %879 = vmatpush1.msra.mxu0 0.0
    %880 = vmatprep.subr.mxu0 0.0
    %881 = vmatpush1.msra.mxu0 0.0
    %882 = vmatprep.subr.mxu0 0.0
    %883 = vmatpush1.msra.mxu0 0.0
    %884 = vmatprep.subr.mxu0 0.0
    %885 = vmatpush1.msra.mxu0 0.0
    %886 = vmatprep.subr.mxu0 0.0
    %887 = vmatpush1.msra.mxu0 0.0
    %888 = vmatprep.subr.mxu0 0.0
    %889 = vmatpush1.msra.mxu0 0.0
    %890 = vmatprep.subr.mxu0 0.0
    %891 = vmatpush1.msra.mxu0 0.0
    %892 = vmatprep.mubr.f32.mxu0 0.0
    %v893 = vand.u32 %v572, 4294901760
    %v894 = vsub.f32 %v572, %v893
    %v895 = vand.u32 %v894, 4294901760
    %896 = vmatmul.mubr.f32.gmra.mrb[0].mxu0 %v895
    %v897 = vpop.f32.mrb[0].mxu0
    %v898 = vadd.f32 %v821, %v897
    %v899 = vpop.f32.mrb[0].mxu0
    %900 = vdwg.mxu0
    %901 = vmatprep.subr.mxu0 0.0
    %v902 = vand.u32 %v559, 4294901760
    %v903 = vsub.f32 %v559, %v902
    %v904 = vand.u32 %v903, 4294901760
    %905 = vmatpush1.msra.mxu0 %v904
    %906 = vmatprep.subr.mxu0 0.0
    %v907 = vand.u32 %v560, 4294901760
    %v908 = vsub.f32 %v560, %v907
    %v909 = vand.u32 %v908, 4294901760
    %910 = vmatpush1.msra.mxu0 %v909
    %911 = vmatprep.subr.mxu0 0.0
    %v912 = vand.u32 %v561, 4294901760
    %v913 = vsub.f32 %v561, %v912
    %v914 = vand.u32 %v913, 4294901760
    %915 = vmatpush1.msra.mxu0 %v914
    %916 = vmatprep.subr.mxu0 0.0
    %v917 = vand.u32 %v562, 4294901760
    %v918 = vsub.f32 %v562, %v917
    %v919 = vand.u32 %v918, 4294901760
    %920 = vmatpush1.msra.mxu0 %v919
    %921 = vmatprep.subr.mxu0 0.0
    %922 = vmatpush1.msra.mxu0 0.0
    %923 = vmatprep.subr.mxu0 0.0
    %924 = vmatpush1.msra.mxu0 0.0
    %925 = vmatprep.subr.mxu0 0.0
    %926 = vmatpush1.msra.mxu0 0.0
    %927 = vmatprep.subr.mxu0 0.0
    %928 = vmatpush1.msra.mxu0 0.0
    %929 = vmatprep.subr.mxu0 0.0
    %930 = vmatpush1.msra.mxu0 0.0
    %931 = vmatprep.subr.mxu0 0.0
    %932 = vmatpush1.msra.mxu0 0.0
    %933 = vmatprep.subr.mxu0 0.0
    %934 = vmatpush1.msra.mxu0 0.0
    %935 = vmatprep.subr.mxu0 0.0
    %936 = vmatpush1.msra.mxu0 0.0
    %937 = vmatprep.subr.mxu0 0.0
    %938 = vmatpush1.msra.mxu0 0.0
    %939 = vmatprep.subr.mxu0 0.0
    %940 = vmatpush1.msra.mxu0 0.0
    %941 = vmatprep.subr.mxu0 0.0
    %942 = vmatpush1.msra.mxu0 0.0
    %943 = vmatprep.subr.mxu0 0.0
    %944 = vmatpush1.msra.mxu0 0.0
    %945 = vmatprep.subr.mxu0 0.0
    %946 = vmatpush1.msra.mxu0 0.0
    %947 = vmatprep.subr.mxu0 0.0
    %948 = vmatpush1.msra.mxu0 0.0
    %949 = vmatprep.subr.mxu0 0.0
    %950 = vmatpush1.msra.mxu0 0.0
    %951 = vmatprep.subr.mxu0 0.0
    %952 = vmatpush1.msra.mxu0 0.0
    %953 = vmatprep.subr.mxu0 0.0
    %954 = vmatpush1.msra.mxu0 0.0
    %955 = vmatprep.subr.mxu0 0.0
    %956 = vmatpush1.msra.mxu0 0.0
    %957 = vmatprep.subr.mxu0 0.0
    %958 = vmatpush1.msra.mxu0 0.0
    %959 = vmatprep.subr.mxu0 0.0
    %960 = vmatpush1.msra.mxu0 0.0
    %961 = vmatprep.subr.mxu0 0.0
    %962 = vmatpush1.msra.mxu0 0.0
    %963 = vmatprep.subr.mxu0 0.0
    %964 = vmatpush1.msra.mxu0 0.0
    %965 = vmatprep.subr.mxu0 0.0
    %966 = vmatpush1.msra.mxu0 0.0
    %967 = vmatprep.subr.mxu0 0.0
    %968 = vmatpush1.msra.mxu0 0.0
    %969 = vmatprep.subr.mxu0 0.0
    %970 = vmatpush1.msra.mxu0 0.0
    %971 = vmatprep.subr.mxu0 0.0
    %972 = vmatpush1.msra.mxu0 0.0
    %973 = vmatprep.subr.mxu0 0.0
    %974 = vmatpush1.msra.mxu0 0.0
    %975 = vmatprep.subr.mxu0 0.0
    %976 = vmatpush1.msra.mxu0 0.0
    %977 = vmatprep.mubr.f32.mxu0 0.0
    %v978 = vand.u32 %v572, 4294901760
    %979 = vmatmul.mubr.f32.gmra.mrb[0].mxu0 %v978
    %v980 = vpop.f32.mrb[0].mxu0
    %v981 = vadd.f32 %v898, %v980
    %v982 = vpop.f32.mrb[0].mxu0
    %983 = vdwg.mxu0
    %984 = vmatprep.subr.mxu0 0.0
    %v985 = vand.u32 %v559, 4294901760
    %986 = vmatpush1.msra.mxu0 %v985
    %987 = vmatprep.subr.mxu0 0.0
    %v988 = vand.u32 %v560, 4294901760
    %989 = vmatpush1.msra.mxu0 %v988
    %990 = vmatprep.subr.mxu0 0.0
    %v991 = vand.u32 %v561, 4294901760
    %992 = vmatpush1.msra.mxu0 %v991
    %993 = vmatprep.subr.mxu0 0.0
    %v994 = vand.u32 %v562, 4294901760
    %995 = vmatpush1.msra.mxu0 %v994
    %996 = vmatprep.subr.mxu0 0.0
    %997 = vmatpush1.msra.mxu0 0.0
    %998 = vmatprep.subr.mxu0 0.0
    %999 = vmatpush1.msra.mxu0 0.0
    %1000 = vmatprep.subr.mxu0 0.0
    %1001 = vmatpush1.msra.mxu0 0.0
    %1002 = vmatprep.subr.mxu0 0.0
    %1003 = vmatpush1.msra.mxu0 0.0
    %1004 = vmatprep.subr.mxu0 0.0
    %1005 = vmatpush1.msra.mxu0 0.0
    %1006 = vmatprep.subr.mxu0 0.0
    %1007 = vmatpush1.msra.mxu0 0.0
    %1008 = vmatprep.subr.mxu0 0.0
    %1009 = vmatpush1.msra.mxu0 0.0
    %1010 = vmatprep.subr.mxu0 0.0
    %1011 = vmatpush1.msra.mxu0 0.0
    %1012 = vmatprep.subr.mxu0 0.0
    %1013 = vmatpush1.msra.mxu0 0.0
    %1014 = vmatprep.subr.mxu0 0.0
    %1015 = vmatpush1.msra.mxu0 0.0
    %1016 = vmatprep.subr.mxu0 0.0
    %1017 = vmatpush1.msra.mxu0 0.0
    %1018 = vmatprep.subr.mxu0 0.0
    %1019 = vmatpush1.msra.mxu0 0.0
    %1020 = vmatprep.subr.mxu0 0.0
    %1021 = vmatpush1.msra.mxu0 0.0
    %1022 = vmatprep.subr.mxu0 0.0
    %1023 = vmatpush1.msra.mxu0 0.0
    %1024 = vmatprep.subr.mxu0 0.0
    %1025 = vmatpush1.msra.mxu0 0.0
    %1026 = vmatprep.subr.mxu0 0.0
    %1027 = vmatpush1.msra.mxu0 0.0
    %1028 = vmatprep.subr.mxu0 0.0
    %1029 = vmatpush1.msra.mxu0 0.0
    %1030 = vmatprep.subr.mxu0 0.0
    %1031 = vmatpush1.msra.mxu0 0.0
    %1032 = vmatprep.subr.mxu0 0.0
    %1033 = vmatpush1.msra.mxu0 0.0
    %1034 = vmatprep.subr.mxu0 0.0
    %1035 = vmatpush1.msra.mxu0 0.0
    %1036 = vmatprep.subr.mxu0 0.0
    %1037 = vmatpush1.msra.mxu0 0.0
    %1038 = vmatprep.subr.mxu0 0.0
    %1039 = vmatpush1.msra.mxu0 0.0
    %1040 = vmatprep.subr.mxu0 0.0
    %1041 = vmatpush1.msra.mxu0 0.0
    %1042 = vmatprep.subr.mxu0 0.0
    %1043 = vmatpush1.msra.mxu0 0.0
    %1044 = vmatprep.subr.mxu0 0.0
    %1045 = vmatpush1.msra.mxu0 0.0
    %1046 = vmatprep.subr.mxu0 0.0
    %1047 = vmatpush1.msra.mxu0 0.0
    %1048 = vmatprep.subr.mxu0 0.0
    %1049 = vmatpush1.msra.mxu0 0.0
    %1050 = vmatprep.subr.mxu0 0.0
    %1051 = vmatpush1.msra.mxu0 0.0
    %1052 = vmatprep.mubr.f32.mxu0 0.0
    %v1053 = vand.u32 %v572, 4294901760
    %1054 = vmatmul.mubr.f32.gmra.mrb[0].mxu0 %v1053
    %v1055 = vpop.f32.mrb[0].mxu0
    %v1056 = vadd.f32 %v981, %v1055
    %v1057 = vpop.f32.mrb[0].mxu0
    %1058 = vdwg.mxu0
    %v1059 = vtanh.pop %v1056
    %vm1060 = vcmask 517120
    %1061 = vst.msk [vmem:[#allocation47] sm:$0x3] %vm1060, %v1059
    %v1062 = vld [vmem:[%s7] sm:$0xff]
    %v1063 = vld [vmem:[%s7 + $0x8] sm:$0xff]
    %v1064 = vld [vmem:[%s7 + $0x10] sm:$0xff]
    %v1065 = vld [vmem:[%s7 + $0x18] sm:$0xff]
    %v1066 = vld [vmem:[%s7 + $0x20] sm:$0xff]
    %v1067 = vld [vmem:[%s7 + $0x28] sm:$0xff]
    %v1068 = vld [vmem:[%s7 + $0x30] sm:$0xff]
    %v1069 = vld [vmem:[%s7 + $0x38] sm:$0xff]
    %v1070 = vld [vmem:[#allocation7] sm:$0x1]
    %v1071 = vld [vmem:[#allocation8] sm:$0x1]
    %v1072 = vld [vmem:[#allocation10] sm:$0x1]
    %v1074 = vlaneseq
    %v1075 = vshrl.u32 %v1074, 7
    %v1076 = vsub.s32 0, %v1075
    %v1077 = vrot.slane %v1070, %v1076
    %vm1079 = vcmask 523264
    %v1081 = vsel %vm1079, %v1059, 0
    %1083 = vmatprep.subr.mxu0 0.0
    %v1084 = vand.u32 %v1062, 4294901760
    %1085 = vmatpush1.msra.mxu0 %v1084
    %1086 = vmatprep.subr.mxu0 0.0
    %v1087 = vand.u32 %v1063, 4294901760
    %1088 = vmatpush1.msra.mxu0 %v1087
    %1089 = vmatprep.subr.mxu0 0.0
    %v1090 = vand.u32 %v1064, 4294901760
    %1091 = vmatpush1.msra.mxu0 %v1090
    %1092 = vmatprep.subr.mxu0 0.0
    %v1093 = vand.u32 %v1065, 4294901760
    %1094 = vmatpush1.msra.mxu0 %v1093
    %1095 = vmatprep.subr.mxu0 0.0
    %v1096 = vand.u32 %v1066, 4294901760
    %1097 = vmatpush1.msra.mxu0 %v1096
    %1098 = vmatprep.subr.mxu0 0.0
    %v1099 = vand.u32 %v1067, 4294901760
    %1100 = vmatpush1.msra.mxu0 %v1099
    %1101 = vmatprep.subr.mxu0 0.0
    %v1102 = vand.u32 %v1068, 4294901760
    %1103 = vmatpush1.msra.mxu0 %v1102
    %1104 = vmatprep.subr.mxu0 0.0
    %v1105 = vand.u32 %v1069, 4294901760
    %1106 = vmatpush1.msra.mxu0 %v1105
    %1107 = vmatprep.subr.mxu0 0.0
    %1108 = vmatpush1.msra.mxu0 0.0
    %1109 = vmatprep.subr.mxu0 0.0
    %1110 = vmatpush1.msra.mxu0 0.0
    %1111 = vmatprep.subr.mxu0 0.0
    %1112 = vmatpush1.msra.mxu0 0.0
    %1113 = vmatprep.subr.mxu0 0.0
    %1114 = vmatpush1.msra.mxu0 0.0
    %1115 = vmatprep.subr.mxu0 0.0
    %1116 = vmatpush1.msra.mxu0 0.0
    %1117 = vmatprep.subr.mxu0 0.0
    %1118 = vmatpush1.msra.mxu0 0.0
    %1119 = vmatprep.subr.mxu0 0.0
    %1120 = vmatpush1.msra.mxu0 0.0
    %1121 = vmatprep.subr.mxu0 0.0
    %1122 = vmatpush1.msra.mxu0 0.0
    %1123 = vmatprep.subr.mxu0 0.0
    %1124 = vmatpush1.msra.mxu0 0.0
    %1125 = vmatprep.subr.mxu0 0.0
    %1126 = vmatpush1.msra.mxu0 0.0
    %1127 = vmatprep.subr.mxu0 0.0
    %1128 = vmatpush1.msra.mxu0 0.0
    %1129 = vmatprep.subr.mxu0 0.0
    %1130 = vmatpush1.msra.mxu0 0.0
    %1131 = vmatprep.subr.mxu0 0.0
    %1132 = vmatpush1.msra.mxu0 0.0
    %1133 = vmatprep.subr.mxu0 0.0
    %1134 = vmatpush1.msra.mxu0 0.0
    %1135 = vmatprep.subr.mxu0 0.0
    %1136 = vmatpush1.msra.mxu0 0.0
    %1137 = vmatprep.subr.mxu0 0.0
    %1138 = vmatpush1.msra.mxu0 0.0
    %1139 = vmatprep.subr.mxu0 0.0
    %1140 = vmatpush1.msra.mxu0 0.0
    %1141 = vmatprep.subr.mxu0 0.0
    %1142 = vmatpush1.msra.mxu0 0.0
    %1143 = vmatprep.subr.mxu0 0.0
    %1144 = vmatpush1.msra.mxu0 0.0
    %1145 = vmatprep.subr.mxu0 0.0
    %1146 = vmatpush1.msra.mxu0 0.0
    %1147 = vmatprep.subr.mxu0 0.0
    %1148 = vmatpush1.msra.mxu0 0.0
    %1149 = vmatprep.subr.mxu0 0.0
    %1150 = vmatpush1.msra.mxu0 0.0
    %1151 = vmatprep.subr.mxu0 0.0
    %1152 = vmatpush1.msra.mxu0 0.0
    %1153 = vmatprep.subr.mxu0 0.0
    %1154 = vmatpush1.msra.mxu0 0.0
    %1155 = vmatprep.mubr.f32.mxu0 0.0
    %v1156 = vand.u32 %v1081, 4294901760
    %v1157 = vsub.f32 %v1081, %v1156
    %v1158 = vand.u32 %v1157, 4294901760
    %v1159 = vsub.f32 %v1157, %v1158
    %v1160 = vand.u32 %v1159, 4294901760
    %1161 = vmatmul.mubr.f32.gmra.mrb[0].mxu0 %v1160
    %v1162 = vpop.f32.mrb[0].mxu0
    %v1163 = vadd.f32 %v1077, %v1162
    %v1164 = vpop.f32.mrb[0].mxu0
    %1165 = vdwg.mxu0
    %1166 = vmatprep.subr.mxu0 0.0
    %v1167 = vand.u32 %v1062, 4294901760
    %v1168 = vsub.f32 %v1062, %v1167
    %v1169 = vand.u32 %v1168, 4294901760
    %v1170 = vsub.f32 %v1168, %v1169
    %v1171 = vand.u32 %v1170, 4294901760
    %1172 = vmatpush1.msra.mxu0 %v1171
    %1173 = vmatprep.subr.mxu0 0.0
    %v1174 = vand.u32 %v1063, 4294901760
    %v1175 = vsub.f32 %v1063, %v1174
    %v1176 = vand.u32 %v1175, 4294901760
    %v1177 = vsub.f32 %v1175, %v1176
    %v1178 = vand.u32 %v1177, 4294901760
    %1179 = vmatpush1.msra.mxu0 %v1178
    %1180 = vmatprep.subr.mxu0 0.0
    %v1181 = vand.u32 %v1064, 4294901760
    %v1182 = vsub.f32 %v1064, %v1181
    %v1183 = vand.u32 %v1182, 4294901760
    %v1184 = vsub.f32 %v1182, %v1183
    %v1185 = vand.u32 %v1184, 4294901760
    %1186 = vmatpush1.msra.mxu0 %v1185
    %1187 = vmatprep.subr.mxu0 0.0
    %v1188 = vand.u32 %v1065, 4294901760
    %v1189 = vsub.f32 %v1065, %v1188
    %v1190 = vand.u32 %v1189, 4294901760
    %v1191 = vsub.f32 %v1189, %v1190
    %v1192 = vand.u32 %v1191, 4294901760
    %1193 = vmatpush1.msra.mxu0 %v1192
    %1194 = vmatprep.subr.mxu0 0.0
    %v1195 = vand.u32 %v1066, 4294901760
    %v1196 = vsub.f32 %v1066, %v1195
    %v1197 = vand.u32 %v1196, 4294901760
    %v1198 = vsub.f32 %v1196, %v1197
    %v1199 = vand.u32 %v1198, 4294901760
    %1200 = vmatpush1.msra.mxu0 %v1199
    %1201 = vmatprep.subr.mxu0 0.0
    %v1202 = vand.u32 %v1067, 4294901760
    %v1203 = vsub.f32 %v1067, %v1202
    %v1204 = vand.u32 %v1203, 4294901760
    %v1205 = vsub.f32 %v1203, %v1204
    %v1206 = vand.u32 %v1205, 4294901760
    %1207 = vmatpush1.msra.mxu0 %v1206
    %1208 = vmatprep.subr.mxu0 0.0
    %v1209 = vand.u32 %v1068, 4294901760
    %v1210 = vsub.f32 %v1068, %v1209
    %v1211 = vand.u32 %v1210, 4294901760
    %v1212 = vsub.f32 %v1210, %v1211
    %v1213 = vand.u32 %v1212, 4294901760
    %1214 = vmatpush1.msra.mxu0 %v1213
    %1215 = vmatprep.subr.mxu0 0.0
    %v1216 = vand.u32 %v1069, 4294901760
    %v1217 = vsub.f32 %v1069, %v1216
    %v1218 = vand.u32 %v1217, 4294901760
    %v1219 = vsub.f32 %v1217, %v1218
    %v1220 = vand.u32 %v1219, 4294901760
    %1221 = vmatpush1.msra.mxu0 %v1220
    %1222 = vmatprep.subr.mxu0 0.0
    %1223 = vmatpush1.msra.mxu0 0.0
    %1224 = vmatprep.subr.mxu0 0.0
    %1225 = vmatpush1.msra.mxu0 0.0
    %1226 = vmatprep.subr.mxu0 0.0
    %1227 = vmatpush1.msra.mxu0 0.0
    %1228 = vmatprep.subr.mxu0 0.0
    %1229 = vmatpush1.msra.mxu0 0.0
    %1230 = vmatprep.subr.mxu0 0.0
    %1231 = vmatpush1.msra.mxu0 0.0
    %1232 = vmatprep.subr.mxu0 0.0
    %1233 = vmatpush1.msra.mxu0 0.0
    %1234 = vmatprep.subr.mxu0 0.0
    %1235 = vmatpush1.msra.mxu0 0.0
    %1236 = vmatprep.subr.mxu0 0.0
    %1237 = vmatpush1.msra.mxu0 0.0
    %1238 = vmatprep.subr.mxu0 0.0
    %1239 = vmatpush1.msra.mxu0 0.0
    %1240 = vmatprep.subr.mxu0 0.0
    %1241 = vmatpush1.msra.mxu0 0.0
    %1242 = vmatprep.subr.mxu0 0.0
    %1243 = vmatpush1.msra.mxu0 0.0
    %1244 = vmatprep.subr.mxu0 0.0
    %1245 = vmatpush1.msra.mxu0 0.0
    %1246 = vmatprep.subr.mxu0 0.0
    %1247 = vmatpush1.msra.mxu0 0.0
    %1248 = vmatprep.subr.mxu0 0.0
    %1249 = vmatpush1.msra.mxu0 0.0
    %1250 = vmatprep.subr.mxu0 0.0
    %1251 = vmatpush1.msra.mxu0 0.0
    %1252 = vmatprep.subr.mxu0 0.0
    %1253 = vmatpush1.msra.mxu0 0.0
    %1254 = vmatprep.subr.mxu0 0.0
    %1255 = vmatpush1.msra.mxu0 0.0
    %1256 = vmatprep.subr.mxu0 0.0
    %1257 = vmatpush1.msra.mxu0 0.0
    %1258 = vmatprep.subr.mxu0 0.0
    %1259 = vmatpush1.msra.mxu0 0.0
    %1260 = vmatprep.subr.mxu0 0.0
    %1261 = vmatpush1.msra.mxu0 0.0
    %1262 = vmatprep.subr.mxu0 0.0
    %1263 = vmatpush1.msra.mxu0 0.0
    %1264 = vmatprep.subr.mxu0 0.0
    %1265 = vmatpush1.msra.mxu0 0.0
    %1266 = vmatprep.subr.mxu0 0.0
    %1267 = vmatpush1.msra.mxu0 0.0
    %1268 = vmatprep.subr.mxu0 0.0
    %1269 = vmatpush1.msra.mxu0 0.0
    %1270 = vmatprep.mubr.f32.mxu0 0.0
    %v1271 = vand.u32 %v1081, 4294901760
    %1272 = vmatmul.mubr.f32.gmra.mrb[0].mxu0 %v1271
    %v1273 = vpop.f32.mrb[0].mxu0
    %v1274 = vadd.f32 %v1163, %v1273
    %v1275 = vpop.f32.mrb[0].mxu0
    %1276 = vdwg.mxu0
    %1277 = vmatprep.subr.mxu0 0.0
    %v1278 = vand.u32 %v1062, 4294901760
    %v1279 = vsub.f32 %v1062, %v1278
    %1280 = vmatpush1.msra.mxu0 %v1279
    %1281 = vmatprep.subr.mxu0 0.0
    %v1282 = vand.u32 %v1063, 4294901760
    %v1283 = vsub.f32 %v1063, %v1282
    %1284 = vmatpush1.msra.mxu0 %v1283
    %1285 = vmatprep.subr.mxu0 0.0
    %v1286 = vand.u32 %v1064, 4294901760
    %v1287 = vsub.f32 %v1064, %v1286
    %1288 = vmatpush1.msra.mxu0 %v1287
    %1289 = vmatprep.subr.mxu0 0.0
    %v1290 = vand.u32 %v1065, 4294901760
    %v1291 = vsub.f32 %v1065, %v1290
    %1292 = vmatpush1.msra.mxu0 %v1291
    %1293 = vmatprep.subr.mxu0 0.0
    %v1294 = vand.u32 %v1066, 4294901760
    %v1295 = vsub.f32 %v1066, %v1294
    %1296 = vmatpush1.msra.mxu0 %v1295
    %1297 = vmatprep.subr.mxu0 0.0
    %v1298 = vand.u32 %v1067, 4294901760
    %v1299 = vsub.f32 %v1067, %v1298
    %1300 = vmatpush1.msra.mxu0 %v1299
    %1301 = vmatprep.subr.mxu0 0.0
    %v1302 = vand.u32 %v1068, 4294901760
    %v1303 = vsub.f32 %v1068, %v1302
    %1304 = vmatpush1.msra.mxu0 %v1303
    %1305 = vmatprep.subr.mxu0 0.0
    %v1306 = vand.u32 %v1069, 4294901760
    %v1307 = vsub.f32 %v1069, %v1306
    %1308 = vmatpush1.msra.mxu0 %v1307
    %1309 = vmatprep.subr.mxu0 0.0
    %1310 = vmatpush1.msra.mxu0 0.0
    %1311 = vmatprep.subr.mxu0 0.0
    %1312 = vmatpush1.msra.mxu0 0.0
    %1313 = vmatprep.subr.mxu0 0.0
    %1314 = vmatpush1.msra.mxu0 0.0
    %1315 = vmatprep.subr.mxu0 0.0
    %1316 = vmatpush1.msra.mxu0 0.0
    %1317 = vmatprep.subr.mxu0 0.0
    %1318 = vmatpush1.msra.mxu0 0.0
    %1319 = vmatprep.subr.mxu0 0.0
    %1320 = vmatpush1.msra.mxu0 0.0
    %1321 = vmatprep.subr.mxu0 0.0
    %1322 = vmatpush1.msra.mxu0 0.0
    %1323 = vmatprep.subr.mxu0 0.0
    %1324 = vmatpush1.msra.mxu0 0.0
    %1325 = vmatprep.subr.mxu0 0.0
    %1326 = vmatpush1.msra.mxu0 0.0
    %1327 = vmatprep.subr.mxu0 0.0
    %1328 = vmatpush1.msra.mxu0 0.0
    %1329 = vmatprep.subr.mxu0 0.0
    %1330 = vmatpush1.msra.mxu0 0.0
    %1331 = vmatprep.subr.mxu0 0.0
    %1332 = vmatpush1.msra.mxu0 0.0
    %1333 = vmatprep.subr.mxu0 0.0
    %1334 = vmatpush1.msra.mxu0 0.0
    %1335 = vmatprep.subr.mxu0 0.0
    %1336 = vmatpush1.msra.mxu0 0.0
    %1337 = vmatprep.subr.mxu0 0.0
    %1338 = vmatpush1.msra.mxu0 0.0
    %1339 = vmatprep.subr.mxu0 0.0
    %1340 = vmatpush1.msra.mxu0 0.0
    %1341 = vmatprep.subr.mxu0 0.0
    %1342 = vmatpush1.msra.mxu0 0.0
    %1343 = vmatprep.subr.mxu0 0.0
    %1344 = vmatpush1.msra.mxu0 0.0
    %1345 = vmatprep.subr.mxu0 0.0
    %1346 = vmatpush1.msra.mxu0 0.0
    %1347 = vmatprep.subr.mxu0 0.0
    %1348 = vmatpush1.msra.mxu0 0.0
    %1349 = vmatprep.subr.mxu0 0.0
    %1350 = vmatpush1.msra.mxu0 0.0
    %1351 = vmatprep.subr.mxu0 0.0
    %1352 = vmatpush1.msra.mxu0 0.0
    %1353 = vmatprep.subr.mxu0 0.0
    %1354 = vmatpush1.msra.mxu0 0.0
    %1355 = vmatprep.subr.mxu0 0.0
    %1356 = vmatpush1.msra.mxu0 0.0
    %1357 = vmatprep.mubr.f32.mxu0 0.0
    %v1358 = vand.u32 %v1081, 4294901760
    %v1359 = vsub.f32 %v1081, %v1358
    %1360 = vmatmul.mubr.f32.gmra.mrb[0].mxu0 %v1359
    %v1361 = vpop.f32.mrb[0].mxu0
    %v1362 = vadd.f32 %v1274, %v1361
    %v1363 = vpop.f32.mrb[0].mxu0
    %1364 = vdwg.mxu0
    %1365 = vmatprep.subr.mxu0 0.0
    %v1366 = vand.u32 %v1062, 4294901760
    %1367 = vmatpush1.msra.mxu0 %v1366
    %1368 = vmatprep.subr.mxu0 0.0
    %v1369 = vand.u32 %v1063, 4294901760
    %1370 = vmatpush1.msra.mxu0 %v1369
    %1371 = vmatprep.subr.mxu0 0.0
    %v1372 = vand.u32 %v1064, 4294901760
    %1373 = vmatpush1.msra.mxu0 %v1372
    %1374 = vmatprep.subr.mxu0 0.0
    %v1375 = vand.u32 %v1065, 4294901760
    %1376 = vmatpush1.msra.mxu0 %v1375
    %1377 = vmatprep.subr.mxu0 0.0
    %v1378 = vand.u32 %v1066, 4294901760
    %1379 = vmatpush1.msra.mxu0 %v1378
    %1380 = vmatprep.subr.mxu0 0.0
    %v1381 = vand.u32 %v1067, 4294901760
    %1382 = vmatpush1.msra.mxu0 %v1381
    %1383 = vmatprep.subr.mxu0 0.0
    %v1384 = vand.u32 %v1068, 4294901760
    %1385 = vmatpush1.msra.mxu0 %v1384
    %1386 = vmatprep.subr.mxu0 0.0
    %v1387 = vand.u32 %v1069, 4294901760
    %1388 = vmatpush1.msra.mxu0 %v1387
    %1389 = vmatprep.subr.mxu0 0.0
    %1390 = vmatpush1.msra.mxu0 0.0
    %1391 = vmatprep.subr.mxu0 0.0
    %1392 = vmatpush1.msra.mxu0 0.0
    %1393 = vmatprep.subr.mxu0 0.0
    %1394 = vmatpush1.msra.mxu0 0.0
    %1395 = vmatprep.subr.mxu0 0.0
    %1396 = vmatpush1.msra.mxu0 0.0
    %1397 = vmatprep.subr.mxu0 0.0
    %1398 = vmatpush1.msra.mxu0 0.0
    %1399 = vmatprep.subr.mxu0 0.0
    %1400 = vmatpush1.msra.mxu0 0.0
    %1401 = vmatprep.subr.mxu0 0.0
    %1402 = vmatpush1.msra.mxu0 0.0
    %1403 = vmatprep.subr.mxu0 0.0
    %1404 = vmatpush1.msra.mxu0 0.0
    %1405 = vmatprep.subr.mxu0 0.0
    %1406 = vmatpush1.msra.mxu0 0.0
    %1407 = vmatprep.subr.mxu0 0.0
    %1408 = vmatpush1.msra.mxu0 0.0
    %1409 = vmatprep.subr.mxu0 0.0
    %1410 = vmatpush1.msra.mxu0 0.0
    %1411 = vmatprep.subr.mxu0 0.0
    %1412 = vmatpush1.msra.mxu0 0.0
    %1413 = vmatprep.subr.mxu0 0.0
    %1414 = vmatpush1.msra.mxu0 0.0
    %1415 = vmatprep.subr.mxu0 0.0
    %1416 = vmatpush1.msra.mxu0 0.0
    %1417 = vmatprep.subr.mxu0 0.0
    %1418 = vmatpush1.msra.mxu0 0.0
    %1419 = vmatprep.subr.mxu0 0.0
    %1420 = vmatpush1.msra.mxu0 0.0
    %1421 = vmatprep.subr.mxu0 0.0
    %1422 = vmatpush1.msra.mxu0 0.0
    %1423 = vmatprep.subr.mxu0 0.0
    %1424 = vmatpush1.msra.mxu0 0.0
    %1425 = vmatprep.subr.mxu0 0.0
    %1426 = vmatpush1.msra.mxu0 0.0
    %1427 = vmatprep.subr.mxu0 0.0
    %1428 = vmatpush1.msra.mxu0 0.0
    %1429 = vmatprep.subr.mxu0 0.0
    %1430 = vmatpush1.msra.mxu0 0.0
    %1431 = vmatprep.subr.mxu0 0.0
    %1432 = vmatpush1.msra.mxu0 0.0
    %1433 = vmatprep.subr.mxu0 0.0
    %1434 = vmatpush1.msra.mxu0 0.0
    %1435 = vmatprep.subr.mxu0 0.0
    %1436 = vmatpush1.msra.mxu0 0.0
    %1437 = vmatprep.mubr.f32.mxu0 0.0
    %v1438 = vand.u32 %v1081, 4294901760
    %v1439 = vsub.f32 %v1081, %v1438
    %v1440 = vand.u32 %v1439, 4294901760
    %1441 = vmatmul.mubr.f32.gmra.mrb[0].mxu0 %v1440
    %v1442 = vpop.f32.mrb[0].mxu0
    %v1443 = vadd.f32 %v1362, %v1442
    %v1444 = vpop.f32.mrb[0].mxu0
    %1445 = vdwg.mxu0
    %1446 = vmatprep.subr.mxu0 0.0
    %v1447 = vand.u32 %v1062, 4294901760
    %v1448 = vsub.f32 %v1062, %v1447
    %v1449 = vand.u32 %v1448, 4294901760
    %1450 = vmatpush1.msra.mxu0 %v1449
    %1451 = vmatprep.subr.mxu0 0.0
    %v1452 = vand.u32 %v1063, 4294901760
    %v1453 = vsub.f32 %v1063, %v1452
    %v1454 = vand.u32 %v1453, 4294901760
    %1455 = vmatpush1.msra.mxu0 %v1454
    %1456 = vmatprep.subr.mxu0 0.0
    %v1457 = vand.u32 %v1064, 4294901760
    %v1458 = vsub.f32 %v1064, %v1457
    %v1459 = vand.u32 %v1458, 4294901760
    %1460 = vmatpush1.msra.mxu0 %v1459
    %1461 = vmatprep.subr.mxu0 0.0
    %v1462 = vand.u32 %v1065, 4294901760
    %v1463 = vsub.f32 %v1065, %v1462
    %v1464 = vand.u32 %v1463, 4294901760
    %1465 = vmatpush1.msra.mxu0 %v1464
    %1466 = vmatprep.subr.mxu0 0.0
    %v1467 = vand.u32 %v1066, 4294901760
    %v1468 = vsub.f32 %v1066, %v1467
    %v1469 = vand.u32 %v1468, 4294901760
    %1470 = vmatpush1.msra.mxu0 %v1469
    %1471 = vmatprep.subr.mxu0 0.0
    %v1472 = vand.u32 %v1067, 4294901760
    %v1473 = vsub.f32 %v1067, %v1472
    %v1474 = vand.u32 %v1473, 4294901760
    %1475 = vmatpush1.msra.mxu0 %v1474
    %1476 = vmatprep.subr.mxu0 0.0
    %v1477 = vand.u32 %v1068, 4294901760
    %v1478 = vsub.f32 %v1068, %v1477
    %v1479 = vand.u32 %v1478, 4294901760
    %1480 = vmatpush1.msra.mxu0 %v1479
    %1481 = vmatprep.subr.mxu0 0.0
    %v1482 = vand.u32 %v1069, 4294901760
    %v1483 = vsub.f32 %v1069, %v1482
    %v1484 = vand.u32 %v1483, 4294901760
    %1485 = vmatpush1.msra.mxu0 %v1484
    %1486 = vmatprep.subr.mxu0 0.0
    %1487 = vmatpush1.msra.mxu0 0.0
    %1488 = vmatprep.subr.mxu0 0.0
    %1489 = vmatpush1.msra.mxu0 0.0
    %1490 = vmatprep.subr.mxu0 0.0
    %1491 = vmatpush1.msra.mxu0 0.0
    %1492 = vmatprep.subr.mxu0 0.0
    %1493 = vmatpush1.msra.mxu0 0.0
    %1494 = vmatprep.subr.mxu0 0.0
    %1495 = vmatpush1.msra.mxu0 0.0
    %1496 = vmatprep.subr.mxu0 0.0
    %1497 = vmatpush1.msra.mxu0 0.0
    %1498 = vmatprep.subr.mxu0 0.0
    %1499 = vmatpush1.msra.mxu0 0.0
    %1500 = vmatprep.subr.mxu0 0.0
    %1501 = vmatpush1.msra.mxu0 0.0
    %1502 = vmatprep.subr.mxu0 0.0
    %1503 = vmatpush1.msra.mxu0 0.0
    %1504 = vmatprep.subr.mxu0 0.0
    %1505 = vmatpush1.msra.mxu0 0.0
    %1506 = vmatprep.subr.mxu0 0.0
    %1507 = vmatpush1.msra.mxu0 0.0
    %1508 = vmatprep.subr.mxu0 0.0
    %1509 = vmatpush1.msra.mxu0 0.0
    %1510 = vmatprep.subr.mxu0 0.0
    %1511 = vmatpush1.msra.mxu0 0.0
    %1512 = vmatprep.subr.mxu0 0.0
    %1513 = vmatpush1.msra.mxu0 0.0
    %1514 = vmatprep.subr.mxu0 0.0
    %1515 = vmatpush1.msra.mxu0 0.0
    %1516 = vmatprep.subr.mxu0 0.0
    %1517 = vmatpush1.msra.mxu0 0.0
    %1518 = vmatprep.subr.mxu0 0.0
    %1519 = vmatpush1.msra.mxu0 0.0
    %1520 = vmatprep.subr.mxu0 0.0
    %1521 = vmatpush1.msra.mxu0 0.0
    %1522 = vmatprep.subr.mxu0 0.0
    %1523 = vmatpush1.msra.mxu0 0.0
    %1524 = vmatprep.subr.mxu0 0.0
    %1525 = vmatpush1.msra.mxu0 0.0
    %1526 = vmatprep.subr.mxu0 0.0
    %1527 = vmatpush1.msra.mxu0 0.0
    %1528 = vmatprep.subr.mxu0 0.0
    %1529 = vmatpush1.msra.mxu0 0.0
    %1530 = vmatprep.subr.mxu0 0.0
    %1531 = vmatpush1.msra.mxu0 0.0
    %1532 = vmatprep.subr.mxu0 0.0
    %1533 = vmatpush1.msra.mxu0 0.0
    %1534 = vmatprep.mubr.f32.mxu0 0.0
    %v1535 = vand.u32 %v1081, 4294901760
    %1536 = vmatmul.mubr.f32.gmra.mrb[0].mxu0 %v1535
    %v1537 = vpop.f32.mrb[0].mxu0
    %v1538 = vadd.f32 %v1443, %v1537
    %v1539 = vpop.f32.mrb[0].mxu0
    %1540 = vdwg.mxu0
    %1541 = vmatprep.subr.mxu0 0.0
    %v1542 = vand.u32 %v1062, 4294901760
    %1543 = vmatpush1.msra.mxu0 %v1542
    %1544 = vmatprep.subr.mxu0 0.0
    %v1545 = vand.u32 %v1063, 4294901760
    %1546 = vmatpush1.msra.mxu0 %v1545
    %1547 = vmatprep.subr.mxu0 0.0
    %v1548 = vand.u32 %v1064, 4294901760
    %1549 = vmatpush1.msra.mxu0 %v1548
    %1550 = vmatprep.subr.mxu0 0.0
    %v1551 = vand.u32 %v1065, 4294901760
    %1552 = vmatpush1.msra.mxu0 %v1551
    %1553 = vmatprep.subr.mxu0 0.0
    %v1554 = vand.u32 %v1066, 4294901760
    %1555 = vmatpush1.msra.mxu0 %v1554
    %1556 = vmatprep.subr.mxu0 0.0
    %v1557 = vand.u32 %v1067, 4294901760
    %1558 = vmatpush1.msra.mxu0 %v1557
    %1559 = vmatprep.subr.mxu0 0.0
    %v1560 = vand.u32 %v1068, 4294901760
    %1561 = vmatpush1.msra.mxu0 %v1560
    %1562 = vmatprep.subr.mxu0 0.0
    %v1563 = vand.u32 %v1069, 4294901760
    %1564 = vmatpush1.msra.mxu0 %v1563
    %1565 = vmatprep.subr.mxu0 0.0
    %1566 = vmatpush1.msra.mxu0 0.0
    %1567 = vmatprep.subr.mxu0 0.0
    %1568 = vmatpush1.msra.mxu0 0.0
    %1569 = vmatprep.subr.mxu0 0.0
    %1570 = vmatpush1.msra.mxu0 0.0
    %1571 = vmatprep.subr.mxu0 0.0
    %1572 = vmatpush1.msra.mxu0 0.0
    %1573 = vmatprep.subr.mxu0 0.0
    %1574 = vmatpush1.msra.mxu0 0.0
    %1575 = vmatprep.subr.mxu0 0.0
    %1576 = vmatpush1.msra.mxu0 0.0
    %1577 = vmatprep.subr.mxu0 0.0
    %1578 = vmatpush1.msra.mxu0 0.0
    %1579 = vmatprep.subr.mxu0 0.0
    %1580 = vmatpush1.msra.mxu0 0.0
    %1581 = vmatprep.subr.mxu0 0.0
    %1582 = vmatpush1.msra.mxu0 0.0
    %1583 = vmatprep.subr.mxu0 0.0
    %1584 = vmatpush1.msra.mxu0 0.0
    %1585 = vmatprep.subr.mxu0 0.0
    %1586 = vmatpush1.msra.mxu0 0.0
    %1587 = vmatprep.subr.mxu0 0.0
    %1588 = vmatpush1.msra.mxu0 0.0
    %1589 = vmatprep.subr.mxu0 0.0
    %1590 = vmatpush1.msra.mxu0 0.0
    %1591 = vmatprep.subr.mxu0 0.0
    %1592 = vmatpush1.msra.mxu0 0.0
    %1593 = vmatprep.subr.mxu0 0.0
    %1594 = vmatpush1.msra.mxu0 0.0
    %1595 = vmatprep.subr.mxu0 0.0
    %1596 = vmatpush1.msra.mxu0 0.0
    %1597 = vmatprep.subr.mxu0 0.0
    %1598 = vmatpush1.msra.mxu0 0.0
    %1599 = vmatprep.subr.mxu0 0.0
    %1600 = vmatpush1.msra.mxu0 0.0
    %1601 = vmatprep.subr.mxu0 0.0
    %1602 = vmatpush1.msra.mxu0 0.0
    %1603 = vmatprep.subr.mxu0 0.0
    %1604 = vmatpush1.msra.mxu0 0.0
    %1605 = vmatprep.subr.mxu0 0.0
    %1606 = vmatpush1.msra.mxu0 0.0
    %1607 = vmatprep.subr.mxu0 0.0
    %1608 = vmatpush1.msra.mxu0 0.0
    %1609 = vmatprep.subr.mxu0 0.0
    %1610 = vmatpush1.msra.mxu0 0.0
    %1611 = vmatprep.subr.mxu0 0.0
    %1612 = vmatpush1.msra.mxu0 0.0
    %1613 = vmatprep.mubr.f32.mxu0 0.0
    %v1614 = vand.u32 %v1081, 4294901760
    %1615 = vmatmul.mubr.f32.gmra.mrb[0].mxu0 %v1614
    %v1616 = vpop.f32.mrb[0].mxu0
    %v1617 = vadd.f32 %v1538, %v1616
    %v1618 = vpop.f32.mrb[0].mxu0
    %1619 = vdwg.mxu0
    %v1620 = vsel %vm1060, %v1617, 0.0
    %v1621 = vrot.slane %v1620, 4
    %v1622 = vadd.f32 %v1620, %v1621
    %v1623 = vrot.slane %v1622, 2
    %v1624 = vadd.f32 %v1622, %v1623
    %v1625 = vrot.slane %v1624, 1
    %v1626 = vadd.f32 %v1624, %v1625
    %v1627 = vrcp.pop 2.0
    %v1628 = vmul.f32 %v1626, %v1627
    %v1629 = vsub.f32 %v1617, %v1628
    %v1630 = vmul.f32 %v1629, %v1629
    %v1631 = vsel %vm1060, %v1630, 0.0
    %v1632 = vrot.slane %v1631, 4
    %v1633 = vadd.f32 %v1631, %v1632
    %v1634 = vrot.slane %v1633, 2
    %v1635 = vadd.f32 %v1633, %v1634
    %v1636 = vrot.slane %v1635, 1
    %v1637 = vadd.f32 %v1635, %v1636
    %v1638 = vmul.f32 %v1637, %v1627
    %v1639 = vadd.f32 %v1638, 1e-05
    %v1640 = vrsqrt.pop %v1639
    %v1641 = vmul.f32 %v1629, %v1640
    %v1643 = vlaneseq
    %v1644 = vshrl.u32 %v1643, 7
    %v1645 = vsub.s32 0, %v1644
    %v1646 = vrot.slane %v1071, %v1645
    %v1648 = vmul.f32 %v1641, %v1646
    %v1650 = vlaneseq
    %v1651 = vshrl.u32 %v1650, 7
    %v1652 = vsub.s32 0, %v1651
    %v1653 = vrot.slane %v1072, %v1652
    %v1655 = vadd.f32 %v1648, %v1653
    %vm1656 = vcmp.ge.f32.partialorder %v1655, 0.0
    %v1657 = vmul.f32 %v1655, 0.01
    %v1658 = vsel %vm1656, %v1655, %v1657
    %v1659 = vld [vmem:[%s15] sm:$0xff]
    %v1660 = vld [vmem:[%s15 + $0x8] sm:$0xff]
    %v1661 = vld [vmem:[%s15 + $0x10] sm:$0xff]
    %v1662 = vld [vmem:[%s15 + $0x18] sm:$0xff]
    %v1663 = vld [vmem:[%s15 + $0x20] sm:$0xff]
    %v1664 = vld [vmem:[%s15 + $0x28] sm:$0xff]
    %v1665 = vld [vmem:[%s15 + $0x30] sm:$0xff]
    %v1666 = vld [vmem:[%s15 + $0x38] sm:$0xff]
    %v1667 = vld [vmem:[#allocation11] sm:$0x1]
    %v1668 = vld [vmem:[#allocation13] sm:$0x1]
    %v1669 = vld [vmem:[#allocation14] sm:$0x1]
    %v1671 = vlaneseq
    %v1672 = vshrl.u32 %v1671, 7
    %v1673 = vsub.s32 0, %v1672
    %v1674 = vrot.slane %v1667, %v1673
    %v1677 = vsel %vm1079, %v1658, 0
    %1679 = vmatprep.subr.mxu0 0.0
    %v1680 = vand.u32 %v1659, 4294901760
    %1681 = vmatpush1.msra.mxu0 %v1680
    %1682 = vmatprep.subr.mxu0 0.0
    %v1683 = vand.u32 %v1660, 4294901760
    %1684 = vmatpush1.msra.mxu0 %v1683
    %1685 = vmatprep.subr.mxu0 0.0
    %v1686 = vand.u32 %v1661, 4294901760
    %1687 = vmatpush1.msra.mxu0 %v1686
    %1688 = vmatprep.subr.mxu0 0.0
    %v1689 = vand.u32 %v1662, 4294901760
    %1690 = vmatpush1.msra.mxu0 %v1689
    %1691 = vmatprep.subr.mxu0 0.0
    %v1692 = vand.u32 %v1663, 4294901760
    %1693 = vmatpush1.msra.mxu0 %v1692
    %1694 = vmatprep.subr.mxu0 0.0
    %v1695 = vand.u32 %v1664, 4294901760
    %1696 = vmatpush1.msra.mxu0 %v1695
    %1697 = vmatprep.subr.mxu0 0.0
    %v1698 = vand.u32 %v1665, 4294901760
    %1699 = vmatpush1.msra.mxu0 %v1698
    %1700 = vmatprep.subr.mxu0 0.0
    %v1701 = vand.u32 %v1666, 4294901760
    %1702 = vmatpush1.msra.mxu0 %v1701
    %1703 = vmatprep.subr.mxu0 0.0
    %1704 = vmatpush1.msra.mxu0 0.0
    %1705 = vmatprep.subr.mxu0 0.0
    %1706 = vmatpush1.msra.mxu0 0.0
    %1707 = vmatprep.subr.mxu0 0.0
    %1708 = vmatpush1.msra.mxu0 0.0
    %1709 = vmatprep.subr.mxu0 0.0
    %1710 = vmatpush1.msra.mxu0 0.0
    %1711 = vmatprep.subr.mxu0 0.0
    %1712 = vmatpush1.msra.mxu0 0.0
    %1713 = vmatprep.subr.mxu0 0.0
    %1714 = vmatpush1.msra.mxu0 0.0
    %1715 = vmatprep.subr.mxu0 0.0
    %1716 = vmatpush1.msra.mxu0 0.0
    %1717 = vmatprep.subr.mxu0 0.0
    %1718 = vmatpush1.msra.mxu0 0.0
    %1719 = vmatprep.subr.mxu0 0.0
    %1720 = vmatpush1.msra.mxu0 0.0
    %1721 = vmatprep.subr.mxu0 0.0
    %1722 = vmatpush1.msra.mxu0 0.0
    %1723 = vmatprep.subr.mxu0 0.0
    %1724 = vmatpush1.msra.mxu0 0.0
    %1725 = vmatprep.subr.mxu0 0.0
    %1726 = vmatpush1.msra.mxu0 0.0
    %1727 = vmatprep.subr.mxu0 0.0
    %1728 = vmatpush1.msra.mxu0 0.0
    %1729 = vmatprep.subr.mxu0 0.0
    %1730 = vmatpush1.msra.mxu0 0.0
    %1731 = vmatprep.subr.mxu0 0.0
    %1732 = vmatpush1.msra.mxu0 0.0
    %1733 = vmatprep.subr.mxu0 0.0
    %1734 = vmatpush1.msra.mxu0 0.0
    %1735 = vmatprep.subr.mxu0 0.0
    %1736 = vmatpush1.msra.mxu0 0.0
    %1737 = vmatprep.subr.mxu0 0.0
    %1738 = vmatpush1.msra.mxu0 0.0
    %1739 = vmatprep.subr.mxu0 0.0
    %1740 = vmatpush1.msra.mxu0 0.0
    %1741 = vmatprep.subr.mxu0 0.0
    %1742 = vmatpush1.msra.mxu0 0.0
    %1743 = vmatprep.subr.mxu0 0.0
    %1744 = vmatpush1.msra.mxu0 0.0
    %1745 = vmatprep.subr.mxu0 0.0
    %1746 = vmatpush1.msra.mxu0 0.0
    %1747 = vmatprep.subr.mxu0 0.0
    %1748 = vmatpush1.msra.mxu0 0.0
    %1749 = vmatprep.subr.mxu0 0.0
    %1750 = vmatpush1.msra.mxu0 0.0
    %1751 = vmatprep.mubr.f32.mxu0 0.0
    %v1752 = vand.u32 %v1677, 4294901760
    %v1753 = vsub.f32 %v1677, %v1752
    %v1754 = vand.u32 %v1753, 4294901760
    %v1755 = vsub.f32 %v1753, %v1754
    %v1756 = vand.u32 %v1755, 4294901760
    %1757 = vmatmul.mubr.f32.gmra.mrb[0].mxu0 %v1756
    %v1758 = vpop.f32.mrb[0].mxu0
    %v1759 = vadd.f32 %v1674, %v1758
    %v1760 = vpop.f32.mrb[0].mxu0
    %1761 = vdwg.mxu0
    %1762 = vmatprep.subr.mxu0 0.0
    %v1763 = vand.u32 %v1659, 4294901760
    %v1764 = vsub.f32 %v1659, %v1763
    %v1765 = vand.u32 %v1764, 4294901760
    %v1766 = vsub.f32 %v1764, %v1765
    %v1767 = vand.u32 %v1766, 4294901760
    %1768 = vmatpush1.msra.mxu0 %v1767
    %1769 = vmatprep.subr.mxu0 0.0
    %v1770 = vand.u32 %v1660, 4294901760
    %v1771 = vsub.f32 %v1660, %v1770
    %v1772 = vand.u32 %v1771, 4294901760
    %v1773 = vsub.f32 %v1771, %v1772
    %v1774 = vand.u32 %v1773, 4294901760
    %1775 = vmatpush1.msra.mxu0 %v1774
    %1776 = vmatprep.subr.mxu0 0.0
    %v1777 = vand.u32 %v1661, 4294901760
    %v1778 = vsub.f32 %v1661, %v1777
    %v1779 = vand.u32 %v1778, 4294901760
    %v1780 = vsub.f32 %v1778, %v1779
    %v1781 = vand.u32 %v1780, 4294901760
    %1782 = vmatpush1.msra.mxu0 %v1781
    %1783 = vmatprep.subr.mxu0 0.0
    %v1784 = vand.u32 %v1662, 4294901760
    %v1785 = vsub.f32 %v1662, %v1784
    %v1786 = vand.u32 %v1785, 4294901760
    %v1787 = vsub.f32 %v1785, %v1786
    %v1788 = vand.u32 %v1787, 4294901760
    %1789 = vmatpush1.msra.mxu0 %v1788
    %1790 = vmatprep.subr.mxu0 0.0
    %v1791 = vand.u32 %v1663, 4294901760
    %v1792 = vsub.f32 %v1663, %v1791
    %v1793 = vand.u32 %v1792, 4294901760
    %v1794 = vsub.f32 %v1792, %v1793
    %v1795 = vand.u32 %v1794, 4294901760
    %1796 = vmatpush1.msra.mxu0 %v1795
    %1797 = vmatprep.subr.mxu0 0.0
    %v1798 = vand.u32 %v1664, 4294901760
    %v1799 = vsub.f32 %v1664, %v1798
    %v1800 = vand.u32 %v1799, 4294901760
    %v1801 = vsub.f32 %v1799, %v1800
    %v1802 = vand.u32 %v1801, 4294901760
    %1803 = vmatpush1.msra.mxu0 %v1802
    %1804 = vmatprep.subr.mxu0 0.0
    %v1805 = vand.u32 %v1665, 4294901760
    %v1806 = vsub.f32 %v1665, %v1805
    %v1807 = vand.u32 %v1806, 4294901760
    %v1808 = vsub.f32 %v1806, %v1807
    %v1809 = vand.u32 %v1808, 4294901760
    %1810 = vmatpush1.msra.mxu0 %v1809
    %1811 = vmatprep.subr.mxu0 0.0
    %v1812 = vand.u32 %v1666, 4294901760
    %v1813 = vsub.f32 %v1666, %v1812
    %v1814 = vand.u32 %v1813, 4294901760
    %v1815 = vsub.f32 %v1813, %v1814
    %v1816 = vand.u32 %v1815, 4294901760
    %1817 = vmatpush1.msra.mxu0 %v1816
    %1818 = vmatprep.subr.mxu0 0.0
    %1819 = vmatpush1.msra.mxu0 0.0
    %1820 = vmatprep.subr.mxu0 0.0
    %1821 = vmatpush1.msra.mxu0 0.0
    %1822 = vmatprep.subr.mxu0 0.0
    %1823 = vmatpush1.msra.mxu0 0.0
    %1824 = vmatprep.subr.mxu0 0.0
    %1825 = vmatpush1.msra.mxu0 0.0
    %1826 = vmatprep.subr.mxu0 0.0
    %1827 = vmatpush1.msra.mxu0 0.0
    %1828 = vmatprep.subr.mxu0 0.0
    %1829 = vmatpush1.msra.mxu0 0.0
    %1830 = vmatprep.subr.mxu0 0.0
    %1831 = vmatpush1.msra.mxu0 0.0
    %1832 = vmatprep.subr.mxu0 0.0
    %1833 = vmatpush1.msra.mxu0 0.0
    %1834 = vmatprep.subr.mxu0 0.0
    %1835 = vmatpush1.msra.mxu0 0.0
    %1836 = vmatprep.subr.mxu0 0.0
    %1837 = vmatpush1.msra.mxu0 0.0
    %1838 = vmatprep.subr.mxu0 0.0
    %1839 = vmatpush1.msra.mxu0 0.0
    %1840 = vmatprep.subr.mxu0 0.0
    %1841 = vmatpush1.msra.mxu0 0.0
    %1842 = vmatprep.subr.mxu0 0.0
    %1843 = vmatpush1.msra.mxu0 0.0
    %1844 = vmatprep.subr.mxu0 0.0
    %1845 = vmatpush1.msra.mxu0 0.0
    %1846 = vmatprep.subr.mxu0 0.0
    %1847 = vmatpush1.msra.mxu0 0.0
    %1848 = vmatprep.subr.mxu0 0.0
    %1849 = vmatpush1.msra.mxu0 0.0
    %1850 = vmatprep.subr.mxu0 0.0
    %1851 = vmatpush1.msra.mxu0 0.0
    %1852 = vmatprep.subr.mxu0 0.0
    %1853 = vmatpush1.msra.mxu0 0.0
    %1854 = vmatprep.subr.mxu0 0.0
    %1855 = vmatpush1.msra.mxu0 0.0
    %1856 = vmatprep.subr.mxu0 0.0
    %1857 = vmatpush1.msra.mxu0 0.0
    %1858 = vmatprep.subr.mxu0 0.0
    %1859 = vmatpush1.msra.mxu0 0.0
    %1860 = vmatprep.subr.mxu0 0.0
    %1861 = vmatpush1.msra.mxu0 0.0
    %1862 = vmatprep.subr.mxu0 0.0
    %1863 = vmatpush1.msra.mxu0 0.0
    %1864 = vmatprep.subr.mxu0 0.0
    %1865 = vmatpush1.msra.mxu0 0.0
    %1866 = vmatprep.mubr.f32.mxu0 0.0
    %v1867 = vand.u32 %v1677, 4294901760
    %1868 = vmatmul.mubr.f32.gmra.mrb[0].mxu0 %v1867
    %v1869 = vpop.f32.mrb[0].mxu0
    %v1870 = vadd.f32 %v1759, %v1869
    %v1871 = vpop.f32.mrb[0].mxu0
    %1872 = vdwg.mxu0
    %1873 = vmatprep.subr.mxu0 0.0
    %v1874 = vand.u32 %v1659, 4294901760
    %v1875 = vsub.f32 %v1659, %v1874
    %1876 = vmatpush1.msra.mxu0 %v1875
    %1877 = vmatprep.subr.mxu0 0.0
    %v1878 = vand.u32 %v1660, 4294901760
    %v1879 = vsub.f32 %v1660, %v1878
    %1880 = vmatpush1.msra.mxu0 %v1879
    %1881 = vmatprep.subr.mxu0 0.0
    %v1882 = vand.u32 %v1661, 4294901760
    %v1883 = vsub.f32 %v1661, %v1882
    %1884 = vmatpush1.msra.mxu0 %v1883
    %1885 = vmatprep.subr.mxu0 0.0
    %v1886 = vand.u32 %v1662, 4294901760
    %v1887 = vsub.f32 %v1662, %v1886
    %1888 = vmatpush1.msra.mxu0 %v1887
    %1889 = vmatprep.subr.mxu0 0.0
    %v1890 = vand.u32 %v1663, 4294901760
    %v1891 = vsub.f32 %v1663, %v1890
    %1892 = vmatpush1.msra.mxu0 %v1891
    %1893 = vmatprep.subr.mxu0 0.0
    %v1894 = vand.u32 %v1664, 4294901760
    %v1895 = vsub.f32 %v1664, %v1894
    %1896 = vmatpush1.msra.mxu0 %v1895
    %1897 = vmatprep.subr.mxu0 0.0
    %v1898 = vand.u32 %v1665, 4294901760
    %v1899 = vsub.f32 %v1665, %v1898
    %1900 = vmatpush1.msra.mxu0 %v1899
    %1901 = vmatprep.subr.mxu0 0.0
    %v1902 = vand.u32 %v1666, 4294901760
    %v1903 = vsub.f32 %v1666, %v1902
    %1904 = vmatpush1.msra.mxu0 %v1903
    %1905 = vmatprep.subr.mxu0 0.0
    %1906 = vmatpush1.msra.mxu0 0.0
    %1907 = vmatprep.subr.mxu0 0.0
    %1908 = vmatpush1.msra.mxu0 0.0
    %1909 = vmatprep.subr.mxu0 0.0
    %1910 = vmatpush1.msra.mxu0 0.0
    %1911 = vmatprep.subr.mxu0 0.0
    %1912 = vmatpush1.msra.mxu0 0.0
    %1913 = vmatprep.subr.mxu0 0.0
    %1914 = vmatpush1.msra.mxu0 0.0
    %1915 = vmatprep.subr.mxu0 0.0
    %1916 = vmatpush1.msra.mxu0 0.0
    %1917 = vmatprep.subr.mxu0 0.0
    %1918 = vmatpush1.msra.mxu0 0.0
    %1919 = vmatprep.subr.mxu0 0.0
    %1920 = vmatpush1.msra.mxu0 0.0
    %1921 = vmatprep.subr.mxu0 0.0
    %1922 = vmatpush1.msra.mxu0 0.0
    %1923 = vmatprep.subr.mxu0 0.0
    %1924 = vmatpush1.msra.mxu0 0.0
    %1925 = vmatprep.subr.mxu0 0.0
    %1926 = vmatpush1.msra.mxu0 0.0
    %1927 = vmatprep.subr.mxu0 0.0
    %1928 = vmatpush1.msra.mxu0 0.0
    %1929 = vmatprep.subr.mxu0 0.0
    %1930 = vmatpush1.msra.mxu0 0.0
    %1931 = vmatprep.subr.mxu0 0.0
    %1932 = vmatpush1.msra.mxu0 0.0
    %1933 = vmatprep.subr.mxu0 0.0
    %1934 = vmatpush1.msra.mxu0 0.0
    %1935 = vmatprep.subr.mxu0 0.0
    %1936 = vmatpush1.msra.mxu0 0.0
    %1937 = vmatprep.subr.mxu0 0.0
    %1938 = vmatpush1.msra.mxu0 0.0
    %1939 = vmatprep.subr.mxu0 0.0
    %1940 = vmatpush1.msra.mxu0 0.0
    %1941 = vmatprep.subr.mxu0 0.0
    %1942 = vmatpush1.msra.mxu0 0.0
    %1943 = vmatprep.subr.mxu0 0.0
    %1944 = vmatpush1.msra.mxu0 0.0
    %1945 = vmatprep.subr.mxu0 0.0
    %1946 = vmatpush1.msra.mxu0 0.0
    %1947 = vmatprep.subr.mxu0 0.0
    %1948 = vmatpush1.msra.mxu0 0.0
    %1949 = vmatprep.subr.mxu0 0.0
    %1950 = vmatpush1.msra.mxu0 0.0
    %1951 = vmatprep.subr.mxu0 0.0
    %1952 = vmatpush1.msra.mxu0 0.0
    %1953 = vmatprep.mubr.f32.mxu0 0.0
    %v1954 = vand.u32 %v1677, 4294901760
    %v1955 = vsub.f32 %v1677, %v1954
    %1956 = vmatmul.mubr.f32.gmra.mrb[0].mxu0 %v1955
    %v1957 = vpop.f32.mrb[0].mxu0
    %v1958 = vadd.f32 %v1870, %v1957
    %v1959 = vpop.f32.mrb[0].mxu0
    %1960 = vdwg.mxu0
    %1961 = vmatprep.subr.mxu0 0.0
    %v1962 = vand.u32 %v1659, 4294901760
    %1963 = vmatpush1.msra.mxu0 %v1962
    %1964 = vmatprep.subr.mxu0 0.0
    %v1965 = vand.u32 %v1660, 4294901760
    %1966 = vmatpush1.msra.mxu0 %v1965
    %1967 = vmatprep.subr.mxu0 0.0
    %v1968 = vand.u32 %v1661, 4294901760
    %1969 = vmatpush1.msra.mxu0 %v1968
    %1970 = vmatprep.subr.mxu0 0.0
    %v1971 = vand.u32 %v1662, 4294901760
    %1972 = vmatpush1.msra.mxu0 %v1971
    %1973 = vmatprep.subr.mxu0 0.0
    %v1974 = vand.u32 %v1663, 4294901760
    %1975 = vmatpush1.msra.mxu0 %v1974
    %1976 = vmatprep.subr.mxu0 0.0
    %v1977 = vand.u32 %v1664, 4294901760
    %1978 = vmatpush1.msra.mxu0 %v1977
    %1979 = vmatprep.subr.mxu0 0.0
    %v1980 = vand.u32 %v1665, 4294901760
    %1981 = vmatpush1.msra.mxu0 %v1980
    %1982 = vmatprep.subr.mxu0 0.0
    %v1983 = vand.u32 %v1666, 4294901760
    %1984 = vmatpush1.msra.mxu0 %v1983
    %1985 = vmatprep.subr.mxu0 0.0
    %1986 = vmatpush1.msra.mxu0 0.0
    %1987 = vmatprep.subr.mxu0 0.0
    %1988 = vmatpush1.msra.mxu0 0.0
    %1989 = vmatprep.subr.mxu0 0.0
    %1990 = vmatpush1.msra.mxu0 0.0
    %1991 = vmatprep.subr.mxu0 0.0
    %1992 = vmatpush1.msra.mxu0 0.0
    %1993 = vmatprep.subr.mxu0 0.0
    %1994 = vmatpush1.msra.mxu0 0.0
    %1995 = vmatprep.subr.mxu0 0.0
    %1996 = vmatpush1.msra.mxu0 0.0
    %1997 = vmatprep.subr.mxu0 0.0
    %1998 = vmatpush1.msra.mxu0 0.0
    %1999 = vmatprep.subr.mxu0 0.0
    %2000 = vmatpush1.msra.mxu0 0.0
    %2001 = vmatprep.subr.mxu0 0.0
    %2002 = vmatpush1.msra.mxu0 0.0
    %2003 = vmatprep.subr.mxu0 0.0
    %2004 = vmatpush1.msra.mxu0 0.0
    %2005 = vmatprep.subr.mxu0 0.0
    %2006 = vmatpush1.msra.mxu0 0.0
    %2007 = vmatprep.subr.mxu0 0.0
    %2008 = vmatpush1.msra.mxu0 0.0
    %2009 = vmatprep.subr.mxu0 0.0
    %2010 = vmatpush1.msra.mxu0 0.0
    %2011 = vmatprep.subr.mxu0 0.0
    %2012 = vmatpush1.msra.mxu0 0.0
    %2013 = vmatprep.subr.mxu0 0.0
    %2014 = vmatpush1.msra.mxu0 0.0
    %2015 = vmatprep.subr.mxu0 0.0
    %2016 = vmatpush1.msra.mxu0 0.0
    %2017 = vmatprep.subr.mxu0 0.0
    %2018 = vmatpush1.msra.mxu0 0.0
    %2019 = vmatprep.subr.mxu0 0.0
    %2020 = vmatpush1.msra.mxu0 0.0
    %2021 = vmatprep.subr.mxu0 0.0
    %2022 = vmatpush1.msra.mxu0 0.0
    %2023 = vmatprep.subr.mxu0 0.0
    %2024 = vmatpush1.msra.mxu0 0.0
    %2025 = vmatprep.subr.mxu0 0.0
    %2026 = vmatpush1.msra.mxu0 0.0
    %2027 = vmatprep.subr.mxu0 0.0
    %2028 = vmatpush1.msra.mxu0 0.0
    %2029 = vmatprep.subr.mxu0 0.0
    %2030 = vmatpush1.msra.mxu0 0.0
    %2031 = vmatprep.subr.mxu0 0.0
    %2032 = vmatpush1.msra.mxu0 0.0
    %2033 = vmatprep.mubr.f32.mxu0 0.0
    %v2034 = vand.u32 %v1677, 4294901760
    %v2035 = vsub.f32 %v1677, %v2034
    %v2036 = vand.u32 %v2035, 4294901760
    %2037 = vmatmul.mubr.f32.gmra.mrb[0].mxu0 %v2036
    %v2038 = vpop.f32.mrb[0].mxu0
    %v2039 = vadd.f32 %v1958, %v2038
    %v2040 = vpop.f32.mrb[0].mxu0
    %2041 = vdwg.mxu0
    %2042 = vmatprep.subr.mxu0 0.0
    %v2043 = vand.u32 %v1659, 4294901760
    %v2044 = vsub.f32 %v1659, %v2043
    %v2045 = vand.u32 %v2044, 4294901760
    %2046 = vmatpush1.msra.mxu0 %v2045
    %2047 = vmatprep.subr.mxu0 0.0
    %v2048 = vand.u32 %v1660, 4294901760
    %v2049 = vsub.f32 %v1660, %v2048
    %v2050 = vand.u32 %v2049, 4294901760
    %2051 = vmatpush1.msra.mxu0 %v2050
    %2052 = vmatprep.subr.mxu0 0.0
    %v2053 = vand.u32 %v1661, 4294901760
    %v2054 = vsub.f32 %v1661, %v2053
    %v2055 = vand.u32 %v2054, 4294901760
    %2056 = vmatpush1.msra.mxu0 %v2055
    %2057 = vmatprep.subr.mxu0 0.0
    %v2058 = vand.u32 %v1662, 4294901760
    %v2059 = vsub.f32 %v1662, %v2058
    %v2060 = vand.u32 %v2059, 4294901760
    %2061 = vmatpush1.msra.mxu0 %v2060
    %2062 = vmatprep.subr.mxu0 0.0
    %v2063 = vand.u32 %v1663, 4294901760
    %v2064 = vsub.f32 %v1663, %v2063
    %v2065 = vand.u32 %v2064, 4294901760
    %2066 = vmatpush1.msra.mxu0 %v2065
    %2067 = vmatprep.subr.mxu0 0.0
    %v2068 = vand.u32 %v1664, 4294901760
    %v2069 = vsub.f32 %v1664, %v2068
    %v2070 = vand.u32 %v2069, 4294901760
    %2071 = vmatpush1.msra.mxu0 %v2070
    %2072 = vmatprep.subr.mxu0 0.0
    %v2073 = vand.u32 %v1665, 4294901760
    %v2074 = vsub.f32 %v1665, %v2073
    %v2075 = vand.u32 %v2074, 4294901760
    %2076 = vmatpush1.msra.mxu0 %v2075
    %2077 = vmatprep.subr.mxu0 0.0
    %v2078 = vand.u32 %v1666, 4294901760
    %v2079 = vsub.f32 %v1666, %v2078
    %v2080 = vand.u32 %v2079, 4294901760
    %2081 = vmatpush1.msra.mxu0 %v2080
    %2082 = vmatprep.subr.mxu0 0.0
    %2083 = vmatpush1.msra.mxu0 0.0
    %2084 = vmatprep.subr.mxu0 0.0
    %2085 = vmatpush1.msra.mxu0 0.0
    %2086 = vmatprep.subr.mxu0 0.0
    %2087 = vmatpush1.msra.mxu0 0.0
    %2088 = vmatprep.subr.mxu0 0.0
    %2089 = vmatpush1.msra.mxu0 0.0
    %2090 = vmatprep.subr.mxu0 0.0
    %2091 = vmatpush1.msra.mxu0 0.0
    %2092 = vmatprep.subr.mxu0 0.0
    %2093 = vmatpush1.msra.mxu0 0.0
    %2094 = vmatprep.subr.mxu0 0.0
    %2095 = vmatpush1.msra.mxu0 0.0
    %2096 = vmatprep.subr.mxu0 0.0
    %2097 = vmatpush1.msra.mxu0 0.0
    %2098 = vmatprep.subr.mxu0 0.0
    %2099 = vmatpush1.msra.mxu0 0.0
    %2100 = vmatprep.subr.mxu0 0.0
    %2101 = vmatpush1.msra.mxu0 0.0
    %2102 = vmatprep.subr.mxu0 0.0
    %2103 = vmatpush1.msra.mxu0 0.0
    %2104 = vmatprep.subr.mxu0 0.0
    %2105 = vmatpush1.msra.mxu0 0.0
    %2106 = vmatprep.subr.mxu0 0.0
    %2107 = vmatpush1.msra.mxu0 0.0
    %2108 = vmatprep.subr.mxu0 0.0
    %2109 = vmatpush1.msra.mxu0 0.0
    %2110 = vmatprep.subr.mxu0 0.0
    %2111 = vmatpush1.msra.mxu0 0.0
    %2112 = vmatprep.subr.mxu0 0.0
    %2113 = vmatpush1.msra.mxu0 0.0
    %2114 = vmatprep.subr.mxu0 0.0
    %2115 = vmatpush1.msra.mxu0 0.0
    %2116 = vmatprep.subr.mxu0 0.0
    %2117 = vmatpush1.msra.mxu0 0.0
    %2118 = vmatprep.subr.mxu0 0.0
    %2119 = vmatpush1.msra.mxu0 0.0
    %2120 = vmatprep.subr.mxu0 0.0
    %2121 = vmatpush1.msra.mxu0 0.0
    %2122 = vmatprep.subr.mxu0 0.0
    %2123 = vmatpush1.msra.mxu0 0.0
    %2124 = vmatprep.subr.mxu0 0.0
    %2125 = vmatpush1.msra.mxu0 0.0
    %2126 = vmatprep.subr.mxu0 0.0
    %2127 = vmatpush1.msra.mxu0 0.0
    %2128 = vmatprep.subr.mxu0 0.0
    %2129 = vmatpush1.msra.mxu0 0.0
    %2130 = vmatprep.mubr.f32.mxu0 0.0
    %v2131 = vand.u32 %v1677, 4294901760
    %2132 = vmatmul.mubr.f32.gmra.mrb[0].mxu0 %v2131
    %v2133 = vpop.f32.mrb[0].mxu0
    %v2134 = vadd.f32 %v2039, %v2133
    %v2135 = vpop.f32.mrb[0].mxu0
    %2136 = vdwg.mxu0
    %2137 = vmatprep.subr.mxu0 0.0
    %v2138 = vand.u32 %v1659, 4294901760
    %2139 = vmatpush1.msra.mxu0 %v2138
    %2140 = vmatprep.subr.mxu0 0.0
    %v2141 = vand.u32 %v1660, 4294901760
    %2142 = vmatpush1.msra.mxu0 %v2141
    %2143 = vmatprep.subr.mxu0 0.0
    %v2144 = vand.u32 %v1661, 4294901760
    %2145 = vmatpush1.msra.mxu0 %v2144
    %2146 = vmatprep.subr.mxu0 0.0
    %v2147 = vand.u32 %v1662, 4294901760
    %2148 = vmatpush1.msra.mxu0 %v2147
    %2149 = vmatprep.subr.mxu0 0.0
    %v2150 = vand.u32 %v1663, 4294901760
    %2151 = vmatpush1.msra.mxu0 %v2150
    %2152 = vmatprep.subr.mxu0 0.0
    %v2153 = vand.u32 %v1664, 4294901760
    %2154 = vmatpush1.msra.mxu0 %v2153
    %2155 = vmatprep.subr.mxu0 0.0
    %v2156 = vand.u32 %v1665, 4294901760
    %2157 = vmatpush1.msra.mxu0 %v2156
    %2158 = vmatprep.subr.mxu0 0.0
    %v2159 = vand.u32 %v1666, 4294901760
    %2160 = vmatpush1.msra.mxu0 %v2159
    %2161 = vmatprep.subr.mxu0 0.0
    %2162 = vmatpush1.msra.mxu0 0.0
    %2163 = vmatprep.subr.mxu0 0.0
    %2164 = vmatpush1.msra.mxu0 0.0
    %2165 = vmatprep.subr.mxu0 0.0
    %2166 = vmatpush1.msra.mxu0 0.0
    %2167 = vmatprep.subr.mxu0 0.0
    %2168 = vmatpush1.msra.mxu0 0.0
    %2169 = vmatprep.subr.mxu0 0.0
    %2170 = vmatpush1.msra.mxu0 0.0
    %2171 = vmatprep.subr.mxu0 0.0
    %2172 = vmatpush1.msra.mxu0 0.0
    %2173 = vmatprep.subr.mxu0 0.0
    %2174 = vmatpush1.msra.mxu0 0.0
    %2175 = vmatprep.subr.mxu0 0.0
    %2176 = vmatpush1.msra.mxu0 0.0
    %2177 = vmatprep.subr.mxu0 0.0
    %2178 = vmatpush1.msra.mxu0 0.0
    %2179 = vmatprep.subr.mxu0 0.0
    %2180 = vmatpush1.msra.mxu0 0.0
    %2181 = vmatprep.subr.mxu0 0.0
    %2182 = vmatpush1.msra.mxu0 0.0
    %2183 = vmatprep.subr.mxu0 0.0
    %2184 = vmatpush1.msra.mxu0 0.0
    %2185 = vmatprep.subr.mxu0 0.0
    %2186 = vmatpush1.msra.mxu0 0.0
    %2187 = vmatprep.subr.mxu0 0.0
    %2188 = vmatpush1.msra.mxu0 0.0
    %2189 = vmatprep.subr.mxu0 0.0
    %2190 = vmatpush1.msra.mxu0 0.0
    %2191 = vmatprep.subr.mxu0 0.0
    %2192 = vmatpush1.msra.mxu0 0.0
    %2193 = vmatprep.subr.mxu0 0.0
    %2194 = vmatpush1.msra.mxu0 0.0
    %2195 = vmatprep.subr.mxu0 0.0
    %2196 = vmatpush1.msra.mxu0 0.0
    %2197 = vmatprep.subr.mxu0 0.0
    %2198 = vmatpush1.msra.mxu0 0.0
    %2199 = vmatprep.subr.mxu0 0.0
    %2200 = vmatpush1.msra.mxu0 0.0
    %2201 = vmatprep.subr.mxu0 0.0
    %2202 = vmatpush1.msra.mxu0 0.0
    %2203 = vmatprep.subr.mxu0 0.0
    %2204 = vmatpush1.msra.mxu0 0.0
    %2205 = vmatprep.subr.mxu0 0.0
    %2206 = vmatpush1.msra.mxu0 0.0
    %2207 = vmatprep.subr.mxu0 0.0
    %2208 = vmatpush1.msra.mxu0 0.0
    %2209 = vmatprep.mubr.f32.mxu0 0.0
    %v2210 = vand.u32 %v1677, 4294901760
    %2211 = vmatmul.mubr.f32.gmra.mrb[0].mxu0 %v2210
    %v2212 = vpop.f32.mrb[0].mxu0
    %v2213 = vadd.f32 %v2134, %v2212
    %v2214 = vpop.f32.mrb[0].mxu0
    %2215 = vdwg.mxu0
    %vm2216 = vcmask 1041408
    %v2217 = vsel %vm2216, %v2213, 0.0
    %v2218 = vrot.slane %v2217, 4
    %v2219 = vadd.f32 %v2217, %v2218
    %v2220 = vrot.slane %v2219, 2
    %v2221 = vadd.f32 %v2219, %v2220
    %v2222 = vrot.slane %v2221, 1
    %v2223 = vadd.f32 %v2221, %v2222
    %v2224 = vmul.f32 %v2223, %v1627
    %v2225 = vsub.f32 %v2213, %v2224
    %v2226 = vmul.f32 %v2225, %v2225
    %v2227 = vsel %vm2216, %v2226, 0.0
    %v2228 = vrot.slane %v2227, 4
    %v2229 = vadd.f32 %v2227, %v2228
    %v2230 = vrot.slane %v2229, 2
    %v2231 = vadd.f32 %v2229, %v2230
    %v2232 = vrot.slane %v2231, 1
    %v2233 = vadd.f32 %v2231, %v2232
    %v2234 = vmul.f32 %v2233, %v1627
    %v2235 = vadd.f32 %v2234, 1e-05
    %v2236 = vrsqrt.pop %v2235
    %v2237 = vmul.f32 %v2225, %v2236
    %v2239 = vlaneseq
    %v2240 = vshrl.u32 %v2239, 7
    %v2241 = vsub.s32 0, %v2240
    %v2242 = vrot.slane %v1668, %v2241
    %v2244 = vmul.f32 %v2237, %v2242
    %v2246 = vlaneseq
    %v2247 = vshrl.u32 %v2246, 7
    %v2248 = vsub.s32 0, %v2247
    %v2249 = vrot.slane %v1669, %v2248
    %v2251 = vadd.f32 %v2244, %v2249
    %vm2252 = vcmp.ge.f32.partialorder %v2251, 0.0
    %v2253 = vmul.f32 %v2251, 0.01
    %v2254 = vsel %vm2252, %v2251, %v2253
    %v2255 = vld [vmem:[%s23] sm:$0xff]
    %v2256 = vld [vmem:[%s23 + $0x8] sm:$0xff]
    %v2257 = vld [vmem:[%s23 + $0x10] sm:$0xff]
    %v2258 = vld [vmem:[%s23 + $0x18] sm:$0xff]
    %v2259 = vld [vmem:[%s23 + $0x20] sm:$0xff]
    %v2260 = vld [vmem:[%s23 + $0x28] sm:$0xff]
    %v2261 = vld [vmem:[%s23 + $0x30] sm:$0xff]
    %v2262 = vld [vmem:[%s23 + $0x38] sm:$0xff]
    %v2263 = vld [vmem:[%s23 + $0x40] sm:$0xff]
    %v2264 = vld [vmem:[%s23 + $0x48] sm:$0xff]
    %v2265 = vld [vmem:[%s23 + $0x50] sm:$0xff]
    %v2266 = vld [vmem:[%s23 + $0x58] sm:$0xff]
    %v2267 = vld [vmem:[%s23 + $0x60] sm:$0xff]
    %v2268 = vld [vmem:[%s23 + $0x68] sm:$0xff]
    %v2269 = vld [vmem:[%s23 + $0x70] sm:$0xff]
    %v2270 = vld [vmem:[%s23 + $0x78] sm:$0xff]
    %v2271 = vld [vmem:[#allocation16] sm:$0x1]
    %v2272 = vld [vmem:[#allocation17] sm:$0x1]
    %v2273 = vld [vmem:[#allocation19] sm:$0x1]
    %v2275 = vlaneseq
    %v2276 = vshrl.u32 %v2275, 7
    %v2277 = vsub.s32 0, %v2276
    %v2278 = vrot.slane %v2271, %v2277
    %2280 = vmatprep.subr.mxu0 0.0
    %v2281 = vand.u32 %v2255, 4294901760
    %2282 = vmatpush1.msra.mxu0 %v2281
    %2283 = vmatprep.subr.mxu0 0.0
    %v2284 = vand.u32 %v2256, 4294901760
    %2285 = vmatpush1.msra.mxu0 %v2284
    %2286 = vmatprep.subr.mxu0 0.0
    %v2287 = vand.u32 %v2257, 4294901760
    %2288 = vmatpush1.msra.mxu0 %v2287
    %2289 = vmatprep.subr.mxu0 0.0
    %v2290 = vand.u32 %v2258, 4294901760
    %2291 = vmatpush1.msra.mxu0 %v2290
    %2292 = vmatprep.subr.mxu0 0.0
    %v2293 = vand.u32 %v2259, 4294901760
    %2294 = vmatpush1.msra.mxu0 %v2293
    %2295 = vmatprep.subr.mxu0 0.0
    %v2296 = vand.u32 %v2260, 4294901760
    %2297 = vmatpush1.msra.mxu0 %v2296
    %2298 = vmatprep.subr.mxu0 0.0
    %v2299 = vand.u32 %v2261, 4294901760
    %2300 = vmatpush1.msra.mxu0 %v2299
    %2301 = vmatprep.subr.mxu0 0.0
    %v2302 = vand.u32 %v2262, 4294901760
    %2303 = vmatpush1.msra.mxu0 %v2302
    %2304 = vmatprep.subr.mxu0 0.0
    %v2305 = vand.u32 %v2263, 4294901760
    %2306 = vmatpush1.msra.mxu0 %v2305
    %2307 = vmatprep.subr.mxu0 0.0
    %v2308 = vand.u32 %v2264, 4294901760
    %2309 = vmatpush1.msra.mxu0 %v2308
    %2310 = vmatprep.subr.mxu0 0.0
    %v2311 = vand.u32 %v2265, 4294901760
    %2312 = vmatpush1.msra.mxu0 %v2311
    %2313 = vmatprep.subr.mxu0 0.0
    %v2314 = vand.u32 %v2266, 4294901760
    %2315 = vmatpush1.msra.mxu0 %v2314
    %2316 = vmatprep.subr.mxu0 0.0
    %v2317 = vand.u32 %v2267, 4294901760
    %2318 = vmatpush1.msra.mxu0 %v2317
    %2319 = vmatprep.subr.mxu0 0.0
    %v2320 = vand.u32 %v2268, 4294901760
    %2321 = vmatpush1.msra.mxu0 %v2320
    %2322 = vmatprep.subr.mxu0 0.0
    %v2323 = vand.u32 %v2269, 4294901760
    %2324 = vmatpush1.msra.mxu0 %v2323
    %2325 = vmatprep.subr.mxu0 0.0
    %v2326 = vand.u32 %v2270, 4294901760
    %2327 = vmatpush1.msra.mxu0 %v2326
    %2328 = vmatprep.subr.mxu0 0.0
    %2329 = vmatpush1.msra.mxu0 0.0
    %2330 = vmatprep.subr.mxu0 0.0
    %2331 = vmatpush1.msra.mxu0 0.0
    %2332 = vmatprep.subr.mxu0 0.0
    %2333 = vmatpush1.msra.mxu0 0.0
    %2334 = vmatprep.subr.mxu0 0.0
    %2335 = vmatpush1.msra.mxu0 0.0
    %2336 = vmatprep.subr.mxu0 0.0
    %2337 = vmatpush1.msra.mxu0 0.0
    %2338 = vmatprep.subr.mxu0 0.0
    %2339 = vmatpush1.msra.mxu0 0.0
    %2340 = vmatprep.subr.mxu0 0.0
    %2341 = vmatpush1.msra.mxu0 0.0
    %2342 = vmatprep.subr.mxu0 0.0
    %2343 = vmatpush1.msra.mxu0 0.0
    %2344 = vmatprep.subr.mxu0 0.0
    %2345 = vmatpush1.msra.mxu0 0.0
    %2346 = vmatprep.subr.mxu0 0.0
    %2347 = vmatpush1.msra.mxu0 0.0
    %2348 = vmatprep.subr.mxu0 0.0
    %2349 = vmatpush1.msra.mxu0 0.0
    %2350 = vmatprep.subr.mxu0 0.0
    %2351 = vmatpush1.msra.mxu0 0.0
    %2352 = vmatprep.subr.mxu0 0.0
    %2353 = vmatpush1.msra.mxu0 0.0
    %2354 = vmatprep.subr.mxu0 0.0
    %2355 = vmatpush1.msra.mxu0 0.0
    %2356 = vmatprep.subr.mxu0 0.0
    %2357 = vmatpush1.msra.mxu0 0.0
    %2358 = vmatprep.subr.mxu0 0.0
    %2359 = vmatpush1.msra.mxu0 0.0
    %2360 = vmatprep.mubr.f32.mxu0 0.0
    %v2361 = vand.u32 %v2254, 4294901760
    %v2362 = vsub.f32 %v2254, %v2361
    %v2363 = vand.u32 %v2362, 4294901760
    %v2364 = vsub.f32 %v2362, %v2363
    %v2365 = vand.u32 %v2364, 4294901760
    %2366 = vmatmul.mubr.f32.gmra.mrb[0].mxu0 %v2365
    %v2367 = vpop.f32.mrb[0].mxu0
    %v2368 = vadd.f32 %v2278, %v2367
    %v2369 = vpop.f32.mrb[0].mxu0
    %2370 = vdwg.mxu0
    %2371 = vmatprep.subr.mxu0 0.0
    %v2372 = vand.u32 %v2255, 4294901760
    %v2373 = vsub.f32 %v2255, %v2372
    %v2374 = vand.u32 %v2373, 4294901760
    %v2375 = vsub.f32 %v2373, %v2374
    %v2376 = vand.u32 %v2375, 4294901760
    %2377 = vmatpush1.msra.mxu0 %v2376
    %2378 = vmatprep.subr.mxu0 0.0
    %v2379 = vand.u32 %v2256, 4294901760
    %v2380 = vsub.f32 %v2256, %v2379
    %v2381 = vand.u32 %v2380, 4294901760
    %v2382 = vsub.f32 %v2380, %v2381
    %v2383 = vand.u32 %v2382, 4294901760
    %2384 = vmatpush1.msra.mxu0 %v2383
    %2385 = vmatprep.subr.mxu0 0.0
    %v2386 = vand.u32 %v2257, 4294901760
    %v2387 = vsub.f32 %v2257, %v2386
    %v2388 = vand.u32 %v2387, 4294901760
    %v2389 = vsub.f32 %v2387, %v2388
    %v2390 = vand.u32 %v2389, 4294901760
    %2391 = vmatpush1.msra.mxu0 %v2390
    %2392 = vmatprep.subr.mxu0 0.0
    %v2393 = vand.u32 %v2258, 4294901760
    %v2394 = vsub.f32 %v2258, %v2393
    %v2395 = vand.u32 %v2394, 4294901760
    %v2396 = vsub.f32 %v2394, %v2395
    %v2397 = vand.u32 %v2396, 4294901760
    %2398 = vmatpush1.msra.mxu0 %v2397
    %2399 = vmatprep.subr.mxu0 0.0
    %v2400 = vand.u32 %v2259, 4294901760
    %v2401 = vsub.f32 %v2259, %v2400
    %v2402 = vand.u32 %v2401, 4294901760
    %v2403 = vsub.f32 %v2401, %v2402
    %v2404 = vand.u32 %v2403, 4294901760
    %2405 = vmatpush1.msra.mxu0 %v2404
    %2406 = vmatprep.subr.mxu0 0.0
    %v2407 = vand.u32 %v2260, 4294901760
    %v2408 = vsub.f32 %v2260, %v2407
    %v2409 = vand.u32 %v2408, 4294901760
    %v2410 = vsub.f32 %v2408, %v2409
    %v2411 = vand.u32 %v2410, 4294901760
    %2412 = vmatpush1.msra.mxu0 %v2411
    %2413 = vmatprep.subr.mxu0 0.0
    %v2414 = vand.u32 %v2261, 4294901760
    %v2415 = vsub.f32 %v2261, %v2414
    %v2416 = vand.u32 %v2415, 4294901760
    %v2417 = vsub.f32 %v2415, %v2416
    %v2418 = vand.u32 %v2417, 4294901760
    %2419 = vmatpush1.msra.mxu0 %v2418
    %2420 = vmatprep.subr.mxu0 0.0
    %v2421 = vand.u32 %v2262, 4294901760
    %v2422 = vsub.f32 %v2262, %v2421
    %v2423 = vand.u32 %v2422, 4294901760
    %v2424 = vsub.f32 %v2422, %v2423
    %v2425 = vand.u32 %v2424, 4294901760
    %2426 = vmatpush1.msra.mxu0 %v2425
    %2427 = vmatprep.subr.mxu0 0.0
    %v2428 = vand.u32 %v2263, 4294901760
    %v2429 = vsub.f32 %v2263, %v2428
    %v2430 = vand.u32 %v2429, 4294901760
    %v2431 = vsub.f32 %v2429, %v2430
    %v2432 = vand.u32 %v2431, 4294901760
    %2433 = vmatpush1.msra.mxu0 %v2432
    %2434 = vmatprep.subr.mxu0 0.0
    %v2435 = vand.u32 %v2264, 4294901760
    %v2436 = vsub.f32 %v2264, %v2435
    %v2437 = vand.u32 %v2436, 4294901760
    %v2438 = vsub.f32 %v2436, %v2437
    %v2439 = vand.u32 %v2438, 4294901760
    %2440 = vmatpush1.msra.mxu0 %v2439
    %2441 = vmatprep.subr.mxu0 0.0
    %v2442 = vand.u32 %v2265, 4294901760
    %v2443 = vsub.f32 %v2265, %v2442
    %v2444 = vand.u32 %v2443, 4294901760
    %v2445 = vsub.f32 %v2443, %v2444
    %v2446 = vand.u32 %v2445, 4294901760
    %2447 = vmatpush1.msra.mxu0 %v2446
    %2448 = vmatprep.subr.mxu0 0.0
    %v2449 = vand.u32 %v2266, 4294901760
    %v2450 = vsub.f32 %v2266, %v2449
    %v2451 = vand.u32 %v2450, 4294901760
    %v2452 = vsub.f32 %v2450, %v2451
    %v2453 = vand.u32 %v2452, 4294901760
    %2454 = vmatpush1.msra.mxu0 %v2453
    %2455 = vmatprep.subr.mxu0 0.0
    %v2456 = vand.u32 %v2267, 4294901760
    %v2457 = vsub.f32 %v2267, %v2456
    %v2458 = vand.u32 %v2457, 4294901760
    %v2459 = vsub.f32 %v2457, %v2458
    %v2460 = vand.u32 %v2459, 4294901760
    %2461 = vmatpush1.msra.mxu0 %v2460
    %2462 = vmatprep.subr.mxu0 0.0
    %v2463 = vand.u32 %v2268, 4294901760
    %v2464 = vsub.f32 %v2268, %v2463
    %v2465 = vand.u32 %v2464, 4294901760
    %v2466 = vsub.f32 %v2464, %v2465
    %v2467 = vand.u32 %v2466, 4294901760
    %2468 = vmatpush1.msra.mxu0 %v2467
    %2469 = vmatprep.subr.mxu0 0.0
    %v2470 = vand.u32 %v2269, 4294901760
    %v2471 = vsub.f32 %v2269, %v2470
    %v2472 = vand.u32 %v2471, 4294901760
    %v2473 = vsub.f32 %v2471, %v2472
    %v2474 = vand.u32 %v2473, 4294901760
    %2475 = vmatpush1.msra.mxu0 %v2474
    %2476 = vmatprep.subr.mxu0 0.0
    %v2477 = vand.u32 %v2270, 4294901760
    %v2478 = vsub.f32 %v2270, %v2477
    %v2479 = vand.u32 %v2478, 4294901760
    %v2480 = vsub.f32 %v2478, %v2479
    %v2481 = vand.u32 %v2480, 4294901760
    %2482 = vmatpush1.msra.mxu0 %v2481
    %2483 = vmatprep.subr.mxu0 0.0
    %2484 = vmatpush1.msra.mxu0 0.0
    %2485 = vmatprep.subr.mxu0 0.0
    %2486 = vmatpush1.msra.mxu0 0.0
    %2487 = vmatprep.subr.mxu0 0.0
    %2488 = vmatpush1.msra.mxu0 0.0
    %2489 = vmatprep.subr.mxu0 0.0
    %2490 = vmatpush1.msra.mxu0 0.0
    %2491 = vmatprep.subr.mxu0 0.0
    %2492 = vmatpush1.msra.mxu0 0.0
    %2493 = vmatprep.subr.mxu0 0.0
    %2494 = vmatpush1.msra.mxu0 0.0
    %2495 = vmatprep.subr.mxu0 0.0
    %2496 = vmatpush1.msra.mxu0 0.0
    %2497 = vmatprep.subr.mxu0 0.0
    %2498 = vmatpush1.msra.mxu0 0.0
    %2499 = vmatprep.subr.mxu0 0.0
    %2500 = vmatpush1.msra.mxu0 0.0
    %2501 = vmatprep.subr.mxu0 0.0
    %2502 = vmatpush1.msra.mxu0 0.0
    %2503 = vmatprep.subr.mxu0 0.0
    %2504 = vmatpush1.msra.mxu0 0.0
    %2505 = vmatprep.subr.mxu0 0.0
    %2506 = vmatpush1.msra.mxu0 0.0
    %2507 = vmatprep.subr.mxu0 0.0
    %2508 = vmatpush1.msra.mxu0 0.0
    %2509 = vmatprep.subr.mxu0 0.0
    %2510 = vmatpush1.msra.mxu0 0.0
    %2511 = vmatprep.subr.mxu0 0.0
    %2512 = vmatpush1.msra.mxu0 0.0
    %2513 = vmatprep.subr.mxu0 0.0
    %2514 = vmatpush1.msra.mxu0 0.0
    %2515 = vmatprep.mubr.f32.mxu0 0.0
    %v2516 = vand.u32 %v2254, 4294901760
    %2517 = vmatmul.mubr.f32.gmra.mrb[0].mxu0 %v2516
    %v2518 = vpop.f32.mrb[0].mxu0
    %v2519 = vadd.f32 %v2368, %v2518
    %v2520 = vpop.f32.mrb[0].mxu0
    %2521 = vdwg.mxu0
    %2522 = vmatprep.subr.mxu0 0.0
    %v2523 = vand.u32 %v2255, 4294901760
    %v2524 = vsub.f32 %v2255, %v2523
    %2525 = vmatpush1.msra.mxu0 %v2524
    %2526 = vmatprep.subr.mxu0 0.0
    %v2527 = vand.u32 %v2256, 4294901760
    %v2528 = vsub.f32 %v2256, %v2527
    %2529 = vmatpush1.msra.mxu0 %v2528
    %2530 = vmatprep.subr.mxu0 0.0
    %v2531 = vand.u32 %v2257, 4294901760
    %v2532 = vsub.f32 %v2257, %v2531
    %2533 = vmatpush1.msra.mxu0 %v2532
    %2534 = vmatprep.subr.mxu0 0.0
    %v2535 = vand.u32 %v2258, 4294901760
    %v2536 = vsub.f32 %v2258, %v2535
    %2537 = vmatpush1.msra.mxu0 %v2536
    %2538 = vmatprep.subr.mxu0 0.0
    %v2539 = vand.u32 %v2259, 4294901760
    %v2540 = vsub.f32 %v2259, %v2539
    %2541 = vmatpush1.msra.mxu0 %v2540
    %2542 = vmatprep.subr.mxu0 0.0
    %v2543 = vand.u32 %v2260, 4294901760
    %v2544 = vsub.f32 %v2260, %v2543
    %2545 = vmatpush1.msra.mxu0 %v2544
    %2546 = vmatprep.subr.mxu0 0.0
    %v2547 = vand.u32 %v2261, 4294901760
    %v2548 = vsub.f32 %v2261, %v2547
    %2549 = vmatpush1.msra.mxu0 %v2548
    %2550 = vmatprep.subr.mxu0 0.0
    %v2551 = vand.u32 %v2262, 4294901760
    %v2552 = vsub.f32 %v2262, %v2551
    %2553 = vmatpush1.msra.mxu0 %v2552
    %2554 = vmatprep.subr.mxu0 0.0
    %v2555 = vand.u32 %v2263, 4294901760
    %v2556 = vsub.f32 %v2263, %v2555
    %2557 = vmatpush1.msra.mxu0 %v2556
    %2558 = vmatprep.subr.mxu0 0.0
    %v2559 = vand.u32 %v2264, 4294901760
    %v2560 = vsub.f32 %v2264, %v2559
    %2561 = vmatpush1.msra.mxu0 %v2560
    %2562 = vmatprep.subr.mxu0 0.0
    %v2563 = vand.u32 %v2265, 4294901760
    %v2564 = vsub.f32 %v2265, %v2563
    %2565 = vmatpush1.msra.mxu0 %v2564
    %2566 = vmatprep.subr.mxu0 0.0
    %v2567 = vand.u32 %v2266, 4294901760
    %v2568 = vsub.f32 %v2266, %v2567
    %2569 = vmatpush1.msra.mxu0 %v2568
    %2570 = vmatprep.subr.mxu0 0.0
    %v2571 = vand.u32 %v2267, 4294901760
    %v2572 = vsub.f32 %v2267, %v2571
    %2573 = vmatpush1.msra.mxu0 %v2572
    %2574 = vmatprep.subr.mxu0 0.0
    %v2575 = vand.u32 %v2268, 4294901760
    %v2576 = vsub.f32 %v2268, %v2575
    %2577 = vmatpush1.msra.mxu0 %v2576
    %2578 = vmatprep.subr.mxu0 0.0
    %v2579 = vand.u32 %v2269, 4294901760
    %v2580 = vsub.f32 %v2269, %v2579
    %2581 = vmatpush1.msra.mxu0 %v2580
    %2582 = vmatprep.subr.mxu0 0.0
    %v2583 = vand.u32 %v2270, 4294901760
    %v2584 = vsub.f32 %v2270, %v2583
    %2585 = vmatpush1.msra.mxu0 %v2584
    %2586 = vmatprep.subr.mxu0 0.0
    %2587 = vmatpush1.msra.mxu0 0.0
    %2588 = vmatprep.subr.mxu0 0.0
    %2589 = vmatpush1.msra.mxu0 0.0
    %2590 = vmatprep.subr.mxu0 0.0
    %2591 = vmatpush1.msra.mxu0 0.0
    %2592 = vmatprep.subr.mxu0 0.0
    %2593 = vmatpush1.msra.mxu0 0.0
    %2594 = vmatprep.subr.mxu0 0.0
    %2595 = vmatpush1.msra.mxu0 0.0
    %2596 = vmatprep.subr.mxu0 0.0
    %2597 = vmatpush1.msra.mxu0 0.0
    %2598 = vmatprep.subr.mxu0 0.0
    %2599 = vmatpush1.msra.mxu0 0.0
    %2600 = vmatprep.subr.mxu0 0.0
    %2601 = vmatpush1.msra.mxu0 0.0
    %2602 = vmatprep.subr.mxu0 0.0
    %2603 = vmatpush1.msra.mxu0 0.0
    %2604 = vmatprep.subr.mxu0 0.0
    %2605 = vmatpush1.msra.mxu0 0.0
    %2606 = vmatprep.subr.mxu0 0.0
    %2607 = vmatpush1.msra.mxu0 0.0
    %2608 = vmatprep.subr.mxu0 0.0
    %2609 = vmatpush1.msra.mxu0 0.0
    %2610 = vmatprep.subr.mxu0 0.0
    %2611 = vmatpush1.msra.mxu0 0.0
    %2612 = vmatprep.subr.mxu0 0.0
    %2613 = vmatpush1.msra.mxu0 0.0
    %2614 = vmatprep.subr.mxu0 0.0
    %2615 = vmatpush1.msra.mxu0 0.0
    %2616 = vmatprep.subr.mxu0 0.0
    %2617 = vmatpush1.msra.mxu0 0.0
    %2618 = vmatprep.mubr.f32.mxu0 0.0
    %v2619 = vand.u32 %v2254, 4294901760
    %v2620 = vsub.f32 %v2254, %v2619
    %2621 = vmatmul.mubr.f32.gmra.mrb[0].mxu0 %v2620
    %v2622 = vpop.f32.mrb[0].mxu0
    %v2623 = vadd.f32 %v2519, %v2622
    %v2624 = vpop.f32.mrb[0].mxu0
    %2625 = vdwg.mxu0
    %2626 = vmatprep.subr.mxu0 0.0
    %v2627 = vand.u32 %v2255, 4294901760
    %2628 = vmatpush1.msra.mxu0 %v2627
    %2629 = vmatprep.subr.mxu0 0.0
    %v2630 = vand.u32 %v2256, 4294901760
    %2631 = vmatpush1.msra.mxu0 %v2630
    %2632 = vmatprep.subr.mxu0 0.0
    %v2633 = vand.u32 %v2257, 4294901760
    %2634 = vmatpush1.msra.mxu0 %v2633
    %2635 = vmatprep.subr.mxu0 0.0
    %v2636 = vand.u32 %v2258, 4294901760
    %2637 = vmatpush1.msra.mxu0 %v2636
    %2638 = vmatprep.subr.mxu0 0.0
    %v2639 = vand.u32 %v2259, 4294901760
    %2640 = vmatpush1.msra.mxu0 %v2639
    %2641 = vmatprep.subr.mxu0 0.0
    %v2642 = vand.u32 %v2260, 4294901760
    %2643 = vmatpush1.msra.mxu0 %v2642
    %2644 = vmatprep.subr.mxu0 0.0
    %v2645 = vand.u32 %v2261, 4294901760
    %2646 = vmatpush1.msra.mxu0 %v2645
    %2647 = vmatprep.subr.mxu0 0.0
    %v2648 = vand.u32 %v2262, 4294901760
    %2649 = vmatpush1.msra.mxu0 %v2648
    %2650 = vmatprep.subr.mxu0 0.0
    %v2651 = vand.u32 %v2263, 4294901760
    %2652 = vmatpush1.msra.mxu0 %v2651
    %2653 = vmatprep.subr.mxu0 0.0
    %v2654 = vand.u32 %v2264, 4294901760
    %2655 = vmatpush1.msra.mxu0 %v2654
    %2656 = vmatprep.subr.mxu0 0.0
    %v2657 = vand.u32 %v2265, 4294901760
    %2658 = vmatpush1.msra.mxu0 %v2657
    %2659 = vmatprep.subr.mxu0 0.0
    %v2660 = vand.u32 %v2266, 4294901760
    %2661 = vmatpush1.msra.mxu0 %v2660
    %2662 = vmatprep.subr.mxu0 0.0
    %v2663 = vand.u32 %v2267, 4294901760
    %2664 = vmatpush1.msra.mxu0 %v2663
    %2665 = vmatprep.subr.mxu0 0.0
    %v2666 = vand.u32 %v2268, 4294901760
    %2667 = vmatpush1.msra.mxu0 %v2666
    %2668 = vmatprep.subr.mxu0 0.0
    %v2669 = vand.u32 %v2269, 4294901760
    %2670 = vmatpush1.msra.mxu0 %v2669
    %2671 = vmatprep.subr.mxu0 0.0
    %v2672 = vand.u32 %v2270, 4294901760
    %2673 = vmatpush1.msra.mxu0 %v2672
    %2674 = vmatprep.subr.mxu0 0.0
    %2675 = vmatpush1.msra.mxu0 0.0
    %2676 = vmatprep.subr.mxu0 0.0
    %2677 = vmatpush1.msra.mxu0 0.0
    %2678 = vmatprep.subr.mxu0 0.0
    %2679 = vmatpush1.msra.mxu0 0.0
    %2680 = vmatprep.subr.mxu0 0.0
    %2681 = vmatpush1.msra.mxu0 0.0
    %2682 = vmatprep.subr.mxu0 0.0
    %2683 = vmatpush1.msra.mxu0 0.0
    %2684 = vmatprep.subr.mxu0 0.0
    %2685 = vmatpush1.msra.mxu0 0.0
    %2686 = vmatprep.subr.mxu0 0.0
    %2687 = vmatpush1.msra.mxu0 0.0
    %2688 = vmatprep.subr.mxu0 0.0
    %2689 = vmatpush1.msra.mxu0 0.0
    %2690 = vmatprep.subr.mxu0 0.0
    %2691 = vmatpush1.msra.mxu0 0.0
    %2692 = vmatprep.subr.mxu0 0.0
    %2693 = vmatpush1.msra.mxu0 0.0
    %2694 = vmatprep.subr.mxu0 0.0
    %2695 = vmatpush1.msra.mxu0 0.0
    %2696 = vmatprep.subr.mxu0 0.0
    %2697 = vmatpush1.msra.mxu0 0.0
    %2698 = vmatprep.subr.mxu0 0.0
    %2699 = vmatpush1.msra.mxu0 0.0
    %2700 = vmatprep.subr.mxu0 0.0
    %2701 = vmatpush1.msra.mxu0 0.0
    %2702 = vmatprep.subr.mxu0 0.0
    %2703 = vmatpush1.msra.mxu0 0.0
    %2704 = vmatprep.subr.mxu0 0.0
    %2705 = vmatpush1.msra.mxu0 0.0
    %2706 = vmatprep.mubr.f32.mxu0 0.0
    %v2707 = vand.u32 %v2254, 4294901760
    %v2708 = vsub.f32 %v2254, %v2707
    %v2709 = vand.u32 %v2708, 4294901760
    %2710 = vmatmul.mubr.f32.gmra.mrb[0].mxu0 %v2709
    %v2711 = vpop.f32.mrb[0].mxu0
    %v2712 = vadd.f32 %v2623, %v2711
    %v2713 = vpop.f32.mrb[0].mxu0
    %2714 = vdwg.mxu0
    %2715 = vmatprep.subr.mxu0 0.0
    %v2716 = vand.u32 %v2255, 4294901760
    %v2717 = vsub.f32 %v2255, %v2716
    %v2718 = vand.u32 %v2717, 4294901760
    %2719 = vmatpush1.msra.mxu0 %v2718
    %2720 = vmatprep.subr.mxu0 0.0
    %v2721 = vand.u32 %v2256, 4294901760
    %v2722 = vsub.f32 %v2256, %v2721
    %v2723 = vand.u32 %v2722, 4294901760
    %2724 = vmatpush1.msra.mxu0 %v2723
    %2725 = vmatprep.subr.mxu0 0.0
    %v2726 = vand.u32 %v2257, 4294901760
    %v2727 = vsub.f32 %v2257, %v2726
    %v2728 = vand.u32 %v2727, 4294901760
    %2729 = vmatpush1.msra.mxu0 %v2728
    %2730 = vmatprep.subr.mxu0 0.0
    %v2731 = vand.u32 %v2258, 4294901760
    %v2732 = vsub.f32 %v2258, %v2731
    %v2733 = vand.u32 %v2732, 4294901760
    %2734 = vmatpush1.msra.mxu0 %v2733
    %2735 = vmatprep.subr.mxu0 0.0
    %v2736 = vand.u32 %v2259, 4294901760
    %v2737 = vsub.f32 %v2259, %v2736
    %v2738 = vand.u32 %v2737, 4294901760
    %2739 = vmatpush1.msra.mxu0 %v2738
    %2740 = vmatprep.subr.mxu0 0.0
    %v2741 = vand.u32 %v2260, 4294901760
    %v2742 = vsub.f32 %v2260, %v2741
    %v2743 = vand.u32 %v2742, 4294901760
    %2744 = vmatpush1.msra.mxu0 %v2743
    %2745 = vmatprep.subr.mxu0 0.0
    %v2746 = vand.u32 %v2261, 4294901760
    %v2747 = vsub.f32 %v2261, %v2746
    %v2748 = vand.u32 %v2747, 4294901760
    %2749 = vmatpush1.msra.mxu0 %v2748
    %2750 = vmatprep.subr.mxu0 0.0
    %v2751 = vand.u32 %v2262, 4294901760
    %v2752 = vsub.f32 %v2262, %v2751
    %v2753 = vand.u32 %v2752, 4294901760
    %2754 = vmatpush1.msra.mxu0 %v2753
    %2755 = vmatprep.subr.mxu0 0.0
    %v2756 = vand.u32 %v2263, 4294901760
    %v2757 = vsub.f32 %v2263, %v2756
    %v2758 = vand.u32 %v2757, 4294901760
    %2759 = vmatpush1.msra.mxu0 %v2758
    %2760 = vmatprep.subr.mxu0 0.0
    %v2761 = vand.u32 %v2264, 4294901760
    %v2762 = vsub.f32 %v2264, %v2761
    %v2763 = vand.u32 %v2762, 4294901760
    %2764 = vmatpush1.msra.mxu0 %v2763
    %2765 = vmatprep.subr.mxu0 0.0
    %v2766 = vand.u32 %v2265, 4294901760
    %v2767 = vsub.f32 %v2265, %v2766
    %v2768 = vand.u32 %v2767, 4294901760
    %2769 = vmatpush1.msra.mxu0 %v2768
    %2770 = vmatprep.subr.mxu0 0.0
    %v2771 = vand.u32 %v2266, 4294901760
    %v2772 = vsub.f32 %v2266, %v2771
    %v2773 = vand.u32 %v2772, 4294901760
    %2774 = vmatpush1.msra.mxu0 %v2773
    %2775 = vmatprep.subr.mxu0 0.0
    %v2776 = vand.u32 %v2267, 4294901760
    %v2777 = vsub.f32 %v2267, %v2776
    %v2778 = vand.u32 %v2777, 4294901760
    %2779 = vmatpush1.msra.mxu0 %v2778
    %2780 = vmatprep.subr.mxu0 0.0
    %v2781 = vand.u32 %v2268, 4294901760
    %v2782 = vsub.f32 %v2268, %v2781
    %v2783 = vand.u32 %v2782, 4294901760
    %2784 = vmatpush1.msra.mxu0 %v2783
    %2785 = vmatprep.subr.mxu0 0.0
    %v2786 = vand.u32 %v2269, 4294901760
    %v2787 = vsub.f32 %v2269, %v2786
    %v2788 = vand.u32 %v2787, 4294901760
    %2789 = vmatpush1.msra.mxu0 %v2788
    %2790 = vmatprep.subr.mxu0 0.0
    %v2791 = vand.u32 %v2270, 4294901760
    %v2792 = vsub.f32 %v2270, %v2791
    %v2793 = vand.u32 %v2792, 4294901760
    %2794 = vmatpush1.msra.mxu0 %v2793
    %2795 = vmatprep.subr.mxu0 0.0
    %2796 = vmatpush1.msra.mxu0 0.0
    %2797 = vmatprep.subr.mxu0 0.0
    %2798 = vmatpush1.msra.mxu0 0.0
    %2799 = vmatprep.subr.mxu0 0.0
    %2800 = vmatpush1.msra.mxu0 0.0
    %2801 = vmatprep.subr.mxu0 0.0
    %2802 = vmatpush1.msra.mxu0 0.0
    %2803 = vmatprep.subr.mxu0 0.0
    %2804 = vmatpush1.msra.mxu0 0.0
    %2805 = vmatprep.subr.mxu0 0.0
    %2806 = vmatpush1.msra.mxu0 0.0
    %2807 = vmatprep.subr.mxu0 0.0
    %2808 = vmatpush1.msra.mxu0 0.0
    %2809 = vmatprep.subr.mxu0 0.0
    %2810 = vmatpush1.msra.mxu0 0.0
    %2811 = vmatprep.subr.mxu0 0.0
    %2812 = vmatpush1.msra.mxu0 0.0
    %2813 = vmatprep.subr.mxu0 0.0
    %2814 = vmatpush1.msra.mxu0 0.0
    %2815 = vmatprep.subr.mxu0 0.0
    %2816 = vmatpush1.msra.mxu0 0.0
    %2817 = vmatprep.subr.mxu0 0.0
    %2818 = vmatpush1.msra.mxu0 0.0
    %2819 = vmatprep.subr.mxu0 0.0
    %2820 = vmatpush1.msra.mxu0 0.0
    %2821 = vmatprep.subr.mxu0 0.0
    %2822 = vmatpush1.msra.mxu0 0.0
    %2823 = vmatprep.subr.mxu0 0.0
    %2824 = vmatpush1.msra.mxu0 0.0
    %2825 = vmatprep.subr.mxu0 0.0
    %2826 = vmatpush1.msra.mxu0 0.0
    %2827 = vmatprep.mubr.f32.mxu0 0.0
    %v2828 = vand.u32 %v2254, 4294901760
    %2829 = vmatmul.mubr.f32.gmra.mrb[0].mxu0 %v2828
    %v2830 = vpop.f32.mrb[0].mxu0
    %v2831 = vadd.f32 %v2712, %v2830
    %v2832 = vpop.f32.mrb[0].mxu0
    %2833 = vdwg.mxu0
    %2834 = vmatprep.subr.mxu0 0.0
    %v2835 = vand.u32 %v2255, 4294901760
    %2836 = vmatpush1.msra.mxu0 %v2835
    %2837 = vmatprep.subr.mxu0 0.0
    %v2838 = vand.u32 %v2256, 4294901760
    %2839 = vmatpush1.msra.mxu0 %v2838
    %2840 = vmatprep.subr.mxu0 0.0
    %v2841 = vand.u32 %v2257, 4294901760
    %2842 = vmatpush1.msra.mxu0 %v2841
    %2843 = vmatprep.subr.mxu0 0.0
    %v2844 = vand.u32 %v2258, 4294901760
    %2845 = vmatpush1.msra.mxu0 %v2844
    %2846 = vmatprep.subr.mxu0 0.0
    %v2847 = vand.u32 %v2259, 4294901760
    %2848 = vmatpush1.msra.mxu0 %v2847
    %2849 = vmatprep.subr.mxu0 0.0
    %v2850 = vand.u32 %v2260, 4294901760
    %2851 = vmatpush1.msra.mxu0 %v2850
    %2852 = vmatprep.subr.mxu0 0.0
    %v2853 = vand.u32 %v2261, 4294901760
    %2854 = vmatpush1.msra.mxu0 %v2853
    %2855 = vmatprep.subr.mxu0 0.0
    %v2856 = vand.u32 %v2262, 4294901760
    %2857 = vmatpush1.msra.mxu0 %v2856
    %2858 = vmatprep.subr.mxu0 0.0
    %v2859 = vand.u32 %v2263, 4294901760
    %2860 = vmatpush1.msra.mxu0 %v2859
    %2861 = vmatprep.subr.mxu0 0.0
    %v2862 = vand.u32 %v2264, 4294901760
    %2863 = vmatpush1.msra.mxu0 %v2862
    %2864 = vmatprep.subr.mxu0 0.0
    %v2865 = vand.u32 %v2265, 4294901760
    %2866 = vmatpush1.msra.mxu0 %v2865
    %2867 = vmatprep.subr.mxu0 0.0
    %v2868 = vand.u32 %v2266, 4294901760
    %2869 = vmatpush1.msra.mxu0 %v2868
    %2870 = vmatprep.subr.mxu0 0.0
    %v2871 = vand.u32 %v2267, 4294901760
    %2872 = vmatpush1.msra.mxu0 %v2871
    %2873 = vmatprep.subr.mxu0 0.0
    %v2874 = vand.u32 %v2268, 4294901760
    %2875 = vmatpush1.msra.mxu0 %v2874
    %2876 = vmatprep.subr.mxu0 0.0
    %v2877 = vand.u32 %v2269, 4294901760
    %2878 = vmatpush1.msra.mxu0 %v2877
    %2879 = vmatprep.subr.mxu0 0.0
    %v2880 = vand.u32 %v2270, 4294901760
    %2881 = vmatpush1.msra.mxu0 %v2880
    %2882 = vmatprep.subr.mxu0 0.0
    %2883 = vmatpush1.msra.mxu0 0.0
    %2884 = vmatprep.subr.mxu0 0.0
    %2885 = vmatpush1.msra.mxu0 0.0
    %2886 = vmatprep.subr.mxu0 0.0
    %2887 = vmatpush1.msra.mxu0 0.0
    %2888 = vmatprep.subr.mxu0 0.0
    %2889 = vmatpush1.msra.mxu0 0.0
    %2890 = vmatprep.subr.mxu0 0.0
    %2891 = vmatpush1.msra.mxu0 0.0
    %2892 = vmatprep.subr.mxu0 0.0
    %2893 = vmatpush1.msra.mxu0 0.0
    %2894 = vmatprep.subr.mxu0 0.0
    %2895 = vmatpush1.msra.mxu0 0.0
    %2896 = vmatprep.subr.mxu0 0.0
    %2897 = vmatpush1.msra.mxu0 0.0
    %2898 = vmatprep.subr.mxu0 0.0
    %2899 = vmatpush1.msra.mxu0 0.0
    %2900 = vmatprep.subr.mxu0 0.0
    %2901 = vmatpush1.msra.mxu0 0.0
    %2902 = vmatprep.subr.mxu0 0.0
    %2903 = vmatpush1.msra.mxu0 0.0
    %2904 = vmatprep.subr.mxu0 0.0
    %2905 = vmatpush1.msra.mxu0 0.0
    %2906 = vmatprep.subr.mxu0 0.0
    %2907 = vmatpush1.msra.mxu0 0.0
    %2908 = vmatprep.subr.mxu0 0.0
    %2909 = vmatpush1.msra.mxu0 0.0
    %2910 = vmatprep.subr.mxu0 0.0
    %2911 = vmatpush1.msra.mxu0 0.0
    %2912 = vmatprep.subr.mxu0 0.0
    %2913 = vmatpush1.msra.mxu0 0.0
    %2914 = vmatprep.mubr.f32.mxu0 0.0
    %v2915 = vand.u32 %v2254, 4294901760
    %2916 = vmatmul.mubr.f32.gmra.mrb[0].mxu0 %v2915
    %v2917 = vpop.f32.mrb[0].mxu0
    %v2918 = vadd.f32 %v2831, %v2917
    %v2919 = vpop.f32.mrb[0].mxu0
    %2920 = vdwg.mxu0
    %v2921 = vsel %vm2216, %v2918, 0.0
    %v2922 = vrot.slane %v2921, 4
    %v2923 = vadd.f32 %v2921, %v2922
    %v2924 = vrot.slane %v2923, 2
    %v2925 = vadd.f32 %v2923, %v2924
    %v2926 = vrot.slane %v2925, 1
    %v2927 = vadd.f32 %v2925, %v2926
    %v2928 = vmul.f32 %v2927, %v1627
    %v2929 = vsub.f32 %v2918, %v2928
    %v2930 = vmul.f32 %v2929, %v2929
    %v2931 = vsel %vm2216, %v2930, 0.0
    %v2932 = vrot.slane %v2931, 4
    %v2933 = vadd.f32 %v2931, %v2932
    %v2934 = vrot.slane %v2933, 2
    %v2935 = vadd.f32 %v2933, %v2934
    %v2936 = vrot.slane %v2935, 1
    %v2937 = vadd.f32 %v2935, %v2936
    %v2938 = vmul.f32 %v2937, %v1627
    %v2939 = vadd.f32 %v2938, 1e-05
    %v2940 = vrsqrt.pop %v2939
    %v2941 = vmul.f32 %v2929, %v2940
    %v2943 = vlaneseq
    %v2944 = vshrl.u32 %v2943, 7
    %v2945 = vsub.s32 0, %v2944
    %v2946 = vrot.slane %v2272, %v2945
    %v2948 = vmul.f32 %v2941, %v2946
    %v2950 = vlaneseq
    %v2951 = vshrl.u32 %v2950, 7
    %v2952 = vsub.s32 0, %v2951
    %v2953 = vrot.slane %v2273, %v2952
    %v2955 = vadd.f32 %v2948, %v2953
    %vm2956 = vcmp.ge.f32.partialorder %v2955, 0.0
    %v2957 = vmul.f32 %v2955, 0.01
    %v2958 = vsel %vm2956, %v2955, %v2957
    %v2959 = vld [vmem:[%s31] sm:$0xff]
    %v2960 = vld [vmem:[%s31 + $0x8] sm:$0xff]
    %v2961 = vld [vmem:[%s31 + $0x10] sm:$0xff]
    %v2962 = vld [vmem:[%s31 + $0x18] sm:$0xff]
    %v2963 = vld [vmem:[%s31 + $0x20] sm:$0xff]
    %v2964 = vld [vmem:[%s31 + $0x28] sm:$0xff]
    %v2965 = vld [vmem:[%s31 + $0x30] sm:$0xff]
    %v2966 = vld [vmem:[%s31 + $0x38] sm:$0xff]
    %v2967 = vld [vmem:[%s31 + $0x40] sm:$0xff]
    %v2968 = vld [vmem:[%s31 + $0x48] sm:$0xff]
    %v2969 = vld [vmem:[%s31 + $0x50] sm:$0xff]
    %v2970 = vld [vmem:[%s31 + $0x58] sm:$0xff]
    %v2971 = vld [vmem:[%s31 + $0x60] sm:$0xff]
    %v2972 = vld [vmem:[%s31 + $0x68] sm:$0xff]
    %v2973 = vld [vmem:[%s31 + $0x70] sm:$0xff]
    %v2974 = vld [vmem:[%s31 + $0x78] sm:$0xff]
    %v2975 = vld [vmem:[#allocation20] sm:$0x1]
    %v2976 = vld [vmem:[#allocation22] sm:$0x1]
    %v2977 = vld [vmem:[#allocation23] sm:$0x1]
    %v2979 = vlaneseq
    %v2980 = vshrl.u32 %v2979, 7
    %v2981 = vsub.s32 0, %v2980
    %v2982 = vrot.slane %v2975, %v2981
    %2984 = vmatprep.subr.mxu0 0.0
    %v2985 = vand.u32 %v2959, 4294901760
    %2986 = vmatpush1.msra.mxu0 %v2985
    %2987 = vmatprep.subr.mxu0 0.0
    %v2988 = vand.u32 %v2960, 4294901760
    %2989 = vmatpush1.msra.mxu0 %v2988
    %2990 = vmatprep.subr.mxu0 0.0
    %v2991 = vand.u32 %v2961, 4294901760
    %2992 = vmatpush1.msra.mxu0 %v2991
    %2993 = vmatprep.subr.mxu0 0.0
    %v2994 = vand.u32 %v2962, 4294901760
    %2995 = vmatpush1.msra.mxu0 %v2994
    %2996 = vmatprep.subr.mxu0 0.0
    %v2997 = vand.u32 %v2963, 4294901760
    %2998 = vmatpush1.msra.mxu0 %v2997
    %2999 = vmatprep.subr.mxu0 0.0
    %v3000 = vand.u32 %v2964, 4294901760
    %3001 = vmatpush1.msra.mxu0 %v3000
    %3002 = vmatprep.subr.mxu0 0.0
    %v3003 = vand.u32 %v2965, 4294901760
    %3004 = vmatpush1.msra.mxu0 %v3003
    %3005 = vmatprep.subr.mxu0 0.0
    %v3006 = vand.u32 %v2966, 4294901760
    %3007 = vmatpush1.msra.mxu0 %v3006
    %3008 = vmatprep.subr.mxu0 0.0
    %v3009 = vand.u32 %v2967, 4294901760
    %3010 = vmatpush1.msra.mxu0 %v3009
    %3011 = vmatprep.subr.mxu0 0.0
    %v3012 = vand.u32 %v2968, 4294901760
    %3013 = vmatpush1.msra.mxu0 %v3012
    %3014 = vmatprep.subr.mxu0 0.0
    %v3015 = vand.u32 %v2969, 4294901760
    %3016 = vmatpush1.msra.mxu0 %v3015
    %3017 = vmatprep.subr.mxu0 0.0
    %v3018 = vand.u32 %v2970, 4294901760
    %3019 = vmatpush1.msra.mxu0 %v3018
    %3020 = vmatprep.subr.mxu0 0.0
    %v3021 = vand.u32 %v2971, 4294901760
    %3022 = vmatpush1.msra.mxu0 %v3021
    %3023 = vmatprep.subr.mxu0 0.0
    %v3024 = vand.u32 %v2972, 4294901760
    %3025 = vmatpush1.msra.mxu0 %v3024
    %3026 = vmatprep.subr.mxu0 0.0
    %v3027 = vand.u32 %v2973, 4294901760
    %3028 = vmatpush1.msra.mxu0 %v3027
    %3029 = vmatprep.subr.mxu0 0.0
    %v3030 = vand.u32 %v2974, 4294901760
    %3031 = vmatpush1.msra.mxu0 %v3030
    %3032 = vmatprep.subr.mxu0 0.0
    %3033 = vmatpush1.msra.mxu0 0.0
    %3034 = vmatprep.subr.mxu0 0.0
    %3035 = vmatpush1.msra.mxu0 0.0
    %3036 = vmatprep.subr.mxu0 0.0
    %3037 = vmatpush1.msra.mxu0 0.0
    %3038 = vmatprep.subr.mxu0 0.0
    %3039 = vmatpush1.msra.mxu0 0.0
    %3040 = vmatprep.subr.mxu0 0.0
    %3041 = vmatpush1.msra.mxu0 0.0
    %3042 = vmatprep.subr.mxu0 0.0
    %3043 = vmatpush1.msra.mxu0 0.0
    %3044 = vmatprep.subr.mxu0 0.0
    %3045 = vmatpush1.msra.mxu0 0.0
    %3046 = vmatprep.subr.mxu0 0.0
    %3047 = vmatpush1.msra.mxu0 0.0
    %3048 = vmatprep.subr.mxu0 0.0
    %3049 = vmatpush1.msra.mxu0 0.0
    %3050 = vmatprep.subr.mxu0 0.0
    %3051 = vmatpush1.msra.mxu0 0.0
    %3052 = vmatprep.subr.mxu0 0.0
    %3053 = vmatpush1.msra.mxu0 0.0
    %3054 = vmatprep.subr.mxu0 0.0
    %3055 = vmatpush1.msra.mxu0 0.0
    %3056 = vmatprep.subr.mxu0 0.0
    %3057 = vmatpush1.msra.mxu0 0.0
    %3058 = vmatprep.subr.mxu0 0.0
    %3059 = vmatpush1.msra.mxu0 0.0
    %3060 = vmatprep.subr.mxu0 0.0
    %3061 = vmatpush1.msra.mxu0 0.0
    %3062 = vmatprep.subr.mxu0 0.0
    %3063 = vmatpush1.msra.mxu0 0.0
    %3064 = vmatprep.mubr.f32.mxu0 0.0
    %v3065 = vand.u32 %v2958, 4294901760
    %v3066 = vsub.f32 %v2958, %v3065
    %v3067 = vand.u32 %v3066, 4294901760
    %v3068 = vsub.f32 %v3066, %v3067
    %v3069 = vand.u32 %v3068, 4294901760
    %3070 = vmatmul.mubr.f32.gmra.mrb[0].mxu0 %v3069
    %v3071 = vpop.f32.mrb[0].mxu0
    %v3072 = vadd.f32 %v2982, %v3071
    %v3073 = vpop.f32.mrb[0].mxu0
    %3074 = vdwg.mxu0
    %3075 = vmatprep.subr.mxu0 0.0
    %v3076 = vand.u32 %v2959, 4294901760
    %v3077 = vsub.f32 %v2959, %v3076
    %v3078 = vand.u32 %v3077, 4294901760
    %v3079 = vsub.f32 %v3077, %v3078
    %v3080 = vand.u32 %v3079, 4294901760
    %3081 = vmatpush1.msra.mxu0 %v3080
    %3082 = vmatprep.subr.mxu0 0.0
    %v3083 = vand.u32 %v2960, 4294901760
    %v3084 = vsub.f32 %v2960, %v3083
    %v3085 = vand.u32 %v3084, 4294901760
    %v3086 = vsub.f32 %v3084, %v3085
    %v3087 = vand.u32 %v3086, 4294901760
    %3088 = vmatpush1.msra.mxu0 %v3087
    %3089 = vmatprep.subr.mxu0 0.0
    %v3090 = vand.u32 %v2961, 4294901760
    %v3091 = vsub.f32 %v2961, %v3090
    %v3092 = vand.u32 %v3091, 4294901760
    %v3093 = vsub.f32 %v3091, %v3092
    %v3094 = vand.u32 %v3093, 4294901760
    %3095 = vmatpush1.msra.mxu0 %v3094
    %3096 = vmatprep.subr.mxu0 0.0
    %v3097 = vand.u32 %v2962, 4294901760
    %v3098 = vsub.f32 %v2962, %v3097
    %v3099 = vand.u32 %v3098, 4294901760
    %v3100 = vsub.f32 %v3098, %v3099
    %v3101 = vand.u32 %v3100, 4294901760
    %3102 = vmatpush1.msra.mxu0 %v3101
    %3103 = vmatprep.subr.mxu0 0.0
    %v3104 = vand.u32 %v2963, 4294901760
    %v3105 = vsub.f32 %v2963, %v3104
    %v3106 = vand.u32 %v3105, 4294901760
    %v3107 = vsub.f32 %v3105, %v3106
    %v3108 = vand.u32 %v3107, 4294901760
    %3109 = vmatpush1.msra.mxu0 %v3108
    %3110 = vmatprep.subr.mxu0 0.0
    %v3111 = vand.u32 %v2964, 4294901760
    %v3112 = vsub.f32 %v2964, %v3111
    %v3113 = vand.u32 %v3112, 4294901760
    %v3114 = vsub.f32 %v3112, %v3113
    %v3115 = vand.u32 %v3114, 4294901760
    %3116 = vmatpush1.msra.mxu0 %v3115
    %3117 = vmatprep.subr.mxu0 0.0
    %v3118 = vand.u32 %v2965, 4294901760
    %v3119 = vsub.f32 %v2965, %v3118
    %v3120 = vand.u32 %v3119, 4294901760
    %v3121 = vsub.f32 %v3119, %v3120
    %v3122 = vand.u32 %v3121, 4294901760
    %3123 = vmatpush1.msra.mxu0 %v3122
    %3124 = vmatprep.subr.mxu0 0.0
    %v3125 = vand.u32 %v2966, 4294901760
    %v3126 = vsub.f32 %v2966, %v3125
    %v3127 = vand.u32 %v3126, 4294901760
    %v3128 = vsub.f32 %v3126, %v3127
    %v3129 = vand.u32 %v3128, 4294901760
    %3130 = vmatpush1.msra.mxu0 %v3129
    %3131 = vmatprep.subr.mxu0 0.0
    %v3132 = vand.u32 %v2967, 4294901760
    %v3133 = vsub.f32 %v2967, %v3132
    %v3134 = vand.u32 %v3133, 4294901760
    %v3135 = vsub.f32 %v3133, %v3134
    %v3136 = vand.u32 %v3135, 4294901760
    %3137 = vmatpush1.msra.mxu0 %v3136
    %3138 = vmatprep.subr.mxu0 0.0
    %v3139 = vand.u32 %v2968, 4294901760
    %v3140 = vsub.f32 %v2968, %v3139
    %v3141 = vand.u32 %v3140, 4294901760
    %v3142 = vsub.f32 %v3140, %v3141
    %v3143 = vand.u32 %v3142, 4294901760
    %3144 = vmatpush1.msra.mxu0 %v3143
    %3145 = vmatprep.subr.mxu0 0.0
    %v3146 = vand.u32 %v2969, 4294901760
    %v3147 = vsub.f32 %v2969, %v3146
    %v3148 = vand.u32 %v3147, 4294901760
    %v3149 = vsub.f32 %v3147, %v3148
    %v3150 = vand.u32 %v3149, 4294901760
    %3151 = vmatpush1.msra.mxu0 %v3150
    %3152 = vmatprep.subr.mxu0 0.0
    %v3153 = vand.u32 %v2970, 4294901760
    %v3154 = vsub.f32 %v2970, %v3153
    %v3155 = vand.u32 %v3154, 4294901760
    %v3156 = vsub.f32 %v3154, %v3155
    %v3157 = vand.u32 %v3156, 4294901760
    %3158 = vmatpush1.msra.mxu0 %v3157
    %3159 = vmatprep.subr.mxu0 0.0
    %v3160 = vand.u32 %v2971, 4294901760
    %v3161 = vsub.f32 %v2971, %v3160
    %v3162 = vand.u32 %v3161, 4294901760
    %v3163 = vsub.f32 %v3161, %v3162
    %v3164 = vand.u32 %v3163, 4294901760
    %3165 = vmatpush1.msra.mxu0 %v3164
    %3166 = vmatprep.subr.mxu0 0.0
    %v3167 = vand.u32 %v2972, 4294901760
    %v3168 = vsub.f32 %v2972, %v3167
    %v3169 = vand.u32 %v3168, 4294901760
    %v3170 = vsub.f32 %v3168, %v3169
    %v3171 = vand.u32 %v3170, 4294901760
    %3172 = vmatpush1.msra.mxu0 %v3171
    %3173 = vmatprep.subr.mxu0 0.0
    %v3174 = vand.u32 %v2973, 4294901760
    %v3175 = vsub.f32 %v2973, %v3174
    %v3176 = vand.u32 %v3175, 4294901760
    %v3177 = vsub.f32 %v3175, %v3176
    %v3178 = vand.u32 %v3177, 4294901760
    %3179 = vmatpush1.msra.mxu0 %v3178
    %3180 = vmatprep.subr.mxu0 0.0
    %v3181 = vand.u32 %v2974, 4294901760
    %v3182 = vsub.f32 %v2974, %v3181
    %v3183 = vand.u32 %v3182, 4294901760
    %v3184 = vsub.f32 %v3182, %v3183
    %v3185 = vand.u32 %v3184, 4294901760
    %3186 = vmatpush1.msra.mxu0 %v3185
    %3187 = vmatprep.subr.mxu0 0.0
    %3188 = vmatpush1.msra.mxu0 0.0
    %3189 = vmatprep.subr.mxu0 0.0
    %3190 = vmatpush1.msra.mxu0 0.0
    %3191 = vmatprep.subr.mxu0 0.0
    %3192 = vmatpush1.msra.mxu0 0.0
    %3193 = vmatprep.subr.mxu0 0.0
    %3194 = vmatpush1.msra.mxu0 0.0
    %3195 = vmatprep.subr.mxu0 0.0
    %3196 = vmatpush1.msra.mxu0 0.0
    %3197 = vmatprep.subr.mxu0 0.0
    %3198 = vmatpush1.msra.mxu0 0.0
    %3199 = vmatprep.subr.mxu0 0.0
    %3200 = vmatpush1.msra.mxu0 0.0
    %3201 = vmatprep.subr.mxu0 0.0
    %3202 = vmatpush1.msra.mxu0 0.0
    %3203 = vmatprep.subr.mxu0 0.0
    %3204 = vmatpush1.msra.mxu0 0.0
    %3205 = vmatprep.subr.mxu0 0.0
    %3206 = vmatpush1.msra.mxu0 0.0
    %3207 = vmatprep.subr.mxu0 0.0
    %3208 = vmatpush1.msra.mxu0 0.0
    %3209 = vmatprep.subr.mxu0 0.0
    %3210 = vmatpush1.msra.mxu0 0.0
    %3211 = vmatprep.subr.mxu0 0.0
    %3212 = vmatpush1.msra.mxu0 0.0
    %3213 = vmatprep.subr.mxu0 0.0
    %3214 = vmatpush1.msra.mxu0 0.0
    %3215 = vmatprep.subr.mxu0 0.0
    %3216 = vmatpush1.msra.mxu0 0.0
    %3217 = vmatprep.subr.mxu0 0.0
    %3218 = vmatpush1.msra.mxu0 0.0
    %3219 = vmatprep.mubr.f32.mxu0 0.0
    %v3220 = vand.u32 %v2958, 4294901760
    %3221 = vmatmul.mubr.f32.gmra.mrb[0].mxu0 %v3220
    %v3222 = vpop.f32.mrb[0].mxu0
    %v3223 = vadd.f32 %v3072, %v3222
    %v3224 = vpop.f32.mrb[0].mxu0
    %3225 = vdwg.mxu0
    %3226 = vmatprep.subr.mxu0 0.0
    %v3227 = vand.u32 %v2959, 4294901760
    %v3228 = vsub.f32 %v2959, %v3227
    %3229 = vmatpush1.msra.mxu0 %v3228
    %3230 = vmatprep.subr.mxu0 0.0
    %v3231 = vand.u32 %v2960, 4294901760
    %v3232 = vsub.f32 %v2960, %v3231
    %3233 = vmatpush1.msra.mxu0 %v3232
    %3234 = vmatprep.subr.mxu0 0.0
    %v3235 = vand.u32 %v2961, 4294901760
    %v3236 = vsub.f32 %v2961, %v3235
    %3237 = vmatpush1.msra.mxu0 %v3236
    %3238 = vmatprep.subr.mxu0 0.0
    %v3239 = vand.u32 %v2962, 4294901760
    %v3240 = vsub.f32 %v2962, %v3239
    %3241 = vmatpush1.msra.mxu0 %v3240
    %3242 = vmatprep.subr.mxu0 0.0
    %v3243 = vand.u32 %v2963, 4294901760
    %v3244 = vsub.f32 %v2963, %v3243
    %3245 = vmatpush1.msra.mxu0 %v3244
    %3246 = vmatprep.subr.mxu0 0.0
    %v3247 = vand.u32 %v2964, 4294901760
    %v3248 = vsub.f32 %v2964, %v3247
    %3249 = vmatpush1.msra.mxu0 %v3248
    %3250 = vmatprep.subr.mxu0 0.0
    %v3251 = vand.u32 %v2965, 4294901760
    %v3252 = vsub.f32 %v2965, %v3251
    %3253 = vmatpush1.msra.mxu0 %v3252
    %3254 = vmatprep.subr.mxu0 0.0
    %v3255 = vand.u32 %v2966, 4294901760
    %v3256 = vsub.f32 %v2966, %v3255
    %3257 = vmatpush1.msra.mxu0 %v3256
    %3258 = vmatprep.subr.mxu0 0.0
    %v3259 = vand.u32 %v2967, 4294901760
    %v3260 = vsub.f32 %v2967, %v3259
    %3261 = vmatpush1.msra.mxu0 %v3260
    %3262 = vmatprep.subr.mxu0 0.0
    %v3263 = vand.u32 %v2968, 4294901760
    %v3264 = vsub.f32 %v2968, %v3263
    %3265 = vmatpush1.msra.mxu0 %v3264
    %3266 = vmatprep.subr.mxu0 0.0
    %v3267 = vand.u32 %v2969, 4294901760
    %v3268 = vsub.f32 %v2969, %v3267
    %3269 = vmatpush1.msra.mxu0 %v3268
    %3270 = vmatprep.subr.mxu0 0.0
    %v3271 = vand.u32 %v2970, 4294901760
    %v3272 = vsub.f32 %v2970, %v3271
    %3273 = vmatpush1.msra.mxu0 %v3272
    %3274 = vmatprep.subr.mxu0 0.0
    %v3275 = vand.u32 %v2971, 4294901760
    %v3276 = vsub.f32 %v2971, %v3275
    %3277 = vmatpush1.msra.mxu0 %v3276
    %3278 = vmatprep.subr.mxu0 0.0
    %v3279 = vand.u32 %v2972, 4294901760
    %v3280 = vsub.f32 %v2972, %v3279
    %3281 = vmatpush1.msra.mxu0 %v3280
    %3282 = vmatprep.subr.mxu0 0.0
    %v3283 = vand.u32 %v2973, 4294901760
    %v3284 = vsub.f32 %v2973, %v3283
    %3285 = vmatpush1.msra.mxu0 %v3284
    %3286 = vmatprep.subr.mxu0 0.0
    %v3287 = vand.u32 %v2974, 4294901760
    %v3288 = vsub.f32 %v2974, %v3287
    %3289 = vmatpush1.msra.mxu0 %v3288
    %3290 = vmatprep.subr.mxu0 0.0
    %3291 = vmatpush1.msra.mxu0 0.0
    %3292 = vmatprep.subr.mxu0 0.0
    %3293 = vmatpush1.msra.mxu0 0.0
    %3294 = vmatprep.subr.mxu0 0.0
    %3295 = vmatpush1.msra.mxu0 0.0
    %3296 = vmatprep.subr.mxu0 0.0
    %3297 = vmatpush1.msra.mxu0 0.0
    %3298 = vmatprep.subr.mxu0 0.0
    %3299 = vmatpush1.msra.mxu0 0.0
    %3300 = vmatprep.subr.mxu0 0.0
    %3301 = vmatpush1.msra.mxu0 0.0
    %3302 = vmatprep.subr.mxu0 0.0
    %3303 = vmatpush1.msra.mxu0 0.0
    %3304 = vmatprep.subr.mxu0 0.0
    %3305 = vmatpush1.msra.mxu0 0.0
    %3306 = vmatprep.subr.mxu0 0.0
    %3307 = vmatpush1.msra.mxu0 0.0
    %3308 = vmatprep.subr.mxu0 0.0
    %3309 = vmatpush1.msra.mxu0 0.0
    %3310 = vmatprep.subr.mxu0 0.0
    %3311 = vmatpush1.msra.mxu0 0.0
    %3312 = vmatprep.subr.mxu0 0.0
    %3313 = vmatpush1.msra.mxu0 0.0
    %3314 = vmatprep.subr.mxu0 0.0
    %3315 = vmatpush1.msra.mxu0 0.0
    %3316 = vmatprep.subr.mxu0 0.0
    %3317 = vmatpush1.msra.mxu0 0.0
    %3318 = vmatprep.subr.mxu0 0.0
    %3319 = vmatpush1.msra.mxu0 0.0
    %3320 = vmatprep.subr.mxu0 0.0
    %3321 = vmatpush1.msra.mxu0 0.0
    %3322 = vmatprep.mubr.f32.mxu0 0.0
    %v3323 = vand.u32 %v2958, 4294901760
    %v3324 = vsub.f32 %v2958, %v3323
    %3325 = vmatmul.mubr.f32.gmra.mrb[0].mxu0 %v3324
    %v3326 = vpop.f32.mrb[0].mxu0
    %v3327 = vadd.f32 %v3223, %v3326
    %v3328 = vpop.f32.mrb[0].mxu0
    %3329 = vdwg.mxu0
    %3330 = vmatprep.subr.mxu0 0.0
    %v3331 = vand.u32 %v2959, 4294901760
    %3332 = vmatpush1.msra.mxu0 %v3331
    %3333 = vmatprep.subr.mxu0 0.0
    %v3334 = vand.u32 %v2960, 4294901760
    %3335 = vmatpush1.msra.mxu0 %v3334
    %3336 = vmatprep.subr.mxu0 0.0
    %v3337 = vand.u32 %v2961, 4294901760
    %3338 = vmatpush1.msra.mxu0 %v3337
    %3339 = vmatprep.subr.mxu0 0.0
    %v3340 = vand.u32 %v2962, 4294901760
    %3341 = vmatpush1.msra.mxu0 %v3340
    %3342 = vmatprep.subr.mxu0 0.0
    %v3343 = vand.u32 %v2963, 4294901760
    %3344 = vmatpush1.msra.mxu0 %v3343
    %3345 = vmatprep.subr.mxu0 0.0
    %v3346 = vand.u32 %v2964, 4294901760
    %3347 = vmatpush1.msra.mxu0 %v3346
    %3348 = vmatprep.subr.mxu0 0.0
    %v3349 = vand.u32 %v2965, 4294901760
    %3350 = vmatpush1.msra.mxu0 %v3349
    %3351 = vmatprep.subr.mxu0 0.0
    %v3352 = vand.u32 %v2966, 4294901760
    %3353 = vmatpush1.msra.mxu0 %v3352
    %3354 = vmatprep.subr.mxu0 0.0
    %v3355 = vand.u32 %v2967, 4294901760
    %3356 = vmatpush1.msra.mxu0 %v3355
    %3357 = vmatprep.subr.mxu0 0.0
    %v3358 = vand.u32 %v2968, 4294901760
    %3359 = vmatpush1.msra.mxu0 %v3358
    %3360 = vmatprep.subr.mxu0 0.0
    %v3361 = vand.u32 %v2969, 4294901760
    %3362 = vmatpush1.msra.mxu0 %v3361
    %3363 = vmatprep.subr.mxu0 0.0
    %v3364 = vand.u32 %v2970, 4294901760
    %3365 = vmatpush1.msra.mxu0 %v3364
    %3366 = vmatprep.subr.mxu0 0.0
    %v3367 = vand.u32 %v2971, 4294901760
    %3368 = vmatpush1.msra.mxu0 %v3367
    %3369 = vmatprep.subr.mxu0 0.0
    %v3370 = vand.u32 %v2972, 4294901760
    %3371 = vmatpush1.msra.mxu0 %v3370
    %3372 = vmatprep.subr.mxu0 0.0
    %v3373 = vand.u32 %v2973, 4294901760
    %3374 = vmatpush1.msra.mxu0 %v3373
    %3375 = vmatprep.subr.mxu0 0.0
    %v3376 = vand.u32 %v2974, 4294901760
    %3377 = vmatpush1.msra.mxu0 %v3376
    %3378 = vmatprep.subr.mxu0 0.0
    %3379 = vmatpush1.msra.mxu0 0.0
    %3380 = vmatprep.subr.mxu0 0.0
    %3381 = vmatpush1.msra.mxu0 0.0
    %3382 = vmatprep.subr.mxu0 0.0
    %3383 = vmatpush1.msra.mxu0 0.0
    %3384 = vmatprep.subr.mxu0 0.0
    %3385 = vmatpush1.msra.mxu0 0.0
    %3386 = vmatprep.subr.mxu0 0.0
    %3387 = vmatpush1.msra.mxu0 0.0
    %3388 = vmatprep.subr.mxu0 0.0
    %3389 = vmatpush1.msra.mxu0 0.0
    %3390 = vmatprep.subr.mxu0 0.0
    %3391 = vmatpush1.msra.mxu0 0.0
    %3392 = vmatprep.subr.mxu0 0.0
    %3393 = vmatpush1.msra.mxu0 0.0
    %3394 = vmatprep.subr.mxu0 0.0
    %3395 = vmatpush1.msra.mxu0 0.0
    %3396 = vmatprep.subr.mxu0 0.0
    %3397 = vmatpush1.msra.mxu0 0.0
    %3398 = vmatprep.subr.mxu0 0.0
    %3399 = vmatpush1.msra.mxu0 0.0
    %3400 = vmatprep.subr.mxu0 0.0
    %3401 = vmatpush1.msra.mxu0 0.0
    %3402 = vmatprep.subr.mxu0 0.0
    %3403 = vmatpush1.msra.mxu0 0.0
    %3404 = vmatprep.subr.mxu0 0.0
    %3405 = vmatpush1.msra.mxu0 0.0
    %3406 = vmatprep.subr.mxu0 0.0
    %3407 = vmatpush1.msra.mxu0 0.0
    %3408 = vmatprep.subr.mxu0 0.0
    %3409 = vmatpush1.msra.mxu0 0.0
    %3410 = vmatprep.mubr.f32.mxu0 0.0
    %v3411 = vand.u32 %v2958, 4294901760
    %v3412 = vsub.f32 %v2958, %v3411
    %v3413 = vand.u32 %v3412, 4294901760
    %3414 = vmatmul.mubr.f32.gmra.mrb[0].mxu0 %v3413
    %v3415 = vpop.f32.mrb[0].mxu0
    %v3416 = vadd.f32 %v3327, %v3415
    %v3417 = vpop.f32.mrb[0].mxu0
    %3418 = vdwg.mxu0
    %3419 = vmatprep.subr.mxu0 0.0
    %v3420 = vand.u32 %v2959, 4294901760
    %v3421 = vsub.f32 %v2959, %v3420
    %v3422 = vand.u32 %v3421, 4294901760
    %3423 = vmatpush1.msra.mxu0 %v3422
    %3424 = vmatprep.subr.mxu0 0.0
    %v3425 = vand.u32 %v2960, 4294901760
    %v3426 = vsub.f32 %v2960, %v3425
    %v3427 = vand.u32 %v3426, 4294901760
    %3428 = vmatpush1.msra.mxu0 %v3427
    %3429 = vmatprep.subr.mxu0 0.0
    %v3430 = vand.u32 %v2961, 4294901760
    %v3431 = vsub.f32 %v2961, %v3430
    %v3432 = vand.u32 %v3431, 4294901760
    %3433 = vmatpush1.msra.mxu0 %v3432
    %3434 = vmatprep.subr.mxu0 0.0
    %v3435 = vand.u32 %v2962, 4294901760
    %v3436 = vsub.f32 %v2962, %v3435
    %v3437 = vand.u32 %v3436, 4294901760
    %3438 = vmatpush1.msra.mxu0 %v3437
    %3439 = vmatprep.subr.mxu0 0.0
    %v3440 = vand.u32 %v2963, 4294901760
    %v3441 = vsub.f32 %v2963, %v3440
    %v3442 = vand.u32 %v3441, 4294901760
    %3443 = vmatpush1.msra.mxu0 %v3442
    %3444 = vmatprep.subr.mxu0 0.0
    %v3445 = vand.u32 %v2964, 4294901760
    %v3446 = vsub.f32 %v2964, %v3445
    %v3447 = vand.u32 %v3446, 4294901760
    %3448 = vmatpush1.msra.mxu0 %v3447
    %3449 = vmatprep.subr.mxu0 0.0
    %v3450 = vand.u32 %v2965, 4294901760
    %v3451 = vsub.f32 %v2965, %v3450
    %v3452 = vand.u32 %v3451, 4294901760
    %3453 = vmatpush1.msra.mxu0 %v3452
    %3454 = vmatprep.subr.mxu0 0.0
    %v3455 = vand.u32 %v2966, 4294901760
    %v3456 = vsub.f32 %v2966, %v3455
    %v3457 = vand.u32 %v3456, 4294901760
    %3458 = vmatpush1.msra.mxu0 %v3457
    %3459 = vmatprep.subr.mxu0 0.0
    %v3460 = vand.u32 %v2967, 4294901760
    %v3461 = vsub.f32 %v2967, %v3460
    %v3462 = vand.u32 %v3461, 4294901760
    %3463 = vmatpush1.msra.mxu0 %v3462
    %3464 = vmatprep.subr.mxu0 0.0
    %v3465 = vand.u32 %v2968, 4294901760
    %v3466 = vsub.f32 %v2968, %v3465
    %v3467 = vand.u32 %v3466, 4294901760
    %3468 = vmatpush1.msra.mxu0 %v3467
    %3469 = vmatprep.subr.mxu0 0.0
    %v3470 = vand.u32 %v2969, 4294901760
    %v3471 = vsub.f32 %v2969, %v3470
    %v3472 = vand.u32 %v3471, 4294901760
    %3473 = vmatpush1.msra.mxu0 %v3472
    %3474 = vmatprep.subr.mxu0 0.0
    %v3475 = vand.u32 %v2970, 4294901760
    %v3476 = vsub.f32 %v2970, %v3475
    %v3477 = vand.u32 %v3476, 4294901760
    %3478 = vmatpush1.msra.mxu0 %v3477
    %3479 = vmatprep.subr.mxu0 0.0
    %v3480 = vand.u32 %v2971, 4294901760
    %v3481 = vsub.f32 %v2971, %v3480
    %v3482 = vand.u32 %v3481, 4294901760
    %3483 = vmatpush1.msra.mxu0 %v3482
    %3484 = vmatprep.subr.mxu0 0.0
    %v3485 = vand.u32 %v2972, 4294901760
    %v3486 = vsub.f32 %v2972, %v3485
    %v3487 = vand.u32 %v3486, 4294901760
    %3488 = vmatpush1.msra.mxu0 %v3487
    %3489 = vmatprep.subr.mxu0 0.0
    %v3490 = vand.u32 %v2973, 4294901760
    %v3491 = vsub.f32 %v2973, %v3490
    %v3492 = vand.u32 %v3491, 4294901760
    %3493 = vmatpush1.msra.mxu0 %v3492
    %3494 = vmatprep.subr.mxu0 0.0
    %v3495 = vand.u32 %v2974, 4294901760
    %v3496 = vsub.f32 %v2974, %v3495
    %v3497 = vand.u32 %v3496, 4294901760
    %3498 = vmatpush1.msra.mxu0 %v3497
    %3499 = vmatprep.subr.mxu0 0.0
    %3500 = vmatpush1.msra.mxu0 0.0
    %3501 = vmatprep.subr.mxu0 0.0
    %3502 = vmatpush1.msra.mxu0 0.0
    %3503 = vmatprep.subr.mxu0 0.0
    %3504 = vmatpush1.msra.mxu0 0.0
    %3505 = vmatprep.subr.mxu0 0.0
    %3506 = vmatpush1.msra.mxu0 0.0
    %3507 = vmatprep.subr.mxu0 0.0
    %3508 = vmatpush1.msra.mxu0 0.0
    %3509 = vmatprep.subr.mxu0 0.0
    %3510 = vmatpush1.msra.mxu0 0.0
    %3511 = vmatprep.subr.mxu0 0.0
    %3512 = vmatpush1.msra.mxu0 0.0
    %3513 = vmatprep.subr.mxu0 0.0
    %3514 = vmatpush1.msra.mxu0 0.0
    %3515 = vmatprep.subr.mxu0 0.0
    %3516 = vmatpush1.msra.mxu0 0.0
    %3517 = vmatprep.subr.mxu0 0.0
    %3518 = vmatpush1.msra.mxu0 0.0
    %3519 = vmatprep.subr.mxu0 0.0
    %3520 = vmatpush1.msra.mxu0 0.0
    %3521 = vmatprep.subr.mxu0 0.0
    %3522 = vmatpush1.msra.mxu0 0.0
    %3523 = vmatprep.subr.mxu0 0.0
    %3524 = vmatpush1.msra.mxu0 0.0
    %3525 = vmatprep.subr.mxu0 0.0
    %3526 = vmatpush1.msra.mxu0 0.0
    %3527 = vmatprep.subr.mxu0 0.0
    %3528 = vmatpush1.msra.mxu0 0.0
    %3529 = vmatprep.subr.mxu0 0.0
    %3530 = vmatpush1.msra.mxu0 0.0
    %3531 = vmatprep.mubr.f32.mxu0 0.0
    %v3532 = vand.u32 %v2958, 4294901760
    %3533 = vmatmul.mubr.f32.gmra.mrb[0].mxu0 %v3532
    %v3534 = vpop.f32.mrb[0].mxu0
    %v3535 = vadd.f32 %v3416, %v3534
    %v3536 = vpop.f32.mrb[0].mxu0
    %3537 = vdwg.mxu0
    %3538 = vmatprep.subr.mxu0 0.0
    %v3539 = vand.u32 %v2959, 4294901760
    %3540 = vmatpush1.msra.mxu0 %v3539
    %3541 = vmatprep.subr.mxu0 0.0
    %v3542 = vand.u32 %v2960, 4294901760
    %3543 = vmatpush1.msra.mxu0 %v3542
    %3544 = vmatprep.subr.mxu0 0.0
    %v3545 = vand.u32 %v2961, 4294901760
    %3546 = vmatpush1.msra.mxu0 %v3545
    %3547 = vmatprep.subr.mxu0 0.0
    %v3548 = vand.u32 %v2962, 4294901760
    %3549 = vmatpush1.msra.mxu0 %v3548
    %3550 = vmatprep.subr.mxu0 0.0
    %v3551 = vand.u32 %v2963, 4294901760
    %3552 = vmatpush1.msra.mxu0 %v3551
    %3553 = vmatprep.subr.mxu0 0.0
    %v3554 = vand.u32 %v2964, 4294901760
    %3555 = vmatpush1.msra.mxu0 %v3554
    %3556 = vmatprep.subr.mxu0 0.0
    %v3557 = vand.u32 %v2965, 4294901760
    %3558 = vmatpush1.msra.mxu0 %v3557
    %3559 = vmatprep.subr.mxu0 0.0
    %v3560 = vand.u32 %v2966, 4294901760
    %3561 = vmatpush1.msra.mxu0 %v3560
    %3562 = vmatprep.subr.mxu0 0.0
    %v3563 = vand.u32 %v2967, 4294901760
    %3564 = vmatpush1.msra.mxu0 %v3563
    %3565 = vmatprep.subr.mxu0 0.0
    %v3566 = vand.u32 %v2968, 4294901760
    %3567 = vmatpush1.msra.mxu0 %v3566
    %3568 = vmatprep.subr.mxu0 0.0
    %v3569 = vand.u32 %v2969, 4294901760
    %3570 = vmatpush1.msra.mxu0 %v3569
    %3571 = vmatprep.subr.mxu0 0.0
    %v3572 = vand.u32 %v2970, 4294901760
    %3573 = vmatpush1.msra.mxu0 %v3572
    %3574 = vmatprep.subr.mxu0 0.0
    %v3575 = vand.u32 %v2971, 4294901760
    %3576 = vmatpush1.msra.mxu0 %v3575
    %3577 = vmatprep.subr.mxu0 0.0
    %v3578 = vand.u32 %v2972, 4294901760
    %3579 = vmatpush1.msra.mxu0 %v3578
    %3580 = vmatprep.subr.mxu0 0.0
    %v3581 = vand.u32 %v2973, 4294901760
    %3582 = vmatpush1.msra.mxu0 %v3581
    %3583 = vmatprep.subr.mxu0 0.0
    %v3584 = vand.u32 %v2974, 4294901760
    %3585 = vmatpush1.msra.mxu0 %v3584
    %3586 = vmatprep.subr.mxu0 0.0
    %3587 = vmatpush1.msra.mxu0 0.0
    %3588 = vmatprep.subr.mxu0 0.0
    %3589 = vmatpush1.msra.mxu0 0.0
    %3590 = vmatprep.subr.mxu0 0.0
    %3591 = vmatpush1.msra.mxu0 0.0
    %3592 = vmatprep.subr.mxu0 0.0
    %3593 = vmatpush1.msra.mxu0 0.0
    %3594 = vmatprep.subr.mxu0 0.0
    %3595 = vmatpush1.msra.mxu0 0.0
    %3596 = vmatprep.subr.mxu0 0.0
    %3597 = vmatpush1.msra.mxu0 0.0
    %3598 = vmatprep.subr.mxu0 0.0
    %3599 = vmatpush1.msra.mxu0 0.0
    %3600 = vmatprep.subr.mxu0 0.0
    %3601 = vmatpush1.msra.mxu0 0.0
    %3602 = vmatprep.subr.mxu0 0.0
    %3603 = vmatpush1.msra.mxu0 0.0
    %3604 = vmatprep.subr.mxu0 0.0
    %3605 = vmatpush1.msra.mxu0 0.0
    %3606 = vmatprep.subr.mxu0 0.0
    %3607 = vmatpush1.msra.mxu0 0.0
    %3608 = vmatprep.subr.mxu0 0.0
    %3609 = vmatpush1.msra.mxu0 0.0
    %3610 = vmatprep.subr.mxu0 0.0
    %3611 = vmatpush1.msra.mxu0 0.0
    %3612 = vmatprep.subr.mxu0 0.0
    %3613 = vmatpush1.msra.mxu0 0.0
    %3614 = vmatprep.subr.mxu0 0.0
    %3615 = vmatpush1.msra.mxu0 0.0
    %3616 = vmatprep.subr.mxu0 0.0
    %3617 = vmatpush1.msra.mxu0 0.0
    %3618 = vmatprep.mubr.f32.mxu0 0.0
    %v3619 = vand.u32 %v2958, 4294901760
    %3620 = vmatmul.mubr.f32.gmra.mrb[0].mxu0 %v3619
    %v3621 = vpop.f32.mrb[0].mxu0
    %v3622 = vadd.f32 %v3535, %v3621
    %v3623 = vpop.f32.mrb[0].mxu0
    %3624 = vdwg.mxu0
    %v3625 = vsel %vm2216, %v3622, 0.0
    %v3626 = vrot.slane %v3625, 4
    %v3627 = vadd.f32 %v3625, %v3626
    %v3628 = vrot.slane %v3627, 2
    %v3629 = vadd.f32 %v3627, %v3628
    %v3630 = vrot.slane %v3629, 1
    %v3631 = vadd.f32 %v3629, %v3630
    %v3632 = vmul.f32 %v3631, %v1627
    %v3633 = vsub.f32 %v3622, %v3632
    %v3634 = vmul.f32 %v3633, %v3633
    %v3635 = vsel %vm2216, %v3634, 0.0
    %v3636 = vrot.slane %v3635, 4
    %v3637 = vadd.f32 %v3635, %v3636
    %v3638 = vrot.slane %v3637, 2
    %v3639 = vadd.f32 %v3637, %v3638
    %v3640 = vrot.slane %v3639, 1
    %v3641 = vadd.f32 %v3639, %v3640
    %v3642 = vmul.f32 %v3641, %v1627
    %v3643 = vadd.f32 %v3642, 1e-05
    %v3644 = vrsqrt.pop %v3643
    %v3645 = vmul.f32 %v3633, %v3644
    %v3647 = vlaneseq
    %v3648 = vshrl.u32 %v3647, 7
    %v3649 = vsub.s32 0, %v3648
    %v3650 = vrot.slane %v2976, %v3649
    %v3652 = vmul.f32 %v3645, %v3650
    %v3654 = vlaneseq
    %v3655 = vshrl.u32 %v3654, 7
    %v3656 = vsub.s32 0, %v3655
    %v3657 = vrot.slane %v2977, %v3656
    %v3659 = vadd.f32 %v3652, %v3657
    %v3660 = vtanh.pop %v3659
    %3661 = vst [vmem:[%s105] sm:$0x3] %v3660
    %v3663 = vrot.slane %v3660, 7
    %3664 = vrot.lane.b32.xlu0 %v3663, 96
    %v3665 = vpop.permute.xlu0 %3664
    %v3667 = vrot.slane %v3660, 6
    %3668 = vrot.lane.b32.xlu0 %v3667, 64
    %v3669 = vpop.permute.xlu0 %3668
    %v3671 = vrot.slane %v3660, 5
    %3672 = vrot.lane.b32.xlu0 %v3671, 32
    %v3673 = vpop.permute.xlu0 %3672
    %v3676 = vrot.slane %v3660, 4
    %3677 = vrot.lane.b32.xlu0 %v3676, 96
    %v3678 = vpop.permute.xlu0 %3677
    %v3680 = vrot.slane %v3660, 3
    %3681 = vrot.lane.b32.xlu0 %v3680, 64
    %v3682 = vpop.permute.xlu0 %3681
    %v3684 = vrot.slane %v3660, 2
    %3685 = vrot.lane.b32.xlu0 %v3684, 32
    %v3686 = vpop.permute.xlu0 %3685
    %vm3688 = vcmask 1040384
    %v3689 = vsel %vm3688, %v3660, %v3665
    %v3690 = vsel %vm2216, %v3689, %v3669
    %vm3691 = vcmask 1042432
    %v3692 = vsel %vm3691, %v3690, %v3673
    %vm3693 = vcmask 1043456
    %v3694 = vsel %vm3693, %v3692, %v3671
    %vm3695 = vcmask 1044480
    %v3696 = vsel %vm3695, %v3694, %v3678
    %vm3697 = vcmask 1045504
    %v3698 = vsel %vm3697, %v3696, %v3682
    %vm3699 = vcmask 1046528
    %v3700 = vsel %vm3699, %v3698, %v3686
    %v3701 = vld [vmem:[#allocation25] sm:$0xff]
    %v3702 = vld [vmem:[#allocation25 + $0x8] sm:$0xff]
    %v3703 = vld [vmem:[#allocation25 + $0x10] sm:$0xff]
    %v3704 = vld [vmem:[#allocation25 + $0x18] sm:$0xff]
    %v3705 = vld [vmem:[#allocation26] sm:$0x1]
    %v3706 = vld [vmem:[#allocation28] sm:$0x1]
    %v3707 = vld [vmem:[#allocation29] sm:$0x1]
    %v3709 = vlaneseq
    %v3710 = vshrl.u32 %v3709, 7
    %v3711 = vsub.s32 0, %v3710
    %v3712 = vrot.slane %v3705, %v3711
    %v3715 = vsel %vm570, %v3700, 0
    %3717 = vmatprep.subr.mxu0 0.0
    %v3718 = vand.u32 %v3701, 4294901760
    %3719 = vmatpush1.msra.mxu0 %v3718
    %3720 = vmatprep.subr.mxu0 0.0
    %v3721 = vand.u32 %v3702, 4294901760
    %3722 = vmatpush1.msra.mxu0 %v3721
    %3723 = vmatprep.subr.mxu0 0.0
    %v3724 = vand.u32 %v3703, 4294901760
    %3725 = vmatpush1.msra.mxu0 %v3724
    %3726 = vmatprep.subr.mxu0 0.0
    %v3727 = vand.u32 %v3704, 4294901760
    %3728 = vmatpush1.msra.mxu0 %v3727
    %3729 = vmatprep.subr.mxu0 0.0
    %3730 = vmatpush1.msra.mxu0 0.0
    %3731 = vmatprep.subr.mxu0 0.0
    %3732 = vmatpush1.msra.mxu0 0.0
    %3733 = vmatprep.subr.mxu0 0.0
    %3734 = vmatpush1.msra.mxu0 0.0
    %3735 = vmatprep.subr.mxu0 0.0
    %3736 = vmatpush1.msra.mxu0 0.0
    %3737 = vmatprep.subr.mxu0 0.0
    %3738 = vmatpush1.msra.mxu0 0.0
    %3739 = vmatprep.subr.mxu0 0.0
    %3740 = vmatpush1.msra.mxu0 0.0
    %3741 = vmatprep.subr.mxu0 0.0
    %3742 = vmatpush1.msra.mxu0 0.0
    %3743 = vmatprep.subr.mxu0 0.0
    %3744 = vmatpush1.msra.mxu0 0.0
    %3745 = vmatprep.subr.mxu0 0.0
    %3746 = vmatpush1.msra.mxu0 0.0
    %3747 = vmatprep.subr.mxu0 0.0
    %3748 = vmatpush1.msra.mxu0 0.0
    %3749 = vmatprep.subr.mxu0 0.0
    %3750 = vmatpush1.msra.mxu0 0.0
    %3751 = vmatprep.subr.mxu0 0.0
    %3752 = vmatpush1.msra.mxu0 0.0
    %3753 = vmatprep.subr.mxu0 0.0
    %3754 = vmatpush1.msra.mxu0 0.0
    %3755 = vmatprep.subr.mxu0 0.0
    %3756 = vmatpush1.msra.mxu0 0.0
    %3757 = vmatprep.subr.mxu0 0.0
    %3758 = vmatpush1.msra.mxu0 0.0
    %3759 = vmatprep.subr.mxu0 0.0
    %3760 = vmatpush1.msra.mxu0 0.0
    %3761 = vmatprep.subr.mxu0 0.0
    %3762 = vmatpush1.msra.mxu0 0.0
    %3763 = vmatprep.subr.mxu0 0.0
    %3764 = vmatpush1.msra.mxu0 0.0
    %3765 = vmatprep.subr.mxu0 0.0
    %3766 = vmatpush1.msra.mxu0 0.0
    %3767 = vmatprep.subr.mxu0 0.0
    %3768 = vmatpush1.msra.mxu0 0.0
    %3769 = vmatprep.subr.mxu0 0.0
    %3770 = vmatpush1.msra.mxu0 0.0
    %3771 = vmatprep.subr.mxu0 0.0
    %3772 = vmatpush1.msra.mxu0 0.0
    %3773 = vmatprep.subr.mxu0 0.0
    %3774 = vmatpush1.msra.mxu0 0.0
    %3775 = vmatprep.subr.mxu0 0.0
    %3776 = vmatpush1.msra.mxu0 0.0
    %3777 = vmatprep.subr.mxu0 0.0
    %3778 = vmatpush1.msra.mxu0 0.0
    %3779 = vmatprep.subr.mxu0 0.0
    %3780 = vmatpush1.msra.mxu0 0.0
    %3781 = vmatprep.subr.mxu0 0.0
    %3782 = vmatpush1.msra.mxu0 0.0
    %3783 = vmatprep.subr.mxu0 0.0
    %3784 = vmatpush1.msra.mxu0 0.0
    %3785 = vmatprep.mubr.f32.mxu0 0.0
    %v3786 = vand.u32 %v3715, 4294901760
    %v3787 = vsub.f32 %v3715, %v3786
    %v3788 = vand.u32 %v3787, 4294901760
    %v3789 = vsub.f32 %v3787, %v3788
    %v3790 = vand.u32 %v3789, 4294901760
    %3791 = vmatmul.mubr.f32.gmra.mrb[0].mxu0 %v3790
    %v3792 = vpop.f32.mrb[0].mxu0
    %v3793 = vadd.f32 %v3712, %v3792
    %v3794 = vpop.f32.mrb[0].mxu0
    %3795 = vdwg.mxu0
    %3796 = vmatprep.subr.mxu0 0.0
    %v3797 = vand.u32 %v3701, 4294901760
    %v3798 = vsub.f32 %v3701, %v3797
    %v3799 = vand.u32 %v3798, 4294901760
    %v3800 = vsub.f32 %v3798, %v3799
    %v3801 = vand.u32 %v3800, 4294901760
    %3802 = vmatpush1.msra.mxu0 %v3801
    %3803 = vmatprep.subr.mxu0 0.0
    %v3804 = vand.u32 %v3702, 4294901760
    %v3805 = vsub.f32 %v3702, %v3804
    %v3806 = vand.u32 %v3805, 4294901760
    %v3807 = vsub.f32 %v3805, %v3806
    %v3808 = vand.u32 %v3807, 4294901760
    %3809 = vmatpush1.msra.mxu0 %v3808
    %3810 = vmatprep.subr.mxu0 0.0
    %v3811 = vand.u32 %v3703, 4294901760
    %v3812 = vsub.f32 %v3703, %v3811
    %v3813 = vand.u32 %v3812, 4294901760
    %v3814 = vsub.f32 %v3812, %v3813
    %v3815 = vand.u32 %v3814, 4294901760
    %3816 = vmatpush1.msra.mxu0 %v3815
    %3817 = vmatprep.subr.mxu0 0.0
    %v3818 = vand.u32 %v3704, 4294901760
    %v3819 = vsub.f32 %v3704, %v3818
    %v3820 = vand.u32 %v3819, 4294901760
    %v3821 = vsub.f32 %v3819, %v3820
    %v3822 = vand.u32 %v3821, 4294901760
    %3823 = vmatpush1.msra.mxu0 %v3822
    %3824 = vmatprep.subr.mxu0 0.0
    %3825 = vmatpush1.msra.mxu0 0.0
    %3826 = vmatprep.subr.mxu0 0.0
    %3827 = vmatpush1.msra.mxu0 0.0
    %3828 = vmatprep.subr.mxu0 0.0
    %3829 = vmatpush1.msra.mxu0 0.0
    %3830 = vmatprep.subr.mxu0 0.0
    %3831 = vmatpush1.msra.mxu0 0.0
    %3832 = vmatprep.subr.mxu0 0.0
    %3833 = vmatpush1.msra.mxu0 0.0
    %3834 = vmatprep.subr.mxu0 0.0
    %3835 = vmatpush1.msra.mxu0 0.0
    %3836 = vmatprep.subr.mxu0 0.0
    %3837 = vmatpush1.msra.mxu0 0.0
    %3838 = vmatprep.subr.mxu0 0.0
    %3839 = vmatpush1.msra.mxu0 0.0
    %3840 = vmatprep.subr.mxu0 0.0
    %3841 = vmatpush1.msra.mxu0 0.0
    %3842 = vmatprep.subr.mxu0 0.0
    %3843 = vmatpush1.msra.mxu0 0.0
    %3844 = vmatprep.subr.mxu0 0.0
    %3845 = vmatpush1.msra.mxu0 0.0
    %3846 = vmatprep.subr.mxu0 0.0
    %3847 = vmatpush1.msra.mxu0 0.0
    %3848 = vmatprep.subr.mxu0 0.0
    %3849 = vmatpush1.msra.mxu0 0.0
    %3850 = vmatprep.subr.mxu0 0.0
    %3851 = vmatpush1.msra.mxu0 0.0
    %3852 = vmatprep.subr.mxu0 0.0
    %3853 = vmatpush1.msra.mxu0 0.0
    %3854 = vmatprep.subr.mxu0 0.0
    %3855 = vmatpush1.msra.mxu0 0.0
    %3856 = vmatprep.subr.mxu0 0.0
    %3857 = vmatpush1.msra.mxu0 0.0
    %3858 = vmatprep.subr.mxu0 0.0
    %3859 = vmatpush1.msra.mxu0 0.0
    %3860 = vmatprep.subr.mxu0 0.0
    %3861 = vmatpush1.msra.mxu0 0.0
    %3862 = vmatprep.subr.mxu0 0.0
    %3863 = vmatpush1.msra.mxu0 0.0
    %3864 = vmatprep.subr.mxu0 0.0
    %3865 = vmatpush1.msra.mxu0 0.0
    %3866 = vmatprep.subr.mxu0 0.0
    %3867 = vmatpush1.msra.mxu0 0.0
    %3868 = vmatprep.subr.mxu0 0.0
    %3869 = vmatpush1.msra.mxu0 0.0
    %3870 = vmatprep.subr.mxu0 0.0
    %3871 = vmatpush1.msra.mxu0 0.0
    %3872 = vmatprep.subr.mxu0 0.0
    %3873 = vmatpush1.msra.mxu0 0.0
    %3874 = vmatprep.subr.mxu0 0.0
    %3875 = vmatpush1.msra.mxu0 0.0
    %3876 = vmatprep.subr.mxu0 0.0
    %3877 = vmatpush1.msra.mxu0 0.0
    %3878 = vmatprep.subr.mxu0 0.0
    %3879 = vmatpush1.msra.mxu0 0.0
    %3880 = vmatprep.mubr.f32.mxu0 0.0
    %v3881 = vand.u32 %v3715, 4294901760
    %3882 = vmatmul.mubr.f32.gmra.mrb[0].mxu0 %v3881
    %v3883 = vpop.f32.mrb[0].mxu0
    %v3884 = vadd.f32 %v3793, %v3883
    %v3885 = vpop.f32.mrb[0].mxu0
    %3886 = vdwg.mxu0
    %3887 = vmatprep.subr.mxu0 0.0
    %v3888 = vand.u32 %v3701, 4294901760
    %v3889 = vsub.f32 %v3701, %v3888
    %3890 = vmatpush1.msra.mxu0 %v3889
    %3891 = vmatprep.subr.mxu0 0.0
    %v3892 = vand.u32 %v3702, 4294901760
    %v3893 = vsub.f32 %v3702, %v3892
    %3894 = vmatpush1.msra.mxu0 %v3893
    %3895 = vmatprep.subr.mxu0 0.0
    %v3896 = vand.u32 %v3703, 4294901760
    %v3897 = vsub.f32 %v3703, %v3896
    %3898 = vmatpush1.msra.mxu0 %v3897
    %3899 = vmatprep.subr.mxu0 0.0
    %v3900 = vand.u32 %v3704, 4294901760
    %v3901 = vsub.f32 %v3704, %v3900
    %3902 = vmatpush1.msra.mxu0 %v3901
    %3903 = vmatprep.subr.mxu0 0.0
    %3904 = vmatpush1.msra.mxu0 0.0
    %3905 = vmatprep.subr.mxu0 0.0
    %3906 = vmatpush1.msra.mxu0 0.0
    %3907 = vmatprep.subr.mxu0 0.0
    %3908 = vmatpush1.msra.mxu0 0.0
    %3909 = vmatprep.subr.mxu0 0.0
    %3910 = vmatpush1.msra.mxu0 0.0
    %3911 = vmatprep.subr.mxu0 0.0
    %3912 = vmatpush1.msra.mxu0 0.0
    %3913 = vmatprep.subr.mxu0 0.0
    %3914 = vmatpush1.msra.mxu0 0.0
    %3915 = vmatprep.subr.mxu0 0.0
    %3916 = vmatpush1.msra.mxu0 0.0
    %3917 = vmatprep.subr.mxu0 0.0
    %3918 = vmatpush1.msra.mxu0 0.0
    %3919 = vmatprep.subr.mxu0 0.0
    %3920 = vmatpush1.msra.mxu0 0.0
    %3921 = vmatprep.subr.mxu0 0.0
    %3922 = vmatpush1.msra.mxu0 0.0
    %3923 = vmatprep.subr.mxu0 0.0
    %3924 = vmatpush1.msra.mxu0 0.0
    %3925 = vmatprep.subr.mxu0 0.0
    %3926 = vmatpush1.msra.mxu0 0.0
    %3927 = vmatprep.subr.mxu0 0.0
    %3928 = vmatpush1.msra.mxu0 0.0
    %3929 = vmatprep.subr.mxu0 0.0
    %3930 = vmatpush1.msra.mxu0 0.0
    %3931 = vmatprep.subr.mxu0 0.0
    %3932 = vmatpush1.msra.mxu0 0.0
    %3933 = vmatprep.subr.mxu0 0.0
    %3934 = vmatpush1.msra.mxu0 0.0
    %3935 = vmatprep.subr.mxu0 0.0
    %3936 = vmatpush1.msra.mxu0 0.0
    %3937 = vmatprep.subr.mxu0 0.0
    %3938 = vmatpush1.msra.mxu0 0.0
    %3939 = vmatprep.subr.mxu0 0.0
    %3940 = vmatpush1.msra.mxu0 0.0
    %3941 = vmatprep.subr.mxu0 0.0
    %3942 = vmatpush1.msra.mxu0 0.0
    %3943 = vmatprep.subr.mxu0 0.0
    %3944 = vmatpush1.msra.mxu0 0.0
    %3945 = vmatprep.subr.mxu0 0.0
    %3946 = vmatpush1.msra.mxu0 0.0
    %3947 = vmatprep.subr.mxu0 0.0
    %3948 = vmatpush1.msra.mxu0 0.0
    %3949 = vmatprep.subr.mxu0 0.0
    %3950 = vmatpush1.msra.mxu0 0.0
    %3951 = vmatprep.subr.mxu0 0.0
    %3952 = vmatpush1.msra.mxu0 0.0
    %3953 = vmatprep.subr.mxu0 0.0
    %3954 = vmatpush1.msra.mxu0 0.0
    %3955 = vmatprep.subr.mxu0 0.0
    %3956 = vmatpush1.msra.mxu0 0.0
    %3957 = vmatprep.subr.mxu0 0.0
    %3958 = vmatpush1.msra.mxu0 0.0
    %3959 = vmatprep.mubr.f32.mxu0 0.0
    %v3960 = vand.u32 %v3715, 4294901760
    %v3961 = vsub.f32 %v3715, %v3960
    %3962 = vmatmul.mubr.f32.gmra.mrb[0].mxu0 %v3961
    %v3963 = vpop.f32.mrb[0].mxu0
    %v3964 = vadd.f32 %v3884, %v3963
    %v3965 = vpop.f32.mrb[0].mxu0
    %3966 = vdwg.mxu0
    %3967 = vmatprep.subr.mxu0 0.0
    %v3968 = vand.u32 %v3701, 4294901760
    %3969 = vmatpush1.msra.mxu0 %v3968
    %3970 = vmatprep.subr.mxu0 0.0
    %v3971 = vand.u32 %v3702, 4294901760
    %3972 = vmatpush1.msra.mxu0 %v3971
    %3973 = vmatprep.subr.mxu0 0.0
    %v3974 = vand.u32 %v3703, 4294901760
    %3975 = vmatpush1.msra.mxu0 %v3974
    %3976 = vmatprep.subr.mxu0 0.0
    %v3977 = vand.u32 %v3704, 4294901760
    %3978 = vmatpush1.msra.mxu0 %v3977
    %3979 = vmatprep.subr.mxu0 0.0
    %3980 = vmatpush1.msra.mxu0 0.0
    %3981 = vmatprep.subr.mxu0 0.0
    %3982 = vmatpush1.msra.mxu0 0.0
    %3983 = vmatprep.subr.mxu0 0.0
    %3984 = vmatpush1.msra.mxu0 0.0
    %3985 = vmatprep.subr.mxu0 0.0
    %3986 = vmatpush1.msra.mxu0 0.0
    %3987 = vmatprep.subr.mxu0 0.0
    %3988 = vmatpush1.msra.mxu0 0.0
    %3989 = vmatprep.subr.mxu0 0.0
    %3990 = vmatpush1.msra.mxu0 0.0
    %3991 = vmatprep.subr.mxu0 0.0
    %3992 = vmatpush1.msra.mxu0 0.0
    %3993 = vmatprep.subr.mxu0 0.0
    %3994 = vmatpush1.msra.mxu0 0.0
    %3995 = vmatprep.subr.mxu0 0.0
    %3996 = vmatpush1.msra.mxu0 0.0
    %3997 = vmatprep.subr.mxu0 0.0
    %3998 = vmatpush1.msra.mxu0 0.0
    %3999 = vmatprep.subr.mxu0 0.0
    %4000 = vmatpush1.msra.mxu0 0.0
    %4001 = vmatprep.subr.mxu0 0.0
    %4002 = vmatpush1.msra.mxu0 0.0
    %4003 = vmatprep.subr.mxu0 0.0
    %4004 = vmatpush1.msra.mxu0 0.0
    %4005 = vmatprep.subr.mxu0 0.0
    %4006 = vmatpush1.msra.mxu0 0.0
    %4007 = vmatprep.subr.mxu0 0.0
    %4008 = vmatpush1.msra.mxu0 0.0
    %4009 = vmatprep.subr.mxu0 0.0
    %4010 = vmatpush1.msra.mxu0 0.0
    %4011 = vmatprep.subr.mxu0 0.0
    %4012 = vmatpush1.msra.mxu0 0.0
    %4013 = vmatprep.subr.mxu0 0.0
    %4014 = vmatpush1.msra.mxu0 0.0
    %4015 = vmatprep.subr.mxu0 0.0
    %4016 = vmatpush1.msra.mxu0 0.0
    %4017 = vmatprep.subr.mxu0 0.0
    %4018 = vmatpush1.msra.mxu0 0.0
    %4019 = vmatprep.subr.mxu0 0.0
    %4020 = vmatpush1.msra.mxu0 0.0
    %4021 = vmatprep.subr.mxu0 0.0
    %4022 = vmatpush1.msra.mxu0 0.0
    %4023 = vmatprep.subr.mxu0 0.0
    %4024 = vmatpush1.msra.mxu0 0.0
    %4025 = vmatprep.subr.mxu0 0.0
    %4026 = vmatpush1.msra.mxu0 0.0
    %4027 = vmatprep.subr.mxu0 0.0
    %4028 = vmatpush1.msra.mxu0 0.0
    %4029 = vmatprep.subr.mxu0 0.0
    %4030 = vmatpush1.msra.mxu0 0.0
    %4031 = vmatprep.subr.mxu0 0.0
    %4032 = vmatpush1.msra.mxu0 0.0
    %4033 = vmatprep.subr.mxu0 0.0
    %4034 = vmatpush1.msra.mxu0 0.0
    %4035 = vmatprep.mubr.f32.mxu0 0.0
    %v4036 = vand.u32 %v3715, 4294901760
    %v4037 = vsub.f32 %v3715, %v4036
    %v4038 = vand.u32 %v4037, 4294901760
    %4039 = vmatmul.mubr.f32.gmra.mrb[0].mxu0 %v4038
    %v4040 = vpop.f32.mrb[0].mxu0
    %v4041 = vadd.f32 %v3964, %v4040
    %v4042 = vpop.f32.mrb[0].mxu0
    %4043 = vdwg.mxu0
    %4044 = vmatprep.subr.mxu0 0.0
    %v4045 = vand.u32 %v3701, 4294901760
    %v4046 = vsub.f32 %v3701, %v4045
    %v4047 = vand.u32 %v4046, 4294901760
    %4048 = vmatpush1.msra.mxu0 %v4047
    %4049 = vmatprep.subr.mxu0 0.0
    %v4050 = vand.u32 %v3702, 4294901760
    %v4051 = vsub.f32 %v3702, %v4050
    %v4052 = vand.u32 %v4051, 4294901760
    %4053 = vmatpush1.msra.mxu0 %v4052
    %4054 = vmatprep.subr.mxu0 0.0
    %v4055 = vand.u32 %v3703, 4294901760
    %v4056 = vsub.f32 %v3703, %v4055
    %v4057 = vand.u32 %v4056, 4294901760
    %4058 = vmatpush1.msra.mxu0 %v4057
    %4059 = vmatprep.subr.mxu0 0.0
    %v4060 = vand.u32 %v3704, 4294901760
    %v4061 = vsub.f32 %v3704, %v4060
    %v4062 = vand.u32 %v4061, 4294901760
    %4063 = vmatpush1.msra.mxu0 %v4062
    %4064 = vmatprep.subr.mxu0 0.0
    %4065 = vmatpush1.msra.mxu0 0.0
    %4066 = vmatprep.subr.mxu0 0.0
    %4067 = vmatpush1.msra.mxu0 0.0
    %4068 = vmatprep.subr.mxu0 0.0
    %4069 = vmatpush1.msra.mxu0 0.0
    %4070 = vmatprep.subr.mxu0 0.0
    %4071 = vmatpush1.msra.mxu0 0.0
    %4072 = vmatprep.subr.mxu0 0.0
    %4073 = vmatpush1.msra.mxu0 0.0
    %4074 = vmatprep.subr.mxu0 0.0
    %4075 = vmatpush1.msra.mxu0 0.0
    %4076 = vmatprep.subr.mxu0 0.0
    %4077 = vmatpush1.msra.mxu0 0.0
    %4078 = vmatprep.subr.mxu0 0.0
    %4079 = vmatpush1.msra.mxu0 0.0
    %4080 = vmatprep.subr.mxu0 0.0
    %4081 = vmatpush1.msra.mxu0 0.0
    %4082 = vmatprep.subr.mxu0 0.0
    %4083 = vmatpush1.msra.mxu0 0.0
    %4084 = vmatprep.subr.mxu0 0.0
    %4085 = vmatpush1.msra.mxu0 0.0
    %4086 = vmatprep.subr.mxu0 0.0
    %4087 = vmatpush1.msra.mxu0 0.0
    %4088 = vmatprep.subr.mxu0 0.0
    %4089 = vmatpush1.msra.mxu0 0.0
    %4090 = vmatprep.subr.mxu0 0.0
    %4091 = vmatpush1.msra.mxu0 0.0
    %4092 = vmatprep.subr.mxu0 0.0
    %4093 = vmatpush1.msra.mxu0 0.0
    %4094 = vmatprep.subr.mxu0 0.0
    %4095 = vmatpush1.msra.mxu0 0.0
    %4096 = vmatprep.subr.mxu0 0.0
    %4097 = vmatpush1.msra.mxu0 0.0
    %4098 = vmatprep.subr.mxu0 0.0
    %4099 = vmatpush1.msra.mxu0 0.0
    %4100 = vmatprep.subr.mxu0 0.0
    %4101 = vmatpush1.msra.mxu0 0.0
    %4102 = vmatprep.subr.mxu0 0.0
    %4103 = vmatpush1.msra.mxu0 0.0
    %4104 = vmatprep.subr.mxu0 0.0
    %4105 = vmatpush1.msra.mxu0 0.0
    %4106 = vmatprep.subr.mxu0 0.0
    %4107 = vmatpush1.msra.mxu0 0.0
    %4108 = vmatprep.subr.mxu0 0.0
    %4109 = vmatpush1.msra.mxu0 0.0
    %4110 = vmatprep.subr.mxu0 0.0
    %4111 = vmatpush1.msra.mxu0 0.0
    %4112 = vmatprep.subr.mxu0 0.0
    %4113 = vmatpush1.msra.mxu0 0.0
    %4114 = vmatprep.subr.mxu0 0.0
    %4115 = vmatpush1.msra.mxu0 0.0
    %4116 = vmatprep.subr.mxu0 0.0
    %4117 = vmatpush1.msra.mxu0 0.0
    %4118 = vmatprep.subr.mxu0 0.0
    %4119 = vmatpush1.msra.mxu0 0.0
    %4120 = vmatprep.mubr.f32.mxu0 0.0
    %v4121 = vand.u32 %v3715, 4294901760
    %4122 = vmatmul.mubr.f32.gmra.mrb[0].mxu0 %v4121
    %v4123 = vpop.f32.mrb[0].mxu0
    %v4124 = vadd.f32 %v4041, %v4123
    %v4125 = vpop.f32.mrb[0].mxu0
    %4126 = vdwg.mxu0
    %4127 = vmatprep.subr.mxu0 0.0
    %v4128 = vand.u32 %v3701, 4294901760
    %4129 = vmatpush1.msra.mxu0 %v4128
    %4130 = vmatprep.subr.mxu0 0.0
    %v4131 = vand.u32 %v3702, 4294901760
    %4132 = vmatpush1.msra.mxu0 %v4131
    %4133 = vmatprep.subr.mxu0 0.0
    %v4134 = vand.u32 %v3703, 4294901760
    %4135 = vmatpush1.msra.mxu0 %v4134
    %4136 = vmatprep.subr.mxu0 0.0
    %v4137 = vand.u32 %v3704, 4294901760
    %4138 = vmatpush1.msra.mxu0 %v4137
    %4139 = vmatprep.subr.mxu0 0.0
    %4140 = vmatpush1.msra.mxu0 0.0
    %4141 = vmatprep.subr.mxu0 0.0
    %4142 = vmatpush1.msra.mxu0 0.0
    %4143 = vmatprep.subr.mxu0 0.0
    %4144 = vmatpush1.msra.mxu0 0.0
    %4145 = vmatprep.subr.mxu0 0.0
    %4146 = vmatpush1.msra.mxu0 0.0
    %4147 = vmatprep.subr.mxu0 0.0
    %4148 = vmatpush1.msra.mxu0 0.0
    %4149 = vmatprep.subr.mxu0 0.0
    %4150 = vmatpush1.msra.mxu0 0.0
    %4151 = vmatprep.subr.mxu0 0.0
    %4152 = vmatpush1.msra.mxu0 0.0
    %4153 = vmatprep.subr.mxu0 0.0
    %4154 = vmatpush1.msra.mxu0 0.0
    %4155 = vmatprep.subr.mxu0 0.0
    %4156 = vmatpush1.msra.mxu0 0.0
    %4157 = vmatprep.subr.mxu0 0.0
    %4158 = vmatpush1.msra.mxu0 0.0
    %4159 = vmatprep.subr.mxu0 0.0
    %4160 = vmatpush1.msra.mxu0 0.0
    %4161 = vmatprep.subr.mxu0 0.0
    %4162 = vmatpush1.msra.mxu0 0.0
    %4163 = vmatprep.subr.mxu0 0.0
    %4164 = vmatpush1.msra.mxu0 0.0
    %4165 = vmatprep.subr.mxu0 0.0
    %4166 = vmatpush1.msra.mxu0 0.0
    %4167 = vmatprep.subr.mxu0 0.0
    %4168 = vmatpush1.msra.mxu0 0.0
    %4169 = vmatprep.subr.mxu0 0.0
    %4170 = vmatpush1.msra.mxu0 0.0
    %4171 = vmatprep.subr.mxu0 0.0
    %4172 = vmatpush1.msra.mxu0 0.0
    %4173 = vmatprep.subr.mxu0 0.0
    %4174 = vmatpush1.msra.mxu0 0.0
    %4175 = vmatprep.subr.mxu0 0.0
    %4176 = vmatpush1.msra.mxu0 0.0
    %4177 = vmatprep.subr.mxu0 0.0
    %4178 = vmatpush1.msra.mxu0 0.0
    %4179 = vmatprep.subr.mxu0 0.0
    %4180 = vmatpush1.msra.mxu0 0.0
    %4181 = vmatprep.subr.mxu0 0.0
    %4182 = vmatpush1.msra.mxu0 0.0
    %4183 = vmatprep.subr.mxu0 0.0
    %4184 = vmatpush1.msra.mxu0 0.0
    %4185 = vmatprep.subr.mxu0 0.0
    %4186 = vmatpush1.msra.mxu0 0.0
    %4187 = vmatprep.subr.mxu0 0.0
    %4188 = vmatpush1.msra.mxu0 0.0
    %4189 = vmatprep.subr.mxu0 0.0
    %4190 = vmatpush1.msra.mxu0 0.0
    %4191 = vmatprep.subr.mxu0 0.0
    %4192 = vmatpush1.msra.mxu0 0.0
    %4193 = vmatprep.subr.mxu0 0.0
    %4194 = vmatpush1.msra.mxu0 0.0
    %4195 = vmatprep.mubr.f32.mxu0 0.0
    %v4196 = vand.u32 %v3715, 4294901760
    %4197 = vmatmul.mubr.f32.gmra.mrb[0].mxu0 %v4196
    %v4198 = vpop.f32.mrb[0].mxu0
    %v4199 = vadd.f32 %v4124, %v4198
    %v4200 = vpop.f32.mrb[0].mxu0
    %4201 = vdwg.mxu0
    %v4202 = vsel %vm570, %v4199, 0.0
    %v4203 = vrot.slane %v4202, 4
    %v4204 = vadd.f32 %v4202, %v4203
    %v4205 = vrot.slane %v4204, 2
    %v4206 = vadd.f32 %v4204, %v4205
    %v4207 = vrot.slane %v4206, 1
    %v4208 = vadd.f32 %v4206, %v4207
    %v4209 = vrcp.pop 8.0
    %v4210 = vmul.f32 %v4208, %v4209
    %v4211 = vsub.f32 %v4199, %v4210
    %v4212 = vmul.f32 %v4211, %v4211
    %v4213 = vsel %vm570, %v4212, 0.0
    %v4214 = vrot.slane %v4213, 4
    %v4215 = vadd.f32 %v4213, %v4214
    %v4216 = vrot.slane %v4215, 2
    %v4217 = vadd.f32 %v4215, %v4216
    %v4218 = vrot.slane %v4217, 1
    %v4219 = vadd.f32 %v4217, %v4218
    %v4220 = vmul.f32 %v4219, %v4209
    %v4221 = vadd.f32 %v4220, 1e-05
    %v4222 = vrsqrt.pop %v4221
    %v4223 = vmul.f32 %v4211, %v4222
    %v4225 = vlaneseq
    %v4226 = vshrl.u32 %v4225, 7
    %v4227 = vsub.s32 0, %v4226
    %v4228 = vrot.slane %v3706, %v4227
    %v4230 = vmul.f32 %v4223, %v4228
    %v4232 = vlaneseq
    %v4233 = vshrl.u32 %v4232, 7
    %v4234 = vsub.s32 0, %v4233
    %v4235 = vrot.slane %v3707, %v4234
    %v4237 = vadd.f32 %v4230, %v4235
    %vm4238 = vcmp.ge.f32.partialorder %v4237, 0.0
    %v4239 = vmul.f32 %v4237, 0.01
    %v4240 = vsel %vm4238, %v4237, %v4239
    %v4241 = vld [vmem:[#allocation31] sm:$0xff]
    %v4242 = vld [vmem:[#allocation31 + $0x8] sm:$0xff]
    %v4243 = vld [vmem:[#allocation31 + $0x10] sm:$0xff]
    %v4244 = vld [vmem:[#allocation31 + $0x18] sm:$0xff]
    %v4245 = vld [vmem:[#allocation32] sm:$0x1]
    %v4246 = vld [vmem:[#allocation34] sm:$0x1]
    %v4247 = vld [vmem:[#allocation35] sm:$0x1]
    %v4249 = vlaneseq
    %v4250 = vshrl.u32 %v4249, 7
    %v4251 = vsub.s32 0, %v4250
    %v4252 = vrot.slane %v4245, %v4251
    %v4255 = vsel %vm570, %v4240, 0
    %4257 = vmatprep.subr.mxu0 0.0
    %v4258 = vand.u32 %v4241, 4294901760
    %4259 = vmatpush1.msra.mxu0 %v4258
    %4260 = vmatprep.subr.mxu0 0.0
    %v4261 = vand.u32 %v4242, 4294901760
    %4262 = vmatpush1.msra.mxu0 %v4261
    %4263 = vmatprep.subr.mxu0 0.0
    %v4264 = vand.u32 %v4243, 4294901760
    %4265 = vmatpush1.msra.mxu0 %v4264
    %4266 = vmatprep.subr.mxu0 0.0
    %v4267 = vand.u32 %v4244, 4294901760
    %4268 = vmatpush1.msra.mxu0 %v4267
    %4269 = vmatprep.subr.mxu0 0.0
    %4270 = vmatpush1.msra.mxu0 0.0
    %4271 = vmatprep.subr.mxu0 0.0
    %4272 = vmatpush1.msra.mxu0 0.0
    %4273 = vmatprep.subr.mxu0 0.0
    %4274 = vmatpush1.msra.mxu0 0.0
    %4275 = vmatprep.subr.mxu0 0.0
    %4276 = vmatpush1.msra.mxu0 0.0
    %4277 = vmatprep.subr.mxu0 0.0
    %4278 = vmatpush1.msra.mxu0 0.0
    %4279 = vmatprep.subr.mxu0 0.0
    %4280 = vmatpush1.msra.mxu0 0.0
    %4281 = vmatprep.subr.mxu0 0.0
    %4282 = vmatpush1.msra.mxu0 0.0
    %4283 = vmatprep.subr.mxu0 0.0
    %4284 = vmatpush1.msra.mxu0 0.0
    %4285 = vmatprep.subr.mxu0 0.0
    %4286 = vmatpush1.msra.mxu0 0.0
    %4287 = vmatprep.subr.mxu0 0.0
    %4288 = vmatpush1.msra.mxu0 0.0
    %4289 = vmatprep.subr.mxu0 0.0
    %4290 = vmatpush1.msra.mxu0 0.0
    %4291 = vmatprep.subr.mxu0 0.0
    %4292 = vmatpush1.msra.mxu0 0.0
    %4293 = vmatprep.subr.mxu0 0.0
    %4294 = vmatpush1.msra.mxu0 0.0
    %4295 = vmatprep.subr.mxu0 0.0
    %4296 = vmatpush1.msra.mxu0 0.0
    %4297 = vmatprep.subr.mxu0 0.0
    %4298 = vmatpush1.msra.mxu0 0.0
    %4299 = vmatprep.subr.mxu0 0.0
    %4300 = vmatpush1.msra.mxu0 0.0
    %4301 = vmatprep.subr.mxu0 0.0
    %4302 = vmatpush1.msra.mxu0 0.0
    %4303 = vmatprep.subr.mxu0 0.0
    %4304 = vmatpush1.msra.mxu0 0.0
    %4305 = vmatprep.subr.mxu0 0.0
    %4306 = vmatpush1.msra.mxu0 0.0
    %4307 = vmatprep.subr.mxu0 0.0
    %4308 = vmatpush1.msra.mxu0 0.0
    %4309 = vmatprep.subr.mxu0 0.0
    %4310 = vmatpush1.msra.mxu0 0.0
    %4311 = vmatprep.subr.mxu0 0.0
    %4312 = vmatpush1.msra.mxu0 0.0
    %4313 = vmatprep.subr.mxu0 0.0
    %4314 = vmatpush1.msra.mxu0 0.0
    %4315 = vmatprep.subr.mxu0 0.0
    %4316 = vmatpush1.msra.mxu0 0.0
    %4317 = vmatprep.subr.mxu0 0.0
    %4318 = vmatpush1.msra.mxu0 0.0
    %4319 = vmatprep.subr.mxu0 0.0
    %4320 = vmatpush1.msra.mxu0 0.0
    %4321 = vmatprep.subr.mxu0 0.0
    %4322 = vmatpush1.msra.mxu0 0.0
    %4323 = vmatprep.subr.mxu0 0.0
    %4324 = vmatpush1.msra.mxu0 0.0
    %4325 = vmatprep.mubr.f32.mxu0 0.0
    %v4326 = vand.u32 %v4255, 4294901760
    %v4327 = vsub.f32 %v4255, %v4326
    %v4328 = vand.u32 %v4327, 4294901760
    %v4329 = vsub.f32 %v4327, %v4328
    %v4330 = vand.u32 %v4329, 4294901760
    %4331 = vmatmul.mubr.f32.gmra.mrb[0].mxu0 %v4330
    %v4332 = vpop.f32.mrb[0].mxu0
    %v4333 = vadd.f32 %v4252, %v4332
    %v4334 = vpop.f32.mrb[0].mxu0
    %4335 = vdwg.mxu0
    %4336 = vmatprep.subr.mxu0 0.0
    %v4337 = vand.u32 %v4241, 4294901760
    %v4338 = vsub.f32 %v4241, %v4337
    %v4339 = vand.u32 %v4338, 4294901760
    %v4340 = vsub.f32 %v4338, %v4339
    %v4341 = vand.u32 %v4340, 4294901760
    %4342 = vmatpush1.msra.mxu0 %v4341
    %4343 = vmatprep.subr.mxu0 0.0
    %v4344 = vand.u32 %v4242, 4294901760
    %v4345 = vsub.f32 %v4242, %v4344
    %v4346 = vand.u32 %v4345, 4294901760
    %v4347 = vsub.f32 %v4345, %v4346
    %v4348 = vand.u32 %v4347, 4294901760
    %4349 = vmatpush1.msra.mxu0 %v4348
    %4350 = vmatprep.subr.mxu0 0.0
    %v4351 = vand.u32 %v4243, 4294901760
    %v4352 = vsub.f32 %v4243, %v4351
    %v4353 = vand.u32 %v4352, 4294901760
    %v4354 = vsub.f32 %v4352, %v4353
    %v4355 = vand.u32 %v4354, 4294901760
    %4356 = vmatpush1.msra.mxu0 %v4355
    %4357 = vmatprep.subr.mxu0 0.0
    %v4358 = vand.u32 %v4244, 4294901760
    %v4359 = vsub.f32 %v4244, %v4358
    %v4360 = vand.u32 %v4359, 4294901760
    %v4361 = vsub.f32 %v4359, %v4360
    %v4362 = vand.u32 %v4361, 4294901760
    %4363 = vmatpush1.msra.mxu0 %v4362
    %4364 = vmatprep.subr.mxu0 0.0
    %4365 = vmatpush1.msra.mxu0 0.0
    %4366 = vmatprep.subr.mxu0 0.0
    %4367 = vmatpush1.msra.mxu0 0.0
    %4368 = vmatprep.subr.mxu0 0.0
    %4369 = vmatpush1.msra.mxu0 0.0
    %4370 = vmatprep.subr.mxu0 0.0
    %4371 = vmatpush1.msra.mxu0 0.0
    %4372 = vmatprep.subr.mxu0 0.0
    %4373 = vmatpush1.msra.mxu0 0.0
    %4374 = vmatprep.subr.mxu0 0.0
    %4375 = vmatpush1.msra.mxu0 0.0
    %4376 = vmatprep.subr.mxu0 0.0
    %4377 = vmatpush1.msra.mxu0 0.0
    %4378 = vmatprep.subr.mxu0 0.0
    %4379 = vmatpush1.msra.mxu0 0.0
    %4380 = vmatprep.subr.mxu0 0.0
    %4381 = vmatpush1.msra.mxu0 0.0
    %4382 = vmatprep.subr.mxu0 0.0
    %4383 = vmatpush1.msra.mxu0 0.0
    %4384 = vmatprep.subr.mxu0 0.0
    %4385 = vmatpush1.msra.mxu0 0.0
    %4386 = vmatprep.subr.mxu0 0.0
    %4387 = vmatpush1.msra.mxu0 0.0
    %4388 = vmatprep.subr.mxu0 0.0
    %4389 = vmatpush1.msra.mxu0 0.0
    %4390 = vmatprep.subr.mxu0 0.0
    %4391 = vmatpush1.msra.mxu0 0.0
    %4392 = vmatprep.subr.mxu0 0.0
    %4393 = vmatpush1.msra.mxu0 0.0
    %4394 = vmatprep.subr.mxu0 0.0
    %4395 = vmatpush1.msra.mxu0 0.0
    %4396 = vmatprep.subr.mxu0 0.0
    %4397 = vmatpush1.msra.mxu0 0.0
    %4398 = vmatprep.subr.mxu0 0.0
    %4399 = vmatpush1.msra.mxu0 0.0
    %4400 = vmatprep.subr.mxu0 0.0
    %4401 = vmatpush1.msra.mxu0 0.0
    %4402 = vmatprep.subr.mxu0 0.0
    %4403 = vmatpush1.msra.mxu0 0.0
    %4404 = vmatprep.subr.mxu0 0.0
    %4405 = vmatpush1.msra.mxu0 0.0
    %4406 = vmatprep.subr.mxu0 0.0
    %4407 = vmatpush1.msra.mxu0 0.0
    %4408 = vmatprep.subr.mxu0 0.0
    %4409 = vmatpush1.msra.mxu0 0.0
    %4410 = vmatprep.subr.mxu0 0.0
    %4411 = vmatpush1.msra.mxu0 0.0
    %4412 = vmatprep.subr.mxu0 0.0
    %4413 = vmatpush1.msra.mxu0 0.0
    %4414 = vmatprep.subr.mxu0 0.0
    %4415 = vmatpush1.msra.mxu0 0.0
    %4416 = vmatprep.subr.mxu0 0.0
    %4417 = vmatpush1.msra.mxu0 0.0
    %4418 = vmatprep.subr.mxu0 0.0
    %4419 = vmatpush1.msra.mxu0 0.0
    %4420 = vmatprep.mubr.f32.mxu0 0.0
    %v4421 = vand.u32 %v4255, 4294901760
    %4422 = vmatmul.mubr.f32.gmra.mrb[0].mxu0 %v4421
    %v4423 = vpop.f32.mrb[0].mxu0
    %v4424 = vadd.f32 %v4333, %v4423
    %v4425 = vpop.f32.mrb[0].mxu0
    %4426 = vdwg.mxu0
    %4427 = vmatprep.subr.mxu0 0.0
    %v4428 = vand.u32 %v4241, 4294901760
    %v4429 = vsub.f32 %v4241, %v4428
    %4430 = vmatpush1.msra.mxu0 %v4429
    %4431 = vmatprep.subr.mxu0 0.0
    %v4432 = vand.u32 %v4242, 4294901760
    %v4433 = vsub.f32 %v4242, %v4432
    %4434 = vmatpush1.msra.mxu0 %v4433
    %4435 = vmatprep.subr.mxu0 0.0
    %v4436 = vand.u32 %v4243, 4294901760
    %v4437 = vsub.f32 %v4243, %v4436
    %4438 = vmatpush1.msra.mxu0 %v4437
    %4439 = vmatprep.subr.mxu0 0.0
    %v4440 = vand.u32 %v4244, 4294901760
    %v4441 = vsub.f32 %v4244, %v4440
    %4442 = vmatpush1.msra.mxu0 %v4441
    %4443 = vmatprep.subr.mxu0 0.0
    %4444 = vmatpush1.msra.mxu0 0.0
    %4445 = vmatprep.subr.mxu0 0.0
    %4446 = vmatpush1.msra.mxu0 0.0
    %4447 = vmatprep.subr.mxu0 0.0
    %4448 = vmatpush1.msra.mxu0 0.0
    %4449 = vmatprep.subr.mxu0 0.0
    %4450 = vmatpush1.msra.mxu0 0.0
    %4451 = vmatprep.subr.mxu0 0.0
    %4452 = vmatpush1.msra.mxu0 0.0
    %4453 = vmatprep.subr.mxu0 0.0
    %4454 = vmatpush1.msra.mxu0 0.0
    %4455 = vmatprep.subr.mxu0 0.0
    %4456 = vmatpush1.msra.mxu0 0.0
    %4457 = vmatprep.subr.mxu0 0.0
    %4458 = vmatpush1.msra.mxu0 0.0
    %4459 = vmatprep.subr.mxu0 0.0
    %4460 = vmatpush1.msra.mxu0 0.0
    %4461 = vmatprep.subr.mxu0 0.0
    %4462 = vmatpush1.msra.mxu0 0.0
    %4463 = vmatprep.subr.mxu0 0.0
    %4464 = vmatpush1.msra.mxu0 0.0
    %4465 = vmatprep.subr.mxu0 0.0
    %4466 = vmatpush1.msra.mxu0 0.0
    %4467 = vmatprep.subr.mxu0 0.0
    %4468 = vmatpush1.msra.mxu0 0.0
    %4469 = vmatprep.subr.mxu0 0.0
    %4470 = vmatpush1.msra.mxu0 0.0
    %4471 = vmatprep.subr.mxu0 0.0
    %4472 = vmatpush1.msra.mxu0 0.0
    %4473 = vmatprep.subr.mxu0 0.0
    %4474 = vmatpush1.msra.mxu0 0.0
    %4475 = vmatprep.subr.mxu0 0.0
    %4476 = vmatpush1.msra.mxu0 0.0
    %4477 = vmatprep.subr.mxu0 0.0
    %4478 = vmatpush1.msra.mxu0 0.0
    %4479 = vmatprep.subr.mxu0 0.0
    %4480 = vmatpush1.msra.mxu0 0.0
    %4481 = vmatprep.subr.mxu0 0.0
    %4482 = vmatpush1.msra.mxu0 0.0
    %4483 = vmatprep.subr.mxu0 0.0
    %4484 = vmatpush1.msra.mxu0 0.0
    %4485 = vmatprep.subr.mxu0 0.0
    %4486 = vmatpush1.msra.mxu0 0.0
    %4487 = vmatprep.subr.mxu0 0.0
    %4488 = vmatpush1.msra.mxu0 0.0
    %4489 = vmatprep.subr.mxu0 0.0
    %4490 = vmatpush1.msra.mxu0 0.0
    %4491 = vmatprep.subr.mxu0 0.0
    %4492 = vmatpush1.msra.mxu0 0.0
    %4493 = vmatprep.subr.mxu0 0.0
    %4494 = vmatpush1.msra.mxu0 0.0
    %4495 = vmatprep.subr.mxu0 0.0
    %4496 = vmatpush1.msra.mxu0 0.0
    %4497 = vmatprep.subr.mxu0 0.0
    %4498 = vmatpush1.msra.mxu0 0.0
    %4499 = vmatprep.mubr.f32.mxu0 0.0
    %v4500 = vand.u32 %v4255, 4294901760
    %v4501 = vsub.f32 %v4255, %v4500
    %4502 = vmatmul.mubr.f32.gmra.mrb[0].mxu0 %v4501
    %v4503 = vpop.f32.mrb[0].mxu0
    %v4504 = vadd.f32 %v4424, %v4503
    %v4505 = vpop.f32.mrb[0].mxu0
    %4506 = vdwg.mxu0
    %4507 = vmatprep.subr.mxu0 0.0
    %v4508 = vand.u32 %v4241, 4294901760
    %4509 = vmatpush1.msra.mxu0 %v4508
    %4510 = vmatprep.subr.mxu0 0.0
    %v4511 = vand.u32 %v4242, 4294901760
    %4512 = vmatpush1.msra.mxu0 %v4511
    %4513 = vmatprep.subr.mxu0 0.0
    %v4514 = vand.u32 %v4243, 4294901760
    %4515 = vmatpush1.msra.mxu0 %v4514
    %4516 = vmatprep.subr.mxu0 0.0
    %v4517 = vand.u32 %v4244, 4294901760
    %4518 = vmatpush1.msra.mxu0 %v4517
    %4519 = vmatprep.subr.mxu0 0.0
    %4520 = vmatpush1.msra.mxu0 0.0
    %4521 = vmatprep.subr.mxu0 0.0
    %4522 = vmatpush1.msra.mxu0 0.0
    %4523 = vmatprep.subr.mxu0 0.0
    %4524 = vmatpush1.msra.mxu0 0.0
    %4525 = vmatprep.subr.mxu0 0.0
    %4526 = vmatpush1.msra.mxu0 0.0
    %4527 = vmatprep.subr.mxu0 0.0
    %4528 = vmatpush1.msra.mxu0 0.0
    %4529 = vmatprep.subr.mxu0 0.0
    %4530 = vmatpush1.msra.mxu0 0.0
    %4531 = vmatprep.subr.mxu0 0.0
    %4532 = vmatpush1.msra.mxu0 0.0
    %4533 = vmatprep.subr.mxu0 0.0
    %4534 = vmatpush1.msra.mxu0 0.0
    %4535 = vmatprep.subr.mxu0 0.0
    %4536 = vmatpush1.msra.mxu0 0.0
    %4537 = vmatprep.subr.mxu0 0.0
    %4538 = vmatpush1.msra.mxu0 0.0
    %4539 = vmatprep.subr.mxu0 0.0
    %4540 = vmatpush1.msra.mxu0 0.0
    %4541 = vmatprep.subr.mxu0 0.0
    %4542 = vmatpush1.msra.mxu0 0.0
    %4543 = vmatprep.subr.mxu0 0.0
    %4544 = vmatpush1.msra.mxu0 0.0
    %4545 = vmatprep.subr.mxu0 0.0
    %4546 = vmatpush1.msra.mxu0 0.0
    %4547 = vmatprep.subr.mxu0 0.0
    %4548 = vmatpush1.msra.mxu0 0.0
    %4549 = vmatprep.subr.mxu0 0.0
    %4550 = vmatpush1.msra.mxu0 0.0
    %4551 = vmatprep.subr.mxu0 0.0
    %4552 = vmatpush1.msra.mxu0 0.0
    %4553 = vmatprep.subr.mxu0 0.0
    %4554 = vmatpush1.msra.mxu0 0.0
    %4555 = vmatprep.subr.mxu0 0.0
    %4556 = vmatpush1.msra.mxu0 0.0
    %4557 = vmatprep.subr.mxu0 0.0
    %4558 = vmatpush1.msra.mxu0 0.0
    %4559 = vmatprep.subr.mxu0 0.0
    %4560 = vmatpush1.msra.mxu0 0.0
    %4561 = vmatprep.subr.mxu0 0.0
    %4562 = vmatpush1.msra.mxu0 0.0
    %4563 = vmatprep.subr.mxu0 0.0
    %4564 = vmatpush1.msra.mxu0 0.0
    %4565 = vmatprep.subr.mxu0 0.0
    %4566 = vmatpush1.msra.mxu0 0.0
    %4567 = vmatprep.subr.mxu0 0.0
    %4568 = vmatpush1.msra.mxu0 0.0
    %4569 = vmatprep.subr.mxu0 0.0
    %4570 = vmatpush1.msra.mxu0 0.0
    %4571 = vmatprep.subr.mxu0 0.0
    %4572 = vmatpush1.msra.mxu0 0.0
    %4573 = vmatprep.subr.mxu0 0.0
    %4574 = vmatpush1.msra.mxu0 0.0
    %4575 = vmatprep.mubr.f32.mxu0 0.0
    %v4576 = vand.u32 %v4255, 4294901760
    %v4577 = vsub.f32 %v4255, %v4576
    %v4578 = vand.u32 %v4577, 4294901760
    %4579 = vmatmul.mubr.f32.gmra.mrb[0].mxu0 %v4578
    %v4580 = vpop.f32.mrb[0].mxu0
    %v4581 = vadd.f32 %v4504, %v4580
    %v4582 = vpop.f32.mrb[0].mxu0
    %4583 = vdwg.mxu0
    %4584 = vmatprep.subr.mxu0 0.0
    %v4585 = vand.u32 %v4241, 4294901760
    %v4586 = vsub.f32 %v4241, %v4585
    %v4587 = vand.u32 %v4586, 4294901760
    %4588 = vmatpush1.msra.mxu0 %v4587
    %4589 = vmatprep.subr.mxu0 0.0
    %v4590 = vand.u32 %v4242, 4294901760
    %v4591 = vsub.f32 %v4242, %v4590
    %v4592 = vand.u32 %v4591, 4294901760
    %4593 = vmatpush1.msra.mxu0 %v4592
    %4594 = vmatprep.subr.mxu0 0.0
    %v4595 = vand.u32 %v4243, 4294901760
    %v4596 = vsub.f32 %v4243, %v4595
    %v4597 = vand.u32 %v4596, 4294901760
    %4598 = vmatpush1.msra.mxu0 %v4597
    %4599 = vmatprep.subr.mxu0 0.0
    %v4600 = vand.u32 %v4244, 4294901760
    %v4601 = vsub.f32 %v4244, %v4600
    %v4602 = vand.u32 %v4601, 4294901760
    %4603 = vmatpush1.msra.mxu0 %v4602
    %4604 = vmatprep.subr.mxu0 0.0
    %4605 = vmatpush1.msra.mxu0 0.0
    %4606 = vmatprep.subr.mxu0 0.0
    %4607 = vmatpush1.msra.mxu0 0.0
    %4608 = vmatprep.subr.mxu0 0.0
    %4609 = vmatpush1.msra.mxu0 0.0
    %4610 = vmatprep.subr.mxu0 0.0
    %4611 = vmatpush1.msra.mxu0 0.0
    %4612 = vmatprep.subr.mxu0 0.0
    %4613 = vmatpush1.msra.mxu0 0.0
    %4614 = vmatprep.subr.mxu0 0.0
    %4615 = vmatpush1.msra.mxu0 0.0
    %4616 = vmatprep.subr.mxu0 0.0
    %4617 = vmatpush1.msra.mxu0 0.0
    %4618 = vmatprep.subr.mxu0 0.0
    %4619 = vmatpush1.msra.mxu0 0.0
    %4620 = vmatprep.subr.mxu0 0.0
    %4621 = vmatpush1.msra.mxu0 0.0
    %4622 = vmatprep.subr.mxu0 0.0
    %4623 = vmatpush1.msra.mxu0 0.0
    %4624 = vmatprep.subr.mxu0 0.0
    %4625 = vmatpush1.msra.mxu0 0.0
    %4626 = vmatprep.subr.mxu0 0.0
    %4627 = vmatpush1.msra.mxu0 0.0
    %4628 = vmatprep.subr.mxu0 0.0
    %4629 = vmatpush1.msra.mxu0 0.0
    %4630 = vmatprep.subr.mxu0 0.0
    %4631 = vmatpush1.msra.mxu0 0.0
    %4632 = vmatprep.subr.mxu0 0.0
    %4633 = vmatpush1.msra.mxu0 0.0
    %4634 = vmatprep.subr.mxu0 0.0
    %4635 = vmatpush1.msra.mxu0 0.0
    %4636 = vmatprep.subr.mxu0 0.0
    %4637 = vmatpush1.msra.mxu0 0.0
    %4638 = vmatprep.subr.mxu0 0.0
    %4639 = vmatpush1.msra.mxu0 0.0
    %4640 = vmatprep.subr.mxu0 0.0
    %4641 = vmatpush1.msra.mxu0 0.0
    %4642 = vmatprep.subr.mxu0 0.0
    %4643 = vmatpush1.msra.mxu0 0.0
    %4644 = vmatprep.subr.mxu0 0.0
    %4645 = vmatpush1.msra.mxu0 0.0
    %4646 = vmatprep.subr.mxu0 0.0
    %4647 = vmatpush1.msra.mxu0 0.0
    %4648 = vmatprep.subr.mxu0 0.0
    %4649 = vmatpush1.msra.mxu0 0.0
    %4650 = vmatprep.subr.mxu0 0.0
    %4651 = vmatpush1.msra.mxu0 0.0
    %4652 = vmatprep.subr.mxu0 0.0
    %4653 = vmatpush1.msra.mxu0 0.0
    %4654 = vmatprep.subr.mxu0 0.0
    %4655 = vmatpush1.msra.mxu0 0.0
    %4656 = vmatprep.subr.mxu0 0.0
    %4657 = vmatpush1.msra.mxu0 0.0
    %4658 = vmatprep.subr.mxu0 0.0
    %4659 = vmatpush1.msra.mxu0 0.0
    %4660 = vmatprep.mubr.f32.mxu0 0.0
    %v4661 = vand.u32 %v4255, 4294901760
    %4662 = vmatmul.mubr.f32.gmra.mrb[0].mxu0 %v4661
    %v4663 = vpop.f32.mrb[0].mxu0
    %v4664 = vadd.f32 %v4581, %v4663
    %v4665 = vpop.f32.mrb[0].mxu0
    %4666 = vdwg.mxu0
    %4667 = vmatprep.subr.mxu0 0.0
    %v4668 = vand.u32 %v4241, 4294901760
    %4669 = vmatpush1.msra.mxu0 %v4668
    %4670 = vmatprep.subr.mxu0 0.0
    %v4671 = vand.u32 %v4242, 4294901760
    %4672 = vmatpush1.msra.mxu0 %v4671
    %4673 = vmatprep.subr.mxu0 0.0
    %v4674 = vand.u32 %v4243, 4294901760
    %4675 = vmatpush1.msra.mxu0 %v4674
    %4676 = vmatprep.subr.mxu0 0.0
    %v4677 = vand.u32 %v4244, 4294901760
    %4678 = vmatpush1.msra.mxu0 %v4677
    %4679 = vmatprep.subr.mxu0 0.0
    %4680 = vmatpush1.msra.mxu0 0.0
    %4681 = vmatprep.subr.mxu0 0.0
    %4682 = vmatpush1.msra.mxu0 0.0
    %4683 = vmatprep.subr.mxu0 0.0
    %4684 = vmatpush1.msra.mxu0 0.0
    %4685 = vmatprep.subr.mxu0 0.0
    %4686 = vmatpush1.msra.mxu0 0.0
    %4687 = vmatprep.subr.mxu0 0.0
    %4688 = vmatpush1.msra.mxu0 0.0
    %4689 = vmatprep.subr.mxu0 0.0
    %4690 = vmatpush1.msra.mxu0 0.0
    %4691 = vmatprep.subr.mxu0 0.0
    %4692 = vmatpush1.msra.mxu0 0.0
    %4693 = vmatprep.subr.mxu0 0.0
    %4694 = vmatpush1.msra.mxu0 0.0
    %4695 = vmatprep.subr.mxu0 0.0
    %4696 = vmatpush1.msra.mxu0 0.0
    %4697 = vmatprep.subr.mxu0 0.0
    %4698 = vmatpush1.msra.mxu0 0.0
    %4699 = vmatprep.subr.mxu0 0.0
    %4700 = vmatpush1.msra.mxu0 0.0
    %4701 = vmatprep.subr.mxu0 0.0
    %4702 = vmatpush1.msra.mxu0 0.0
    %4703 = vmatprep.subr.mxu0 0.0
    %4704 = vmatpush1.msra.mxu0 0.0
    %4705 = vmatprep.subr.mxu0 0.0
    %4706 = vmatpush1.msra.mxu0 0.0
    %4707 = vmatprep.subr.mxu0 0.0
    %4708 = vmatpush1.msra.mxu0 0.0
    %4709 = vmatprep.subr.mxu0 0.0
    %4710 = vmatpush1.msra.mxu0 0.0
    %4711 = vmatprep.subr.mxu0 0.0
    %4712 = vmatpush1.msra.mxu0 0.0
    %4713 = vmatprep.subr.mxu0 0.0
    %4714 = vmatpush1.msra.mxu0 0.0
    %4715 = vmatprep.subr.mxu0 0.0
    %4716 = vmatpush1.msra.mxu0 0.0
    %4717 = vmatprep.subr.mxu0 0.0
    %4718 = vmatpush1.msra.mxu0 0.0
    %4719 = vmatprep.subr.mxu0 0.0
    %4720 = vmatpush1.msra.mxu0 0.0
    %4721 = vmatprep.subr.mxu0 0.0
    %4722 = vmatpush1.msra.mxu0 0.0
    %4723 = vmatprep.subr.mxu0 0.0
    %4724 = vmatpush1.msra.mxu0 0.0
    %4725 = vmatprep.subr.mxu0 0.0
    %4726 = vmatpush1.msra.mxu0 0.0
    %4727 = vmatprep.subr.mxu0 0.0
    %4728 = vmatpush1.msra.mxu0 0.0
    %4729 = vmatprep.subr.mxu0 0.0
    %4730 = vmatpush1.msra.mxu0 0.0
    %4731 = vmatprep.subr.mxu0 0.0
    %4732 = vmatpush1.msra.mxu0 0.0
    %4733 = vmatprep.subr.mxu0 0.0
    %4734 = vmatpush1.msra.mxu0 0.0
    %4735 = vmatprep.mubr.f32.mxu0 0.0
    %v4736 = vand.u32 %v4255, 4294901760
    %4737 = vmatmul.mubr.f32.gmra.mrb[0].mxu0 %v4736
    %v4738 = vpop.f32.mrb[0].mxu0
    %v4739 = vadd.f32 %v4664, %v4738
    %v4740 = vpop.f32.mrb[0].mxu0
    %4741 = vdwg.mxu0
    %v4742 = vsel %vm1079, %v4739, 0.0
    %v4743 = vrot.slane %v4742, 4
    %v4744 = vadd.f32 %v4742, %v4743
    %v4745 = vrot.slane %v4744, 2
    %v4746 = vadd.f32 %v4744, %v4745
    %v4747 = vrot.slane %v4746, 1
    %v4748 = vadd.f32 %v4746, %v4747
    %v4749 = vmul.f32 %v4748, %v4209
    %v4750 = vsub.f32 %v4739, %v4749
    %v4751 = vmul.f32 %v4750, %v4750
    %v4752 = vsel %vm1079, %v4751, 0.0
    %v4753 = vrot.slane %v4752, 4
    %v4754 = vadd.f32 %v4752, %v4753
    %v4755 = vrot.slane %v4754, 2
    %v4756 = vadd.f32 %v4754, %v4755
    %v4757 = vrot.slane %v4756, 1
    %v4758 = vadd.f32 %v4756, %v4757
    %v4759 = vmul.f32 %v4758, %v4209
    %v4760 = vadd.f32 %v4759, 1e-05
    %v4761 = vrsqrt.pop %v4760
    %v4762 = vmul.f32 %v4750, %v4761
    %v4764 = vlaneseq
    %v4765 = vshrl.u32 %v4764, 7
    %v4766 = vsub.s32 0, %v4765
    %v4767 = vrot.slane %v4246, %v4766
    %v4769 = vmul.f32 %v4762, %v4767
    %v4771 = vlaneseq
    %v4772 = vshrl.u32 %v4771, 7
    %v4773 = vsub.s32 0, %v4772
    %v4774 = vrot.slane %v4247, %v4773
    %v4776 = vadd.f32 %v4769, %v4774
    %vm4777 = vcmp.ge.f32.partialorder %v4776, 0.0
    %v4778 = vmul.f32 %v4776, 0.01
    %v4779 = vsel %vm4777, %v4776, %v4778
    %v4780 = vld [vmem:[%s55] sm:$0xff]
    %v4781 = vld [vmem:[%s55 + $0x8] sm:$0xff]
    %v4782 = vld [vmem:[%s55 + $0x10] sm:$0xff]
    %v4783 = vld [vmem:[%s55 + $0x18] sm:$0xff]
    %v4784 = vld [vmem:[%s55 + $0x20] sm:$0xff]
    %v4785 = vld [vmem:[%s55 + $0x28] sm:$0xff]
    %v4786 = vld [vmem:[%s55 + $0x30] sm:$0xff]
    %v4787 = vld [vmem:[%s55 + $0x38] sm:$0xff]
    %v4788 = vld [vmem:[#allocation37] sm:$0x1]
    %v4789 = vld [vmem:[#allocation38] sm:$0x1]
    %v4790 = vld [vmem:[#allocation40] sm:$0x1]
    %v4792 = vlaneseq
    %v4793 = vshrl.u32 %v4792, 7
    %v4794 = vsub.s32 0, %v4793
    %v4795 = vrot.slane %v4788, %v4794
    %v4798 = vsel %vm1079, %v4779, 0
    %4800 = vmatprep.subr.mxu0 0.0
    %v4801 = vand.u32 %v4780, 4294901760
    %4802 = vmatpush1.msra.mxu0 %v4801
    %4803 = vmatprep.subr.mxu0 0.0
    %v4804 = vand.u32 %v4781, 4294901760
    %4805 = vmatpush1.msra.mxu0 %v4804
    %4806 = vmatprep.subr.mxu0 0.0
    %v4807 = vand.u32 %v4782, 4294901760
    %4808 = vmatpush1.msra.mxu0 %v4807
    %4809 = vmatprep.subr.mxu0 0.0
    %v4810 = vand.u32 %v4783, 4294901760
    %4811 = vmatpush1.msra.mxu0 %v4810
    %4812 = vmatprep.subr.mxu0 0.0
    %v4813 = vand.u32 %v4784, 4294901760
    %4814 = vmatpush1.msra.mxu0 %v4813
    %4815 = vmatprep.subr.mxu0 0.0
    %v4816 = vand.u32 %v4785, 4294901760
    %4817 = vmatpush1.msra.mxu0 %v4816
    %4818 = vmatprep.subr.mxu0 0.0
    %v4819 = vand.u32 %v4786, 4294901760
    %4820 = vmatpush1.msra.mxu0 %v4819
    %4821 = vmatprep.subr.mxu0 0.0
    %v4822 = vand.u32 %v4787, 4294901760
    %4823 = vmatpush1.msra.mxu0 %v4822
    %4824 = vmatprep.subr.mxu0 0.0
    %4825 = vmatpush1.msra.mxu0 0.0
    %4826 = vmatprep.subr.mxu0 0.0
    %4827 = vmatpush1.msra.mxu0 0.0
    %4828 = vmatprep.subr.mxu0 0.0
    %4829 = vmatpush1.msra.mxu0 0.0
    %4830 = vmatprep.subr.mxu0 0.0
    %4831 = vmatpush1.msra.mxu0 0.0
    %4832 = vmatprep.subr.mxu0 0.0
    %4833 = vmatpush1.msra.mxu0 0.0
    %4834 = vmatprep.subr.mxu0 0.0
    %4835 = vmatpush1.msra.mxu0 0.0
    %4836 = vmatprep.subr.mxu0 0.0
    %4837 = vmatpush1.msra.mxu0 0.0
    %4838 = vmatprep.subr.mxu0 0.0
    %4839 = vmatpush1.msra.mxu0 0.0
    %4840 = vmatprep.subr.mxu0 0.0
    %4841 = vmatpush1.msra.mxu0 0.0
    %4842 = vmatprep.subr.mxu0 0.0
    %4843 = vmatpush1.msra.mxu0 0.0
    %4844 = vmatprep.subr.mxu0 0.0
    %4845 = vmatpush1.msra.mxu0 0.0
    %4846 = vmatprep.subr.mxu0 0.0
    %4847 = vmatpush1.msra.mxu0 0.0
    %4848 = vmatprep.subr.mxu0 0.0
    %4849 = vmatpush1.msra.mxu0 0.0
    %4850 = vmatprep.subr.mxu0 0.0
    %4851 = vmatpush1.msra.mxu0 0.0
    %4852 = vmatprep.subr.mxu0 0.0
    %4853 = vmatpush1.msra.mxu0 0.0
    %4854 = vmatprep.subr.mxu0 0.0
    %4855 = vmatpush1.msra.mxu0 0.0
    %4856 = vmatprep.subr.mxu0 0.0
    %4857 = vmatpush1.msra.mxu0 0.0
    %4858 = vmatprep.subr.mxu0 0.0
    %4859 = vmatpush1.msra.mxu0 0.0
    %4860 = vmatprep.subr.mxu0 0.0
    %4861 = vmatpush1.msra.mxu0 0.0
    %4862 = vmatprep.subr.mxu0 0.0
    %4863 = vmatpush1.msra.mxu0 0.0
    %4864 = vmatprep.subr.mxu0 0.0
    %4865 = vmatpush1.msra.mxu0 0.0
    %4866 = vmatprep.subr.mxu0 0.0
    %4867 = vmatpush1.msra.mxu0 0.0
    %4868 = vmatprep.subr.mxu0 0.0
    %4869 = vmatpush1.msra.mxu0 0.0
    %4870 = vmatprep.subr.mxu0 0.0
    %4871 = vmatpush1.msra.mxu0 0.0
    %4872 = vmatprep.mubr.f32.mxu0 0.0
    %v4873 = vand.u32 %v4798, 4294901760
    %v4874 = vsub.f32 %v4798, %v4873
    %v4875 = vand.u32 %v4874, 4294901760
    %v4876 = vsub.f32 %v4874, %v4875
    %v4877 = vand.u32 %v4876, 4294901760
    %4878 = vmatmul.mubr.f32.gmra.mrb[0].mxu0 %v4877
    %v4879 = vpop.f32.mrb[0].mxu0
    %v4880 = vadd.f32 %v4795, %v4879
    %v4881 = vpop.f32.mrb[0].mxu0
    %4882 = vdwg.mxu0
    %4883 = vmatprep.subr.mxu0 0.0
    %v4884 = vand.u32 %v4780, 4294901760
    %v4885 = vsub.f32 %v4780, %v4884
    %v4886 = vand.u32 %v4885, 4294901760
    %v4887 = vsub.f32 %v4885, %v4886
    %v4888 = vand.u32 %v4887, 4294901760
    %4889 = vmatpush1.msra.mxu0 %v4888
    %4890 = vmatprep.subr.mxu0 0.0
    %v4891 = vand.u32 %v4781, 4294901760
    %v4892 = vsub.f32 %v4781, %v4891
    %v4893 = vand.u32 %v4892, 4294901760
    %v4894 = vsub.f32 %v4892, %v4893
    %v4895 = vand.u32 %v4894, 4294901760
    %4896 = vmatpush1.msra.mxu0 %v4895
    %4897 = vmatprep.subr.mxu0 0.0
    %v4898 = vand.u32 %v4782, 4294901760
    %v4899 = vsub.f32 %v4782, %v4898
    %v4900 = vand.u32 %v4899, 4294901760
    %v4901 = vsub.f32 %v4899, %v4900
    %v4902 = vand.u32 %v4901, 4294901760
    %4903 = vmatpush1.msra.mxu0 %v4902
    %4904 = vmatprep.subr.mxu0 0.0
    %v4905 = vand.u32 %v4783, 4294901760
    %v4906 = vsub.f32 %v4783, %v4905
    %v4907 = vand.u32 %v4906, 4294901760
    %v4908 = vsub.f32 %v4906, %v4907
    %v4909 = vand.u32 %v4908, 4294901760
    %4910 = vmatpush1.msra.mxu0 %v4909
    %4911 = vmatprep.subr.mxu0 0.0
    %v4912 = vand.u32 %v4784, 4294901760
    %v4913 = vsub.f32 %v4784, %v4912
    %v4914 = vand.u32 %v4913, 4294901760
    %v4915 = vsub.f32 %v4913, %v4914
    %v4916 = vand.u32 %v4915, 4294901760
    %4917 = vmatpush1.msra.mxu0 %v4916
    %4918 = vmatprep.subr.mxu0 0.0
    %v4919 = vand.u32 %v4785, 4294901760
    %v4920 = vsub.f32 %v4785, %v4919
    %v4921 = vand.u32 %v4920, 4294901760
    %v4922 = vsub.f32 %v4920, %v4921
    %v4923 = vand.u32 %v4922, 4294901760
    %4924 = vmatpush1.msra.mxu0 %v4923
    %4925 = vmatprep.subr.mxu0 0.0
    %v4926 = vand.u32 %v4786, 4294901760
    %v4927 = vsub.f32 %v4786, %v4926
    %v4928 = vand.u32 %v4927, 4294901760
    %v4929 = vsub.f32 %v4927, %v4928
    %v4930 = vand.u32 %v4929, 4294901760
    %4931 = vmatpush1.msra.mxu0 %v4930
    %4932 = vmatprep.subr.mxu0 0.0
    %v4933 = vand.u32 %v4787, 4294901760
    %v4934 = vsub.f32 %v4787, %v4933
    %v4935 = vand.u32 %v4934, 4294901760
    %v4936 = vsub.f32 %v4934, %v4935
    %v4937 = vand.u32 %v4936, 4294901760
    %4938 = vmatpush1.msra.mxu0 %v4937
    %4939 = vmatprep.subr.mxu0 0.0
    %4940 = vmatpush1.msra.mxu0 0.0
    %4941 = vmatprep.subr.mxu0 0.0
    %4942 = vmatpush1.msra.mxu0 0.0
    %4943 = vmatprep.subr.mxu0 0.0
    %4944 = vmatpush1.msra.mxu0 0.0
    %4945 = vmatprep.subr.mxu0 0.0
    %4946 = vmatpush1.msra.mxu0 0.0
    %4947 = vmatprep.subr.mxu0 0.0
    %4948 = vmatpush1.msra.mxu0 0.0
    %4949 = vmatprep.subr.mxu0 0.0
    %4950 = vmatpush1.msra.mxu0 0.0
    %4951 = vmatprep.subr.mxu0 0.0
    %4952 = vmatpush1.msra.mxu0 0.0
    %4953 = vmatprep.subr.mxu0 0.0
    %4954 = vmatpush1.msra.mxu0 0.0
    %4955 = vmatprep.subr.mxu0 0.0
    %4956 = vmatpush1.msra.mxu0 0.0
    %4957 = vmatprep.subr.mxu0 0.0
    %4958 = vmatpush1.msra.mxu0 0.0
    %4959 = vmatprep.subr.mxu0 0.0
    %4960 = vmatpush1.msra.mxu0 0.0
    %4961 = vmatprep.subr.mxu0 0.0
    %4962 = vmatpush1.msra.mxu0 0.0
    %4963 = vmatprep.subr.mxu0 0.0
    %4964 = vmatpush1.msra.mxu0 0.0
    %4965 = vmatprep.subr.mxu0 0.0
    %4966 = vmatpush1.msra.mxu0 0.0
    %4967 = vmatprep.subr.mxu0 0.0
    %4968 = vmatpush1.msra.mxu0 0.0
    %4969 = vmatprep.subr.mxu0 0.0
    %4970 = vmatpush1.msra.mxu0 0.0
    %4971 = vmatprep.subr.mxu0 0.0
    %4972 = vmatpush1.msra.mxu0 0.0
    %4973 = vmatprep.subr.mxu0 0.0
    %4974 = vmatpush1.msra.mxu0 0.0
    %4975 = vmatprep.subr.mxu0 0.0
    %4976 = vmatpush1.msra.mxu0 0.0
    %4977 = vmatprep.subr.mxu0 0.0
    %4978 = vmatpush1.msra.mxu0 0.0
    %4979 = vmatprep.subr.mxu0 0.0
    %4980 = vmatpush1.msra.mxu0 0.0
    %4981 = vmatprep.subr.mxu0 0.0
    %4982 = vmatpush1.msra.mxu0 0.0
    %4983 = vmatprep.subr.mxu0 0.0
    %4984 = vmatpush1.msra.mxu0 0.0
    %4985 = vmatprep.subr.mxu0 0.0
    %4986 = vmatpush1.msra.mxu0 0.0
    %4987 = vmatprep.mubr.f32.mxu0 0.0
    %v4988 = vand.u32 %v4798, 4294901760
    %4989 = vmatmul.mubr.f32.gmra.mrb[0].mxu0 %v4988
    %v4990 = vpop.f32.mrb[0].mxu0
    %v4991 = vadd.f32 %v4880, %v4990
    %v4992 = vpop.f32.mrb[0].mxu0
    %4993 = vdwg.mxu0
    %4994 = vmatprep.subr.mxu0 0.0
    %v4995 = vand.u32 %v4780, 4294901760
    %v4996 = vsub.f32 %v4780, %v4995
    %4997 = vmatpush1.msra.mxu0 %v4996
    %4998 = vmatprep.subr.mxu0 0.0
    %v4999 = vand.u32 %v4781, 4294901760
    %v5000 = vsub.f32 %v4781, %v4999
    %5001 = vmatpush1.msra.mxu0 %v5000
    %5002 = vmatprep.subr.mxu0 0.0
    %v5003 = vand.u32 %v4782, 4294901760
    %v5004 = vsub.f32 %v4782, %v5003
    %5005 = vmatpush1.msra.mxu0 %v5004
    %5006 = vmatprep.subr.mxu0 0.0
    %v5007 = vand.u32 %v4783, 4294901760
    %v5008 = vsub.f32 %v4783, %v5007
    %5009 = vmatpush1.msra.mxu0 %v5008
    %5010 = vmatprep.subr.mxu0 0.0
    %v5011 = vand.u32 %v4784, 4294901760
    %v5012 = vsub.f32 %v4784, %v5011
    %5013 = vmatpush1.msra.mxu0 %v5012
    %5014 = vmatprep.subr.mxu0 0.0
    %v5015 = vand.u32 %v4785, 4294901760
    %v5016 = vsub.f32 %v4785, %v5015
    %5017 = vmatpush1.msra.mxu0 %v5016
    %5018 = vmatprep.subr.mxu0 0.0
    %v5019 = vand.u32 %v4786, 4294901760
    %v5020 = vsub.f32 %v4786, %v5019
    %5021 = vmatpush1.msra.mxu0 %v5020
    %5022 = vmatprep.subr.mxu0 0.0
    %v5023 = vand.u32 %v4787, 4294901760
    %v5024 = vsub.f32 %v4787, %v5023
    %5025 = vmatpush1.msra.mxu0 %v5024
    %5026 = vmatprep.subr.mxu0 0.0
    %5027 = vmatpush1.msra.mxu0 0.0
    %5028 = vmatprep.subr.mxu0 0.0
    %5029 = vmatpush1.msra.mxu0 0.0
    %5030 = vmatprep.subr.mxu0 0.0
    %5031 = vmatpush1.msra.mxu0 0.0
    %5032 = vmatprep.subr.mxu0 0.0
    %5033 = vmatpush1.msra.mxu0 0.0
    %5034 = vmatprep.subr.mxu0 0.0
    %5035 = vmatpush1.msra.mxu0 0.0
    %5036 = vmatprep.subr.mxu0 0.0
    %5037 = vmatpush1.msra.mxu0 0.0
    %5038 = vmatprep.subr.mxu0 0.0
    %5039 = vmatpush1.msra.mxu0 0.0
    %5040 = vmatprep.subr.mxu0 0.0
    %5041 = vmatpush1.msra.mxu0 0.0
    %5042 = vmatprep.subr.mxu0 0.0
    %5043 = vmatpush1.msra.mxu0 0.0
    %5044 = vmatprep.subr.mxu0 0.0
    %5045 = vmatpush1.msra.mxu0 0.0
    %5046 = vmatprep.subr.mxu0 0.0
    %5047 = vmatpush1.msra.mxu0 0.0
    %5048 = vmatprep.subr.mxu0 0.0
    %5049 = vmatpush1.msra.mxu0 0.0
    %5050 = vmatprep.subr.mxu0 0.0
    %5051 = vmatpush1.msra.mxu0 0.0
    %5052 = vmatprep.subr.mxu0 0.0
    %5053 = vmatpush1.msra.mxu0 0.0
    %5054 = vmatprep.subr.mxu0 0.0
    %5055 = vmatpush1.msra.mxu0 0.0
    %5056 = vmatprep.subr.mxu0 0.0
    %5057 = vmatpush1.msra.mxu0 0.0
    %5058 = vmatprep.subr.mxu0 0.0
    %5059 = vmatpush1.msra.mxu0 0.0
    %5060 = vmatprep.subr.mxu0 0.0
    %5061 = vmatpush1.msra.mxu0 0.0
    %5062 = vmatprep.subr.mxu0 0.0
    %5063 = vmatpush1.msra.mxu0 0.0
    %5064 = vmatprep.subr.mxu0 0.0
    %5065 = vmatpush1.msra.mxu0 0.0
    %5066 = vmatprep.subr.mxu0 0.0
    %5067 = vmatpush1.msra.mxu0 0.0
    %5068 = vmatprep.subr.mxu0 0.0
    %5069 = vmatpush1.msra.mxu0 0.0
    %5070 = vmatprep.subr.mxu0 0.0
    %5071 = vmatpush1.msra.mxu0 0.0
    %5072 = vmatprep.subr.mxu0 0.0
    %5073 = vmatpush1.msra.mxu0 0.0
    %5074 = vmatprep.mubr.f32.mxu0 0.0
    %v5075 = vand.u32 %v4798, 4294901760
    %v5076 = vsub.f32 %v4798, %v5075
    %5077 = vmatmul.mubr.f32.gmra.mrb[0].mxu0 %v5076
    %v5078 = vpop.f32.mrb[0].mxu0
    %v5079 = vadd.f32 %v4991, %v5078
    %v5080 = vpop.f32.mrb[0].mxu0
    %5081 = vdwg.mxu0
    %5082 = vmatprep.subr.mxu0 0.0
    %v5083 = vand.u32 %v4780, 4294901760
    %5084 = vmatpush1.msra.mxu0 %v5083
    %5085 = vmatprep.subr.mxu0 0.0
    %v5086 = vand.u32 %v4781, 4294901760
    %5087 = vmatpush1.msra.mxu0 %v5086
    %5088 = vmatprep.subr.mxu0 0.0
    %v5089 = vand.u32 %v4782, 4294901760
    %5090 = vmatpush1.msra.mxu0 %v5089
    %5091 = vmatprep.subr.mxu0 0.0
    %v5092 = vand.u32 %v4783, 4294901760
    %5093 = vmatpush1.msra.mxu0 %v5092
    %5094 = vmatprep.subr.mxu0 0.0
    %v5095 = vand.u32 %v4784, 4294901760
    %5096 = vmatpush1.msra.mxu0 %v5095
    %5097 = vmatprep.subr.mxu0 0.0
    %v5098 = vand.u32 %v4785, 4294901760
    %5099 = vmatpush1.msra.mxu0 %v5098
    %5100 = vmatprep.subr.mxu0 0.0
    %v5101 = vand.u32 %v4786, 4294901760
    %5102 = vmatpush1.msra.mxu0 %v5101
    %5103 = vmatprep.subr.mxu0 0.0
    %v5104 = vand.u32 %v4787, 4294901760
    %5105 = vmatpush1.msra.mxu0 %v5104
    %5106 = vmatprep.subr.mxu0 0.0
    %5107 = vmatpush1.msra.mxu0 0.0
    %5108 = vmatprep.subr.mxu0 0.0
    %5109 = vmatpush1.msra.mxu0 0.0
    %5110 = vmatprep.subr.mxu0 0.0
    %5111 = vmatpush1.msra.mxu0 0.0
    %5112 = vmatprep.subr.mxu0 0.0
    %5113 = vmatpush1.msra.mxu0 0.0
    %5114 = vmatprep.subr.mxu0 0.0
    %5115 = vmatpush1.msra.mxu0 0.0
    %5116 = vmatprep.subr.mxu0 0.0
    %5117 = vmatpush1.msra.mxu0 0.0
    %5118 = vmatprep.subr.mxu0 0.0
    %5119 = vmatpush1.msra.mxu0 0.0
    %5120 = vmatprep.subr.mxu0 0.0
    %5121 = vmatpush1.msra.mxu0 0.0
    %5122 = vmatprep.subr.mxu0 0.0
    %5123 = vmatpush1.msra.mxu0 0.0
    %5124 = vmatprep.subr.mxu0 0.0
    %5125 = vmatpush1.msra.mxu0 0.0
    %5126 = vmatprep.subr.mxu0 0.0
    %5127 = vmatpush1.msra.mxu0 0.0
    %5128 = vmatprep.subr.mxu0 0.0
    %5129 = vmatpush1.msra.mxu0 0.0
    %5130 = vmatprep.subr.mxu0 0.0
    %5131 = vmatpush1.msra.mxu0 0.0
    %5132 = vmatprep.subr.mxu0 0.0
    %5133 = vmatpush1.msra.mxu0 0.0
    %5134 = vmatprep.subr.mxu0 0.0
    %5135 = vmatpush1.msra.mxu0 0.0
    %5136 = vmatprep.subr.mxu0 0.0
    %5137 = vmatpush1.msra.mxu0 0.0
    %5138 = vmatprep.subr.mxu0 0.0
    %5139 = vmatpush1.msra.mxu0 0.0
    %5140 = vmatprep.subr.mxu0 0.0
    %5141 = vmatpush1.msra.mxu0 0.0
    %5142 = vmatprep.subr.mxu0 0.0
    %5143 = vmatpush1.msra.mxu0 0.0
    %5144 = vmatprep.subr.mxu0 0.0
    %5145 = vmatpush1.msra.mxu0 0.0
    %5146 = vmatprep.subr.mxu0 0.0
    %5147 = vmatpush1.msra.mxu0 0.0
    %5148 = vmatprep.subr.mxu0 0.0
    %5149 = vmatpush1.msra.mxu0 0.0
    %5150 = vmatprep.subr.mxu0 0.0
    %5151 = vmatpush1.msra.mxu0 0.0
    %5152 = vmatprep.subr.mxu0 0.0
    %5153 = vmatpush1.msra.mxu0 0.0
    %5154 = vmatprep.mubr.f32.mxu0 0.0
    %v5155 = vand.u32 %v4798, 4294901760
    %v5156 = vsub.f32 %v4798, %v5155
    %v5157 = vand.u32 %v5156, 4294901760
    %5158 = vmatmul.mubr.f32.gmra.mrb[0].mxu0 %v5157
    %v5159 = vpop.f32.mrb[0].mxu0
    %v5160 = vadd.f32 %v5079, %v5159
    %v5161 = vpop.f32.mrb[0].mxu0
    %5162 = vdwg.mxu0
    %5163 = vmatprep.subr.mxu0 0.0
    %v5164 = vand.u32 %v4780, 4294901760
    %v5165 = vsub.f32 %v4780, %v5164
    %v5166 = vand.u32 %v5165, 4294901760
    %5167 = vmatpush1.msra.mxu0 %v5166
    %5168 = vmatprep.subr.mxu0 0.0
    %v5169 = vand.u32 %v4781, 4294901760
    %v5170 = vsub.f32 %v4781, %v5169
    %v5171 = vand.u32 %v5170, 4294901760
    %5172 = vmatpush1.msra.mxu0 %v5171
    %5173 = vmatprep.subr.mxu0 0.0
    %v5174 = vand.u32 %v4782, 4294901760
    %v5175 = vsub.f32 %v4782, %v5174
    %v5176 = vand.u32 %v5175, 4294901760
    %5177 = vmatpush1.msra.mxu0 %v5176
    %5178 = vmatprep.subr.mxu0 0.0
    %v5179 = vand.u32 %v4783, 4294901760
    %v5180 = vsub.f32 %v4783, %v5179
    %v5181 = vand.u32 %v5180, 4294901760
    %5182 = vmatpush1.msra.mxu0 %v5181
    %5183 = vmatprep.subr.mxu0 0.0
    %v5184 = vand.u32 %v4784, 4294901760
    %v5185 = vsub.f32 %v4784, %v5184
    %v5186 = vand.u32 %v5185, 4294901760
    %5187 = vmatpush1.msra.mxu0 %v5186
    %5188 = vmatprep.subr.mxu0 0.0
    %v5189 = vand.u32 %v4785, 4294901760
    %v5190 = vsub.f32 %v4785, %v5189
    %v5191 = vand.u32 %v5190, 4294901760
    %5192 = vmatpush1.msra.mxu0 %v5191
    %5193 = vmatprep.subr.mxu0 0.0
    %v5194 = vand.u32 %v4786, 4294901760
    %v5195 = vsub.f32 %v4786, %v5194
    %v5196 = vand.u32 %v5195, 4294901760
    %5197 = vmatpush1.msra.mxu0 %v5196
    %5198 = vmatprep.subr.mxu0 0.0
    %v5199 = vand.u32 %v4787, 4294901760
    %v5200 = vsub.f32 %v4787, %v5199
    %v5201 = vand.u32 %v5200, 4294901760
    %5202 = vmatpush1.msra.mxu0 %v5201
    %5203 = vmatprep.subr.mxu0 0.0
    %5204 = vmatpush1.msra.mxu0 0.0
    %5205 = vmatprep.subr.mxu0 0.0
    %5206 = vmatpush1.msra.mxu0 0.0
    %5207 = vmatprep.subr.mxu0 0.0
    %5208 = vmatpush1.msra.mxu0 0.0
    %5209 = vmatprep.subr.mxu0 0.0
    %5210 = vmatpush1.msra.mxu0 0.0
    %5211 = vmatprep.subr.mxu0 0.0
    %5212 = vmatpush1.msra.mxu0 0.0
    %5213 = vmatprep.subr.mxu0 0.0
    %5214 = vmatpush1.msra.mxu0 0.0
    %5215 = vmatprep.subr.mxu0 0.0
    %5216 = vmatpush1.msra.mxu0 0.0
    %5217 = vmatprep.subr.mxu0 0.0
    %5218 = vmatpush1.msra.mxu0 0.0
    %5219 = vmatprep.subr.mxu0 0.0
    %5220 = vmatpush1.msra.mxu0 0.0
    %5221 = vmatprep.subr.mxu0 0.0
    %5222 = vmatpush1.msra.mxu0 0.0
    %5223 = vmatprep.subr.mxu0 0.0
    %5224 = vmatpush1.msra.mxu0 0.0
    %5225 = vmatprep.subr.mxu0 0.0
    %5226 = vmatpush1.msra.mxu0 0.0
    %5227 = vmatprep.subr.mxu0 0.0
    %5228 = vmatpush1.msra.mxu0 0.0
    %5229 = vmatprep.subr.mxu0 0.0
    %5230 = vmatpush1.msra.mxu0 0.0
    %5231 = vmatprep.subr.mxu0 0.0
    %5232 = vmatpush1.msra.mxu0 0.0
    %5233 = vmatprep.subr.mxu0 0.0
    %5234 = vmatpush1.msra.mxu0 0.0
    %5235 = vmatprep.subr.mxu0 0.0
    %5236 = vmatpush1.msra.mxu0 0.0
    %5237 = vmatprep.subr.mxu0 0.0
    %5238 = vmatpush1.msra.mxu0 0.0
    %5239 = vmatprep.subr.mxu0 0.0
    %5240 = vmatpush1.msra.mxu0 0.0
    %5241 = vmatprep.subr.mxu0 0.0
    %5242 = vmatpush1.msra.mxu0 0.0
    %5243 = vmatprep.subr.mxu0 0.0
    %5244 = vmatpush1.msra.mxu0 0.0
    %5245 = vmatprep.subr.mxu0 0.0
    %5246 = vmatpush1.msra.mxu0 0.0
    %5247 = vmatprep.subr.mxu0 0.0
    %5248 = vmatpush1.msra.mxu0 0.0
    %5249 = vmatprep.subr.mxu0 0.0
    %5250 = vmatpush1.msra.mxu0 0.0
    %5251 = vmatprep.mubr.f32.mxu0 0.0
    %v5252 = vand.u32 %v4798, 4294901760
    %5253 = vmatmul.mubr.f32.gmra.mrb[0].mxu0 %v5252
    %v5254 = vpop.f32.mrb[0].mxu0
    %v5255 = vadd.f32 %v5160, %v5254
    %v5256 = vpop.f32.mrb[0].mxu0
    %5257 = vdwg.mxu0
    %5258 = vmatprep.subr.mxu0 0.0
    %v5259 = vand.u32 %v4780, 4294901760
    %5260 = vmatpush1.msra.mxu0 %v5259
    %5261 = vmatprep.subr.mxu0 0.0
    %v5262 = vand.u32 %v4781, 4294901760
    %5263 = vmatpush1.msra.mxu0 %v5262
    %5264 = vmatprep.subr.mxu0 0.0
    %v5265 = vand.u32 %v4782, 4294901760
    %5266 = vmatpush1.msra.mxu0 %v5265
    %5267 = vmatprep.subr.mxu0 0.0
    %v5268 = vand.u32 %v4783, 4294901760
    %5269 = vmatpush1.msra.mxu0 %v5268
    %5270 = vmatprep.subr.mxu0 0.0
    %v5271 = vand.u32 %v4784, 4294901760
    %5272 = vmatpush1.msra.mxu0 %v5271
    %5273 = vmatprep.subr.mxu0 0.0
    %v5274 = vand.u32 %v4785, 4294901760
    %5275 = vmatpush1.msra.mxu0 %v5274
    %5276 = vmatprep.subr.mxu0 0.0
    %v5277 = vand.u32 %v4786, 4294901760
    %5278 = vmatpush1.msra.mxu0 %v5277
    %5279 = vmatprep.subr.mxu0 0.0
    %v5280 = vand.u32 %v4787, 4294901760
    %5281 = vmatpush1.msra.mxu0 %v5280
    %5282 = vmatprep.subr.mxu0 0.0
    %5283 = vmatpush1.msra.mxu0 0.0
    %5284 = vmatprep.subr.mxu0 0.0
    %5285 = vmatpush1.msra.mxu0 0.0
    %5286 = vmatprep.subr.mxu0 0.0
    %5287 = vmatpush1.msra.mxu0 0.0
    %5288 = vmatprep.subr.mxu0 0.0
    %5289 = vmatpush1.msra.mxu0 0.0
    %5290 = vmatprep.subr.mxu0 0.0
    %5291 = vmatpush1.msra.mxu0 0.0
    %5292 = vmatprep.subr.mxu0 0.0
    %5293 = vmatpush1.msra.mxu0 0.0
    %5294 = vmatprep.subr.mxu0 0.0
    %5295 = vmatpush1.msra.mxu0 0.0
    %5296 = vmatprep.subr.mxu0 0.0
    %5297 = vmatpush1.msra.mxu0 0.0
    %5298 = vmatprep.subr.mxu0 0.0
    %5299 = vmatpush1.msra.mxu0 0.0
    %5300 = vmatprep.subr.mxu0 0.0
    %5301 = vmatpush1.msra.mxu0 0.0
    %5302 = vmatprep.subr.mxu0 0.0
    %5303 = vmatpush1.msra.mxu0 0.0
    %5304 = vmatprep.subr.mxu0 0.0
    %5305 = vmatpush1.msra.mxu0 0.0
    %5306 = vmatprep.subr.mxu0 0.0
    %5307 = vmatpush1.msra.mxu0 0.0
    %5308 = vmatprep.subr.mxu0 0.0
    %5309 = vmatpush1.msra.mxu0 0.0
    %5310 = vmatprep.subr.mxu0 0.0
    %5311 = vmatpush1.msra.mxu0 0.0
    %5312 = vmatprep.subr.mxu0 0.0
    %5313 = vmatpush1.msra.mxu0 0.0
    %5314 = vmatprep.subr.mxu0 0.0
    %5315 = vmatpush1.msra.mxu0 0.0
    %5316 = vmatprep.subr.mxu0 0.0
    %5317 = vmatpush1.msra.mxu0 0.0
    %5318 = vmatprep.subr.mxu0 0.0
    %5319 = vmatpush1.msra.mxu0 0.0
    %5320 = vmatprep.subr.mxu0 0.0
    %5321 = vmatpush1.msra.mxu0 0.0
    %5322 = vmatprep.subr.mxu0 0.0
    %5323 = vmatpush1.msra.mxu0 0.0
    %5324 = vmatprep.subr.mxu0 0.0
    %5325 = vmatpush1.msra.mxu0 0.0
    %5326 = vmatprep.subr.mxu0 0.0
    %5327 = vmatpush1.msra.mxu0 0.0
    %5328 = vmatprep.subr.mxu0 0.0
    %5329 = vmatpush1.msra.mxu0 0.0
    %5330 = vmatprep.mubr.f32.mxu0 0.0
    %v5331 = vand.u32 %v4798, 4294901760
    %5332 = vmatmul.mubr.f32.gmra.mrb[0].mxu0 %v5331
    %v5333 = vpop.f32.mrb[0].mxu0
    %v5334 = vadd.f32 %v5255, %v5333
    %v5335 = vpop.f32.mrb[0].mxu0
    %5336 = vdwg.mxu0
    %v5337 = vsel %vm1079, %v5334, 0.0
    %v5338 = vrot.slane %v5337, 4
    %v5339 = vadd.f32 %v5337, %v5338
    %v5340 = vrot.slane %v5339, 2
    %v5341 = vadd.f32 %v5339, %v5340
    %v5342 = vrot.slane %v5341, 1
    %v5343 = vadd.f32 %v5341, %v5342
    %v5344 = vmul.f32 %v5343, %v4209
    %v5345 = vsub.f32 %v5334, %v5344
    %v5346 = vmul.f32 %v5345, %v5345
    %v5347 = vsel %vm1079, %v5346, 0.0
    %v5348 = vrot.slane %v5347, 4
    %v5349 = vadd.f32 %v5347, %v5348
    %v5350 = vrot.slane %v5349, 2
    %v5351 = vadd.f32 %v5349, %v5350
    %v5352 = vrot.slane %v5351, 1
    %v5353 = vadd.f32 %v5351, %v5352
    %v5354 = vmul.f32 %v5353, %v4209
    %v5355 = vadd.f32 %v5354, 1e-05
    %v5356 = vrsqrt.pop %v5355
    %v5357 = vmul.f32 %v5345, %v5356
    %v5359 = vlaneseq
    %v5360 = vshrl.u32 %v5359, 7
    %v5361 = vsub.s32 0, %v5360
    %v5362 = vrot.slane %v4789, %v5361
    %v5364 = vmul.f32 %v5357, %v5362
    %v5366 = vlaneseq
    %v5367 = vshrl.u32 %v5366, 7
    %v5368 = vsub.s32 0, %v5367
    %v5369 = vrot.slane %v4790, %v5368
    %v5371 = vadd.f32 %v5364, %v5369
    %vm5372 = vcmp.ge.f32.partialorder %v5371, 0.0
    %v5373 = vmul.f32 %v5371, 0.01
    %v5374 = vsel %vm5372, %v5371, %v5373
    %v5375 = vld [vmem:[%s63] sm:$0xff]
    %v5376 = vld [vmem:[%s63 + $0x8] sm:$0xff]
    %v5377 = vld [vmem:[%s63 + $0x10] sm:$0xff]
    %v5378 = vld [vmem:[%s63 + $0x18] sm:$0xff]
    %v5379 = vld [vmem:[%s63 + $0x20] sm:$0xff]
    %v5380 = vld [vmem:[%s63 + $0x28] sm:$0xff]
    %v5381 = vld [vmem:[%s63 + $0x30] sm:$0xff]
    %v5382 = vld [vmem:[%s63 + $0x38] sm:$0xff]
    %v5383 = vld [vmem:[%s65] sm:$0x1]
    %v5384 = vld [vmem:[%s67] sm:$0x1]
    %v5385 = vld [vmem:[#allocation41] sm:$0x1]
    %v5387 = vlaneseq
    %v5388 = vshrl.u32 %v5387, 7
    %v5389 = vsub.s32 0, %v5388
    %v5390 = vrot.slane %v5383, %v5389
    %v5393 = vsel %vm1079, %v5374, 0
    %5395 = vmatprep.subr.mxu0 0.0
    %v5396 = vand.u32 %v5375, 4294901760
    %5397 = vmatpush1.msra.mxu0 %v5396
    %5398 = vmatprep.subr.mxu0 0.0
    %v5399 = vand.u32 %v5376, 4294901760
    %5400 = vmatpush1.msra.mxu0 %v5399
    %5401 = vmatprep.subr.mxu0 0.0
    %v5402 = vand.u32 %v5377, 4294901760
    %5403 = vmatpush1.msra.mxu0 %v5402
    %5404 = vmatprep.subr.mxu0 0.0
    %v5405 = vand.u32 %v5378, 4294901760
    %5406 = vmatpush1.msra.mxu0 %v5405
    %5407 = vmatprep.subr.mxu0 0.0
    %v5408 = vand.u32 %v5379, 4294901760
    %5409 = vmatpush1.msra.mxu0 %v5408
    %5410 = vmatprep.subr.mxu0 0.0
    %v5411 = vand.u32 %v5380, 4294901760
    %5412 = vmatpush1.msra.mxu0 %v5411
    %5413 = vmatprep.subr.mxu0 0.0
    %v5414 = vand.u32 %v5381, 4294901760
    %5415 = vmatpush1.msra.mxu0 %v5414
    %5416 = vmatprep.subr.mxu0 0.0
    %v5417 = vand.u32 %v5382, 4294901760
    %5418 = vmatpush1.msra.mxu0 %v5417
    %5419 = vmatprep.subr.mxu0 0.0
    %5420 = vmatpush1.msra.mxu0 0.0
    %5421 = vmatprep.subr.mxu0 0.0
    %5422 = vmatpush1.msra.mxu0 0.0
    %5423 = vmatprep.subr.mxu0 0.0
    %5424 = vmatpush1.msra.mxu0 0.0
    %5425 = vmatprep.subr.mxu0 0.0
    %5426 = vmatpush1.msra.mxu0 0.0
    %5427 = vmatprep.subr.mxu0 0.0
    %5428 = vmatpush1.msra.mxu0 0.0
    %5429 = vmatprep.subr.mxu0 0.0
    %5430 = vmatpush1.msra.mxu0 0.0
    %5431 = vmatprep.subr.mxu0 0.0
    %5432 = vmatpush1.msra.mxu0 0.0
    %5433 = vmatprep.subr.mxu0 0.0
    %5434 = vmatpush1.msra.mxu0 0.0
    %5435 = vmatprep.subr.mxu0 0.0
    %5436 = vmatpush1.msra.mxu0 0.0
    %5437 = vmatprep.subr.mxu0 0.0
    %5438 = vmatpush1.msra.mxu0 0.0
    %5439 = vmatprep.subr.mxu0 0.0
    %5440 = vmatpush1.msra.mxu0 0.0
    %5441 = vmatprep.subr.mxu0 0.0
    %5442 = vmatpush1.msra.mxu0 0.0
    %5443 = vmatprep.subr.mxu0 0.0
    %5444 = vmatpush1.msra.mxu0 0.0
    %5445 = vmatprep.subr.mxu0 0.0
    %5446 = vmatpush1.msra.mxu0 0.0
    %5447 = vmatprep.subr.mxu0 0.0
    %5448 = vmatpush1.msra.mxu0 0.0
    %5449 = vmatprep.subr.mxu0 0.0
    %5450 = vmatpush1.msra.mxu0 0.0
    %5451 = vmatprep.subr.mxu0 0.0
    %5452 = vmatpush1.msra.mxu0 0.0
    %5453 = vmatprep.subr.mxu0 0.0
    %5454 = vmatpush1.msra.mxu0 0.0
    %5455 = vmatprep.subr.mxu0 0.0
    %5456 = vmatpush1.msra.mxu0 0.0
    %5457 = vmatprep.subr.mxu0 0.0
    %5458 = vmatpush1.msra.mxu0 0.0
    %5459 = vmatprep.subr.mxu0 0.0
    %5460 = vmatpush1.msra.mxu0 0.0
    %5461 = vmatprep.subr.mxu0 0.0
    %5462 = vmatpush1.msra.mxu0 0.0
    %5463 = vmatprep.subr.mxu0 0.0
    %5464 = vmatpush1.msra.mxu0 0.0
    %5465 = vmatprep.subr.mxu0 0.0
    %5466 = vmatpush1.msra.mxu0 0.0
    %5467 = vmatprep.mubr.f32.mxu0 0.0
    %v5468 = vand.u32 %v5393, 4294901760
    %v5469 = vsub.f32 %v5393, %v5468
    %v5470 = vand.u32 %v5469, 4294901760
    %v5471 = vsub.f32 %v5469, %v5470
    %v5472 = vand.u32 %v5471, 4294901760
    %5473 = vmatmul.mubr.f32.gmra.mrb[0].mxu0 %v5472
    %v5474 = vpop.f32.mrb[0].mxu0
    %v5475 = vadd.f32 %v5390, %v5474
    %v5476 = vpop.f32.mrb[0].mxu0
    %5477 = vdwg.mxu0
    %5478 = vmatprep.subr.mxu0 0.0
    %v5479 = vand.u32 %v5375, 4294901760
    %v5480 = vsub.f32 %v5375, %v5479
    %v5481 = vand.u32 %v5480, 4294901760
    %v5482 = vsub.f32 %v5480, %v5481
    %v5483 = vand.u32 %v5482, 4294901760
    %5484 = vmatpush1.msra.mxu0 %v5483
    %5485 = vmatprep.subr.mxu0 0.0
    %v5486 = vand.u32 %v5376, 4294901760
    %v5487 = vsub.f32 %v5376, %v5486
    %v5488 = vand.u32 %v5487, 4294901760
    %v5489 = vsub.f32 %v5487, %v5488
    %v5490 = vand.u32 %v5489, 4294901760
    %5491 = vmatpush1.msra.mxu0 %v5490
    %5492 = vmatprep.subr.mxu0 0.0
    %v5493 = vand.u32 %v5377, 4294901760
    %v5494 = vsub.f32 %v5377, %v5493
    %v5495 = vand.u32 %v5494, 4294901760
    %v5496 = vsub.f32 %v5494, %v5495
    %v5497 = vand.u32 %v5496, 4294901760
    %5498 = vmatpush1.msra.mxu0 %v5497
    %5499 = vmatprep.subr.mxu0 0.0
    %v5500 = vand.u32 %v5378, 4294901760
    %v5501 = vsub.f32 %v5378, %v5500
    %v5502 = vand.u32 %v5501, 4294901760
    %v5503 = vsub.f32 %v5501, %v5502
    %v5504 = vand.u32 %v5503, 4294901760
    %5505 = vmatpush1.msra.mxu0 %v5504
    %5506 = vmatprep.subr.mxu0 0.0
    %v5507 = vand.u32 %v5379, 4294901760
    %v5508 = vsub.f32 %v5379, %v5507
    %v5509 = vand.u32 %v5508, 4294901760
    %v5510 = vsub.f32 %v5508, %v5509
    %v5511 = vand.u32 %v5510, 4294901760
    %5512 = vmatpush1.msra.mxu0 %v5511
    %5513 = vmatprep.subr.mxu0 0.0
    %v5514 = vand.u32 %v5380, 4294901760
    %v5515 = vsub.f32 %v5380, %v5514
    %v5516 = vand.u32 %v5515, 4294901760
    %v5517 = vsub.f32 %v5515, %v5516
    %v5518 = vand.u32 %v5517, 4294901760
    %5519 = vmatpush1.msra.mxu0 %v5518
    %5520 = vmatprep.subr.mxu0 0.0
    %v5521 = vand.u32 %v5381, 4294901760
    %v5522 = vsub.f32 %v5381, %v5521
    %v5523 = vand.u32 %v5522, 4294901760
    %v5524 = vsub.f32 %v5522, %v5523
    %v5525 = vand.u32 %v5524, 4294901760
    %5526 = vmatpush1.msra.mxu0 %v5525
    %5527 = vmatprep.subr.mxu0 0.0
    %v5528 = vand.u32 %v5382, 4294901760
    %v5529 = vsub.f32 %v5382, %v5528
    %v5530 = vand.u32 %v5529, 4294901760
    %v5531 = vsub.f32 %v5529, %v5530
    %v5532 = vand.u32 %v5531, 4294901760
    %5533 = vmatpush1.msra.mxu0 %v5532
    %5534 = vmatprep.subr.mxu0 0.0
    %5535 = vmatpush1.msra.mxu0 0.0
    %5536 = vmatprep.subr.mxu0 0.0
    %5537 = vmatpush1.msra.mxu0 0.0
    %5538 = vmatprep.subr.mxu0 0.0
    %5539 = vmatpush1.msra.mxu0 0.0
    %5540 = vmatprep.subr.mxu0 0.0
    %5541 = vmatpush1.msra.mxu0 0.0
    %5542 = vmatprep.subr.mxu0 0.0
    %5543 = vmatpush1.msra.mxu0 0.0
    %5544 = vmatprep.subr.mxu0 0.0
    %5545 = vmatpush1.msra.mxu0 0.0
    %5546 = vmatprep.subr.mxu0 0.0
    %5547 = vmatpush1.msra.mxu0 0.0
    %5548 = vmatprep.subr.mxu0 0.0
    %5549 = vmatpush1.msra.mxu0 0.0
    %5550 = vmatprep.subr.mxu0 0.0
    %5551 = vmatpush1.msra.mxu0 0.0
    %5552 = vmatprep.subr.mxu0 0.0
    %5553 = vmatpush1.msra.mxu0 0.0
    %5554 = vmatprep.subr.mxu0 0.0
    %5555 = vmatpush1.msra.mxu0 0.0
    %5556 = vmatprep.subr.mxu0 0.0
    %5557 = vmatpush1.msra.mxu0 0.0
    %5558 = vmatprep.subr.mxu0 0.0
    %5559 = vmatpush1.msra.mxu0 0.0
    %5560 = vmatprep.subr.mxu0 0.0
    %5561 = vmatpush1.msra.mxu0 0.0
    %5562 = vmatprep.subr.mxu0 0.0
    %5563 = vmatpush1.msra.mxu0 0.0
    %5564 = vmatprep.subr.mxu0 0.0
    %5565 = vmatpush1.msra.mxu0 0.0
    %5566 = vmatprep.subr.mxu0 0.0
    %5567 = vmatpush1.msra.mxu0 0.0
    %5568 = vmatprep.subr.mxu0 0.0
    %5569 = vmatpush1.msra.mxu0 0.0
    %5570 = vmatprep.subr.mxu0 0.0
    %5571 = vmatpush1.msra.mxu0 0.0
    %5572 = vmatprep.subr.mxu0 0.0
    %5573 = vmatpush1.msra.mxu0 0.0
    %5574 = vmatprep.subr.mxu0 0.0
    %5575 = vmatpush1.msra.mxu0 0.0
    %5576 = vmatprep.subr.mxu0 0.0
    %5577 = vmatpush1.msra.mxu0 0.0
    %5578 = vmatprep.subr.mxu0 0.0
    %5579 = vmatpush1.msra.mxu0 0.0
    %5580 = vmatprep.subr.mxu0 0.0
    %5581 = vmatpush1.msra.mxu0 0.0
    %5582 = vmatprep.mubr.f32.mxu0 0.0
    %v5583 = vand.u32 %v5393, 4294901760
    %5584 = vmatmul.mubr.f32.gmra.mrb[0].mxu0 %v5583
    %v5585 = vpop.f32.mrb[0].mxu0
    %v5586 = vadd.f32 %v5475, %v5585
    %v5587 = vpop.f32.mrb[0].mxu0
    %5588 = vdwg.mxu0
    %5589 = vmatprep.subr.mxu0 0.0
    %v5590 = vand.u32 %v5375, 4294901760
    %v5591 = vsub.f32 %v5375, %v5590
    %5592 = vmatpush1.msra.mxu0 %v5591
    %5593 = vmatprep.subr.mxu0 0.0
    %v5594 = vand.u32 %v5376, 4294901760
    %v5595 = vsub.f32 %v5376, %v5594
    %5596 = vmatpush1.msra.mxu0 %v5595
    %5597 = vmatprep.subr.mxu0 0.0
    %v5598 = vand.u32 %v5377, 4294901760
    %v5599 = vsub.f32 %v5377, %v5598
    %5600 = vmatpush1.msra.mxu0 %v5599
    %5601 = vmatprep.subr.mxu0 0.0
    %v5602 = vand.u32 %v5378, 4294901760
    %v5603 = vsub.f32 %v5378, %v5602
    %5604 = vmatpush1.msra.mxu0 %v5603
    %5605 = vmatprep.subr.mxu0 0.0
    %v5606 = vand.u32 %v5379, 4294901760
    %v5607 = vsub.f32 %v5379, %v5606
    %5608 = vmatpush1.msra.mxu0 %v5607
    %5609 = vmatprep.subr.mxu0 0.0
    %v5610 = vand.u32 %v5380, 4294901760
    %v5611 = vsub.f32 %v5380, %v5610
    %5612 = vmatpush1.msra.mxu0 %v5611
    %5613 = vmatprep.subr.mxu0 0.0
    %v5614 = vand.u32 %v5381, 4294901760
    %v5615 = vsub.f32 %v5381, %v5614
    %5616 = vmatpush1.msra.mxu0 %v5615
    %5617 = vmatprep.subr.mxu0 0.0
    %v5618 = vand.u32 %v5382, 4294901760
    %v5619 = vsub.f32 %v5382, %v5618
    %5620 = vmatpush1.msra.mxu0 %v5619
    %5621 = vmatprep.subr.mxu0 0.0
    %5622 = vmatpush1.msra.mxu0 0.0
    %5623 = vmatprep.subr.mxu0 0.0
    %5624 = vmatpush1.msra.mxu0 0.0
    %5625 = vmatprep.subr.mxu0 0.0
    %5626 = vmatpush1.msra.mxu0 0.0
    %5627 = vmatprep.subr.mxu0 0.0
    %5628 = vmatpush1.msra.mxu0 0.0
    %5629 = vmatprep.subr.mxu0 0.0
    %5630 = vmatpush1.msra.mxu0 0.0
    %5631 = vmatprep.subr.mxu0 0.0
    %5632 = vmatpush1.msra.mxu0 0.0
    %5633 = vmatprep.subr.mxu0 0.0
    %5634 = vmatpush1.msra.mxu0 0.0
    %5635 = vmatprep.subr.mxu0 0.0
    %5636 = vmatpush1.msra.mxu0 0.0
    %5637 = vmatprep.subr.mxu0 0.0
    %5638 = vmatpush1.msra.mxu0 0.0
    %5639 = vmatprep.subr.mxu0 0.0
    %5640 = vmatpush1.msra.mxu0 0.0
    %5641 = vmatprep.subr.mxu0 0.0
    %5642 = vmatpush1.msra.mxu0 0.0
    %5643 = vmatprep.subr.mxu0 0.0
    %5644 = vmatpush1.msra.mxu0 0.0
    %5645 = vmatprep.subr.mxu0 0.0
    %5646 = vmatpush1.msra.mxu0 0.0
    %5647 = vmatprep.subr.mxu0 0.0
    %5648 = vmatpush1.msra.mxu0 0.0
    %5649 = vmatprep.subr.mxu0 0.0
    %5650 = vmatpush1.msra.mxu0 0.0
    %5651 = vmatprep.subr.mxu0 0.0
    %5652 = vmatpush1.msra.mxu0 0.0
    %5653 = vmatprep.subr.mxu0 0.0
    %5654 = vmatpush1.msra.mxu0 0.0
    %5655 = vmatprep.subr.mxu0 0.0
    %5656 = vmatpush1.msra.mxu0 0.0
    %5657 = vmatprep.subr.mxu0 0.0
    %5658 = vmatpush1.msra.mxu0 0.0
    %5659 = vmatprep.subr.mxu0 0.0
    %5660 = vmatpush1.msra.mxu0 0.0
    %5661 = vmatprep.subr.mxu0 0.0
    %5662 = vmatpush1.msra.mxu0 0.0
    %5663 = vmatprep.subr.mxu0 0.0
    %5664 = vmatpush1.msra.mxu0 0.0
    %5665 = vmatprep.subr.mxu0 0.0
    %5666 = vmatpush1.msra.mxu0 0.0
    %5667 = vmatprep.subr.mxu0 0.0
    %5668 = vmatpush1.msra.mxu0 0.0
    %5669 = vmatprep.mubr.f32.mxu0 0.0
    %v5670 = vand.u32 %v5393, 4294901760
    %v5671 = vsub.f32 %v5393, %v5670
    %5672 = vmatmul.mubr.f32.gmra.mrb[0].mxu0 %v5671
    %v5673 = vpop.f32.mrb[0].mxu0
    %v5674 = vadd.f32 %v5586, %v5673
    %v5675 = vpop.f32.mrb[0].mxu0
    %5676 = vdwg.mxu0
    %5677 = vmatprep.subr.mxu0 0.0
    %v5678 = vand.u32 %v5375, 4294901760
    %5679 = vmatpush1.msra.mxu0 %v5678
    %5680 = vmatprep.subr.mxu0 0.0
    %v5681 = vand.u32 %v5376, 4294901760
    %5682 = vmatpush1.msra.mxu0 %v5681
    %5683 = vmatprep.subr.mxu0 0.0
    %v5684 = vand.u32 %v5377, 4294901760
    %5685 = vmatpush1.msra.mxu0 %v5684
    %5686 = vmatprep.subr.mxu0 0.0
    %v5687 = vand.u32 %v5378, 4294901760
    %5688 = vmatpush1.msra.mxu0 %v5687
    %5689 = vmatprep.subr.mxu0 0.0
    %v5690 = vand.u32 %v5379, 4294901760
    %5691 = vmatpush1.msra.mxu0 %v5690
    %5692 = vmatprep.subr.mxu0 0.0
    %v5693 = vand.u32 %v5380, 4294901760
    %5694 = vmatpush1.msra.mxu0 %v5693
    %5695 = vmatprep.subr.mxu0 0.0
    %v5696 = vand.u32 %v5381, 4294901760
    %5697 = vmatpush1.msra.mxu0 %v5696
    %5698 = vmatprep.subr.mxu0 0.0
    %v5699 = vand.u32 %v5382, 4294901760
    %5700 = vmatpush1.msra.mxu0 %v5699
    %5701 = vmatprep.subr.mxu0 0.0
    %5702 = vmatpush1.msra.mxu0 0.0
    %5703 = vmatprep.subr.mxu0 0.0
    %5704 = vmatpush1.msra.mxu0 0.0
    %5705 = vmatprep.subr.mxu0 0.0
    %5706 = vmatpush1.msra.mxu0 0.0
    %5707 = vmatprep.subr.mxu0 0.0
    %5708 = vmatpush1.msra.mxu0 0.0
    %5709 = vmatprep.subr.mxu0 0.0
    %5710 = vmatpush1.msra.mxu0 0.0
    %5711 = vmatprep.subr.mxu0 0.0
    %5712 = vmatpush1.msra.mxu0 0.0
    %5713 = vmatprep.subr.mxu0 0.0
    %5714 = vmatpush1.msra.mxu0 0.0
    %5715 = vmatprep.subr.mxu0 0.0
    %5716 = vmatpush1.msra.mxu0 0.0
    %5717 = vmatprep.subr.mxu0 0.0
    %5718 = vmatpush1.msra.mxu0 0.0
    %5719 = vmatprep.subr.mxu0 0.0
    %5720 = vmatpush1.msra.mxu0 0.0
    %5721 = vmatprep.subr.mxu0 0.0
    %5722 = vmatpush1.msra.mxu0 0.0
    %5723 = vmatprep.subr.mxu0 0.0
    %5724 = vmatpush1.msra.mxu0 0.0
    %5725 = vmatprep.subr.mxu0 0.0
    %5726 = vmatpush1.msra.mxu0 0.0
    %5727 = vmatprep.subr.mxu0 0.0
    %5728 = vmatpush1.msra.mxu0 0.0
    %5729 = vmatprep.subr.mxu0 0.0
    %5730 = vmatpush1.msra.mxu0 0.0
    %5731 = vmatprep.subr.mxu0 0.0
    %5732 = vmatpush1.msra.mxu0 0.0
    %5733 = vmatprep.subr.mxu0 0.0
    %5734 = vmatpush1.msra.mxu0 0.0
    %5735 = vmatprep.subr.mxu0 0.0
    %5736 = vmatpush1.msra.mxu0 0.0
    %5737 = vmatprep.subr.mxu0 0.0
    %5738 = vmatpush1.msra.mxu0 0.0
    %5739 = vmatprep.subr.mxu0 0.0
    %5740 = vmatpush1.msra.mxu0 0.0
    %5741 = vmatprep.subr.mxu0 0.0
    %5742 = vmatpush1.msra.mxu0 0.0
    %5743 = vmatprep.subr.mxu0 0.0
    %5744 = vmatpush1.msra.mxu0 0.0
    %5745 = vmatprep.subr.mxu0 0.0
    %5746 = vmatpush1.msra.mxu0 0.0
    %5747 = vmatprep.subr.mxu0 0.0
    %5748 = vmatpush1.msra.mxu0 0.0
    %5749 = vmatprep.mubr.f32.mxu0 0.0
    %v5750 = vand.u32 %v5393, 4294901760
    %v5751 = vsub.f32 %v5393, %v5750
    %v5752 = vand.u32 %v5751, 4294901760
    %5753 = vmatmul.mubr.f32.gmra.mrb[0].mxu0 %v5752
    %v5754 = vpop.f32.mrb[0].mxu0
    %v5755 = vadd.f32 %v5674, %v5754
    %v5756 = vpop.f32.mrb[0].mxu0
    %5757 = vdwg.mxu0
    %5758 = vmatprep.subr.mxu0 0.0
    %v5759 = vand.u32 %v5375, 4294901760
    %v5760 = vsub.f32 %v5375, %v5759
    %v5761 = vand.u32 %v5760, 4294901760
    %5762 = vmatpush1.msra.mxu0 %v5761
    %5763 = vmatprep.subr.mxu0 0.0
    %v5764 = vand.u32 %v5376, 4294901760
    %v5765 = vsub.f32 %v5376, %v5764
    %v5766 = vand.u32 %v5765, 4294901760
    %5767 = vmatpush1.msra.mxu0 %v5766
    %5768 = vmatprep.subr.mxu0 0.0
    %v5769 = vand.u32 %v5377, 4294901760
    %v5770 = vsub.f32 %v5377, %v5769
    %v5771 = vand.u32 %v5770, 4294901760
    %5772 = vmatpush1.msra.mxu0 %v5771
    %5773 = vmatprep.subr.mxu0 0.0
    %v5774 = vand.u32 %v5378, 4294901760
    %v5775 = vsub.f32 %v5378, %v5774
    %v5776 = vand.u32 %v5775, 4294901760
    %5777 = vmatpush1.msra.mxu0 %v5776
    %5778 = vmatprep.subr.mxu0 0.0
    %v5779 = vand.u32 %v5379, 4294901760
    %v5780 = vsub.f32 %v5379, %v5779
    %v5781 = vand.u32 %v5780, 4294901760
    %5782 = vmatpush1.msra.mxu0 %v5781
    %5783 = vmatprep.subr.mxu0 0.0
    %v5784 = vand.u32 %v5380, 4294901760
    %v5785 = vsub.f32 %v5380, %v5784
    %v5786 = vand.u32 %v5785, 4294901760
    %5787 = vmatpush1.msra.mxu0 %v5786
    %5788 = vmatprep.subr.mxu0 0.0
    %v5789 = vand.u32 %v5381, 4294901760
    %v5790 = vsub.f32 %v5381, %v5789
    %v5791 = vand.u32 %v5790, 4294901760
    %5792 = vmatpush1.msra.mxu0 %v5791
    %5793 = vmatprep.subr.mxu0 0.0
    %v5794 = vand.u32 %v5382, 4294901760
    %v5795 = vsub.f32 %v5382, %v5794
    %v5796 = vand.u32 %v5795, 4294901760
    %5797 = vmatpush1.msra.mxu0 %v5796
    %5798 = vmatprep.subr.mxu0 0.0
    %5799 = vmatpush1.msra.mxu0 0.0
    %5800 = vmatprep.subr.mxu0 0.0
    %5801 = vmatpush1.msra.mxu0 0.0
    %5802 = vmatprep.subr.mxu0 0.0
    %5803 = vmatpush1.msra.mxu0 0.0
    %5804 = vmatprep.subr.mxu0 0.0
    %5805 = vmatpush1.msra.mxu0 0.0
    %5806 = vmatprep.subr.mxu0 0.0
    %5807 = vmatpush1.msra.mxu0 0.0
    %5808 = vmatprep.subr.mxu0 0.0
    %5809 = vmatpush1.msra.mxu0 0.0
    %5810 = vmatprep.subr.mxu0 0.0
    %5811 = vmatpush1.msra.mxu0 0.0
    %5812 = vmatprep.subr.mxu0 0.0
    %5813 = vmatpush1.msra.mxu0 0.0
    %5814 = vmatprep.subr.mxu0 0.0
    %5815 = vmatpush1.msra.mxu0 0.0
    %5816 = vmatprep.subr.mxu0 0.0
    %5817 = vmatpush1.msra.mxu0 0.0
    %5818 = vmatprep.subr.mxu0 0.0
    %5819 = vmatpush1.msra.mxu0 0.0
    %5820 = vmatprep.subr.mxu0 0.0
    %5821 = vmatpush1.msra.mxu0 0.0
    %5822 = vmatprep.subr.mxu0 0.0
    %5823 = vmatpush1.msra.mxu0 0.0
    %5824 = vmatprep.subr.mxu0 0.0
    %5825 = vmatpush1.msra.mxu0 0.0
    %5826 = vmatprep.subr.mxu0 0.0
    %5827 = vmatpush1.msra.mxu0 0.0
    %5828 = vmatprep.subr.mxu0 0.0
    %5829 = vmatpush1.msra.mxu0 0.0
    %5830 = vmatprep.subr.mxu0 0.0
    %5831 = vmatpush1.msra.mxu0 0.0
    %5832 = vmatprep.subr.mxu0 0.0
    %5833 = vmatpush1.msra.mxu0 0.0
    %5834 = vmatprep.subr.mxu0 0.0
    %5835 = vmatpush1.msra.mxu0 0.0
    %5836 = vmatprep.subr.mxu0 0.0
    %5837 = vmatpush1.msra.mxu0 0.0
    %5838 = vmatprep.subr.mxu0 0.0
    %5839 = vmatpush1.msra.mxu0 0.0
    %5840 = vmatprep.subr.mxu0 0.0
    %5841 = vmatpush1.msra.mxu0 0.0
    %5842 = vmatprep.subr.mxu0 0.0
    %5843 = vmatpush1.msra.mxu0 0.0
    %5844 = vmatprep.subr.mxu0 0.0
    %5845 = vmatpush1.msra.mxu0 0.0
    %5846 = vmatprep.mubr.f32.mxu0 0.0
    %v5847 = vand.u32 %v5393, 4294901760
    %5848 = vmatmul.mubr.f32.gmra.mrb[0].mxu0 %v5847
    %v5849 = vpop.f32.mrb[0].mxu0
    %v5850 = vadd.f32 %v5755, %v5849
    %v5851 = vpop.f32.mrb[0].mxu0
    %5852 = vdwg.mxu0
    %5853 = vmatprep.subr.mxu0 0.0
    %v5854 = vand.u32 %v5375, 4294901760
    %5855 = vmatpush1.msra.mxu0 %v5854
    %5856 = vmatprep.subr.mxu0 0.0
    %v5857 = vand.u32 %v5376, 4294901760
    %5858 = vmatpush1.msra.mxu0 %v5857
    %5859 = vmatprep.subr.mxu0 0.0
    %v5860 = vand.u32 %v5377, 4294901760
    %5861 = vmatpush1.msra.mxu0 %v5860
    %5862 = vmatprep.subr.mxu0 0.0
    %v5863 = vand.u32 %v5378, 4294901760
    %5864 = vmatpush1.msra.mxu0 %v5863
    %5865 = vmatprep.subr.mxu0 0.0
    %v5866 = vand.u32 %v5379, 4294901760
    %5867 = vmatpush1.msra.mxu0 %v5866
    %5868 = vmatprep.subr.mxu0 0.0
    %v5869 = vand.u32 %v5380, 4294901760
    %5870 = vmatpush1.msra.mxu0 %v5869
    %5871 = vmatprep.subr.mxu0 0.0
    %v5872 = vand.u32 %v5381, 4294901760
    %5873 = vmatpush1.msra.mxu0 %v5872
    %5874 = vmatprep.subr.mxu0 0.0
    %v5875 = vand.u32 %v5382, 4294901760
    %5876 = vmatpush1.msra.mxu0 %v5875
    %5877 = vmatprep.subr.mxu0 0.0
    %5878 = vmatpush1.msra.mxu0 0.0
    %5879 = vmatprep.subr.mxu0 0.0
    %5880 = vmatpush1.msra.mxu0 0.0
    %5881 = vmatprep.subr.mxu0 0.0
    %5882 = vmatpush1.msra.mxu0 0.0
    %5883 = vmatprep.subr.mxu0 0.0
    %5884 = vmatpush1.msra.mxu0 0.0
    %5885 = vmatprep.subr.mxu0 0.0
    %5886 = vmatpush1.msra.mxu0 0.0
    %5887 = vmatprep.subr.mxu0 0.0
    %5888 = vmatpush1.msra.mxu0 0.0
    %5889 = vmatprep.subr.mxu0 0.0
    %5890 = vmatpush1.msra.mxu0 0.0
    %5891 = vmatprep.subr.mxu0 0.0
    %5892 = vmatpush1.msra.mxu0 0.0
    %5893 = vmatprep.subr.mxu0 0.0
    %5894 = vmatpush1.msra.mxu0 0.0
    %5895 = vmatprep.subr.mxu0 0.0
    %5896 = vmatpush1.msra.mxu0 0.0
    %5897 = vmatprep.subr.mxu0 0.0
    %5898 = vmatpush1.msra.mxu0 0.0
    %5899 = vmatprep.subr.mxu0 0.0
    %5900 = vmatpush1.msra.mxu0 0.0
    %5901 = vmatprep.subr.mxu0 0.0
    %5902 = vmatpush1.msra.mxu0 0.0
    %5903 = vmatprep.subr.mxu0 0.0
    %5904 = vmatpush1.msra.mxu0 0.0
    %5905 = vmatprep.subr.mxu0 0.0
    %5906 = vmatpush1.msra.mxu0 0.0
    %5907 = vmatprep.subr.mxu0 0.0
    %5908 = vmatpush1.msra.mxu0 0.0
    %5909 = vmatprep.subr.mxu0 0.0
    %5910 = vmatpush1.msra.mxu0 0.0
    %5911 = vmatprep.subr.mxu0 0.0
    %5912 = vmatpush1.msra.mxu0 0.0
    %5913 = vmatprep.subr.mxu0 0.0
    %5914 = vmatpush1.msra.mxu0 0.0
    %5915 = vmatprep.subr.mxu0 0.0
    %5916 = vmatpush1.msra.mxu0 0.0
    %5917 = vmatprep.subr.mxu0 0.0
    %5918 = vmatpush1.msra.mxu0 0.0
    %5919 = vmatprep.subr.mxu0 0.0
    %5920 = vmatpush1.msra.mxu0 0.0
    %5921 = vmatprep.subr.mxu0 0.0
    %5922 = vmatpush1.msra.mxu0 0.0
    %5923 = vmatprep.subr.mxu0 0.0
    %5924 = vmatpush1.msra.mxu0 0.0
    %5925 = vmatprep.mubr.f32.mxu0 0.0
    %v5926 = vand.u32 %v5393, 4294901760
    %5927 = vmatmul.mubr.f32.gmra.mrb[0].mxu0 %v5926
    %v5928 = vpop.f32.mrb[0].mxu0
    %v5929 = vadd.f32 %v5850, %v5928
    %v5930 = vpop.f32.mrb[0].mxu0
    %5931 = vdwg.mxu0
    %v5932 = vsel %vm1079, %v5929, 0.0
    %v5933 = vrot.slane %v5932, 4
    %v5934 = vadd.f32 %v5932, %v5933
    %v5935 = vrot.slane %v5934, 2
    %v5936 = vadd.f32 %v5934, %v5935
    %v5937 = vrot.slane %v5936, 1
    %v5938 = vadd.f32 %v5936, %v5937
    %v5939 = vmul.f32 %v5938, %v4209
    %v5940 = vsub.f32 %v5929, %v5939
    %v5941 = vmul.f32 %v5940, %v5940
    %v5942 = vsel %vm1079, %v5941, 0.0
    %v5943 = vrot.slane %v5942, 4
    %v5944 = vadd.f32 %v5942, %v5943
    %v5945 = vrot.slane %v5944, 2
    %v5946 = vadd.f32 %v5944, %v5945
    %v5947 = vrot.slane %v5946, 1
    %v5948 = vadd.f32 %v5946, %v5947
    %v5949 = vmul.f32 %v5948, %v4209
    %v5950 = vadd.f32 %v5949, 1e-05
    %v5951 = vrsqrt.pop %v5950
    %v5952 = vmul.f32 %v5940, %v5951
    %v5954 = vlaneseq
    %v5955 = vshrl.u32 %v5954, 7
    %v5956 = vsub.s32 0, %v5955
    %v5957 = vrot.slane %v5384, %v5956
    %v5959 = vmul.f32 %v5952, %v5957
    %v5961 = vlaneseq
    %v5962 = vshrl.u32 %v5961, 7
    %v5963 = vsub.s32 0, %v5962
    %v5964 = vrot.slane %v5385, %v5963
    %v5966 = vadd.f32 %v5959, %v5964
    %v5967 = vtanh.pop %v5966
    %5968 = vst.msk [vmem:[%s107] sm:$0xff] %vm1079, %v5967
    %v5970 = vrot.slane %v5967, 4
    %5971 = vrot.lane.b32.xlu0 %v5970, 112
    %v5972 = vpop.permute.xlu0 %5971
    %5974 = vrot.lane.b32.xlu0 %v5967, 96
    %v5975 = vpop.permute.xlu0 %5974
    %5977 = vrot.lane.b32.xlu0 %v5970, 80
    %v5978 = vpop.permute.xlu0 %5977
    %5981 = vrot.lane.b32.xlu0 %v5967, 112
    %v5982 = vpop.permute.xlu0 %5981
    %5984 = vrot.lane.b32.xlu0 %v5970, 96
    %v5985 = vpop.permute.xlu0 %5984
    %5987 = vrot.lane.b32.xlu0 %v5967, 80
    %v5988 = vpop.permute.xlu0 %5987
    %v5990 = vsel %vm3693, %v5967, %v5972
    %v5991 = vsel %vm3693, %v5975, %v5978
    %v5992 = vsel %vm3693, %v5970, %v5982
    %v5993 = vsel %vm3693, %v5985, %v5988
    %v5994 = vld [vmem:[%s71] sm:$0xff]
    %v5995 = vld [vmem:[%s71 + $0x8] sm:$0xff]
    %v5996 = vld [vmem:[%s71 + $0x10] sm:$0xff]
    %v5997 = vld [vmem:[%s71 + $0x18] sm:$0xff]
    %v5998 = vld [vmem:[%s71 + $0x20] sm:$0xff]
    %v5999 = vld [vmem:[%s71 + $0x28] sm:$0xff]
    %v6000 = vld [vmem:[#allocation43] sm:$0x1]
    %v6001 = vld [vmem:[#allocation44] sm:$0x1]
    %v6002 = vld [vmem:[#allocation46] sm:$0x1]
    %v6005 = vrot.slane %v5992, 2
    %v6006 = vrot.slane %v5993, 2
    %v6007 = vsel %vm3697, %v6005, %v6006
    %v6011 = vsel %vm3697, %v5991, %v6005
    %v6014 = vrot.slane %v5990, 1
    %v6015 = vrot.slane %v5991, 1
    %v6016 = vsel %vm3699, %v6014, %v6015
    %v6018 = vrot.slane %v5992, 3
    %v6019 = vrot.slane %v5993, 3
    %v6020 = vsel %vm3695, %v6018, %v6019
    %v6022 = vsel %vm3697, %v6015, %v6018
    %v6023 = vrot.slane %v5990, 2
    %v6024 = vrot.slane %v5991, 2
    %v6025 = vsel %vm3697, %v6023, %v6024
    %v6027 = vrot.slane %v5992, 4
    %v6028 = vrot.slane %v5993, 4
    %v6029 = vsel %vm3693, %v6027, %v6028
    %v6031 = vsel %vm3697, %v6024, %v6027
    %6033 = vrot.lane.b32.xlu0 %v6016, 16
    %v6034 = vpop.permute.xlu0 %6033
    %6035 = vrot.lane.b32.xlu0 %v6022, 16
    %v6036 = vpop.permute.xlu0 %6035
    %6037 = vrot.lane.b32.xlu0 %v6020, 16
    %v6038 = vpop.permute.xlu0 %6037
    %6039 = vrot.lane.b32.xlu0 %v6019, 16
    %v6040 = vpop.permute.xlu0 %6039
    %6046 = vrot.lane.b32.xlu0 %v6025, 32
    %v6047 = vpop.permute.xlu0 %6046
    %6048 = vrot.lane.b32.xlu0 %v6031, 32
    %v6049 = vpop.permute.xlu0 %6048
    %6050 = vrot.lane.b32.xlu0 %v6029, 32
    %v6051 = vpop.permute.xlu0 %6050
    %6052 = vrot.lane.b32.xlu0 %v6028, 32
    %v6053 = vpop.permute.xlu0 %6052
    %vm6058 = vcmask 130048
    %v6059 = vsel %vm6058, %v5990, %v6034
    %v6060 = vsel %vm6058, %v6011, %v6036
    %v6061 = vsel %vm6058, %v6007, %v6038
    %v6062 = vsel %vm6058, %v6006, %v6040
    %v6063 = vsel %vm570, %v6059, %v6047
    %v6064 = vsel %vm570, %v6060, %v6049
    %v6065 = vsel %vm570, %v6061, %v6051
    %v6066 = vsel %vm570, %v6062, %v6053
    %v6068 = vlaneseq
    %v6069 = vshrl.u32 %v6068, 7
    %v6070 = vsub.s32 0, %v6069
    %v6071 = vrot.slane %v6000, %v6070
    %vm6073 = vcmask 392192
    %v6075 = vsel %vm6073, %v6063, 0
    %v6078 = vsel %vm6073, %v6064, 0
    %v6081 = vsel %vm6073, %v6065, 0
    %v6084 = vsel %vm6073, %v6066, 0
    %6086 = vmatprep.subr.mxu0 0.0
    %v6087 = vand.u32 %v5994, 4294901760
    %6088 = vmatpush1.msra.mxu0 %v6087
    %6089 = vmatprep.subr.mxu0 0.0
    %v6090 = vand.u32 %v5995, 4294901760
    %6091 = vmatpush1.msra.mxu0 %v6090
    %6092 = vmatprep.subr.mxu0 0.0
    %v6093 = vand.u32 %v5996, 4294901760
    %6094 = vmatpush1.msra.mxu0 %v6093
    %6095 = vmatprep.subr.mxu0 0.0
    %v6096 = vand.u32 %v5997, 4294901760
    %6097 = vmatpush1.msra.mxu0 %v6096
    %6098 = vmatprep.subr.mxu0 0.0
    %v6099 = vand.u32 %v5998, 4294901760
    %6100 = vmatpush1.msra.mxu0 %v6099
    %6101 = vmatprep.subr.mxu0 0.0
    %v6102 = vand.u32 %v5999, 4294901760
    %6103 = vmatpush1.msra.mxu0 %v6102
    %6104 = vmatprep.subr.mxu0 0.0
    %6105 = vmatpush1.msra.mxu0 0.0
    %6106 = vmatprep.subr.mxu0 0.0
    %6107 = vmatpush1.msra.mxu0 0.0
    %6108 = vmatprep.subr.mxu0 0.0
    %6109 = vmatpush1.msra.mxu0 0.0
    %6110 = vmatprep.subr.mxu0 0.0
    %6111 = vmatpush1.msra.mxu0 0.0
    %6112 = vmatprep.subr.mxu0 0.0
    %6113 = vmatpush1.msra.mxu0 0.0
    %6114 = vmatprep.subr.mxu0 0.0
    %6115 = vmatpush1.msra.mxu0 0.0
    %6116 = vmatprep.subr.mxu0 0.0
    %6117 = vmatpush1.msra.mxu0 0.0
    %6118 = vmatprep.subr.mxu0 0.0
    %6119 = vmatpush1.msra.mxu0 0.0
    %6120 = vmatprep.subr.mxu0 0.0
    %6121 = vmatpush1.msra.mxu0 0.0
    %6122 = vmatprep.subr.mxu0 0.0
    %6123 = vmatpush1.msra.mxu0 0.0
    %6124 = vmatprep.subr.mxu0 0.0
    %6125 = vmatpush1.msra.mxu0 0.0
    %6126 = vmatprep.subr.mxu0 0.0
    %6127 = vmatpush1.msra.mxu0 0.0
    %6128 = vmatprep.subr.mxu0 0.0
    %6129 = vmatpush1.msra.mxu0 0.0
    %6130 = vmatprep.subr.mxu0 0.0
    %6131 = vmatpush1.msra.mxu0 0.0
    %6132 = vmatprep.subr.mxu0 0.0
    %6133 = vmatpush1.msra.mxu0 0.0
    %6134 = vmatprep.subr.mxu0 0.0
    %6135 = vmatpush1.msra.mxu0 0.0
    %6136 = vmatprep.subr.mxu0 0.0
    %6137 = vmatpush1.msra.mxu0 0.0
    %6138 = vmatprep.subr.mxu0 0.0
    %6139 = vmatpush1.msra.mxu0 0.0
    %6140 = vmatprep.subr.mxu0 0.0
    %6141 = vmatpush1.msra.mxu0 0.0
    %6142 = vmatprep.subr.mxu0 0.0
    %6143 = vmatpush1.msra.mxu0 0.0
    %6144 = vmatprep.subr.mxu0 0.0
    %6145 = vmatpush1.msra.mxu0 0.0
    %6146 = vmatprep.subr.mxu0 0.0
    %6147 = vmatpush1.msra.mxu0 0.0
    %6148 = vmatprep.subr.mxu0 0.0
    %6149 = vmatpush1.msra.mxu0 0.0
    %6150 = vmatprep.subr.mxu0 0.0
    %6151 = vmatpush1.msra.mxu0 0.0
    %6152 = vmatprep.subr.mxu0 0.0
    %6153 = vmatpush1.msra.mxu0 0.0
    %6154 = vmatprep.subr.mxu0 0.0
    %6155 = vmatpush1.msra.mxu0 0.0
    %6156 = vmatprep.mubr.f32.mxu0 0.0
    %v6157 = vand.u32 %v6075, 4294901760
    %v6158 = vsub.f32 %v6075, %v6157
    %v6159 = vand.u32 %v6158, 4294901760
    %v6160 = vsub.f32 %v6158, %v6159
    %v6161 = vand.u32 %v6160, 4294901760
    %6162 = vmatmul.mubr.f32.gmra.mrb[0].mxu0 %v6161
    %v6163 = vpop.f32.mrb[0].mxu0
    %v6164 = vadd.f32 %v6071, %v6163
    %v6165 = vpop.f32.mrb[0].mxu0
    %6166 = vmatprep.mubr.f32.mxu0 0.0
    %v6167 = vand.u32 %v6078, 4294901760
    %v6168 = vsub.f32 %v6078, %v6167
    %v6169 = vand.u32 %v6168, 4294901760
    %v6170 = vsub.f32 %v6168, %v6169
    %v6171 = vand.u32 %v6170, 4294901760
    %6172 = vmatmul.mubr.f32.gmra.mrb[0].mxu0 %v6171
    %v6173 = vpop.f32.mrb[0].mxu0
    %v6174 = vadd.f32 %v6071, %v6173
    %v6175 = vpop.f32.mrb[0].mxu0
    %6176 = vmatprep.mubr.f32.mxu0 0.0
    %v6177 = vand.u32 %v6081, 4294901760
    %v6178 = vsub.f32 %v6081, %v6177
    %v6179 = vand.u32 %v6178, 4294901760
    %v6180 = vsub.f32 %v6178, %v6179
    %v6181 = vand.u32 %v6180, 4294901760
    %6182 = vmatmul.mubr.f32.gmra.mrb[0].mxu0 %v6181
    %v6183 = vpop.f32.mrb[0].mxu0
    %v6184 = vadd.f32 %v6071, %v6183
    %v6185 = vpop.f32.mrb[0].mxu0
    %6186 = vmatprep.mubr.f32.mxu0 0.0
    %v6187 = vand.u32 %v6084, 4294901760
    %v6188 = vsub.f32 %v6084, %v6187
    %v6189 = vand.u32 %v6188, 4294901760
    %v6190 = vsub.f32 %v6188, %v6189
    %v6191 = vand.u32 %v6190, 4294901760
    %6192 = vmatmul.mubr.f32.gmra.mrb[0].mxu0 %v6191
    %v6193 = vpop.f32.mrb[0].mxu0
    %v6194 = vadd.f32 %v6071, %v6193
    %v6195 = vpop.f32.mrb[0].mxu0
    %6196 = vdwg.mxu0
    %6197 = vmatprep.subr.mxu0 0.0
    %v6198 = vand.u32 %v5994, 4294901760
    %v6199 = vsub.f32 %v5994, %v6198
    %v6200 = vand.u32 %v6199, 4294901760
    %v6201 = vsub.f32 %v6199, %v6200
    %v6202 = vand.u32 %v6201, 4294901760
    %6203 = vmatpush1.msra.mxu0 %v6202
    %6204 = vmatprep.subr.mxu0 0.0
    %v6205 = vand.u32 %v5995, 4294901760
    %v6206 = vsub.f32 %v5995, %v6205
    %v6207 = vand.u32 %v6206, 4294901760
    %v6208 = vsub.f32 %v6206, %v6207
    %v6209 = vand.u32 %v6208, 4294901760
    %6210 = vmatpush1.msra.mxu0 %v6209
    %6211 = vmatprep.subr.mxu0 0.0
    %v6212 = vand.u32 %v5996, 4294901760
    %v6213 = vsub.f32 %v5996, %v6212
    %v6214 = vand.u32 %v6213, 4294901760
    %v6215 = vsub.f32 %v6213, %v6214
    %v6216 = vand.u32 %v6215, 4294901760
    %6217 = vmatpush1.msra.mxu0 %v6216
    %6218 = vmatprep.subr.mxu0 0.0
    %v6219 = vand.u32 %v5997, 4294901760
    %v6220 = vsub.f32 %v5997, %v6219
    %v6221 = vand.u32 %v6220, 4294901760
    %v6222 = vsub.f32 %v6220, %v6221
    %v6223 = vand.u32 %v6222, 4294901760
    %6224 = vmatpush1.msra.mxu0 %v6223
    %6225 = vmatprep.subr.mxu0 0.0
    %v6226 = vand.u32 %v5998, 4294901760
    %v6227 = vsub.f32 %v5998, %v6226
    %v6228 = vand.u32 %v6227, 4294901760
    %v6229 = vsub.f32 %v6227, %v6228
    %v6230 = vand.u32 %v6229, 4294901760
    %6231 = vmatpush1.msra.mxu0 %v6230
    %6232 = vmatprep.subr.mxu0 0.0
    %v6233 = vand.u32 %v5999, 4294901760
    %v6234 = vsub.f32 %v5999, %v6233
    %v6235 = vand.u32 %v6234, 4294901760
    %v6236 = vsub.f32 %v6234, %v6235
    %v6237 = vand.u32 %v6236, 4294901760
    %6238 = vmatpush1.msra.mxu0 %v6237
    %6239 = vmatprep.subr.mxu0 0.0
    %6240 = vmatpush1.msra.mxu0 0.0
    %6241 = vmatprep.subr.mxu0 0.0
    %6242 = vmatpush1.msra.mxu0 0.0
    %6243 = vmatprep.subr.mxu0 0.0
    %6244 = vmatpush1.msra.mxu0 0.0
    %6245 = vmatprep.subr.mxu0 0.0
    %6246 = vmatpush1.msra.mxu0 0.0
    %6247 = vmatprep.subr.mxu0 0.0
    %6248 = vmatpush1.msra.mxu0 0.0
    %6249 = vmatprep.subr.mxu0 0.0
    %6250 = vmatpush1.msra.mxu0 0.0
    %6251 = vmatprep.subr.mxu0 0.0
    %6252 = vmatpush1.msra.mxu0 0.0
    %6253 = vmatprep.subr.mxu0 0.0
    %6254 = vmatpush1.msra.mxu0 0.0
    %6255 = vmatprep.subr.mxu0 0.0
    %6256 = vmatpush1.msra.mxu0 0.0
    %6257 = vmatprep.subr.mxu0 0.0
    %6258 = vmatpush1.msra.mxu0 0.0
    %6259 = vmatprep.subr.mxu0 0.0
    %6260 = vmatpush1.msra.mxu0 0.0
    %6261 = vmatprep.subr.mxu0 0.0
    %6262 = vmatpush1.msra.mxu0 0.0
    %6263 = vmatprep.subr.mxu0 0.0
    %6264 = vmatpush1.msra.mxu0 0.0
    %6265 = vmatprep.subr.mxu0 0.0
    %6266 = vmatpush1.msra.mxu0 0.0
    %6267 = vmatprep.subr.mxu0 0.0
    %6268 = vmatpush1.msra.mxu0 0.0
    %6269 = vmatprep.subr.mxu0 0.0
    %6270 = vmatpush1.msra.mxu0 0.0
    %6271 = vmatprep.subr.mxu0 0.0
    %6272 = vmatpush1.msra.mxu0 0.0
    %6273 = vmatprep.subr.mxu0 0.0
    %6274 = vmatpush1.msra.mxu0 0.0
    %6275 = vmatprep.subr.mxu0 0.0
    %6276 = vmatpush1.msra.mxu0 0.0
    %6277 = vmatprep.subr.mxu0 0.0
    %6278 = vmatpush1.msra.mxu0 0.0
    %6279 = vmatprep.subr.mxu0 0.0
    %6280 = vmatpush1.msra.mxu0 0.0
    %6281 = vmatprep.subr.mxu0 0.0
    %6282 = vmatpush1.msra.mxu0 0.0
    %6283 = vmatprep.subr.mxu0 0.0
    %6284 = vmatpush1.msra.mxu0 0.0
    %6285 = vmatprep.subr.mxu0 0.0
    %6286 = vmatpush1.msra.mxu0 0.0
    %6287 = vmatprep.subr.mxu0 0.0
    %6288 = vmatpush1.msra.mxu0 0.0
    %6289 = vmatprep.subr.mxu0 0.0
    %6290 = vmatpush1.msra.mxu0 0.0
    %6291 = vmatprep.mubr.f32.mxu0 0.0
    %v6292 = vand.u32 %v6075, 4294901760
    %6293 = vmatmul.mubr.f32.gmra.mrb[0].mxu0 %v6292
    %v6294 = vpop.f32.mrb[0].mxu0
    %v6295 = vadd.f32 %v6164, %v6294
    %v6296 = vpop.f32.mrb[0].mxu0
    %6297 = vmatprep.mubr.f32.mxu0 0.0
    %v6298 = vand.u32 %v6078, 4294901760
    %6299 = vmatmul.mubr.f32.gmra.mrb[0].mxu0 %v6298
    %v6300 = vpop.f32.mrb[0].mxu0
    %v6301 = vadd.f32 %v6174, %v6300
    %v6302 = vpop.f32.mrb[0].mxu0
    %6303 = vmatprep.mubr.f32.mxu0 0.0
    %v6304 = vand.u32 %v6081, 4294901760
    %6305 = vmatmul.mubr.f32.gmra.mrb[0].mxu0 %v6304
    %v6306 = vpop.f32.mrb[0].mxu0
    %v6307 = vadd.f32 %v6184, %v6306
    %v6308 = vpop.f32.mrb[0].mxu0
    %6309 = vmatprep.mubr.f32.mxu0 0.0
    %v6310 = vand.u32 %v6084, 4294901760
    %6311 = vmatmul.mubr.f32.gmra.mrb[0].mxu0 %v6310
    %v6312 = vpop.f32.mrb[0].mxu0
    %v6313 = vadd.f32 %v6194, %v6312
    %v6314 = vpop.f32.mrb[0].mxu0
    %6315 = vdwg.mxu0
    %6316 = vmatprep.subr.mxu0 0.0
    %v6317 = vand.u32 %v5994, 4294901760
    %v6318 = vsub.f32 %v5994, %v6317
    %6319 = vmatpush1.msra.mxu0 %v6318
    %6320 = vmatprep.subr.mxu0 0.0
    %v6321 = vand.u32 %v5995, 4294901760
    %v6322 = vsub.f32 %v5995, %v6321
    %6323 = vmatpush1.msra.mxu0 %v6322
    %6324 = vmatprep.subr.mxu0 0.0
    %v6325 = vand.u32 %v5996, 4294901760
    %v6326 = vsub.f32 %v5996, %v6325
    %6327 = vmatpush1.msra.mxu0 %v6326
    %6328 = vmatprep.subr.mxu0 0.0
    %v6329 = vand.u32 %v5997, 4294901760
    %v6330 = vsub.f32 %v5997, %v6329
    %6331 = vmatpush1.msra.mxu0 %v6330
    %6332 = vmatprep.subr.mxu0 0.0
    %v6333 = vand.u32 %v5998, 4294901760
    %v6334 = vsub.f32 %v5998, %v6333
    %6335 = vmatpush1.msra.mxu0 %v6334
    %6336 = vmatprep.subr.mxu0 0.0
    %v6337 = vand.u32 %v5999, 4294901760
    %v6338 = vsub.f32 %v5999, %v6337
    %6339 = vmatpush1.msra.mxu0 %v6338
    %6340 = vmatprep.subr.mxu0 0.0
    %6341 = vmatpush1.msra.mxu0 0.0
    %6342 = vmatprep.subr.mxu0 0.0
    %6343 = vmatpush1.msra.mxu0 0.0
    %6344 = vmatprep.subr.mxu0 0.0
    %6345 = vmatpush1.msra.mxu0 0.0
    %6346 = vmatprep.subr.mxu0 0.0
    %6347 = vmatpush1.msra.mxu0 0.0
    %6348 = vmatprep.subr.mxu0 0.0
    %6349 = vmatpush1.msra.mxu0 0.0
    %6350 = vmatprep.subr.mxu0 0.0
    %6351 = vmatpush1.msra.mxu0 0.0
    %6352 = vmatprep.subr.mxu0 0.0
    %6353 = vmatpush1.msra.mxu0 0.0
    %6354 = vmatprep.subr.mxu0 0.0
    %6355 = vmatpush1.msra.mxu0 0.0
    %6356 = vmatprep.subr.mxu0 0.0
    %6357 = vmatpush1.msra.mxu0 0.0
    %6358 = vmatprep.subr.mxu0 0.0
    %6359 = vmatpush1.msra.mxu0 0.0
    %6360 = vmatprep.subr.mxu0 0.0
    %6361 = vmatpush1.msra.mxu0 0.0
    %6362 = vmatprep.subr.mxu0 0.0
    %6363 = vmatpush1.msra.mxu0 0.0
    %6364 = vmatprep.subr.mxu0 0.0
    %6365 = vmatpush1.msra.mxu0 0.0
    %6366 = vmatprep.subr.mxu0 0.0
    %6367 = vmatpush1.msra.mxu0 0.0
    %6368 = vmatprep.subr.mxu0 0.0
    %6369 = vmatpush1.msra.mxu0 0.0
    %6370 = vmatprep.subr.mxu0 0.0
    %6371 = vmatpush1.msra.mxu0 0.0
    %6372 = vmatprep.subr.mxu0 0.0
    %6373 = vmatpush1.msra.mxu0 0.0
    %6374 = vmatprep.subr.mxu0 0.0
    %6375 = vmatpush1.msra.mxu0 0.0
    %6376 = vmatprep.subr.mxu0 0.0
    %6377 = vmatpush1.msra.mxu0 0.0
    %6378 = vmatprep.subr.mxu0 0.0
    %6379 = vmatpush1.msra.mxu0 0.0
    %6380 = vmatprep.subr.mxu0 0.0
    %6381 = vmatpush1.msra.mxu0 0.0
    %6382 = vmatprep.subr.mxu0 0.0
    %6383 = vmatpush1.msra.mxu0 0.0
    %6384 = vmatprep.subr.mxu0 0.0
    %6385 = vmatpush1.msra.mxu0 0.0
    %6386 = vmatprep.subr.mxu0 0.0
    %6387 = vmatpush1.msra.mxu0 0.0
    %6388 = vmatprep.subr.mxu0 0.0
    %6389 = vmatpush1.msra.mxu0 0.0
    %6390 = vmatprep.subr.mxu0 0.0
    %6391 = vmatpush1.msra.mxu0 0.0
    %6392 = vmatprep.mubr.f32.mxu0 0.0
    %v6393 = vand.u32 %v6075, 4294901760
    %v6394 = vsub.f32 %v6075, %v6393
    %6395 = vmatmul.mubr.f32.gmra.mrb[0].mxu0 %v6394
    %v6396 = vpop.f32.mrb[0].mxu0
    %v6397 = vadd.f32 %v6295, %v6396
    %v6398 = vpop.f32.mrb[0].mxu0
    %6399 = vmatprep.mubr.f32.mxu0 0.0
    %v6400 = vand.u32 %v6078, 4294901760
    %v6401 = vsub.f32 %v6078, %v6400
    %6402 = vmatmul.mubr.f32.gmra.mrb[0].mxu0 %v6401
    %v6403 = vpop.f32.mrb[0].mxu0
    %v6404 = vadd.f32 %v6301, %v6403
    %v6405 = vpop.f32.mrb[0].mxu0
    %6406 = vmatprep.mubr.f32.mxu0 0.0
    %v6407 = vand.u32 %v6081, 4294901760
    %v6408 = vsub.f32 %v6081, %v6407
    %6409 = vmatmul.mubr.f32.gmra.mrb[0].mxu0 %v6408
    %v6410 = vpop.f32.mrb[0].mxu0
    %v6411 = vadd.f32 %v6307, %v6410
    %v6412 = vpop.f32.mrb[0].mxu0
    %6413 = vmatprep.mubr.f32.mxu0 0.0
    %v6414 = vand.u32 %v6084, 4294901760
    %v6415 = vsub.f32 %v6084, %v6414
    %6416 = vmatmul.mubr.f32.gmra.mrb[0].mxu0 %v6415
    %v6417 = vpop.f32.mrb[0].mxu0
    %v6418 = vadd.f32 %v6313, %v6417
    %v6419 = vpop.f32.mrb[0].mxu0
    %6420 = vdwg.mxu0
    %6421 = vmatprep.subr.mxu0 0.0
    %v6422 = vand.u32 %v5994, 4294901760
    %6423 = vmatpush1.msra.mxu0 %v6422
    %6424 = vmatprep.subr.mxu0 0.0
    %v6425 = vand.u32 %v5995, 4294901760
    %6426 = vmatpush1.msra.mxu0 %v6425
    %6427 = vmatprep.subr.mxu0 0.0
    %v6428 = vand.u32 %v5996, 4294901760
    %6429 = vmatpush1.msra.mxu0 %v6428
    %6430 = vmatprep.subr.mxu0 0.0
    %v6431 = vand.u32 %v5997, 4294901760
    %6432 = vmatpush1.msra.mxu0 %v6431
    %6433 = vmatprep.subr.mxu0 0.0
    %v6434 = vand.u32 %v5998, 4294901760
    %6435 = vmatpush1.msra.mxu0 %v6434
    %6436 = vmatprep.subr.mxu0 0.0
    %v6437 = vand.u32 %v5999, 4294901760
    %6438 = vmatpush1.msra.mxu0 %v6437
    %6439 = vmatprep.subr.mxu0 0.0
    %6440 = vmatpush1.msra.mxu0 0.0
    %6441 = vmatprep.subr.mxu0 0.0
    %6442 = vmatpush1.msra.mxu0 0.0
    %6443 = vmatprep.subr.mxu0 0.0
    %6444 = vmatpush1.msra.mxu0 0.0
    %6445 = vmatprep.subr.mxu0 0.0
    %6446 = vmatpush1.msra.mxu0 0.0
    %6447 = vmatprep.subr.mxu0 0.0
    %6448 = vmatpush1.msra.mxu0 0.0
    %6449 = vmatprep.subr.mxu0 0.0
    %6450 = vmatpush1.msra.mxu0 0.0
    %6451 = vmatprep.subr.mxu0 0.0
    %6452 = vmatpush1.msra.mxu0 0.0
    %6453 = vmatprep.subr.mxu0 0.0
    %6454 = vmatpush1.msra.mxu0 0.0
    %6455 = vmatprep.subr.mxu0 0.0
    %6456 = vmatpush1.msra.mxu0 0.0
    %6457 = vmatprep.subr.mxu0 0.0
    %6458 = vmatpush1.msra.mxu0 0.0
    %6459 = vmatprep.subr.mxu0 0.0
    %6460 = vmatpush1.msra.mxu0 0.0
    %6461 = vmatprep.subr.mxu0 0.0
    %6462 = vmatpush1.msra.mxu0 0.0
    %6463 = vmatprep.subr.mxu0 0.0
    %6464 = vmatpush1.msra.mxu0 0.0
    %6465 = vmatprep.subr.mxu0 0.0
    %6466 = vmatpush1.msra.mxu0 0.0
    %6467 = vmatprep.subr.mxu0 0.0
    %6468 = vmatpush1.msra.mxu0 0.0
    %6469 = vmatprep.subr.mxu0 0.0
    %6470 = vmatpush1.msra.mxu0 0.0
    %6471 = vmatprep.subr.mxu0 0.0
    %6472 = vmatpush1.msra.mxu0 0.0
    %6473 = vmatprep.subr.mxu0 0.0
    %6474 = vmatpush1.msra.mxu0 0.0
    %6475 = vmatprep.subr.mxu0 0.0
    %6476 = vmatpush1.msra.mxu0 0.0
    %6477 = vmatprep.subr.mxu0 0.0
    %6478 = vmatpush1.msra.mxu0 0.0
    %6479 = vmatprep.subr.mxu0 0.0
    %6480 = vmatpush1.msra.mxu0 0.0
    %6481 = vmatprep.subr.mxu0 0.0
    %6482 = vmatpush1.msra.mxu0 0.0
    %6483 = vmatprep.subr.mxu0 0.0
    %6484 = vmatpush1.msra.mxu0 0.0
    %6485 = vmatprep.subr.mxu0 0.0
    %6486 = vmatpush1.msra.mxu0 0.0
    %6487 = vmatprep.subr.mxu0 0.0
    %6488 = vmatpush1.msra.mxu0 0.0
    %6489 = vmatprep.subr.mxu0 0.0
    %6490 = vmatpush1.msra.mxu0 0.0
    %6491 = vmatprep.mubr.f32.mxu0 0.0
    %v6492 = vand.u32 %v6075, 4294901760
    %v6493 = vsub.f32 %v6075, %v6492
    %v6494 = vand.u32 %v6493, 4294901760
    %6495 = vmatmul.mubr.f32.gmra.mrb[0].mxu0 %v6494
    %v6496 = vpop.f32.mrb[0].mxu0
    %v6497 = vadd.f32 %v6397, %v6496
    %v6498 = vpop.f32.mrb[0].mxu0
    %6499 = vmatprep.mubr.f32.mxu0 0.0
    %v6500 = vand.u32 %v6078, 4294901760
    %v6501 = vsub.f32 %v6078, %v6500
    %v6502 = vand.u32 %v6501, 4294901760
    %6503 = vmatmul.mubr.f32.gmra.mrb[0].mxu0 %v6502
    %v6504 = vpop.f32.mrb[0].mxu0
    %v6505 = vadd.f32 %v6404, %v6504
    %v6506 = vpop.f32.mrb[0].mxu0
    %6507 = vmatprep.mubr.f32.mxu0 0.0
    %v6508 = vand.u32 %v6081, 4294901760
    %v6509 = vsub.f32 %v6081, %v6508
    %v6510 = vand.u32 %v6509, 4294901760
    %6511 = vmatmul.mubr.f32.gmra.mrb[0].mxu0 %v6510
    %v6512 = vpop.f32.mrb[0].mxu0
    %v6513 = vadd.f32 %v6411, %v6512
    %v6514 = vpop.f32.mrb[0].mxu0
    %6515 = vmatprep.mubr.f32.mxu0 0.0
    %v6516 = vand.u32 %v6084, 4294901760
    %v6517 = vsub.f32 %v6084, %v6516
    %v6518 = vand.u32 %v6517, 4294901760
    %6519 = vmatmul.mubr.f32.gmra.mrb[0].mxu0 %v6518
    %v6520 = vpop.f32.mrb[0].mxu0
    %v6521 = vadd.f32 %v6418, %v6520
    %v6522 = vpop.f32.mrb[0].mxu0
    %6523 = vdwg.mxu0
    %6524 = vmatprep.subr.mxu0 0.0
    %v6525 = vand.u32 %v5994, 4294901760
    %v6526 = vsub.f32 %v5994, %v6525
    %v6527 = vand.u32 %v6526, 4294901760
    %6528 = vmatpush1.msra.mxu0 %v6527
    %6529 = vmatprep.subr.mxu0 0.0
    %v6530 = vand.u32 %v5995, 4294901760
    %v6531 = vsub.f32 %v5995, %v6530
    %v6532 = vand.u32 %v6531, 4294901760
    %6533 = vmatpush1.msra.mxu0 %v6532
    %6534 = vmatprep.subr.mxu0 0.0
    %v6535 = vand.u32 %v5996, 4294901760
    %v6536 = vsub.f32 %v5996, %v6535
    %v6537 = vand.u32 %v6536, 4294901760
    %6538 = vmatpush1.msra.mxu0 %v6537
    %6539 = vmatprep.subr.mxu0 0.0
    %v6540 = vand.u32 %v5997, 4294901760
    %v6541 = vsub.f32 %v5997, %v6540
    %v6542 = vand.u32 %v6541, 4294901760
    %6543 = vmatpush1.msra.mxu0 %v6542
    %6544 = vmatprep.subr.mxu0 0.0
    %v6545 = vand.u32 %v5998, 4294901760
    %v6546 = vsub.f32 %v5998, %v6545
    %v6547 = vand.u32 %v6546, 4294901760
    %6548 = vmatpush1.msra.mxu0 %v6547
    %6549 = vmatprep.subr.mxu0 0.0
    %v6550 = vand.u32 %v5999, 4294901760
    %v6551 = vsub.f32 %v5999, %v6550
    %v6552 = vand.u32 %v6551, 4294901760
    %6553 = vmatpush1.msra.mxu0 %v6552
    %6554 = vmatprep.subr.mxu0 0.0
    %6555 = vmatpush1.msra.mxu0 0.0
    %6556 = vmatprep.subr.mxu0 0.0
    %6557 = vmatpush1.msra.mxu0 0.0
    %6558 = vmatprep.subr.mxu0 0.0
    %6559 = vmatpush1.msra.mxu0 0.0
    %6560 = vmatprep.subr.mxu0 0.0
    %6561 = vmatpush1.msra.mxu0 0.0
    %6562 = vmatprep.subr.mxu0 0.0
    %6563 = vmatpush1.msra.mxu0 0.0
    %6564 = vmatprep.subr.mxu0 0.0
    %6565 = vmatpush1.msra.mxu0 0.0
    %6566 = vmatprep.subr.mxu0 0.0
    %6567 = vmatpush1.msra.mxu0 0.0
    %6568 = vmatprep.subr.mxu0 0.0
    %6569 = vmatpush1.msra.mxu0 0.0
    %6570 = vmatprep.subr.mxu0 0.0
    %6571 = vmatpush1.msra.mxu0 0.0
    %6572 = vmatprep.subr.mxu0 0.0
    %6573 = vmatpush1.msra.mxu0 0.0
    %6574 = vmatprep.subr.mxu0 0.0
    %6575 = vmatpush1.msra.mxu0 0.0
    %6576 = vmatprep.subr.mxu0 0.0
    %6577 = vmatpush1.msra.mxu0 0.0
    %6578 = vmatprep.subr.mxu0 0.0
    %6579 = vmatpush1.msra.mxu0 0.0
    %6580 = vmatprep.subr.mxu0 0.0
    %6581 = vmatpush1.msra.mxu0 0.0
    %6582 = vmatprep.subr.mxu0 0.0
    %6583 = vmatpush1.msra.mxu0 0.0
    %6584 = vmatprep.subr.mxu0 0.0
    %6585 = vmatpush1.msra.mxu0 0.0
    %6586 = vmatprep.subr.mxu0 0.0
    %6587 = vmatpush1.msra.mxu0 0.0
    %6588 = vmatprep.subr.mxu0 0.0
    %6589 = vmatpush1.msra.mxu0 0.0
    %6590 = vmatprep.subr.mxu0 0.0
    %6591 = vmatpush1.msra.mxu0 0.0
    %6592 = vmatprep.subr.mxu0 0.0
    %6593 = vmatpush1.msra.mxu0 0.0
    %6594 = vmatprep.subr.mxu0 0.0
    %6595 = vmatpush1.msra.mxu0 0.0
    %6596 = vmatprep.subr.mxu0 0.0
    %6597 = vmatpush1.msra.mxu0 0.0
    %6598 = vmatprep.subr.mxu0 0.0
    %6599 = vmatpush1.msra.mxu0 0.0
    %6600 = vmatprep.subr.mxu0 0.0
    %6601 = vmatpush1.msra.mxu0 0.0
    %6602 = vmatprep.subr.mxu0 0.0
    %6603 = vmatpush1.msra.mxu0 0.0
    %6604 = vmatprep.subr.mxu0 0.0
    %6605 = vmatpush1.msra.mxu0 0.0
    %6606 = vmatprep.mubr.f32.mxu0 0.0
    %v6607 = vand.u32 %v6075, 4294901760
    %6608 = vmatmul.mubr.f32.gmra.mrb[0].mxu0 %v6607
    %v6609 = vpop.f32.mrb[0].mxu0
    %v6610 = vadd.f32 %v6497, %v6609
    %v6611 = vpop.f32.mrb[0].mxu0
    %6612 = vmatprep.mubr.f32.mxu0 0.0
    %v6613 = vand.u32 %v6078, 4294901760
    %6614 = vmatmul.mubr.f32.gmra.mrb[0].mxu0 %v6613
    %v6615 = vpop.f32.mrb[0].mxu0
    %v6616 = vadd.f32 %v6505, %v6615
    %v6617 = vpop.f32.mrb[0].mxu0
    %6618 = vmatprep.mubr.f32.mxu0 0.0
    %v6619 = vand.u32 %v6081, 4294901760
    %6620 = vmatmul.mubr.f32.gmra.mrb[0].mxu0 %v6619
    %v6621 = vpop.f32.mrb[0].mxu0
    %v6622 = vadd.f32 %v6513, %v6621
    %v6623 = vpop.f32.mrb[0].mxu0
    %6624 = vmatprep.mubr.f32.mxu0 0.0
    %v6625 = vand.u32 %v6084, 4294901760
    %6626 = vmatmul.mubr.f32.gmra.mrb[0].mxu0 %v6625
    %v6627 = vpop.f32.mrb[0].mxu0
    %v6628 = vadd.f32 %v6521, %v6627
    %v6629 = vpop.f32.mrb[0].mxu0
    %6630 = vdwg.mxu0
    %6631 = vmatprep.subr.mxu0 0.0
    %v6632 = vand.u32 %v5994, 4294901760
    %6633 = vmatpush1.msra.mxu0 %v6632
    %6634 = vmatprep.subr.mxu0 0.0
    %v6635 = vand.u32 %v5995, 4294901760
    %6636 = vmatpush1.msra.mxu0 %v6635
    %6637 = vmatprep.subr.mxu0 0.0
    %v6638 = vand.u32 %v5996, 4294901760
    %6639 = vmatpush1.msra.mxu0 %v6638
    %6640 = vmatprep.subr.mxu0 0.0
    %v6641 = vand.u32 %v5997, 4294901760
    %6642 = vmatpush1.msra.mxu0 %v6641
    %6643 = vmatprep.subr.mxu0 0.0
    %v6644 = vand.u32 %v5998, 4294901760
    %6645 = vmatpush1.msra.mxu0 %v6644
    %6646 = vmatprep.subr.mxu0 0.0
    %v6647 = vand.u32 %v5999, 4294901760
    %6648 = vmatpush1.msra.mxu0 %v6647
    %6649 = vmatprep.subr.mxu0 0.0
    %6650 = vmatpush1.msra.mxu0 0.0
    %6651 = vmatprep.subr.mxu0 0.0
    %6652 = vmatpush1.msra.mxu0 0.0
    %6653 = vmatprep.subr.mxu0 0.0
    %6654 = vmatpush1.msra.mxu0 0.0
    %6655 = vmatprep.subr.mxu0 0.0
    %6656 = vmatpush1.msra.mxu0 0.0
    %6657 = vmatprep.subr.mxu0 0.0
    %6658 = vmatpush1.msra.mxu0 0.0
    %6659 = vmatprep.subr.mxu0 0.0
    %6660 = vmatpush1.msra.mxu0 0.0
    %6661 = vmatprep.subr.mxu0 0.0
    %6662 = vmatpush1.msra.mxu0 0.0
    %6663 = vmatprep.subr.mxu0 0.0
    %6664 = vmatpush1.msra.mxu0 0.0
    %6665 = vmatprep.subr.mxu0 0.0
    %6666 = vmatpush1.msra.mxu0 0.0
    %6667 = vmatprep.subr.mxu0 0.0
    %6668 = vmatpush1.msra.mxu0 0.0
    %6669 = vmatprep.subr.mxu0 0.0
    %6670 = vmatpush1.msra.mxu0 0.0
    %6671 = vmatprep.subr.mxu0 0.0
    %6672 = vmatpush1.msra.mxu0 0.0
    %6673 = vmatprep.subr.mxu0 0.0
    %6674 = vmatpush1.msra.mxu0 0.0
    %6675 = vmatprep.subr.mxu0 0.0
    %6676 = vmatpush1.msra.mxu0 0.0
    %6677 = vmatprep.subr.mxu0 0.0
    %6678 = vmatpush1.msra.mxu0 0.0
    %6679 = vmatprep.subr.mxu0 0.0
    %6680 = vmatpush1.msra.mxu0 0.0
    %6681 = vmatprep.subr.mxu0 0.0
    %6682 = vmatpush1.msra.mxu0 0.0
    %6683 = vmatprep.subr.mxu0 0.0
    %6684 = vmatpush1.msra.mxu0 0.0
    %6685 = vmatprep.subr.mxu0 0.0
    %6686 = vmatpush1.msra.mxu0 0.0
    %6687 = vmatprep.subr.mxu0 0.0
    %6688 = vmatpush1.msra.mxu0 0.0
    %6689 = vmatprep.subr.mxu0 0.0
    %6690 = vmatpush1.msra.mxu0 0.0
    %6691 = vmatprep.subr.mxu0 0.0
    %6692 = vmatpush1.msra.mxu0 0.0
    %6693 = vmatprep.subr.mxu0 0.0
    %6694 = vmatpush1.msra.mxu0 0.0
    %6695 = vmatprep.subr.mxu0 0.0
    %6696 = vmatpush1.msra.mxu0 0.0
    %6697 = vmatprep.subr.mxu0 0.0
    %6698 = vmatpush1.msra.mxu0 0.0
    %6699 = vmatprep.subr.mxu0 0.0
    %6700 = vmatpush1.msra.mxu0 0.0
    %6701 = vmatprep.mubr.f32.mxu0 0.0
    %v6702 = vand.u32 %v6075, 4294901760
    %6703 = vmatmul.mubr.f32.gmra.mrb[0].mxu0 %v6702
    %v6704 = vpop.f32.mrb[0].mxu0
    %v6705 = vadd.f32 %v6610, %v6704
    %v6706 = vpop.f32.mrb[0].mxu0
    %6707 = vmatprep.mubr.f32.mxu0 0.0
    %v6708 = vand.u32 %v6078, 4294901760
    %6709 = vmatmul.mubr.f32.gmra.mrb[0].mxu0 %v6708
    %v6710 = vpop.f32.mrb[0].mxu0
    %v6711 = vadd.f32 %v6616, %v6710
    %v6712 = vpop.f32.mrb[0].mxu0
    %6713 = vmatprep.mubr.f32.mxu0 0.0
    %v6714 = vand.u32 %v6081, 4294901760
    %6715 = vmatmul.mubr.f32.gmra.mrb[0].mxu0 %v6714
    %v6716 = vpop.f32.mrb[0].mxu0
    %v6717 = vadd.f32 %v6622, %v6716
    %v6718 = vpop.f32.mrb[0].mxu0
    %6719 = vmatprep.mubr.f32.mxu0 0.0
    %v6720 = vand.u32 %v6084, 4294901760
    %6721 = vmatmul.mubr.f32.gmra.mrb[0].mxu0 %v6720
    %v6722 = vpop.f32.mrb[0].mxu0
    %v6723 = vadd.f32 %v6628, %v6722
    %v6724 = vpop.f32.mrb[0].mxu0
    %6725 = vdwg.mxu0
    %v6726 = vsel %vm6058, %v6705, 0.0
    %v6727 = vsel %vm6058, %v6711, 0.0
    %v6728 = vadd.f32 %v6726, %v6727
    %v6729 = vsel %vm6058, %v6717, 0.0
    %v6730 = vadd.f32 %v6728, %v6729
    %vm6731 = vcmask 125952
    %v6732 = vsel %vm6731, %v6723, 0.0
    %v6733 = vadd.f32 %v6730, %v6732
    %v6734 = vrot.slane %v6733, 4
    %v6735 = vadd.f32 %v6733, %v6734
    %v6736 = vrot.slane %v6735, 2
    %v6737 = vadd.f32 %v6735, %v6736
    %v6738 = vrot.slane %v6737, 1
    %v6739 = vadd.f32 %v6737, %v6738
    %v6740 = vrcp.pop 28.0
    %v6741 = vmul.f32 %v6739, %v6740
    %v6742 = vsub.f32 %v6705, %v6741
    %v6743 = vsub.f32 %v6711, %v6741
    %v6744 = vsub.f32 %v6717, %v6741
    %v6745 = vsub.f32 %v6723, %v6741
    %v6746 = vmul.f32 %v6742, %v6742
    %v6747 = vmul.f32 %v6743, %v6743
    %v6748 = vmul.f32 %v6744, %v6744
    %v6749 = vmul.f32 %v6745, %v6745
    %v6750 = vsel %vm6058, %v6746, 0.0
    %v6751 = vsel %vm6058, %v6747, 0.0
    %v6752 = vadd.f32 %v6750, %v6751
    %v6753 = vsel %vm6058, %v6748, 0.0
    %v6754 = vadd.f32 %v6752, %v6753
    %v6755 = vsel %vm6731, %v6749, 0.0
    %v6756 = vadd.f32 %v6754, %v6755
    %v6757 = vrot.slane %v6756, 4
    %v6758 = vadd.f32 %v6756, %v6757
    %v6759 = vrot.slane %v6758, 2
    %v6760 = vadd.f32 %v6758, %v6759
    %v6761 = vrot.slane %v6760, 1
    %v6762 = vadd.f32 %v6760, %v6761
    %v6763 = vmul.f32 %v6762, %v6740
    %v6764 = vadd.f32 %v6763, 1e-05
    %v6765 = vrsqrt.pop %v6764
    %v6766 = vmul.f32 %v6742, %v6765
    %v6767 = vmul.f32 %v6743, %v6765
    %v6768 = vmul.f32 %v6744, %v6765
    %v6769 = vmul.f32 %v6745, %v6765
    %v6771 = vlaneseq
    %v6772 = vshrl.u32 %v6771, 7
    %v6773 = vsub.s32 0, %v6772
    %v6774 = vrot.slane %v6001, %v6773
    %v6776 = vmul.f32 %v6766, %v6774
    %v6777 = vmul.f32 %v6767, %v6774
    %v6778 = vmul.f32 %v6768, %v6774
    %v6779 = vmul.f32 %v6769, %v6774
    %v6781 = vlaneseq
    %v6782 = vshrl.u32 %v6781, 7
    %v6783 = vsub.s32 0, %v6782
    %v6784 = vrot.slane %v6002, %v6783
    %v6786 = vadd.f32 %v6776, %v6784
    %v6787 = vadd.f32 %v6777, %v6784
    %v6788 = vadd.f32 %v6778, %v6784
    %v6789 = vadd.f32 %v6779, %v6784
    %vm6790 = vcmp.ge.f32.partialorder %v6786, 0.0
    %vm6791 = vcmp.ge.f32.partialorder %v6787, 0.0
    %vm6792 = vcmp.ge.f32.partialorder %v6788, 0.0
    %vm6793 = vcmp.ge.f32.partialorder %v6789, 0.0
    %v6794 = vmul.f32 %v6786, 0.01
    %v6795 = vmul.f32 %v6787, 0.01
    %v6796 = vmul.f32 %v6788, 0.01
    %v6797 = vmul.f32 %v6789, 0.01
    %v6798 = vsel %vm6790, %v6786, %v6794
    %v6799 = vsel %vm6791, %v6787, %v6795
    %v6800 = vsel %vm6792, %v6788, %v6796
    %v6801 = vsel %vm6793, %v6789, %v6797
    %v6802 = vld [vmem:[%s79] sm:$0xff]
    %v6803 = vld [vmem:[%s79 + $0x8] sm:$0xff]
    %v6804 = vld [vmem:[%s79 + $0x10] sm:$0xff]
    %v6805 = vld [vmem:[%s79 + $0x18] sm:$0xff]
    %v6806 = vld [vmem:[%s79 + $0x20] sm:$0xff]
    %v6807 = vld [vmem:[%s79 + $0x28] sm:$0xff]
    %v6808 = vld [vmem:[%s81] sm:$0x1]
    %v6809 = vld [vmem:[%s83] sm:$0x1]
    %v6810 = vld [vmem:[%s85] sm:$0x1]
    %v6814 = vrot.slane %v6799, 2
    %v6815 = vrot.slane %v6800, 2
    %v6816 = vsel %vm3697, %v6814, %v6815
    %v6817 = vrot.slane %v6801, 2
    %v6818 = vsel %vm3697, %v6815, %v6817
    %v6821 = vsel %vm3693, %v6799, %v6816
    %v6823 = vrot.slane %v6798, 1
    %v6824 = vrot.slane %v6799, 1
    %v6825 = vsel %vm3699, %v6823, %v6824
    %v6827 = vrot.slane %v6799, 3
    %v6828 = vrot.slane %v6800, 3
    %v6829 = vsel %vm3695, %v6827, %v6828
    %v6830 = vrot.slane %v6801, 3
    %v6831 = vsel %vm3695, %v6828, %v6830
    %v6833 = vsel %vm3693, %v6824, %v6829
    %v6834 = vrot.slane %v6798, 2
    %v6835 = vsel %vm3697, %v6834, %v6814
    %v6837 = vrot.slane %v6800, 4
    %v6838 = vrot.slane %v6801, 4
    %v6839 = vsel %vm3693, %v6837, %v6838
    %v6841 = vsel %vm3693, %v6814, %v6837
    %6843 = vrot.lane.b32.xlu0 %v6825, 16
    %v6844 = vpop.permute.xlu0 %6843
    %6845 = vrot.lane.b32.xlu0 %v6833, 16
    %v6846 = vpop.permute.xlu0 %6845
    %6847 = vrot.lane.b32.xlu0 %v6831, 16
    %v6848 = vpop.permute.xlu0 %6847
    %6853 = vrot.lane.b32.xlu0 %v6835, 32
    %v6854 = vpop.permute.xlu0 %6853
    %6855 = vrot.lane.b32.xlu0 %v6841, 32
    %v6856 = vpop.permute.xlu0 %6855
    %6857 = vrot.lane.b32.xlu0 %v6839, 32
    %v6858 = vpop.permute.xlu0 %6857
    %v6862 = vsel %vm6058, %v6798, %v6844
    %v6863 = vsel %vm6058, %v6821, %v6846
    %v6864 = vsel %vm6058, %v6818, %v6848
    %v6865 = vsel %vm570, %v6862, %v6854
    %v6866 = vsel %vm570, %v6863, %v6856
    %v6867 = vsel %vm570, %v6864, %v6858
    %v6869 = vlaneseq
    %v6870 = vshrl.u32 %v6869, 7
    %v6871 = vsub.s32 0, %v6870
    %v6872 = vrot.slane %v6808, %v6871
    %v6875 = vsel %vm6073, %v6865, 0
    %v6878 = vsel %vm6073, %v6866, 0
    %v6881 = vsel %vm6073, %v6867, 0
    %6883 = vmatprep.subr.mxu0 0.0
    %v6884 = vand.u32 %v6802, 4294901760
    %6885 = vmatpush1.msra.mxu0 %v6884
    %6886 = vmatprep.subr.mxu0 0.0
    %v6887 = vand.u32 %v6803, 4294901760
    %6888 = vmatpush1.msra.mxu0 %v6887
    %6889 = vmatprep.subr.mxu0 0.0
    %v6890 = vand.u32 %v6804, 4294901760
    %6891 = vmatpush1.msra.mxu0 %v6890
    %6892 = vmatprep.subr.mxu0 0.0
    %v6893 = vand.u32 %v6805, 4294901760
    %6894 = vmatpush1.msra.mxu0 %v6893
    %6895 = vmatprep.subr.mxu0 0.0
    %v6896 = vand.u32 %v6806, 4294901760
    %6897 = vmatpush1.msra.mxu0 %v6896
    %6898 = vmatprep.subr.mxu0 0.0
    %v6899 = vand.u32 %v6807, 4294901760
    %6900 = vmatpush1.msra.mxu0 %v6899
    %6901 = vmatprep.subr.mxu0 0.0
    %6902 = vmatpush1.msra.mxu0 0.0
    %6903 = vmatprep.subr.mxu0 0.0
    %6904 = vmatpush1.msra.mxu0 0.0
    %6905 = vmatprep.subr.mxu0 0.0
    %6906 = vmatpush1.msra.mxu0 0.0
    %6907 = vmatprep.subr.mxu0 0.0
    %6908 = vmatpush1.msra.mxu0 0.0
    %6909 = vmatprep.subr.mxu0 0.0
    %6910 = vmatpush1.msra.mxu0 0.0
    %6911 = vmatprep.subr.mxu0 0.0
    %6912 = vmatpush1.msra.mxu0 0.0
    %6913 = vmatprep.subr.mxu0 0.0
    %6914 = vmatpush1.msra.mxu0 0.0
    %6915 = vmatprep.subr.mxu0 0.0
    %6916 = vmatpush1.msra.mxu0 0.0
    %6917 = vmatprep.subr.mxu0 0.0
    %6918 = vmatpush1.msra.mxu0 0.0
    %6919 = vmatprep.subr.mxu0 0.0
    %6920 = vmatpush1.msra.mxu0 0.0
    %6921 = vmatprep.subr.mxu0 0.0
    %6922 = vmatpush1.msra.mxu0 0.0
    %6923 = vmatprep.subr.mxu0 0.0
    %6924 = vmatpush1.msra.mxu0 0.0
    %6925 = vmatprep.subr.mxu0 0.0
    %6926 = vmatpush1.msra.mxu0 0.0
    %6927 = vmatprep.subr.mxu0 0.0
    %6928 = vmatpush1.msra.mxu0 0.0
    %6929 = vmatprep.subr.mxu0 0.0
    %6930 = vmatpush1.msra.mxu0 0.0
    %6931 = vmatprep.subr.mxu0 0.0
    %6932 = vmatpush1.msra.mxu0 0.0
    %6933 = vmatprep.subr.mxu0 0.0
    %6934 = vmatpush1.msra.mxu0 0.0
    %6935 = vmatprep.subr.mxu0 0.0
    %6936 = vmatpush1.msra.mxu0 0.0
    %6937 = vmatprep.subr.mxu0 0.0
    %6938 = vmatpush1.msra.mxu0 0.0
    %6939 = vmatprep.subr.mxu0 0.0
    %6940 = vmatpush1.msra.mxu0 0.0
    %6941 = vmatprep.subr.mxu0 0.0
    %6942 = vmatpush1.msra.mxu0 0.0
    %6943 = vmatprep.subr.mxu0 0.0
    %6944 = vmatpush1.msra.mxu0 0.0
    %6945 = vmatprep.subr.mxu0 0.0
    %6946 = vmatpush1.msra.mxu0 0.0
    %6947 = vmatprep.subr.mxu0 0.0
    %6948 = vmatpush1.msra.mxu0 0.0
    %6949 = vmatprep.subr.mxu0 0.0
    %6950 = vmatpush1.msra.mxu0 0.0
    %6951 = vmatprep.subr.mxu0 0.0
    %6952 = vmatpush1.msra.mxu0 0.0
    %6953 = vmatprep.mubr.f32.mxu0 0.0
    %v6954 = vand.u32 %v6875, 4294901760
    %v6955 = vsub.f32 %v6875, %v6954
    %v6956 = vand.u32 %v6955, 4294901760
    %v6957 = vsub.f32 %v6955, %v6956
    %v6958 = vand.u32 %v6957, 4294901760
    %6959 = vmatmul.mubr.f32.gmra.mrb[0].mxu0 %v6958
    %v6960 = vpop.f32.mrb[0].mxu0
    %v6961 = vadd.f32 %v6872, %v6960
    %v6962 = vpop.f32.mrb[0].mxu0
    %6963 = vmatprep.mubr.f32.mxu0 0.0
    %v6964 = vand.u32 %v6878, 4294901760
    %v6965 = vsub.f32 %v6878, %v6964
    %v6966 = vand.u32 %v6965, 4294901760
    %v6967 = vsub.f32 %v6965, %v6966
    %v6968 = vand.u32 %v6967, 4294901760
    %6969 = vmatmul.mubr.f32.gmra.mrb[0].mxu0 %v6968
    %v6970 = vpop.f32.mrb[0].mxu0
    %v6971 = vadd.f32 %v6872, %v6970
    %v6972 = vpop.f32.mrb[0].mxu0
    %6973 = vmatprep.mubr.f32.mxu0 0.0
    %v6974 = vand.u32 %v6881, 4294901760
    %v6975 = vsub.f32 %v6881, %v6974
    %v6976 = vand.u32 %v6975, 4294901760
    %v6977 = vsub.f32 %v6975, %v6976
    %v6978 = vand.u32 %v6977, 4294901760
    %6979 = vmatmul.mubr.f32.gmra.mrb[0].mxu0 %v6978
    %v6980 = vpop.f32.mrb[0].mxu0
    %v6981 = vadd.f32 %v6872, %v6980
    %v6982 = vpop.f32.mrb[0].mxu0
    %6983 = vdwg.mxu0
    %6984 = vmatprep.subr.mxu0 0.0
    %v6985 = vand.u32 %v6802, 4294901760
    %v6986 = vsub.f32 %v6802, %v6985
    %v6987 = vand.u32 %v6986, 4294901760
    %v6988 = vsub.f32 %v6986, %v6987
    %v6989 = vand.u32 %v6988, 4294901760
    %6990 = vmatpush1.msra.mxu0 %v6989
    %6991 = vmatprep.subr.mxu0 0.0
    %v6992 = vand.u32 %v6803, 4294901760
    %v6993 = vsub.f32 %v6803, %v6992
    %v6994 = vand.u32 %v6993, 4294901760
    %v6995 = vsub.f32 %v6993, %v6994
    %v6996 = vand.u32 %v6995, 4294901760
    %6997 = vmatpush1.msra.mxu0 %v6996
    %6998 = vmatprep.subr.mxu0 0.0
    %v6999 = vand.u32 %v6804, 4294901760
    %v7000 = vsub.f32 %v6804, %v6999
    %v7001 = vand.u32 %v7000, 4294901760
    %v7002 = vsub.f32 %v7000, %v7001
    %v7003 = vand.u32 %v7002, 4294901760
    %7004 = vmatpush1.msra.mxu0 %v7003
    %7005 = vmatprep.subr.mxu0 0.0
    %v7006 = vand.u32 %v6805, 4294901760
    %v7007 = vsub.f32 %v6805, %v7006
    %v7008 = vand.u32 %v7007, 4294901760
    %v7009 = vsub.f32 %v7007, %v7008
    %v7010 = vand.u32 %v7009, 4294901760
    %7011 = vmatpush1.msra.mxu0 %v7010
    %7012 = vmatprep.subr.mxu0 0.0
    %v7013 = vand.u32 %v6806, 4294901760
    %v7014 = vsub.f32 %v6806, %v7013
    %v7015 = vand.u32 %v7014, 4294901760
    %v7016 = vsub.f32 %v7014, %v7015
    %v7017 = vand.u32 %v7016, 4294901760
    %7018 = vmatpush1.msra.mxu0 %v7017
    %7019 = vmatprep.subr.mxu0 0.0
    %v7020 = vand.u32 %v6807, 4294901760
    %v7021 = vsub.f32 %v6807, %v7020
    %v7022 = vand.u32 %v7021, 4294901760
    %v7023 = vsub.f32 %v7021, %v7022
    %v7024 = vand.u32 %v7023, 4294901760
    %7025 = vmatpush1.msra.mxu0 %v7024
    %7026 = vmatprep.subr.mxu0 0.0
    %7027 = vmatpush1.msra.mxu0 0.0
    %7028 = vmatprep.subr.mxu0 0.0
    %7029 = vmatpush1.msra.mxu0 0.0
    %7030 = vmatprep.subr.mxu0 0.0
    %7031 = vmatpush1.msra.mxu0 0.0
    %7032 = vmatprep.subr.mxu0 0.0
    %7033 = vmatpush1.msra.mxu0 0.0
    %7034 = vmatprep.subr.mxu0 0.0
    %7035 = vmatpush1.msra.mxu0 0.0
    %7036 = vmatprep.subr.mxu0 0.0
    %7037 = vmatpush1.msra.mxu0 0.0
    %7038 = vmatprep.subr.mxu0 0.0
    %7039 = vmatpush1.msra.mxu0 0.0
    %7040 = vmatprep.subr.mxu0 0.0
    %7041 = vmatpush1.msra.mxu0 0.0
    %7042 = vmatprep.subr.mxu0 0.0
    %7043 = vmatpush1.msra.mxu0 0.0
    %7044 = vmatprep.subr.mxu0 0.0
    %7045 = vmatpush1.msra.mxu0 0.0
    %7046 = vmatprep.subr.mxu0 0.0
    %7047 = vmatpush1.msra.mxu0 0.0
    %7048 = vmatprep.subr.mxu0 0.0
    %7049 = vmatpush1.msra.mxu0 0.0
    %7050 = vmatprep.subr.mxu0 0.0
    %7051 = vmatpush1.msra.mxu0 0.0
    %7052 = vmatprep.subr.mxu0 0.0
    %7053 = vmatpush1.msra.mxu0 0.0
    %7054 = vmatprep.subr.mxu0 0.0
    %7055 = vmatpush1.msra.mxu0 0.0
    %7056 = vmatprep.subr.mxu0 0.0
    %7057 = vmatpush1.msra.mxu0 0.0
    %7058 = vmatprep.subr.mxu0 0.0
    %7059 = vmatpush1.msra.mxu0 0.0
    %7060 = vmatprep.subr.mxu0 0.0
    %7061 = vmatpush1.msra.mxu0 0.0
    %7062 = vmatprep.subr.mxu0 0.0
    %7063 = vmatpush1.msra.mxu0 0.0
    %7064 = vmatprep.subr.mxu0 0.0
    %7065 = vmatpush1.msra.mxu0 0.0
    %7066 = vmatprep.subr.mxu0 0.0
    %7067 = vmatpush1.msra.mxu0 0.0
    %7068 = vmatprep.subr.mxu0 0.0
    %7069 = vmatpush1.msra.mxu0 0.0
    %7070 = vmatprep.subr.mxu0 0.0
    %7071 = vmatpush1.msra.mxu0 0.0
    %7072 = vmatprep.subr.mxu0 0.0
    %7073 = vmatpush1.msra.mxu0 0.0
    %7074 = vmatprep.subr.mxu0 0.0
    %7075 = vmatpush1.msra.mxu0 0.0
    %7076 = vmatprep.subr.mxu0 0.0
    %7077 = vmatpush1.msra.mxu0 0.0
    %7078 = vmatprep.mubr.f32.mxu0 0.0
    %v7079 = vand.u32 %v6875, 4294901760
    %7080 = vmatmul.mubr.f32.gmra.mrb[0].mxu0 %v7079
    %v7081 = vpop.f32.mrb[0].mxu0
    %v7082 = vadd.f32 %v6961, %v7081
    %v7083 = vpop.f32.mrb[0].mxu0
    %7084 = vmatprep.mubr.f32.mxu0 0.0
    %v7085 = vand.u32 %v6878, 4294901760
    %7086 = vmatmul.mubr.f32.gmra.mrb[0].mxu0 %v7085
    %v7087 = vpop.f32.mrb[0].mxu0
    %v7088 = vadd.f32 %v6971, %v7087
    %v7089 = vpop.f32.mrb[0].mxu0
    %7090 = vmatprep.mubr.f32.mxu0 0.0
    %v7091 = vand.u32 %v6881, 4294901760
    %7092 = vmatmul.mubr.f32.gmra.mrb[0].mxu0 %v7091
    %v7093 = vpop.f32.mrb[0].mxu0
    %v7094 = vadd.f32 %v6981, %v7093
    %v7095 = vpop.f32.mrb[0].mxu0
    %7096 = vdwg.mxu0
    %7097 = vmatprep.subr.mxu0 0.0
    %v7098 = vand.u32 %v6802, 4294901760
    %v7099 = vsub.f32 %v6802, %v7098
    %7100 = vmatpush1.msra.mxu0 %v7099
    %7101 = vmatprep.subr.mxu0 0.0
    %v7102 = vand.u32 %v6803, 4294901760
    %v7103 = vsub.f32 %v6803, %v7102
    %7104 = vmatpush1.msra.mxu0 %v7103
    %7105 = vmatprep.subr.mxu0 0.0
    %v7106 = vand.u32 %v6804, 4294901760
    %v7107 = vsub.f32 %v6804, %v7106
    %7108 = vmatpush1.msra.mxu0 %v7107
    %7109 = vmatprep.subr.mxu0 0.0
    %v7110 = vand.u32 %v6805, 4294901760
    %v7111 = vsub.f32 %v6805, %v7110
    %7112 = vmatpush1.msra.mxu0 %v7111
    %7113 = vmatprep.subr.mxu0 0.0
    %v7114 = vand.u32 %v6806, 4294901760
    %v7115 = vsub.f32 %v6806, %v7114
    %7116 = vmatpush1.msra.mxu0 %v7115
    %7117 = vmatprep.subr.mxu0 0.0
    %v7118 = vand.u32 %v6807, 4294901760
    %v7119 = vsub.f32 %v6807, %v7118
    %7120 = vmatpush1.msra.mxu0 %v7119
    %7121 = vmatprep.subr.mxu0 0.0
    %7122 = vmatpush1.msra.mxu0 0.0
    %7123 = vmatprep.subr.mxu0 0.0
    %7124 = vmatpush1.msra.mxu0 0.0
    %7125 = vmatprep.subr.mxu0 0.0
    %7126 = vmatpush1.msra.mxu0 0.0
    %7127 = vmatprep.subr.mxu0 0.0
    %7128 = vmatpush1.msra.mxu0 0.0
    %7129 = vmatprep.subr.mxu0 0.0
    %7130 = vmatpush1.msra.mxu0 0.0
    %7131 = vmatprep.subr.mxu0 0.0
    %7132 = vmatpush1.msra.mxu0 0.0
    %7133 = vmatprep.subr.mxu0 0.0
    %7134 = vmatpush1.msra.mxu0 0.0
    %7135 = vmatprep.subr.mxu0 0.0
    %7136 = vmatpush1.msra.mxu0 0.0
    %7137 = vmatprep.subr.mxu0 0.0
    %7138 = vmatpush1.msra.mxu0 0.0
    %7139 = vmatprep.subr.mxu0 0.0
    %7140 = vmatpush1.msra.mxu0 0.0
    %7141 = vmatprep.subr.mxu0 0.0
    %7142 = vmatpush1.msra.mxu0 0.0
    %7143 = vmatprep.subr.mxu0 0.0
    %7144 = vmatpush1.msra.mxu0 0.0
    %7145 = vmatprep.subr.mxu0 0.0
    %7146 = vmatpush1.msra.mxu0 0.0
    %7147 = vmatprep.subr.mxu0 0.0
    %7148 = vmatpush1.msra.mxu0 0.0
    %7149 = vmatprep.subr.mxu0 0.0
    %7150 = vmatpush1.msra.mxu0 0.0
    %7151 = vmatprep.subr.mxu0 0.0
    %7152 = vmatpush1.msra.mxu0 0.0
    %7153 = vmatprep.subr.mxu0 0.0
    %7154 = vmatpush1.msra.mxu0 0.0
    %7155 = vmatprep.subr.mxu0 0.0
    %7156 = vmatpush1.msra.mxu0 0.0
    %7157 = vmatprep.subr.mxu0 0.0
    %7158 = vmatpush1.msra.mxu0 0.0
    %7159 = vmatprep.subr.mxu0 0.0
    %7160 = vmatpush1.msra.mxu0 0.0
    %7161 = vmatprep.subr.mxu0 0.0
    %7162 = vmatpush1.msra.mxu0 0.0
    %7163 = vmatprep.subr.mxu0 0.0
    %7164 = vmatpush1.msra.mxu0 0.0
    %7165 = vmatprep.subr.mxu0 0.0
    %7166 = vmatpush1.msra.mxu0 0.0
    %7167 = vmatprep.subr.mxu0 0.0
    %7168 = vmatpush1.msra.mxu0 0.0
    %7169 = vmatprep.subr.mxu0 0.0
    %7170 = vmatpush1.msra.mxu0 0.0
    %7171 = vmatprep.subr.mxu0 0.0
    %7172 = vmatpush1.msra.mxu0 0.0
    %7173 = vmatprep.mubr.f32.mxu0 0.0
    %v7174 = vand.u32 %v6875, 4294901760
    %v7175 = vsub.f32 %v6875, %v7174
    %7176 = vmatmul.mubr.f32.gmra.mrb[0].mxu0 %v7175
    %v7177 = vpop.f32.mrb[0].mxu0
    %v7178 = vadd.f32 %v7082, %v7177
    %v7179 = vpop.f32.mrb[0].mxu0
    %7180 = vmatprep.mubr.f32.mxu0 0.0
    %v7181 = vand.u32 %v6878, 4294901760
    %v7182 = vsub.f32 %v6878, %v7181
    %7183 = vmatmul.mubr.f32.gmra.mrb[0].mxu0 %v7182
    %v7184 = vpop.f32.mrb[0].mxu0
    %v7185 = vadd.f32 %v7088, %v7184
    %v7186 = vpop.f32.mrb[0].mxu0
    %7187 = vmatprep.mubr.f32.mxu0 0.0
    %v7188 = vand.u32 %v6881, 4294901760
    %v7189 = vsub.f32 %v6881, %v7188
    %7190 = vmatmul.mubr.f32.gmra.mrb[0].mxu0 %v7189
    %v7191 = vpop.f32.mrb[0].mxu0
    %v7192 = vadd.f32 %v7094, %v7191
    %v7193 = vpop.f32.mrb[0].mxu0
    %7194 = vdwg.mxu0
    %7195 = vmatprep.subr.mxu0 0.0
    %v7196 = vand.u32 %v6802, 4294901760
    %7197 = vmatpush1.msra.mxu0 %v7196
    %7198 = vmatprep.subr.mxu0 0.0
    %v7199 = vand.u32 %v6803, 4294901760
    %7200 = vmatpush1.msra.mxu0 %v7199
    %7201 = vmatprep.subr.mxu0 0.0
    %v7202 = vand.u32 %v6804, 4294901760
    %7203 = vmatpush1.msra.mxu0 %v7202
    %7204 = vmatprep.subr.mxu0 0.0
    %v7205 = vand.u32 %v6805, 4294901760
    %7206 = vmatpush1.msra.mxu0 %v7205
    %7207 = vmatprep.subr.mxu0 0.0
    %v7208 = vand.u32 %v6806, 4294901760
    %7209 = vmatpush1.msra.mxu0 %v7208
    %7210 = vmatprep.subr.mxu0 0.0
    %v7211 = vand.u32 %v6807, 4294901760
    %7212 = vmatpush1.msra.mxu0 %v7211
    %7213 = vmatprep.subr.mxu0 0.0
    %7214 = vmatpush1.msra.mxu0 0.0
    %7215 = vmatprep.subr.mxu0 0.0
    %7216 = vmatpush1.msra.mxu0 0.0
    %7217 = vmatprep.subr.mxu0 0.0
    %7218 = vmatpush1.msra.mxu0 0.0
    %7219 = vmatprep.subr.mxu0 0.0
    %7220 = vmatpush1.msra.mxu0 0.0
    %7221 = vmatprep.subr.mxu0 0.0
    %7222 = vmatpush1.msra.mxu0 0.0
    %7223 = vmatprep.subr.mxu0 0.0
    %7224 = vmatpush1.msra.mxu0 0.0
    %7225 = vmatprep.subr.mxu0 0.0
    %7226 = vmatpush1.msra.mxu0 0.0
    %7227 = vmatprep.subr.mxu0 0.0
    %7228 = vmatpush1.msra.mxu0 0.0
    %7229 = vmatprep.subr.mxu0 0.0
    %7230 = vmatpush1.msra.mxu0 0.0
    %7231 = vmatprep.subr.mxu0 0.0
    %7232 = vmatpush1.msra.mxu0 0.0
    %7233 = vmatprep.subr.mxu0 0.0
    %7234 = vmatpush1.msra.mxu0 0.0
    %7235 = vmatprep.subr.mxu0 0.0
    %7236 = vmatpush1.msra.mxu0 0.0
    %7237 = vmatprep.subr.mxu0 0.0
    %7238 = vmatpush1.msra.mxu0 0.0
    %7239 = vmatprep.subr.mxu0 0.0
    %7240 = vmatpush1.msra.mxu0 0.0
    %7241 = vmatprep.subr.mxu0 0.0
    %7242 = vmatpush1.msra.mxu0 0.0
    %7243 = vmatprep.subr.mxu0 0.0
    %7244 = vmatpush1.msra.mxu0 0.0
    %7245 = vmatprep.subr.mxu0 0.0
    %7246 = vmatpush1.msra.mxu0 0.0
    %7247 = vmatprep.subr.mxu0 0.0
    %7248 = vmatpush1.msra.mxu0 0.0
    %7249 = vmatprep.subr.mxu0 0.0
    %7250 = vmatpush1.msra.mxu0 0.0
    %7251 = vmatprep.subr.mxu0 0.0
    %7252 = vmatpush1.msra.mxu0 0.0
    %7253 = vmatprep.subr.mxu0 0.0
    %7254 = vmatpush1.msra.mxu0 0.0
    %7255 = vmatprep.subr.mxu0 0.0
    %7256 = vmatpush1.msra.mxu0 0.0
    %7257 = vmatprep.subr.mxu0 0.0
    %7258 = vmatpush1.msra.mxu0 0.0
    %7259 = vmatprep.subr.mxu0 0.0
    %7260 = vmatpush1.msra.mxu0 0.0
    %7261 = vmatprep.subr.mxu0 0.0
    %7262 = vmatpush1.msra.mxu0 0.0
    %7263 = vmatprep.subr.mxu0 0.0
    %7264 = vmatpush1.msra.mxu0 0.0
    %7265 = vmatprep.mubr.f32.mxu0 0.0
    %v7266 = vand.u32 %v6875, 4294901760
    %v7267 = vsub.f32 %v6875, %v7266
    %v7268 = vand.u32 %v7267, 4294901760
    %7269 = vmatmul.mubr.f32.gmra.mrb[0].mxu0 %v7268
    %v7270 = vpop.f32.mrb[0].mxu0
    %v7271 = vadd.f32 %v7178, %v7270
    %v7272 = vpop.f32.mrb[0].mxu0
    %7273 = vmatprep.mubr.f32.mxu0 0.0
    %v7274 = vand.u32 %v6878, 4294901760
    %v7275 = vsub.f32 %v6878, %v7274
    %v7276 = vand.u32 %v7275, 4294901760
    %7277 = vmatmul.mubr.f32.gmra.mrb[0].mxu0 %v7276
    %v7278 = vpop.f32.mrb[0].mxu0
    %v7279 = vadd.f32 %v7185, %v7278
    %v7280 = vpop.f32.mrb[0].mxu0
    %7281 = vmatprep.mubr.f32.mxu0 0.0
    %v7282 = vand.u32 %v6881, 4294901760
    %v7283 = vsub.f32 %v6881, %v7282
    %v7284 = vand.u32 %v7283, 4294901760
    %7285 = vmatmul.mubr.f32.gmra.mrb[0].mxu0 %v7284
    %v7286 = vpop.f32.mrb[0].mxu0
    %v7287 = vadd.f32 %v7192, %v7286
    %v7288 = vpop.f32.mrb[0].mxu0
    %7289 = vdwg.mxu0
    %7290 = vmatprep.subr.mxu0 0.0
    %v7291 = vand.u32 %v6802, 4294901760
    %v7292 = vsub.f32 %v6802, %v7291
    %v7293 = vand.u32 %v7292, 4294901760
    %7294 = vmatpush1.msra.mxu0 %v7293
    %7295 = vmatprep.subr.mxu0 0.0
    %v7296 = vand.u32 %v6803, 4294901760
    %v7297 = vsub.f32 %v6803, %v7296
    %v7298 = vand.u32 %v7297, 4294901760
    %7299 = vmatpush1.msra.mxu0 %v7298
    %7300 = vmatprep.subr.mxu0 0.0
    %v7301 = vand.u32 %v6804, 4294901760
    %v7302 = vsub.f32 %v6804, %v7301
    %v7303 = vand.u32 %v7302, 4294901760
    %7304 = vmatpush1.msra.mxu0 %v7303
    %7305 = vmatprep.subr.mxu0 0.0
    %v7306 = vand.u32 %v6805, 4294901760
    %v7307 = vsub.f32 %v6805, %v7306
    %v7308 = vand.u32 %v7307, 4294901760
    %7309 = vmatpush1.msra.mxu0 %v7308
    %7310 = vmatprep.subr.mxu0 0.0
    %v7311 = vand.u32 %v6806, 4294901760
    %v7312 = vsub.f32 %v6806, %v7311
    %v7313 = vand.u32 %v7312, 4294901760
    %7314 = vmatpush1.msra.mxu0 %v7313
    %7315 = vmatprep.subr.mxu0 0.0
    %v7316 = vand.u32 %v6807, 4294901760
    %v7317 = vsub.f32 %v6807, %v7316
    %v7318 = vand.u32 %v7317, 4294901760
    %7319 = vmatpush1.msra.mxu0 %v7318
    %7320 = vmatprep.subr.mxu0 0.0
    %7321 = vmatpush1.msra.mxu0 0.0
    %7322 = vmatprep.subr.mxu0 0.0
    %7323 = vmatpush1.msra.mxu0 0.0
    %7324 = vmatprep.subr.mxu0 0.0
    %7325 = vmatpush1.msra.mxu0 0.0
    %7326 = vmatprep.subr.mxu0 0.0
    %7327 = vmatpush1.msra.mxu0 0.0
    %7328 = vmatprep.subr.mxu0 0.0
    %7329 = vmatpush1.msra.mxu0 0.0
    %7330 = vmatprep.subr.mxu0 0.0
    %7331 = vmatpush1.msra.mxu0 0.0
    %7332 = vmatprep.subr.mxu0 0.0
    %7333 = vmatpush1.msra.mxu0 0.0
    %7334 = vmatprep.subr.mxu0 0.0
    %7335 = vmatpush1.msra.mxu0 0.0
    %7336 = vmatprep.subr.mxu0 0.0
    %7337 = vmatpush1.msra.mxu0 0.0
    %7338 = vmatprep.subr.mxu0 0.0
    %7339 = vmatpush1.msra.mxu0 0.0
    %7340 = vmatprep.subr.mxu0 0.0
    %7341 = vmatpush1.msra.mxu0 0.0
    %7342 = vmatprep.subr.mxu0 0.0
    %7343 = vmatpush1.msra.mxu0 0.0
    %7344 = vmatprep.subr.mxu0 0.0
    %7345 = vmatpush1.msra.mxu0 0.0
    %7346 = vmatprep.subr.mxu0 0.0
    %7347 = vmatpush1.msra.mxu0 0.0
    %7348 = vmatprep.subr.mxu0 0.0
    %7349 = vmatpush1.msra.mxu0 0.0
    %7350 = vmatprep.subr.mxu0 0.0
    %7351 = vmatpush1.msra.mxu0 0.0
    %7352 = vmatprep.subr.mxu0 0.0
    %7353 = vmatpush1.msra.mxu0 0.0
    %7354 = vmatprep.subr.mxu0 0.0
    %7355 = vmatpush1.msra.mxu0 0.0
    %7356 = vmatprep.subr.mxu0 0.0
    %7357 = vmatpush1.msra.mxu0 0.0
    %7358 = vmatprep.subr.mxu0 0.0
    %7359 = vmatpush1.msra.mxu0 0.0
    %7360 = vmatprep.subr.mxu0 0.0
    %7361 = vmatpush1.msra.mxu0 0.0
    %7362 = vmatprep.subr.mxu0 0.0
    %7363 = vmatpush1.msra.mxu0 0.0
    %7364 = vmatprep.subr.mxu0 0.0
    %7365 = vmatpush1.msra.mxu0 0.0
    %7366 = vmatprep.subr.mxu0 0.0
    %7367 = vmatpush1.msra.mxu0 0.0
    %7368 = vmatprep.subr.mxu0 0.0
    %7369 = vmatpush1.msra.mxu0 0.0
    %7370 = vmatprep.subr.mxu0 0.0
    %7371 = vmatpush1.msra.mxu0 0.0
    %7372 = vmatprep.mubr.f32.mxu0 0.0
    %v7373 = vand.u32 %v6875, 4294901760
    %7374 = vmatmul.mubr.f32.gmra.mrb[0].mxu0 %v7373
    %v7375 = vpop.f32.mrb[0].mxu0
    %v7376 = vadd.f32 %v7271, %v7375
    %v7377 = vpop.f32.mrb[0].mxu0
    %7378 = vmatprep.mubr.f32.mxu0 0.0
    %v7379 = vand.u32 %v6878, 4294901760
    %7380 = vmatmul.mubr.f32.gmra.mrb[0].mxu0 %v7379
    %v7381 = vpop.f32.mrb[0].mxu0
    %v7382 = vadd.f32 %v7279, %v7381
    %v7383 = vpop.f32.mrb[0].mxu0
    %7384 = vmatprep.mubr.f32.mxu0 0.0
    %v7385 = vand.u32 %v6881, 4294901760
    %7386 = vmatmul.mubr.f32.gmra.mrb[0].mxu0 %v7385
    %v7387 = vpop.f32.mrb[0].mxu0
    %v7388 = vadd.f32 %v7287, %v7387
    %v7389 = vpop.f32.mrb[0].mxu0
    %7390 = vdwg.mxu0
    %7391 = vmatprep.subr.mxu0 0.0
    %v7392 = vand.u32 %v6802, 4294901760
    %7393 = vmatpush1.msra.mxu0 %v7392
    %7394 = vmatprep.subr.mxu0 0.0
    %v7395 = vand.u32 %v6803, 4294901760
    %7396 = vmatpush1.msra.mxu0 %v7395
    %7397 = vmatprep.subr.mxu0 0.0
    %v7398 = vand.u32 %v6804, 4294901760
    %7399 = vmatpush1.msra.mxu0 %v7398
    %7400 = vmatprep.subr.mxu0 0.0
    %v7401 = vand.u32 %v6805, 4294901760
    %7402 = vmatpush1.msra.mxu0 %v7401
    %7403 = vmatprep.subr.mxu0 0.0
    %v7404 = vand.u32 %v6806, 4294901760
    %7405 = vmatpush1.msra.mxu0 %v7404
    %7406 = vmatprep.subr.mxu0 0.0
    %v7407 = vand.u32 %v6807, 4294901760
    %7408 = vmatpush1.msra.mxu0 %v7407
    %7409 = vmatprep.subr.mxu0 0.0
    %7410 = vmatpush1.msra.mxu0 0.0
    %7411 = vmatprep.subr.mxu0 0.0
    %7412 = vmatpush1.msra.mxu0 0.0
    %7413 = vmatprep.subr.mxu0 0.0
    %7414 = vmatpush1.msra.mxu0 0.0
    %7415 = vmatprep.subr.mxu0 0.0
    %7416 = vmatpush1.msra.mxu0 0.0
    %7417 = vmatprep.subr.mxu0 0.0
    %7418 = vmatpush1.msra.mxu0 0.0
    %7419 = vmatprep.subr.mxu0 0.0
    %7420 = vmatpush1.msra.mxu0 0.0
    %7421 = vmatprep.subr.mxu0 0.0
    %7422 = vmatpush1.msra.mxu0 0.0
    %7423 = vmatprep.subr.mxu0 0.0
    %7424 = vmatpush1.msra.mxu0 0.0
    %7425 = vmatprep.subr.mxu0 0.0
    %7426 = vmatpush1.msra.mxu0 0.0
    %7427 = vmatprep.subr.mxu0 0.0
    %7428 = vmatpush1.msra.mxu0 0.0
    %7429 = vmatprep.subr.mxu0 0.0
    %7430 = vmatpush1.msra.mxu0 0.0
    %7431 = vmatprep.subr.mxu0 0.0
    %7432 = vmatpush1.msra.mxu0 0.0
    %7433 = vmatprep.subr.mxu0 0.0
    %7434 = vmatpush1.msra.mxu0 0.0
    %7435 = vmatprep.subr.mxu0 0.0
    %7436 = vmatpush1.msra.mxu0 0.0
    %7437 = vmatprep.subr.mxu0 0.0
    %7438 = vmatpush1.msra.mxu0 0.0
    %7439 = vmatprep.subr.mxu0 0.0
    %7440 = vmatpush1.msra.mxu0 0.0
    %7441 = vmatprep.subr.mxu0 0.0
    %7442 = vmatpush1.msra.mxu0 0.0
    %7443 = vmatprep.subr.mxu0 0.0
    %7444 = vmatpush1.msra.mxu0 0.0
    %7445 = vmatprep.subr.mxu0 0.0
    %7446 = vmatpush1.msra.mxu0 0.0
    %7447 = vmatprep.subr.mxu0 0.0
    %7448 = vmatpush1.msra.mxu0 0.0
    %7449 = vmatprep.subr.mxu0 0.0
    %7450 = vmatpush1.msra.mxu0 0.0
    %7451 = vmatprep.subr.mxu0 0.0
    %7452 = vmatpush1.msra.mxu0 0.0
    %7453 = vmatprep.subr.mxu0 0.0
    %7454 = vmatpush1.msra.mxu0 0.0
    %7455 = vmatprep.subr.mxu0 0.0
    %7456 = vmatpush1.msra.mxu0 0.0
    %7457 = vmatprep.subr.mxu0 0.0
    %7458 = vmatpush1.msra.mxu0 0.0
    %7459 = vmatprep.subr.mxu0 0.0
    %7460 = vmatpush1.msra.mxu0 0.0
    %7461 = vmatprep.mubr.f32.mxu0 0.0
    %v7462 = vand.u32 %v6875, 4294901760
    %7463 = vmatmul.mubr.f32.gmra.mrb[0].mxu0 %v7462
    %v7464 = vpop.f32.mrb[0].mxu0
    %v7465 = vadd.f32 %v7376, %v7464
    %v7466 = vpop.f32.mrb[0].mxu0
    %7467 = vmatprep.mubr.f32.mxu0 0.0
    %v7468 = vand.u32 %v6878, 4294901760
    %7469 = vmatmul.mubr.f32.gmra.mrb[0].mxu0 %v7468
    %v7470 = vpop.f32.mrb[0].mxu0
    %v7471 = vadd.f32 %v7382, %v7470
    %v7472 = vpop.f32.mrb[0].mxu0
    %7473 = vmatprep.mubr.f32.mxu0 0.0
    %v7474 = vand.u32 %v6881, 4294901760
    %7475 = vmatmul.mubr.f32.gmra.mrb[0].mxu0 %v7474
    %v7476 = vpop.f32.mrb[0].mxu0
    %v7477 = vadd.f32 %v7388, %v7476
    %v7478 = vpop.f32.mrb[0].mxu0
    %7479 = vdwg.mxu0
    %v7480 = vsel %vm570, %v7465, 0.0
    %v7481 = vsel %vm570, %v7471, 0.0
    %v7482 = vadd.f32 %v7480, %v7481
    %v7483 = vsel %vm570, %v7477, 0.0
    %v7484 = vadd.f32 %v7482, %v7483
    %v7485 = vrot.slane %v7484, 4
    %v7486 = vadd.f32 %v7484, %v7485
    %v7487 = vrot.slane %v7486, 2
    %v7488 = vadd.f32 %v7486, %v7487
    %v7489 = vrot.slane %v7488, 1
    %v7490 = vadd.f32 %v7488, %v7489
    %v7491 = vrcp.pop 24.0
    %v7492 = vmul.f32 %v7490, %v7491
    %v7493 = vsub.f32 %v7465, %v7492
    %v7494 = vsub.f32 %v7471, %v7492
    %v7495 = vsub.f32 %v7477, %v7492
    %v7496 = vmul.f32 %v7493, %v7493
    %v7497 = vmul.f32 %v7494, %v7494
    %v7498 = vmul.f32 %v7495, %v7495
    %v7499 = vsel %vm570, %v7496, 0.0
    %v7500 = vsel %vm570, %v7497, 0.0
    %v7501 = vadd.f32 %v7499, %v7500
    %v7502 = vsel %vm570, %v7498, 0.0
    %v7503 = vadd.f32 %v7501, %v7502
    %v7504 = vrot.slane %v7503, 4
    %v7505 = vadd.f32 %v7503, %v7504
    %v7506 = vrot.slane %v7505, 2
    %v7507 = vadd.f32 %v7505, %v7506
    %v7508 = vrot.slane %v7507, 1
    %v7509 = vadd.f32 %v7507, %v7508
    %v7510 = vmul.f32 %v7509, %v7491
    %v7511 = vadd.f32 %v7510, 1e-05
    %v7512 = vrsqrt.pop %v7511
    %v7513 = vmul.f32 %v7493, %v7512
    %v7514 = vmul.f32 %v7494, %v7512
    %v7515 = vmul.f32 %v7495, %v7512
    %v7517 = vlaneseq
    %v7518 = vshrl.u32 %v7517, 7
    %v7519 = vsub.s32 0, %v7518
    %v7520 = vrot.slane %v6809, %v7519
    %v7522 = vmul.f32 %v7513, %v7520
    %v7523 = vmul.f32 %v7514, %v7520
    %v7524 = vmul.f32 %v7515, %v7520
    %v7526 = vlaneseq
    %v7527 = vshrl.u32 %v7526, 7
    %v7528 = vsub.s32 0, %v7527
    %v7529 = vrot.slane %v6810, %v7528
    %v7531 = vadd.f32 %v7522, %v7529
    %v7532 = vadd.f32 %v7523, %v7529
    %v7533 = vadd.f32 %v7524, %v7529
    %vm7534 = vcmp.ge.f32.partialorder %v7531, 0.0
    %vm7535 = vcmp.ge.f32.partialorder %v7532, 0.0
    %vm7536 = vcmp.ge.f32.partialorder %v7533, 0.0
    %v7537 = vmul.f32 %v7531, 0.01
    %v7538 = vmul.f32 %v7532, 0.01
    %v7539 = vmul.f32 %v7533, 0.01
    %v7540 = vsel %vm7534, %v7531, %v7537
    %v7541 = vsel %vm7535, %v7532, %v7538
    %v7542 = vsel %vm7536, %v7533, %v7539
    %v7543 = vld [vmem:[%s87] sm:$0xff]
    %v7544 = vld [vmem:[%s87 + $0x8] sm:$0xff]
    %v7545 = vld [vmem:[%s87 + $0x10] sm:$0xff]
    %v7546 = vld [vmem:[%s87 + $0x18] sm:$0xff]
    %v7547 = vld [vmem:[%s87 + $0x20] sm:$0xff]
    %v7548 = vld [vmem:[%s87 + $0x28] sm:$0xff]
    %v7549 = vld [vmem:[%s87 + $0x30] sm:$0xff]
    %v7550 = vld [vmem:[%s87 + $0x38] sm:$0xff]
    %v7551 = vld [vmem:[%s87 + $0x40] sm:$0xff]
    %v7552 = vld [vmem:[%s87 + $0x48] sm:$0xff]
    %v7553 = vld [vmem:[%s87 + $0x50] sm:$0xff]
    %v7554 = vld [vmem:[%s87 + $0x58] sm:$0xff]
    %v7555 = vld [vmem:[%s89] sm:$0x1]
    %v7556 = vld [vmem:[%s91] sm:$0x1]
    %v7557 = vld [vmem:[%s93] sm:$0x1]
    %v7560 = vrot.slane %v7541, 2
    %v7561 = vrot.slane %v7542, 2
    %v7562 = vsel %vm3697, %v7560, %v7561
    %v7565 = vsel %vm2216, %v7541, %v7562
    %v7567 = vrot.slane %v7540, 1
    %v7568 = vrot.slane %v7541, 1
    %v7569 = vsel %vm3699, %v7567, %v7568
    %v7571 = vrot.slane %v7541, 3
    %v7572 = vrot.slane %v7542, 3
    %v7573 = vsel %vm3695, %v7571, %v7572
    %v7575 = vsel %vm2216, %v7568, %v7573
    %v7576 = vrot.slane %v7540, 2
    %v7577 = vsel %vm3697, %v7576, %v7560
    %v7579 = vrot.slane %v7541, 4
    %v7580 = vrot.slane %v7542, 4
    %v7581 = vsel %vm3693, %v7579, %v7580
    %v7583 = vsel %vm2216, %v7560, %v7581
    %7585 = vrot.lane.b32.xlu0 %v7569, 32
    %v7586 = vpop.permute.xlu0 %7585
    %7587 = vrot.lane.b32.xlu0 %v7575, 32
    %v7588 = vpop.permute.xlu0 %7587
    %7589 = vrot.lane.b32.xlu0 %v7572, 32
    %v7590 = vpop.permute.xlu0 %7589
    %7595 = vrot.lane.b32.xlu0 %v7577, 64
    %v7596 = vpop.permute.xlu0 %7595
    %7597 = vrot.lane.b32.xlu0 %v7583, 64
    %v7598 = vpop.permute.xlu0 %7597
    %7599 = vrot.lane.b32.xlu0 %v7580, 64
    %v7600 = vpop.permute.xlu0 %7599
    %v7604 = vsel %vm570, %v7540, %v7586
    %v7605 = vsel %vm570, %v7565, %v7588
    %v7606 = vsel %vm570, %v7561, %v7590
    %v7607 = vsel %vm1079, %v7604, %v7596
    %v7608 = vsel %vm1079, %v7605, %v7598
    %v7609 = vsel %vm1079, %v7606, %v7600
    %v7611 = vlaneseq
    %v7612 = vshrl.u32 %v7611, 7
    %v7613 = vsub.s32 0, %v7612
    %v7614 = vrot.slane %v7555, %v7613
    %vm7616 = vcmask 785408
    %v7618 = vsel %vm7616, %v7607, 0
    %v7621 = vsel %vm7616, %v7608, 0
    %v7624 = vsel %vm7616, %v7609, 0
    %7626 = vmatprep.subr.mxu0 0.0
    %v7627 = vand.u32 %v7543, 4294901760
    %7628 = vmatpush1.msra.mxu0 %v7627
    %7629 = vmatprep.subr.mxu0 0.0
    %v7630 = vand.u32 %v7544, 4294901760
    %7631 = vmatpush1.msra.mxu0 %v7630
    %7632 = vmatprep.subr.mxu0 0.0
    %v7633 = vand.u32 %v7545, 4294901760
    %7634 = vmatpush1.msra.mxu0 %v7633
    %7635 = vmatprep.subr.mxu0 0.0
    %v7636 = vand.u32 %v7546, 4294901760
    %7637 = vmatpush1.msra.mxu0 %v7636
    %7638 = vmatprep.subr.mxu0 0.0
    %v7639 = vand.u32 %v7547, 4294901760
    %7640 = vmatpush1.msra.mxu0 %v7639
    %7641 = vmatprep.subr.mxu0 0.0
    %v7642 = vand.u32 %v7548, 4294901760
    %7643 = vmatpush1.msra.mxu0 %v7642
    %7644 = vmatprep.subr.mxu0 0.0
    %v7645 = vand.u32 %v7549, 4294901760
    %7646 = vmatpush1.msra.mxu0 %v7645
    %7647 = vmatprep.subr.mxu0 0.0
    %v7648 = vand.u32 %v7550, 4294901760
    %7649 = vmatpush1.msra.mxu0 %v7648
    %7650 = vmatprep.subr.mxu0 0.0
    %v7651 = vand.u32 %v7551, 4294901760
    %7652 = vmatpush1.msra.mxu0 %v7651
    %7653 = vmatprep.subr.mxu0 0.0
    %v7654 = vand.u32 %v7552, 4294901760
    %7655 = vmatpush1.msra.mxu0 %v7654
    %7656 = vmatprep.subr.mxu0 0.0
    %v7657 = vand.u32 %v7553, 4294901760
    %7658 = vmatpush1.msra.mxu0 %v7657
    %7659 = vmatprep.subr.mxu0 0.0
    %v7660 = vand.u32 %v7554, 4294901760
    %7661 = vmatpush1.msra.mxu0 %v7660
    %7662 = vmatprep.subr.mxu0 0.0
    %7663 = vmatpush1.msra.mxu0 0.0
    %7664 = vmatprep.subr.mxu0 0.0
    %7665 = vmatpush1.msra.mxu0 0.0
    %7666 = vmatprep.subr.mxu0 0.0
    %7667 = vmatpush1.msra.mxu0 0.0
    %7668 = vmatprep.subr.mxu0 0.0
    %7669 = vmatpush1.msra.mxu0 0.0
    %7670 = vmatprep.subr.mxu0 0.0
    %7671 = vmatpush1.msra.mxu0 0.0
    %7672 = vmatprep.subr.mxu0 0.0
    %7673 = vmatpush1.msra.mxu0 0.0
    %7674 = vmatprep.subr.mxu0 0.0
    %7675 = vmatpush1.msra.mxu0 0.0
    %7676 = vmatprep.subr.mxu0 0.0
    %7677 = vmatpush1.msra.mxu0 0.0
    %7678 = vmatprep.subr.mxu0 0.0
    %7679 = vmatpush1.msra.mxu0 0.0
    %7680 = vmatprep.subr.mxu0 0.0
    %7681 = vmatpush1.msra.mxu0 0.0
    %7682 = vmatprep.subr.mxu0 0.0
    %7683 = vmatpush1.msra.mxu0 0.0
    %7684 = vmatprep.subr.mxu0 0.0
    %7685 = vmatpush1.msra.mxu0 0.0
    %7686 = vmatprep.subr.mxu0 0.0
    %7687 = vmatpush1.msra.mxu0 0.0
    %7688 = vmatprep.subr.mxu0 0.0
    %7689 = vmatpush1.msra.mxu0 0.0
    %7690 = vmatprep.subr.mxu0 0.0
    %7691 = vmatpush1.msra.mxu0 0.0
    %7692 = vmatprep.subr.mxu0 0.0
    %7693 = vmatpush1.msra.mxu0 0.0
    %7694 = vmatprep.subr.mxu0 0.0
    %7695 = vmatpush1.msra.mxu0 0.0
    %7696 = vmatprep.subr.mxu0 0.0
    %7697 = vmatpush1.msra.mxu0 0.0
    %7698 = vmatprep.subr.mxu0 0.0
    %7699 = vmatpush1.msra.mxu0 0.0
    %7700 = vmatprep.subr.mxu0 0.0
    %7701 = vmatpush1.msra.mxu0 0.0
    %7702 = vmatprep.mubr.f32.mxu0 0.0
    %v7703 = vand.u32 %v7618, 4294901760
    %v7704 = vsub.f32 %v7618, %v7703
    %v7705 = vand.u32 %v7704, 4294901760
    %v7706 = vsub.f32 %v7704, %v7705
    %v7707 = vand.u32 %v7706, 4294901760
    %7708 = vmatmul.mubr.f32.gmra.mrb[0].mxu0 %v7707
    %v7709 = vpop.f32.mrb[0].mxu0
    %v7710 = vadd.f32 %v7614, %v7709
    %v7711 = vpop.f32.mrb[0].mxu0
    %7712 = vmatprep.mubr.f32.mxu0 0.0
    %v7713 = vand.u32 %v7621, 4294901760
    %v7714 = vsub.f32 %v7621, %v7713
    %v7715 = vand.u32 %v7714, 4294901760
    %v7716 = vsub.f32 %v7714, %v7715
    %v7717 = vand.u32 %v7716, 4294901760
    %7718 = vmatmul.mubr.f32.gmra.mrb[0].mxu0 %v7717
    %v7719 = vpop.f32.mrb[0].mxu0
    %v7720 = vadd.f32 %v7614, %v7719
    %v7721 = vpop.f32.mrb[0].mxu0
    %7722 = vmatprep.mubr.f32.mxu0 0.0
    %v7723 = vand.u32 %v7624, 4294901760
    %v7724 = vsub.f32 %v7624, %v7723
    %v7725 = vand.u32 %v7724, 4294901760
    %v7726 = vsub.f32 %v7724, %v7725
    %v7727 = vand.u32 %v7726, 4294901760
    %7728 = vmatmul.mubr.f32.gmra.mrb[0].mxu0 %v7727
    %v7729 = vpop.f32.mrb[0].mxu0
    %v7730 = vadd.f32 %v7614, %v7729
    %v7731 = vpop.f32.mrb[0].mxu0
    %7732 = vdwg.mxu0
    %7733 = vmatprep.subr.mxu0 0.0
    %v7734 = vand.u32 %v7543, 4294901760
    %v7735 = vsub.f32 %v7543, %v7734
    %v7736 = vand.u32 %v7735, 4294901760
    %v7737 = vsub.f32 %v7735, %v7736
    %v7738 = vand.u32 %v7737, 4294901760
    %7739 = vmatpush1.msra.mxu0 %v7738
    %7740 = vmatprep.subr.mxu0 0.0
    %v7741 = vand.u32 %v7544, 4294901760
    %v7742 = vsub.f32 %v7544, %v7741
    %v7743 = vand.u32 %v7742, 4294901760
    %v7744 = vsub.f32 %v7742, %v7743
    %v7745 = vand.u32 %v7744, 4294901760
    %7746 = vmatpush1.msra.mxu0 %v7745
    %7747 = vmatprep.subr.mxu0 0.0
    %v7748 = vand.u32 %v7545, 4294901760
    %v7749 = vsub.f32 %v7545, %v7748
    %v7750 = vand.u32 %v7749, 4294901760
    %v7751 = vsub.f32 %v7749, %v7750
    %v7752 = vand.u32 %v7751, 4294901760
    %7753 = vmatpush1.msra.mxu0 %v7752
    %7754 = vmatprep.subr.mxu0 0.0
    %v7755 = vand.u32 %v7546, 4294901760
    %v7756 = vsub.f32 %v7546, %v7755
    %v7757 = vand.u32 %v7756, 4294901760
    %v7758 = vsub.f32 %v7756, %v7757
    %v7759 = vand.u32 %v7758, 4294901760
    %7760 = vmatpush1.msra.mxu0 %v7759
    %7761 = vmatprep.subr.mxu0 0.0
    %v7762 = vand.u32 %v7547, 4294901760
    %v7763 = vsub.f32 %v7547, %v7762
    %v7764 = vand.u32 %v7763, 4294901760
    %v7765 = vsub.f32 %v7763, %v7764
    %v7766 = vand.u32 %v7765, 4294901760
    %7767 = vmatpush1.msra.mxu0 %v7766
    %7768 = vmatprep.subr.mxu0 0.0
    %v7769 = vand.u32 %v7548, 4294901760
    %v7770 = vsub.f32 %v7548, %v7769
    %v7771 = vand.u32 %v7770, 4294901760
    %v7772 = vsub.f32 %v7770, %v7771
    %v7773 = vand.u32 %v7772, 4294901760
    %7774 = vmatpush1.msra.mxu0 %v7773
    %7775 = vmatprep.subr.mxu0 0.0
    %v7776 = vand.u32 %v7549, 4294901760
    %v7777 = vsub.f32 %v7549, %v7776
    %v7778 = vand.u32 %v7777, 4294901760
    %v7779 = vsub.f32 %v7777, %v7778
    %v7780 = vand.u32 %v7779, 4294901760
    %7781 = vmatpush1.msra.mxu0 %v7780
    %7782 = vmatprep.subr.mxu0 0.0
    %v7783 = vand.u32 %v7550, 4294901760
    %v7784 = vsub.f32 %v7550, %v7783
    %v7785 = vand.u32 %v7784, 4294901760
    %v7786 = vsub.f32 %v7784, %v7785
    %v7787 = vand.u32 %v7786, 4294901760
    %7788 = vmatpush1.msra.mxu0 %v7787
    %7789 = vmatprep.subr.mxu0 0.0
    %v7790 = vand.u32 %v7551, 4294901760
    %v7791 = vsub.f32 %v7551, %v7790
    %v7792 = vand.u32 %v7791, 4294901760
    %v7793 = vsub.f32 %v7791, %v7792
    %v7794 = vand.u32 %v7793, 4294901760
    %7795 = vmatpush1.msra.mxu0 %v7794
    %7796 = vmatprep.subr.mxu0 0.0
    %v7797 = vand.u32 %v7552, 4294901760
    %v7798 = vsub.f32 %v7552, %v7797
    %v7799 = vand.u32 %v7798, 4294901760
    %v7800 = vsub.f32 %v7798, %v7799
    %v7801 = vand.u32 %v7800, 4294901760
    %7802 = vmatpush1.msra.mxu0 %v7801
    %7803 = vmatprep.subr.mxu0 0.0
    %v7804 = vand.u32 %v7553, 4294901760
    %v7805 = vsub.f32 %v7553, %v7804
    %v7806 = vand.u32 %v7805, 4294901760
    %v7807 = vsub.f32 %v7805, %v7806
    %v7808 = vand.u32 %v7807, 4294901760
    %7809 = vmatpush1.msra.mxu0 %v7808
    %7810 = vmatprep.subr.mxu0 0.0
    %v7811 = vand.u32 %v7554, 4294901760
    %v7812 = vsub.f32 %v7554, %v7811
    %v7813 = vand.u32 %v7812, 4294901760
    %v7814 = vsub.f32 %v7812, %v7813
    %v7815 = vand.u32 %v7814, 4294901760
    %7816 = vmatpush1.msra.mxu0 %v7815
    %7817 = vmatprep.subr.mxu0 0.0
    %7818 = vmatpush1.msra.mxu0 0.0
    %7819 = vmatprep.subr.mxu0 0.0
    %7820 = vmatpush1.msra.mxu0 0.0
    %7821 = vmatprep.subr.mxu0 0.0
    %7822 = vmatpush1.msra.mxu0 0.0
    %7823 = vmatprep.subr.mxu0 0.0
    %7824 = vmatpush1.msra.mxu0 0.0
    %7825 = vmatprep.subr.mxu0 0.0
    %7826 = vmatpush1.msra.mxu0 0.0
    %7827 = vmatprep.subr.mxu0 0.0
    %7828 = vmatpush1.msra.mxu0 0.0
    %7829 = vmatprep.subr.mxu0 0.0
    %7830 = vmatpush1.msra.mxu0 0.0
    %7831 = vmatprep.subr.mxu0 0.0
    %7832 = vmatpush1.msra.mxu0 0.0
    %7833 = vmatprep.subr.mxu0 0.0
    %7834 = vmatpush1.msra.mxu0 0.0
    %7835 = vmatprep.subr.mxu0 0.0
    %7836 = vmatpush1.msra.mxu0 0.0
    %7837 = vmatprep.subr.mxu0 0.0
    %7838 = vmatpush1.msra.mxu0 0.0
    %7839 = vmatprep.subr.mxu0 0.0
    %7840 = vmatpush1.msra.mxu0 0.0
    %7841 = vmatprep.subr.mxu0 0.0
    %7842 = vmatpush1.msra.mxu0 0.0
    %7843 = vmatprep.subr.mxu0 0.0
    %7844 = vmatpush1.msra.mxu0 0.0
    %7845 = vmatprep.subr.mxu0 0.0
    %7846 = vmatpush1.msra.mxu0 0.0
    %7847 = vmatprep.subr.mxu0 0.0
    %7848 = vmatpush1.msra.mxu0 0.0
    %7849 = vmatprep.subr.mxu0 0.0
    %7850 = vmatpush1.msra.mxu0 0.0
    %7851 = vmatprep.subr.mxu0 0.0
    %7852 = vmatpush1.msra.mxu0 0.0
    %7853 = vmatprep.subr.mxu0 0.0
    %7854 = vmatpush1.msra.mxu0 0.0
    %7855 = vmatprep.subr.mxu0 0.0
    %7856 = vmatpush1.msra.mxu0 0.0
    %7857 = vmatprep.mubr.f32.mxu0 0.0
    %v7858 = vand.u32 %v7618, 4294901760
    %7859 = vmatmul.mubr.f32.gmra.mrb[0].mxu0 %v7858
    %v7860 = vpop.f32.mrb[0].mxu0
    %v7861 = vadd.f32 %v7710, %v7860
    %v7862 = vpop.f32.mrb[0].mxu0
    %7863 = vmatprep.mubr.f32.mxu0 0.0
    %v7864 = vand.u32 %v7621, 4294901760
    %7865 = vmatmul.mubr.f32.gmra.mrb[0].mxu0 %v7864
    %v7866 = vpop.f32.mrb[0].mxu0
    %v7867 = vadd.f32 %v7720, %v7866
    %v7868 = vpop.f32.mrb[0].mxu0
    %7869 = vmatprep.mubr.f32.mxu0 0.0
    %v7870 = vand.u32 %v7624, 4294901760
    %7871 = vmatmul.mubr.f32.gmra.mrb[0].mxu0 %v7870
    %v7872 = vpop.f32.mrb[0].mxu0
    %v7873 = vadd.f32 %v7730, %v7872
    %v7874 = vpop.f32.mrb[0].mxu0
    %7875 = vdwg.mxu0
    %7876 = vmatprep.subr.mxu0 0.0
    %v7877 = vand.u32 %v7543, 4294901760
    %v7878 = vsub.f32 %v7543, %v7877
    %7879 = vmatpush1.msra.mxu0 %v7878
    %7880 = vmatprep.subr.mxu0 0.0
    %v7881 = vand.u32 %v7544, 4294901760
    %v7882 = vsub.f32 %v7544, %v7881
    %7883 = vmatpush1.msra.mxu0 %v7882
    %7884 = vmatprep.subr.mxu0 0.0
    %v7885 = vand.u32 %v7545, 4294901760
    %v7886 = vsub.f32 %v7545, %v7885
    %7887 = vmatpush1.msra.mxu0 %v7886
    %7888 = vmatprep.subr.mxu0 0.0
    %v7889 = vand.u32 %v7546, 4294901760
    %v7890 = vsub.f32 %v7546, %v7889
    %7891 = vmatpush1.msra.mxu0 %v7890
    %7892 = vmatprep.subr.mxu0 0.0
    %v7893 = vand.u32 %v7547, 4294901760
    %v7894 = vsub.f32 %v7547, %v7893
    %7895 = vmatpush1.msra.mxu0 %v7894
    %7896 = vmatprep.subr.mxu0 0.0
    %v7897 = vand.u32 %v7548, 4294901760
    %v7898 = vsub.f32 %v7548, %v7897
    %7899 = vmatpush1.msra.mxu0 %v7898
    %7900 = vmatprep.subr.mxu0 0.0
    %v7901 = vand.u32 %v7549, 4294901760
    %v7902 = vsub.f32 %v7549, %v7901
    %7903 = vmatpush1.msra.mxu0 %v7902
    %7904 = vmatprep.subr.mxu0 0.0
    %v7905 = vand.u32 %v7550, 4294901760
    %v7906 = vsub.f32 %v7550, %v7905
    %7907 = vmatpush1.msra.mxu0 %v7906
    %7908 = vmatprep.subr.mxu0 0.0
    %v7909 = vand.u32 %v7551, 4294901760
    %v7910 = vsub.f32 %v7551, %v7909
    %7911 = vmatpush1.msra.mxu0 %v7910
    %7912 = vmatprep.subr.mxu0 0.0
    %v7913 = vand.u32 %v7552, 4294901760
    %v7914 = vsub.f32 %v7552, %v7913
    %7915 = vmatpush1.msra.mxu0 %v7914
    %7916 = vmatprep.subr.mxu0 0.0
    %v7917 = vand.u32 %v7553, 4294901760
    %v7918 = vsub.f32 %v7553, %v7917
    %7919 = vmatpush1.msra.mxu0 %v7918
    %7920 = vmatprep.subr.mxu0 0.0
    %v7921 = vand.u32 %v7554, 4294901760
    %v7922 = vsub.f32 %v7554, %v7921
    %7923 = vmatpush1.msra.mxu0 %v7922
    %7924 = vmatprep.subr.mxu0 0.0
    %7925 = vmatpush1.msra.mxu0 0.0
    %7926 = vmatprep.subr.mxu0 0.0
    %7927 = vmatpush1.msra.mxu0 0.0
    %7928 = vmatprep.subr.mxu0 0.0
    %7929 = vmatpush1.msra.mxu0 0.0
    %7930 = vmatprep.subr.mxu0 0.0
    %7931 = vmatpush1.msra.mxu0 0.0
    %7932 = vmatprep.subr.mxu0 0.0
    %7933 = vmatpush1.msra.mxu0 0.0
    %7934 = vmatprep.subr.mxu0 0.0
    %7935 = vmatpush1.msra.mxu0 0.0
    %7936 = vmatprep.subr.mxu0 0.0
    %7937 = vmatpush1.msra.mxu0 0.0
    %7938 = vmatprep.subr.mxu0 0.0
    %7939 = vmatpush1.msra.mxu0 0.0
    %7940 = vmatprep.subr.mxu0 0.0
    %7941 = vmatpush1.msra.mxu0 0.0
    %7942 = vmatprep.subr.mxu0 0.0
    %7943 = vmatpush1.msra.mxu0 0.0
    %7944 = vmatprep.subr.mxu0 0.0
    %7945 = vmatpush1.msra.mxu0 0.0
    %7946 = vmatprep.subr.mxu0 0.0
    %7947 = vmatpush1.msra.mxu0 0.0
    %7948 = vmatprep.subr.mxu0 0.0
    %7949 = vmatpush1.msra.mxu0 0.0
    %7950 = vmatprep.subr.mxu0 0.0
    %7951 = vmatpush1.msra.mxu0 0.0
    %7952 = vmatprep.subr.mxu0 0.0
    %7953 = vmatpush1.msra.mxu0 0.0
    %7954 = vmatprep.subr.mxu0 0.0
    %7955 = vmatpush1.msra.mxu0 0.0
    %7956 = vmatprep.subr.mxu0 0.0
    %7957 = vmatpush1.msra.mxu0 0.0
    %7958 = vmatprep.subr.mxu0 0.0
    %7959 = vmatpush1.msra.mxu0 0.0
    %7960 = vmatprep.subr.mxu0 0.0
    %7961 = vmatpush1.msra.mxu0 0.0
    %7962 = vmatprep.subr.mxu0 0.0
    %7963 = vmatpush1.msra.mxu0 0.0
    %7964 = vmatprep.mubr.f32.mxu0 0.0
    %v7965 = vand.u32 %v7618, 4294901760
    %v7966 = vsub.f32 %v7618, %v7965
    %7967 = vmatmul.mubr.f32.gmra.mrb[0].mxu0 %v7966
    %v7968 = vpop.f32.mrb[0].mxu0
    %v7969 = vadd.f32 %v7861, %v7968
    %v7970 = vpop.f32.mrb[0].mxu0
    %7971 = vmatprep.mubr.f32.mxu0 0.0
    %v7972 = vand.u32 %v7621, 4294901760
    %v7973 = vsub.f32 %v7621, %v7972
    %7974 = vmatmul.mubr.f32.gmra.mrb[0].mxu0 %v7973
    %v7975 = vpop.f32.mrb[0].mxu0
    %v7976 = vadd.f32 %v7867, %v7975
    %v7977 = vpop.f32.mrb[0].mxu0
    %7978 = vmatprep.mubr.f32.mxu0 0.0
    %v7979 = vand.u32 %v7624, 4294901760
    %v7980 = vsub.f32 %v7624, %v7979
    %7981 = vmatmul.mubr.f32.gmra.mrb[0].mxu0 %v7980
    %v7982 = vpop.f32.mrb[0].mxu0
    %v7983 = vadd.f32 %v7873, %v7982
    %v7984 = vpop.f32.mrb[0].mxu0
    %7985 = vdwg.mxu0
    %7986 = vmatprep.subr.mxu0 0.0
    %v7987 = vand.u32 %v7543, 4294901760
    %7988 = vmatpush1.msra.mxu0 %v7987
    %7989 = vmatprep.subr.mxu0 0.0
    %v7990 = vand.u32 %v7544, 4294901760
    %7991 = vmatpush1.msra.mxu0 %v7990
    %7992 = vmatprep.subr.mxu0 0.0
    %v7993 = vand.u32 %v7545, 4294901760
    %7994 = vmatpush1.msra.mxu0 %v7993
    %7995 = vmatprep.subr.mxu0 0.0
    %v7996 = vand.u32 %v7546, 4294901760
    %7997 = vmatpush1.msra.mxu0 %v7996
    %7998 = vmatprep.subr.mxu0 0.0
    %v7999 = vand.u32 %v7547, 4294901760
    %8000 = vmatpush1.msra.mxu0 %v7999
    %8001 = vmatprep.subr.mxu0 0.0
    %v8002 = vand.u32 %v7548, 4294901760
    %8003 = vmatpush1.msra.mxu0 %v8002
    %8004 = vmatprep.subr.mxu0 0.0
    %v8005 = vand.u32 %v7549, 4294901760
    %8006 = vmatpush1.msra.mxu0 %v8005
    %8007 = vmatprep.subr.mxu0 0.0
    %v8008 = vand.u32 %v7550, 4294901760
    %8009 = vmatpush1.msra.mxu0 %v8008
    %8010 = vmatprep.subr.mxu0 0.0
    %v8011 = vand.u32 %v7551, 4294901760
    %8012 = vmatpush1.msra.mxu0 %v8011
    %8013 = vmatprep.subr.mxu0 0.0
    %v8014 = vand.u32 %v7552, 4294901760
    %8015 = vmatpush1.msra.mxu0 %v8014
    %8016 = vmatprep.subr.mxu0 0.0
    %v8017 = vand.u32 %v7553, 4294901760
    %8018 = vmatpush1.msra.mxu0 %v8017
    %8019 = vmatprep.subr.mxu0 0.0
    %v8020 = vand.u32 %v7554, 4294901760
    %8021 = vmatpush1.msra.mxu0 %v8020
    %8022 = vmatprep.subr.mxu0 0.0
    %8023 = vmatpush1.msra.mxu0 0.0
    %8024 = vmatprep.subr.mxu0 0.0
    %8025 = vmatpush1.msra.mxu0 0.0
    %8026 = vmatprep.subr.mxu0 0.0
    %8027 = vmatpush1.msra.mxu0 0.0
    %8028 = vmatprep.subr.mxu0 0.0
    %8029 = vmatpush1.msra.mxu0 0.0
    %8030 = vmatprep.subr.mxu0 0.0
    %8031 = vmatpush1.msra.mxu0 0.0
    %8032 = vmatprep.subr.mxu0 0.0
    %8033 = vmatpush1.msra.mxu0 0.0
    %8034 = vmatprep.subr.mxu0 0.0
    %8035 = vmatpush1.msra.mxu0 0.0
    %8036 = vmatprep.subr.mxu0 0.0
    %8037 = vmatpush1.msra.mxu0 0.0
    %8038 = vmatprep.subr.mxu0 0.0
    %8039 = vmatpush1.msra.mxu0 0.0
    %8040 = vmatprep.subr.mxu0 0.0
    %8041 = vmatpush1.msra.mxu0 0.0
    %8042 = vmatprep.subr.mxu0 0.0
    %8043 = vmatpush1.msra.mxu0 0.0
    %8044 = vmatprep.subr.mxu0 0.0
    %8045 = vmatpush1.msra.mxu0 0.0
    %8046 = vmatprep.subr.mxu0 0.0
    %8047 = vmatpush1.msra.mxu0 0.0
    %8048 = vmatprep.subr.mxu0 0.0
    %8049 = vmatpush1.msra.mxu0 0.0
    %8050 = vmatprep.subr.mxu0 0.0
    %8051 = vmatpush1.msra.mxu0 0.0
    %8052 = vmatprep.subr.mxu0 0.0
    %8053 = vmatpush1.msra.mxu0 0.0
    %8054 = vmatprep.subr.mxu0 0.0
    %8055 = vmatpush1.msra.mxu0 0.0
    %8056 = vmatprep.subr.mxu0 0.0
    %8057 = vmatpush1.msra.mxu0 0.0
    %8058 = vmatprep.subr.mxu0 0.0
    %8059 = vmatpush1.msra.mxu0 0.0
    %8060 = vmatprep.subr.mxu0 0.0
    %8061 = vmatpush1.msra.mxu0 0.0
    %8062 = vmatprep.mubr.f32.mxu0 0.0
    %v8063 = vand.u32 %v7618, 4294901760
    %v8064 = vsub.f32 %v7618, %v8063
    %v8065 = vand.u32 %v8064, 4294901760
    %8066 = vmatmul.mubr.f32.gmra.mrb[0].mxu0 %v8065
    %v8067 = vpop.f32.mrb[0].mxu0
    %v8068 = vadd.f32 %v7969, %v8067
    %v8069 = vpop.f32.mrb[0].mxu0
    %8070 = vmatprep.mubr.f32.mxu0 0.0
    %v8071 = vand.u32 %v7621, 4294901760
    %v8072 = vsub.f32 %v7621, %v8071
    %v8073 = vand.u32 %v8072, 4294901760
    %8074 = vmatmul.mubr.f32.gmra.mrb[0].mxu0 %v8073
    %v8075 = vpop.f32.mrb[0].mxu0
    %v8076 = vadd.f32 %v7976, %v8075
    %v8077 = vpop.f32.mrb[0].mxu0
    %8078 = vmatprep.mubr.f32.mxu0 0.0
    %v8079 = vand.u32 %v7624, 4294901760
    %v8080 = vsub.f32 %v7624, %v8079
    %v8081 = vand.u32 %v8080, 4294901760
    %8082 = vmatmul.mubr.f32.gmra.mrb[0].mxu0 %v8081
    %v8083 = vpop.f32.mrb[0].mxu0
    %v8084 = vadd.f32 %v7983, %v8083
    %v8085 = vpop.f32.mrb[0].mxu0
    %8086 = vdwg.mxu0
    %8087 = vmatprep.subr.mxu0 0.0
    %v8088 = vand.u32 %v7543, 4294901760
    %v8089 = vsub.f32 %v7543, %v8088
    %v8090 = vand.u32 %v8089, 4294901760
    %8091 = vmatpush1.msra.mxu0 %v8090
    %8092 = vmatprep.subr.mxu0 0.0
    %v8093 = vand.u32 %v7544, 4294901760
    %v8094 = vsub.f32 %v7544, %v8093
    %v8095 = vand.u32 %v8094, 4294901760
    %8096 = vmatpush1.msra.mxu0 %v8095
    %8097 = vmatprep.subr.mxu0 0.0
    %v8098 = vand.u32 %v7545, 4294901760
    %v8099 = vsub.f32 %v7545, %v8098
    %v8100 = vand.u32 %v8099, 4294901760
    %8101 = vmatpush1.msra.mxu0 %v8100
    %8102 = vmatprep.subr.mxu0 0.0
    %v8103 = vand.u32 %v7546, 4294901760
    %v8104 = vsub.f32 %v7546, %v8103
    %v8105 = vand.u32 %v8104, 4294901760
    %8106 = vmatpush1.msra.mxu0 %v8105
    %8107 = vmatprep.subr.mxu0 0.0
    %v8108 = vand.u32 %v7547, 4294901760
    %v8109 = vsub.f32 %v7547, %v8108
    %v8110 = vand.u32 %v8109, 4294901760
    %8111 = vmatpush1.msra.mxu0 %v8110
    %8112 = vmatprep.subr.mxu0 0.0
    %v8113 = vand.u32 %v7548, 4294901760
    %v8114 = vsub.f32 %v7548, %v8113
    %v8115 = vand.u32 %v8114, 4294901760
    %8116 = vmatpush1.msra.mxu0 %v8115
    %8117 = vmatprep.subr.mxu0 0.0
    %v8118 = vand.u32 %v7549, 4294901760
    %v8119 = vsub.f32 %v7549, %v8118
    %v8120 = vand.u32 %v8119, 4294901760
    %8121 = vmatpush1.msra.mxu0 %v8120
    %8122 = vmatprep.subr.mxu0 0.0
    %v8123 = vand.u32 %v7550, 4294901760
    %v8124 = vsub.f32 %v7550, %v8123
    %v8125 = vand.u32 %v8124, 4294901760
    %8126 = vmatpush1.msra.mxu0 %v8125
    %8127 = vmatprep.subr.mxu0 0.0
    %v8128 = vand.u32 %v7551, 4294901760
    %v8129 = vsub.f32 %v7551, %v8128
    %v8130 = vand.u32 %v8129, 4294901760
    %8131 = vmatpush1.msra.mxu0 %v8130
    %8132 = vmatprep.subr.mxu0 0.0
    %v8133 = vand.u32 %v7552, 4294901760
    %v8134 = vsub.f32 %v7552, %v8133
    %v8135 = vand.u32 %v8134, 4294901760
    %8136 = vmatpush1.msra.mxu0 %v8135
    %8137 = vmatprep.subr.mxu0 0.0
    %v8138 = vand.u32 %v7553, 4294901760
    %v8139 = vsub.f32 %v7553, %v8138
    %v8140 = vand.u32 %v8139, 4294901760
    %8141 = vmatpush1.msra.mxu0 %v8140
    %8142 = vmatprep.subr.mxu0 0.0
    %v8143 = vand.u32 %v7554, 4294901760
    %v8144 = vsub.f32 %v7554, %v8143
    %v8145 = vand.u32 %v8144, 4294901760
    %8146 = vmatpush1.msra.mxu0 %v8145
    %8147 = vmatprep.subr.mxu0 0.0
    %8148 = vmatpush1.msra.mxu0 0.0
    %8149 = vmatprep.subr.mxu0 0.0
    %8150 = vmatpush1.msra.mxu0 0.0
    %8151 = vmatprep.subr.mxu0 0.0
    %8152 = vmatpush1.msra.mxu0 0.0
    %8153 = vmatprep.subr.mxu0 0.0
    %8154 = vmatpush1.msra.mxu0 0.0
    %8155 = vmatprep.subr.mxu0 0.0
    %8156 = vmatpush1.msra.mxu0 0.0
    %8157 = vmatprep.subr.mxu0 0.0
    %8158 = vmatpush1.msra.mxu0 0.0
    %8159 = vmatprep.subr.mxu0 0.0
    %8160 = vmatpush1.msra.mxu0 0.0
    %8161 = vmatprep.subr.mxu0 0.0
    %8162 = vmatpush1.msra.mxu0 0.0
    %8163 = vmatprep.subr.mxu0 0.0
    %8164 = vmatpush1.msra.mxu0 0.0
    %8165 = vmatprep.subr.mxu0 0.0
    %8166 = vmatpush1.msra.mxu0 0.0
    %8167 = vmatprep.subr.mxu0 0.0
    %8168 = vmatpush1.msra.mxu0 0.0
    %8169 = vmatprep.subr.mxu0 0.0
    %8170 = vmatpush1.msra.mxu0 0.0
    %8171 = vmatprep.subr.mxu0 0.0
    %8172 = vmatpush1.msra.mxu0 0.0
    %8173 = vmatprep.subr.mxu0 0.0
    %8174 = vmatpush1.msra.mxu0 0.0
    %8175 = vmatprep.subr.mxu0 0.0
    %8176 = vmatpush1.msra.mxu0 0.0
    %8177 = vmatprep.subr.mxu0 0.0
    %8178 = vmatpush1.msra.mxu0 0.0
    %8179 = vmatprep.subr.mxu0 0.0
    %8180 = vmatpush1.msra.mxu0 0.0
    %8181 = vmatprep.subr.mxu0 0.0
    %8182 = vmatpush1.msra.mxu0 0.0
    %8183 = vmatprep.subr.mxu0 0.0
    %8184 = vmatpush1.msra.mxu0 0.0
    %8185 = vmatprep.subr.mxu0 0.0
    %8186 = vmatpush1.msra.mxu0 0.0
    %8187 = vmatprep.mubr.f32.mxu0 0.0
    %v8188 = vand.u32 %v7618, 4294901760
    %8189 = vmatmul.mubr.f32.gmra.mrb[0].mxu0 %v8188
    %v8190 = vpop.f32.mrb[0].mxu0
    %v8191 = vadd.f32 %v8068, %v8190
    %v8192 = vpop.f32.mrb[0].mxu0
    %8193 = vmatprep.mubr.f32.mxu0 0.0
    %v8194 = vand.u32 %v7621, 4294901760
    %8195 = vmatmul.mubr.f32.gmra.mrb[0].mxu0 %v8194
    %v8196 = vpop.f32.mrb[0].mxu0
    %v8197 = vadd.f32 %v8076, %v8196
    %v8198 = vpop.f32.mrb[0].mxu0
    %8199 = vmatprep.mubr.f32.mxu0 0.0
    %v8200 = vand.u32 %v7624, 4294901760
    %8201 = vmatmul.mubr.f32.gmra.mrb[0].mxu0 %v8200
    %v8202 = vpop.f32.mrb[0].mxu0
    %v8203 = vadd.f32 %v8084, %v8202
    %v8204 = vpop.f32.mrb[0].mxu0
    %8205 = vdwg.mxu0
    %8206 = vmatprep.subr.mxu0 0.0
    %v8207 = vand.u32 %v7543, 4294901760
    %8208 = vmatpush1.msra.mxu0 %v8207
    %8209 = vmatprep.subr.mxu0 0.0
    %v8210 = vand.u32 %v7544, 4294901760
    %8211 = vmatpush1.msra.mxu0 %v8210
    %8212 = vmatprep.subr.mxu0 0.0
    %v8213 = vand.u32 %v7545, 4294901760
    %8214 = vmatpush1.msra.mxu0 %v8213
    %8215 = vmatprep.subr.mxu0 0.0
    %v8216 = vand.u32 %v7546, 4294901760
    %8217 = vmatpush1.msra.mxu0 %v8216
    %8218 = vmatprep.subr.mxu0 0.0
    %v8219 = vand.u32 %v7547, 4294901760
    %8220 = vmatpush1.msra.mxu0 %v8219
    %8221 = vmatprep.subr.mxu0 0.0
    %v8222 = vand.u32 %v7548, 4294901760
    %8223 = vmatpush1.msra.mxu0 %v8222
    %8224 = vmatprep.subr.mxu0 0.0
    %v8225 = vand.u32 %v7549, 4294901760
    %8226 = vmatpush1.msra.mxu0 %v8225
    %8227 = vmatprep.subr.mxu0 0.0
    %v8228 = vand.u32 %v7550, 4294901760
    %8229 = vmatpush1.msra.mxu0 %v8228
    %8230 = vmatprep.subr.mxu0 0.0
    %v8231 = vand.u32 %v7551, 4294901760
    %8232 = vmatpush1.msra.mxu0 %v8231
    %8233 = vmatprep.subr.mxu0 0.0
    %v8234 = vand.u32 %v7552, 4294901760
    %8235 = vmatpush1.msra.mxu0 %v8234
    %8236 = vmatprep.subr.mxu0 0.0
    %v8237 = vand.u32 %v7553, 4294901760
    %8238 = vmatpush1.msra.mxu0 %v8237
    %8239 = vmatprep.subr.mxu0 0.0
    %v8240 = vand.u32 %v7554, 4294901760
    %8241 = vmatpush1.msra.mxu0 %v8240
    %8242 = vmatprep.subr.mxu0 0.0
    %8243 = vmatpush1.msra.mxu0 0.0
    %8244 = vmatprep.subr.mxu0 0.0
    %8245 = vmatpush1.msra.mxu0 0.0
    %8246 = vmatprep.subr.mxu0 0.0
    %8247 = vmatpush1.msra.mxu0 0.0
    %8248 = vmatprep.subr.mxu0 0.0
    %8249 = vmatpush1.msra.mxu0 0.0
    %8250 = vmatprep.subr.mxu0 0.0
    %8251 = vmatpush1.msra.mxu0 0.0
    %8252 = vmatprep.subr.mxu0 0.0
    %8253 = vmatpush1.msra.mxu0 0.0
    %8254 = vmatprep.subr.mxu0 0.0
    %8255 = vmatpush1.msra.mxu0 0.0
    %8256 = vmatprep.subr.mxu0 0.0
    %8257 = vmatpush1.msra.mxu0 0.0
    %8258 = vmatprep.subr.mxu0 0.0
    %8259 = vmatpush1.msra.mxu0 0.0
    %8260 = vmatprep.subr.mxu0 0.0
    %8261 = vmatpush1.msra.mxu0 0.0
    %8262 = vmatprep.subr.mxu0 0.0
    %8263 = vmatpush1.msra.mxu0 0.0
    %8264 = vmatprep.subr.mxu0 0.0
    %8265 = vmatpush1.msra.mxu0 0.0
    %8266 = vmatprep.subr.mxu0 0.0
    %8267 = vmatpush1.msra.mxu0 0.0
    %8268 = vmatprep.subr.mxu0 0.0
    %8269 = vmatpush1.msra.mxu0 0.0
    %8270 = vmatprep.subr.mxu0 0.0
    %8271 = vmatpush1.msra.mxu0 0.0
    %8272 = vmatprep.subr.mxu0 0.0
    %8273 = vmatpush1.msra.mxu0 0.0
    %8274 = vmatprep.subr.mxu0 0.0
    %8275 = vmatpush1.msra.mxu0 0.0
    %8276 = vmatprep.subr.mxu0 0.0
    %8277 = vmatpush1.msra.mxu0 0.0
    %8278 = vmatprep.subr.mxu0 0.0
    %8279 = vmatpush1.msra.mxu0 0.0
    %8280 = vmatprep.subr.mxu0 0.0
    %8281 = vmatpush1.msra.mxu0 0.0
    %8282 = vmatprep.mubr.f32.mxu0 0.0
    %v8283 = vand.u32 %v7618, 4294901760
    %8284 = vmatmul.mubr.f32.gmra.mrb[0].mxu0 %v8283
    %v8285 = vpop.f32.mrb[0].mxu0
    %v8286 = vadd.f32 %v8191, %v8285
    %v8287 = vpop.f32.mrb[0].mxu0
    %8288 = vmatprep.mubr.f32.mxu0 0.0
    %v8289 = vand.u32 %v7621, 4294901760
    %8290 = vmatmul.mubr.f32.gmra.mrb[0].mxu0 %v8289
    %v8291 = vpop.f32.mrb[0].mxu0
    %v8292 = vadd.f32 %v8197, %v8291
    %v8293 = vpop.f32.mrb[0].mxu0
    %8294 = vmatprep.mubr.f32.mxu0 0.0
    %v8295 = vand.u32 %v7624, 4294901760
    %8296 = vmatmul.mubr.f32.gmra.mrb[0].mxu0 %v8295
    %v8297 = vpop.f32.mrb[0].mxu0
    %v8298 = vadd.f32 %v8203, %v8297
    %v8299 = vpop.f32.mrb[0].mxu0
    %8300 = vdwg.mxu0
    %v8301 = vsel %vm570, %v8286, 0.0
    %v8302 = vsel %vm570, %v8292, 0.0
    %v8303 = vadd.f32 %v8301, %v8302
    %vm8304 = vcmask 257024
    %v8305 = vsel %vm8304, %v8298, 0.0
    %v8306 = vadd.f32 %v8303, %v8305
    %v8307 = vrot.slane %v8306, 4
    %v8308 = vadd.f32 %v8306, %v8307
    %v8309 = vrot.slane %v8308, 2
    %v8310 = vadd.f32 %v8308, %v8309
    %v8311 = vrot.slane %v8310, 1
    %v8312 = vadd.f32 %v8310, %v8311
    %v8313 = vrcp.pop 20.0
    %v8314 = vmul.f32 %v8312, %v8313
    %v8315 = vsub.f32 %v8286, %v8314
    %v8316 = vsub.f32 %v8292, %v8314
    %v8317 = vsub.f32 %v8298, %v8314
    %v8318 = vmul.f32 %v8315, %v8315
    %v8319 = vmul.f32 %v8316, %v8316
    %v8320 = vmul.f32 %v8317, %v8317
    %v8321 = vsel %vm570, %v8318, 0.0
    %v8322 = vsel %vm570, %v8319, 0.0
    %v8323 = vadd.f32 %v8321, %v8322
    %v8324 = vsel %vm8304, %v8320, 0.0
    %v8325 = vadd.f32 %v8323, %v8324
    %v8326 = vrot.slane %v8325, 4
    %v8327 = vadd.f32 %v8325, %v8326
    %v8328 = vrot.slane %v8327, 2
    %v8329 = vadd.f32 %v8327, %v8328
    %v8330 = vrot.slane %v8329, 1
    %v8331 = vadd.f32 %v8329, %v8330
    %v8332 = vmul.f32 %v8331, %v8313
    %v8333 = vadd.f32 %v8332, 1e-05
    %v8334 = vrsqrt.pop %v8333
    %v8335 = vmul.f32 %v8315, %v8334
    %v8336 = vmul.f32 %v8316, %v8334
    %v8337 = vmul.f32 %v8317, %v8334
    %v8339 = vlaneseq
    %v8340 = vshrl.u32 %v8339, 7
    %v8341 = vsub.s32 0, %v8340
    %v8342 = vrot.slane %v7556, %v8341
    %v8344 = vmul.f32 %v8335, %v8342
    %v8345 = vmul.f32 %v8336, %v8342
    %v8346 = vmul.f32 %v8337, %v8342
    %v8348 = vlaneseq
    %v8349 = vshrl.u32 %v8348, 7
    %v8350 = vsub.s32 0, %v8349
    %v8351 = vrot.slane %v7557, %v8350
    %v8353 = vadd.f32 %v8344, %v8351
    %v8354 = vadd.f32 %v8345, %v8351
    %v8355 = vadd.f32 %v8346, %v8351
    %vm8356 = vcmp.ge.f32.partialorder %v8353, 0.0
    %vm8357 = vcmp.ge.f32.partialorder %v8354, 0.0
    %vm8358 = vcmp.ge.f32.partialorder %v8355, 0.0
    %v8359 = vmul.f32 %v8353, 0.01
    %v8360 = vmul.f32 %v8354, 0.01
    %v8361 = vmul.f32 %v8355, 0.01
    %v8362 = vsel %vm8356, %v8353, %v8359
    %v8363 = vsel %vm8357, %v8354, %v8360
    %v8364 = vsel %vm8358, %v8355, %v8361
    %v8365 = vld [vmem:[%s95] sm:$0xff]
    %v8366 = vld [vmem:[%s95 + $0x8] sm:$0xff]
    %v8367 = vld [vmem:[%s95 + $0x10] sm:$0xff]
    %v8368 = vld [vmem:[%s95 + $0x18] sm:$0xff]
    %v8369 = vld [vmem:[%s95 + $0x20] sm:$0xff]
    %v8370 = vld [vmem:[%s95 + $0x28] sm:$0xff]
    %v8371 = vld [vmem:[%s95 + $0x30] sm:$0xff]
    %v8372 = vld [vmem:[%s95 + $0x38] sm:$0xff]
    %v8373 = vld [vmem:[%s95 + $0x40] sm:$0xff]
    %v8374 = vld [vmem:[%s95 + $0x48] sm:$0xff]
    %v8375 = vld [vmem:[%s95 + $0x50] sm:$0xff]
    %v8376 = vld [vmem:[%s95 + $0x58] sm:$0xff]
    %v8377 = vld [vmem:[%s97] sm:$0x1]
    %v8378 = vld [vmem:[%s99] sm:$0x1]
    %v8379 = vld [vmem:[%s101] sm:$0x1]
    %v8382 = vrot.slane %v8363, 2
    %v8383 = vrot.slane %v8364, 2
    %v8384 = vsel %vm3697, %v8382, %v8383
    %v8387 = vrot.slane %v8362, 1
    %v8388 = vrot.slane %v8363, 1
    %v8389 = vsel %vm3699, %v8387, %v8388
    %v8390 = vrot.slane %v8363, 3
    %v8391 = vrot.slane %v8364, 3
    %v8392 = vsel %vm3695, %v8390, %v8391
    %v8393 = vrot.slane %v8362, 2
    %v8394 = vsel %vm3697, %v8393, %v8382
    %v8395 = vrot.slane %v8363, 4
    %v8396 = vrot.slane %v8364, 4
    %v8397 = vsel %vm3693, %v8395, %v8396
    %8398 = vrot.lane.b32.xlu0 %v8389, 32
    %v8399 = vpop.permute.xlu0 %8398
    %8400 = vrot.lane.b32.xlu0 %v8392, 32
    %v8401 = vpop.permute.xlu0 %8400
    %8404 = vrot.lane.b32.xlu0 %v8394, 64
    %v8405 = vpop.permute.xlu0 %8404
    %8406 = vrot.lane.b32.xlu0 %v8397, 64
    %v8407 = vpop.permute.xlu0 %8406
    %v8410 = vsel %vm570, %v8362, %v8399
    %v8411 = vsel %vm570, %v8384, %v8401
    %v8412 = vsel %vm1079, %v8410, %v8405
    %v8413 = vsel %vm1079, %v8411, %v8407
    %v8415 = vlaneseq
    %v8416 = vshrl.u32 %v8415, 7
    %v8417 = vsub.s32 0, %v8416
    %v8418 = vrot.slane %v8377, %v8417
    %v8421 = vsel %vm7616, %v8412, 0
    %v8424 = vsel %vm7616, %v8413, 0
    %8426 = vmatprep.subr.mxu0 0.0
    %v8427 = vand.u32 %v8365, 4294901760
    %8428 = vmatpush1.msra.mxu0 %v8427
    %8429 = vmatprep.subr.mxu0 0.0
    %v8430 = vand.u32 %v8366, 4294901760
    %8431 = vmatpush1.msra.mxu0 %v8430
    %8432 = vmatprep.subr.mxu0 0.0
    %v8433 = vand.u32 %v8367, 4294901760
    %8434 = vmatpush1.msra.mxu0 %v8433
    %8435 = vmatprep.subr.mxu0 0.0
    %v8436 = vand.u32 %v8368, 4294901760
    %8437 = vmatpush1.msra.mxu0 %v8436
    %8438 = vmatprep.subr.mxu0 0.0
    %v8439 = vand.u32 %v8369, 4294901760
    %8440 = vmatpush1.msra.mxu0 %v8439
    %8441 = vmatprep.subr.mxu0 0.0
    %v8442 = vand.u32 %v8370, 4294901760
    %8443 = vmatpush1.msra.mxu0 %v8442
    %8444 = vmatprep.subr.mxu0 0.0
    %v8445 = vand.u32 %v8371, 4294901760
    %8446 = vmatpush1.msra.mxu0 %v8445
    %8447 = vmatprep.subr.mxu0 0.0
    %v8448 = vand.u32 %v8372, 4294901760
    %8449 = vmatpush1.msra.mxu0 %v8448
    %8450 = vmatprep.subr.mxu0 0.0
    %v8451 = vand.u32 %v8373, 4294901760
    %8452 = vmatpush1.msra.mxu0 %v8451
    %8453 = vmatprep.subr.mxu0 0.0
    %v8454 = vand.u32 %v8374, 4294901760
    %8455 = vmatpush1.msra.mxu0 %v8454
    %8456 = vmatprep.subr.mxu0 0.0
    %v8457 = vand.u32 %v8375, 4294901760
    %8458 = vmatpush1.msra.mxu0 %v8457
    %8459 = vmatprep.subr.mxu0 0.0
    %v8460 = vand.u32 %v8376, 4294901760
    %8461 = vmatpush1.msra.mxu0 %v8460
    %8462 = vmatprep.subr.mxu0 0.0
    %8463 = vmatpush1.msra.mxu0 0.0
    %8464 = vmatprep.subr.mxu0 0.0
    %8465 = vmatpush1.msra.mxu0 0.0
    %8466 = vmatprep.subr.mxu0 0.0
    %8467 = vmatpush1.msra.mxu0 0.0
    %8468 = vmatprep.subr.mxu0 0.0
    %8469 = vmatpush1.msra.mxu0 0.0
    %8470 = vmatprep.subr.mxu0 0.0
    %8471 = vmatpush1.msra.mxu0 0.0
    %8472 = vmatprep.subr.mxu0 0.0
    %8473 = vmatpush1.msra.mxu0 0.0
    %8474 = vmatprep.subr.mxu0 0.0
    %8475 = vmatpush1.msra.mxu0 0.0
    %8476 = vmatprep.subr.mxu0 0.0
    %8477 = vmatpush1.msra.mxu0 0.0
    %8478 = vmatprep.subr.mxu0 0.0
    %8479 = vmatpush1.msra.mxu0 0.0
    %8480 = vmatprep.subr.mxu0 0.0
    %8481 = vmatpush1.msra.mxu0 0.0
    %8482 = vmatprep.subr.mxu0 0.0
    %8483 = vmatpush1.msra.mxu0 0.0
    %8484 = vmatprep.subr.mxu0 0.0
    %8485 = vmatpush1.msra.mxu0 0.0
    %8486 = vmatprep.subr.mxu0 0.0
    %8487 = vmatpush1.msra.mxu0 0.0
    %8488 = vmatprep.subr.mxu0 0.0
    %8489 = vmatpush1.msra.mxu0 0.0
    %8490 = vmatprep.subr.mxu0 0.0
    %8491 = vmatpush1.msra.mxu0 0.0
    %8492 = vmatprep.subr.mxu0 0.0
    %8493 = vmatpush1.msra.mxu0 0.0
    %8494 = vmatprep.subr.mxu0 0.0
    %8495 = vmatpush1.msra.mxu0 0.0
    %8496 = vmatprep.subr.mxu0 0.0
    %8497 = vmatpush1.msra.mxu0 0.0
    %8498 = vmatprep.subr.mxu0 0.0
    %8499 = vmatpush1.msra.mxu0 0.0
    %8500 = vmatprep.subr.mxu0 0.0
    %8501 = vmatpush1.msra.mxu0 0.0
    %8502 = vmatprep.mubr.f32.mxu0 0.0
    %v8503 = vand.u32 %v8421, 4294901760
    %v8504 = vsub.f32 %v8421, %v8503
    %v8505 = vand.u32 %v8504, 4294901760
    %v8506 = vsub.f32 %v8504, %v8505
    %v8507 = vand.u32 %v8506, 4294901760
    %8508 = vmatmul.mubr.f32.gmra.mrb[0].mxu0 %v8507
    %v8509 = vpop.f32.mrb[0].mxu0
    %v8510 = vadd.f32 %v8418, %v8509
    %v8511 = vpop.f32.mrb[0].mxu0
    %8512 = vmatprep.mubr.f32.mxu0 0.0
    %v8513 = vand.u32 %v8424, 4294901760
    %v8514 = vsub.f32 %v8424, %v8513
    %v8515 = vand.u32 %v8514, 4294901760
    %v8516 = vsub.f32 %v8514, %v8515
    %v8517 = vand.u32 %v8516, 4294901760
    %8518 = vmatmul.mubr.f32.gmra.mrb[0].mxu0 %v8517
    %v8519 = vpop.f32.mrb[0].mxu0
    %v8520 = vadd.f32 %v8418, %v8519
    %v8521 = vpop.f32.mrb[0].mxu0
    %8522 = vdwg.mxu0
    %8523 = vmatprep.subr.mxu0 0.0
    %v8524 = vand.u32 %v8365, 4294901760
    %v8525 = vsub.f32 %v8365, %v8524
    %v8526 = vand.u32 %v8525, 4294901760
    %v8527 = vsub.f32 %v8525, %v8526
    %v8528 = vand.u32 %v8527, 4294901760
    %8529 = vmatpush1.msra.mxu0 %v8528
    %8530 = vmatprep.subr.mxu0 0.0
    %v8531 = vand.u32 %v8366, 4294901760
    %v8532 = vsub.f32 %v8366, %v8531
    %v8533 = vand.u32 %v8532, 4294901760
    %v8534 = vsub.f32 %v8532, %v8533
    %v8535 = vand.u32 %v8534, 4294901760
    %8536 = vmatpush1.msra.mxu0 %v8535
    %8537 = vmatprep.subr.mxu0 0.0
    %v8538 = vand.u32 %v8367, 4294901760
    %v8539 = vsub.f32 %v8367, %v8538
    %v8540 = vand.u32 %v8539, 4294901760
    %v8541 = vsub.f32 %v8539, %v8540
    %v8542 = vand.u32 %v8541, 4294901760
    %8543 = vmatpush1.msra.mxu0 %v8542
    %8544 = vmatprep.subr.mxu0 0.0
    %v8545 = vand.u32 %v8368, 4294901760
    %v8546 = vsub.f32 %v8368, %v8545
    %v8547 = vand.u32 %v8546, 4294901760
    %v8548 = vsub.f32 %v8546, %v8547
    %v8549 = vand.u32 %v8548, 4294901760
    %8550 = vmatpush1.msra.mxu0 %v8549
    %8551 = vmatprep.subr.mxu0 0.0
    %v8552 = vand.u32 %v8369, 4294901760
    %v8553 = vsub.f32 %v8369, %v8552
    %v8554 = vand.u32 %v8553, 4294901760
    %v8555 = vsub.f32 %v8553, %v8554
    %v8556 = vand.u32 %v8555, 4294901760
    %8557 = vmatpush1.msra.mxu0 %v8556
    %8558 = vmatprep.subr.mxu0 0.0
    %v8559 = vand.u32 %v8370, 4294901760
    %v8560 = vsub.f32 %v8370, %v8559
    %v8561 = vand.u32 %v8560, 4294901760
    %v8562 = vsub.f32 %v8560, %v8561
    %v8563 = vand.u32 %v8562, 4294901760
    %8564 = vmatpush1.msra.mxu0 %v8563
    %8565 = vmatprep.subr.mxu0 0.0
    %v8566 = vand.u32 %v8371, 4294901760
    %v8567 = vsub.f32 %v8371, %v8566
    %v8568 = vand.u32 %v8567, 4294901760
    %v8569 = vsub.f32 %v8567, %v8568
    %v8570 = vand.u32 %v8569, 4294901760
    %8571 = vmatpush1.msra.mxu0 %v8570
    %8572 = vmatprep.subr.mxu0 0.0
    %v8573 = vand.u32 %v8372, 4294901760
    %v8574 = vsub.f32 %v8372, %v8573
    %v8575 = vand.u32 %v8574, 4294901760
    %v8576 = vsub.f32 %v8574, %v8575
    %v8577 = vand.u32 %v8576, 4294901760
    %8578 = vmatpush1.msra.mxu0 %v8577
    %8579 = vmatprep.subr.mxu0 0.0
    %v8580 = vand.u32 %v8373, 4294901760
    %v8581 = vsub.f32 %v8373, %v8580
    %v8582 = vand.u32 %v8581, 4294901760
    %v8583 = vsub.f32 %v8581, %v8582
    %v8584 = vand.u32 %v8583, 4294901760
    %8585 = vmatpush1.msra.mxu0 %v8584
    %8586 = vmatprep.subr.mxu0 0.0
    %v8587 = vand.u32 %v8374, 4294901760
    %v8588 = vsub.f32 %v8374, %v8587
    %v8589 = vand.u32 %v8588, 4294901760
    %v8590 = vsub.f32 %v8588, %v8589
    %v8591 = vand.u32 %v8590, 4294901760
    %8592 = vmatpush1.msra.mxu0 %v8591
    %8593 = vmatprep.subr.mxu0 0.0
    %v8594 = vand.u32 %v8375, 4294901760
    %v8595 = vsub.f32 %v8375, %v8594
    %v8596 = vand.u32 %v8595, 4294901760
    %v8597 = vsub.f32 %v8595, %v8596
    %v8598 = vand.u32 %v8597, 4294901760
    %8599 = vmatpush1.msra.mxu0 %v8598
    %8600 = vmatprep.subr.mxu0 0.0
    %v8601 = vand.u32 %v8376, 4294901760
    %v8602 = vsub.f32 %v8376, %v8601
    %v8603 = vand.u32 %v8602, 4294901760
    %v8604 = vsub.f32 %v8602, %v8603
    %v8605 = vand.u32 %v8604, 4294901760
    %8606 = vmatpush1.msra.mxu0 %v8605
    %8607 = vmatprep.subr.mxu0 0.0
    %8608 = vmatpush1.msra.mxu0 0.0
    %8609 = vmatprep.subr.mxu0 0.0
    %8610 = vmatpush1.msra.mxu0 0.0
    %8611 = vmatprep.subr.mxu0 0.0
    %8612 = vmatpush1.msra.mxu0 0.0
    %8613 = vmatprep.subr.mxu0 0.0
    %8614 = vmatpush1.msra.mxu0 0.0
    %8615 = vmatprep.subr.mxu0 0.0
    %8616 = vmatpush1.msra.mxu0 0.0
    %8617 = vmatprep.subr.mxu0 0.0
    %8618 = vmatpush1.msra.mxu0 0.0
    %8619 = vmatprep.subr.mxu0 0.0
    %8620 = vmatpush1.msra.mxu0 0.0
    %8621 = vmatprep.subr.mxu0 0.0
    %8622 = vmatpush1.msra.mxu0 0.0
    %8623 = vmatprep.subr.mxu0 0.0
    %8624 = vmatpush1.msra.mxu0 0.0
    %8625 = vmatprep.subr.mxu0 0.0
    %8626 = vmatpush1.msra.mxu0 0.0
    %8627 = vmatprep.subr.mxu0 0.0
    %8628 = vmatpush1.msra.mxu0 0.0
    %8629 = vmatprep.subr.mxu0 0.0
    %8630 = vmatpush1.msra.mxu0 0.0
    %8631 = vmatprep.subr.mxu0 0.0
    %8632 = vmatpush1.msra.mxu0 0.0
    %8633 = vmatprep.subr.mxu0 0.0
    %8634 = vmatpush1.msra.mxu0 0.0
    %8635 = vmatprep.subr.mxu0 0.0
    %8636 = vmatpush1.msra.mxu0 0.0
    %8637 = vmatprep.subr.mxu0 0.0
    %8638 = vmatpush1.msra.mxu0 0.0
    %8639 = vmatprep.subr.mxu0 0.0
    %8640 = vmatpush1.msra.mxu0 0.0
    %8641 = vmatprep.subr.mxu0 0.0
    %8642 = vmatpush1.msra.mxu0 0.0
    %8643 = vmatprep.subr.mxu0 0.0
    %8644 = vmatpush1.msra.mxu0 0.0
    %8645 = vmatprep.subr.mxu0 0.0
    %8646 = vmatpush1.msra.mxu0 0.0
    %8647 = vmatprep.mubr.f32.mxu0 0.0
    %v8648 = vand.u32 %v8421, 4294901760
    %8649 = vmatmul.mubr.f32.gmra.mrb[0].mxu0 %v8648
    %v8650 = vpop.f32.mrb[0].mxu0
    %v8651 = vadd.f32 %v8510, %v8650
    %v8652 = vpop.f32.mrb[0].mxu0
    %8653 = vmatprep.mubr.f32.mxu0 0.0
    %v8654 = vand.u32 %v8424, 4294901760
    %8655 = vmatmul.mubr.f32.gmra.mrb[0].mxu0 %v8654
    %v8656 = vpop.f32.mrb[0].mxu0
    %v8657 = vadd.f32 %v8520, %v8656
    %v8658 = vpop.f32.mrb[0].mxu0
    %8659 = vdwg.mxu0
    %8660 = vmatprep.subr.mxu0 0.0
    %v8661 = vand.u32 %v8365, 4294901760
    %v8662 = vsub.f32 %v8365, %v8661
    %8663 = vmatpush1.msra.mxu0 %v8662
    %8664 = vmatprep.subr.mxu0 0.0
    %v8665 = vand.u32 %v8366, 4294901760
    %v8666 = vsub.f32 %v8366, %v8665
    %8667 = vmatpush1.msra.mxu0 %v8666
    %8668 = vmatprep.subr.mxu0 0.0
    %v8669 = vand.u32 %v8367, 4294901760
    %v8670 = vsub.f32 %v8367, %v8669
    %8671 = vmatpush1.msra.mxu0 %v8670
    %8672 = vmatprep.subr.mxu0 0.0
    %v8673 = vand.u32 %v8368, 4294901760
    %v8674 = vsub.f32 %v8368, %v8673
    %8675 = vmatpush1.msra.mxu0 %v8674
    %8676 = vmatprep.subr.mxu0 0.0
    %v8677 = vand.u32 %v8369, 4294901760
    %v8678 = vsub.f32 %v8369, %v8677
    %8679 = vmatpush1.msra.mxu0 %v8678
    %8680 = vmatprep.subr.mxu0 0.0
    %v8681 = vand.u32 %v8370, 4294901760
    %v8682 = vsub.f32 %v8370, %v8681
    %8683 = vmatpush1.msra.mxu0 %v8682
    %8684 = vmatprep.subr.mxu0 0.0
    %v8685 = vand.u32 %v8371, 4294901760
    %v8686 = vsub.f32 %v8371, %v8685
    %8687 = vmatpush1.msra.mxu0 %v8686
    %8688 = vmatprep.subr.mxu0 0.0
    %v8689 = vand.u32 %v8372, 4294901760
    %v8690 = vsub.f32 %v8372, %v8689
    %8691 = vmatpush1.msra.mxu0 %v8690
    %8692 = vmatprep.subr.mxu0 0.0
    %v8693 = vand.u32 %v8373, 4294901760
    %v8694 = vsub.f32 %v8373, %v8693
    %8695 = vmatpush1.msra.mxu0 %v8694
    %8696 = vmatprep.subr.mxu0 0.0
    %v8697 = vand.u32 %v8374, 4294901760
    %v8698 = vsub.f32 %v8374, %v8697
    %8699 = vmatpush1.msra.mxu0 %v8698
    %8700 = vmatprep.subr.mxu0 0.0
    %v8701 = vand.u32 %v8375, 4294901760
    %v8702 = vsub.f32 %v8375, %v8701
    %8703 = vmatpush1.msra.mxu0 %v8702
    %8704 = vmatprep.subr.mxu0 0.0
    %v8705 = vand.u32 %v8376, 4294901760
    %v8706 = vsub.f32 %v8376, %v8705
    %8707 = vmatpush1.msra.mxu0 %v8706
    %8708 = vmatprep.subr.mxu0 0.0
    %8709 = vmatpush1.msra.mxu0 0.0
    %8710 = vmatprep.subr.mxu0 0.0
    %8711 = vmatpush1.msra.mxu0 0.0
    %8712 = vmatprep.subr.mxu0 0.0
    %8713 = vmatpush1.msra.mxu0 0.0
    %8714 = vmatprep.subr.mxu0 0.0
    %8715 = vmatpush1.msra.mxu0 0.0
    %8716 = vmatprep.subr.mxu0 0.0
    %8717 = vmatpush1.msra.mxu0 0.0
    %8718 = vmatprep.subr.mxu0 0.0
    %8719 = vmatpush1.msra.mxu0 0.0
    %8720 = vmatprep.subr.mxu0 0.0
    %8721 = vmatpush1.msra.mxu0 0.0
    %8722 = vmatprep.subr.mxu0 0.0
    %8723 = vmatpush1.msra.mxu0 0.0
    %8724 = vmatprep.subr.mxu0 0.0
    %8725 = vmatpush1.msra.mxu0 0.0
    %8726 = vmatprep.subr.mxu0 0.0
    %8727 = vmatpush1.msra.mxu0 0.0
    %8728 = vmatprep.subr.mxu0 0.0
    %8729 = vmatpush1.msra.mxu0 0.0
    %8730 = vmatprep.subr.mxu0 0.0
    %8731 = vmatpush1.msra.mxu0 0.0
    %8732 = vmatprep.subr.mxu0 0.0
    %8733 = vmatpush1.msra.mxu0 0.0
    %8734 = vmatprep.subr.mxu0 0.0
    %8735 = vmatpush1.msra.mxu0 0.0
    %8736 = vmatprep.subr.mxu0 0.0
    %8737 = vmatpush1.msra.mxu0 0.0
    %8738 = vmatprep.subr.mxu0 0.0
    %8739 = vmatpush1.msra.mxu0 0.0
    %8740 = vmatprep.subr.mxu0 0.0
    %8741 = vmatpush1.msra.mxu0 0.0
    %8742 = vmatprep.subr.mxu0 0.0
    %8743 = vmatpush1.msra.mxu0 0.0
    %8744 = vmatprep.subr.mxu0 0.0
    %8745 = vmatpush1.msra.mxu0 0.0
    %8746 = vmatprep.subr.mxu0 0.0
    %8747 = vmatpush1.msra.mxu0 0.0
    %8748 = vmatprep.mubr.f32.mxu0 0.0
    %v8749 = vand.u32 %v8421, 4294901760
    %v8750 = vsub.f32 %v8421, %v8749
    %8751 = vmatmul.mubr.f32.gmra.mrb[0].mxu0 %v8750
    %v8752 = vpop.f32.mrb[0].mxu0
    %v8753 = vadd.f32 %v8651, %v8752
    %v8754 = vpop.f32.mrb[0].mxu0
    %8755 = vmatprep.mubr.f32.mxu0 0.0
    %v8756 = vand.u32 %v8424, 4294901760
    %v8757 = vsub.f32 %v8424, %v8756
    %8758 = vmatmul.mubr.f32.gmra.mrb[0].mxu0 %v8757
    %v8759 = vpop.f32.mrb[0].mxu0
    %v8760 = vadd.f32 %v8657, %v8759
    %v8761 = vpop.f32.mrb[0].mxu0
    %8762 = vdwg.mxu0
    %8763 = vmatprep.subr.mxu0 0.0
    %v8764 = vand.u32 %v8365, 4294901760
    %8765 = vmatpush1.msra.mxu0 %v8764
    %8766 = vmatprep.subr.mxu0 0.0
    %v8767 = vand.u32 %v8366, 4294901760
    %8768 = vmatpush1.msra.mxu0 %v8767
    %8769 = vmatprep.subr.mxu0 0.0
    %v8770 = vand.u32 %v8367, 4294901760
    %8771 = vmatpush1.msra.mxu0 %v8770
    %8772 = vmatprep.subr.mxu0 0.0
    %v8773 = vand.u32 %v8368, 4294901760
    %8774 = vmatpush1.msra.mxu0 %v8773
    %8775 = vmatprep.subr.mxu0 0.0
    %v8776 = vand.u32 %v8369, 4294901760
    %8777 = vmatpush1.msra.mxu0 %v8776
    %8778 = vmatprep.subr.mxu0 0.0
    %v8779 = vand.u32 %v8370, 4294901760
    %8780 = vmatpush1.msra.mxu0 %v8779
    %8781 = vmatprep.subr.mxu0 0.0
    %v8782 = vand.u32 %v8371, 4294901760
    %8783 = vmatpush1.msra.mxu0 %v8782
    %8784 = vmatprep.subr.mxu0 0.0
    %v8785 = vand.u32 %v8372, 4294901760
    %8786 = vmatpush1.msra.mxu0 %v8785
    %8787 = vmatprep.subr.mxu0 0.0
    %v8788 = vand.u32 %v8373, 4294901760
    %8789 = vmatpush1.msra.mxu0 %v8788
    %8790 = vmatprep.subr.mxu0 0.0
    %v8791 = vand.u32 %v8374, 4294901760
    %8792 = vmatpush1.msra.mxu0 %v8791
    %8793 = vmatprep.subr.mxu0 0.0
    %v8794 = vand.u32 %v8375, 4294901760
    %8795 = vmatpush1.msra.mxu0 %v8794
    %8796 = vmatprep.subr.mxu0 0.0
    %v8797 = vand.u32 %v8376, 4294901760
    %8798 = vmatpush1.msra.mxu0 %v8797
    %8799 = vmatprep.subr.mxu0 0.0
    %8800 = vmatpush1.msra.mxu0 0.0
    %8801 = vmatprep.subr.mxu0 0.0
    %8802 = vmatpush1.msra.mxu0 0.0
    %8803 = vmatprep.subr.mxu0 0.0
    %8804 = vmatpush1.msra.mxu0 0.0
    %8805 = vmatprep.subr.mxu0 0.0
    %8806 = vmatpush1.msra.mxu0 0.0
    %8807 = vmatprep.subr.mxu0 0.0
    %8808 = vmatpush1.msra.mxu0 0.0
    %8809 = vmatprep.subr.mxu0 0.0
    %8810 = vmatpush1.msra.mxu0 0.0
    %8811 = vmatprep.subr.mxu0 0.0
    %8812 = vmatpush1.msra.mxu0 0.0
    %8813 = vmatprep.subr.mxu0 0.0
    %8814 = vmatpush1.msra.mxu0 0.0
    %8815 = vmatprep.subr.mxu0 0.0
    %8816 = vmatpush1.msra.mxu0 0.0
    %8817 = vmatprep.subr.mxu0 0.0
    %8818 = vmatpush1.msra.mxu0 0.0
    %8819 = vmatprep.subr.mxu0 0.0
    %8820 = vmatpush1.msra.mxu0 0.0
    %8821 = vmatprep.subr.mxu0 0.0
    %8822 = vmatpush1.msra.mxu0 0.0
    %8823 = vmatprep.subr.mxu0 0.0
    %8824 = vmatpush1.msra.mxu0 0.0
    %8825 = vmatprep.subr.mxu0 0.0
    %8826 = vmatpush1.msra.mxu0 0.0
    %8827 = vmatprep.subr.mxu0 0.0
    %8828 = vmatpush1.msra.mxu0 0.0
    %8829 = vmatprep.subr.mxu0 0.0
    %8830 = vmatpush1.msra.mxu0 0.0
    %8831 = vmatprep.subr.mxu0 0.0
    %8832 = vmatpush1.msra.mxu0 0.0
    %8833 = vmatprep.subr.mxu0 0.0
    %8834 = vmatpush1.msra.mxu0 0.0
    %8835 = vmatprep.subr.mxu0 0.0
    %8836 = vmatpush1.msra.mxu0 0.0
    %8837 = vmatprep.subr.mxu0 0.0
    %8838 = vmatpush1.msra.mxu0 0.0
    %8839 = vmatprep.mubr.f32.mxu0 0.0
    %v8840 = vand.u32 %v8421, 4294901760
    %v8841 = vsub.f32 %v8421, %v8840
    %v8842 = vand.u32 %v8841, 4294901760
    %8843 = vmatmul.mubr.f32.gmra.mrb[0].mxu0 %v8842
    %v8844 = vpop.f32.mrb[0].mxu0
    %v8845 = vadd.f32 %v8753, %v8844
    %v8846 = vpop.f32.mrb[0].mxu0
    %8847 = vmatprep.mubr.f32.mxu0 0.0
    %v8848 = vand.u32 %v8424, 4294901760
    %v8849 = vsub.f32 %v8424, %v8848
    %v8850 = vand.u32 %v8849, 4294901760
    %8851 = vmatmul.mubr.f32.gmra.mrb[0].mxu0 %v8850
    %v8852 = vpop.f32.mrb[0].mxu0
    %v8853 = vadd.f32 %v8760, %v8852
    %v8854 = vpop.f32.mrb[0].mxu0
    %8855 = vdwg.mxu0
    %8856 = vmatprep.subr.mxu0 0.0
    %v8857 = vand.u32 %v8365, 4294901760
    %v8858 = vsub.f32 %v8365, %v8857
    %v8859 = vand.u32 %v8858, 4294901760
    %8860 = vmatpush1.msra.mxu0 %v8859
    %8861 = vmatprep.subr.mxu0 0.0
    %v8862 = vand.u32 %v8366, 4294901760
    %v8863 = vsub.f32 %v8366, %v8862
    %v8864 = vand.u32 %v8863, 4294901760
    %8865 = vmatpush1.msra.mxu0 %v8864
    %8866 = vmatprep.subr.mxu0 0.0
    %v8867 = vand.u32 %v8367, 4294901760
    %v8868 = vsub.f32 %v8367, %v8867
    %v8869 = vand.u32 %v8868, 4294901760
    %8870 = vmatpush1.msra.mxu0 %v8869
    %8871 = vmatprep.subr.mxu0 0.0
    %v8872 = vand.u32 %v8368, 4294901760
    %v8873 = vsub.f32 %v8368, %v8872
    %v8874 = vand.u32 %v8873, 4294901760
    %8875 = vmatpush1.msra.mxu0 %v8874
    %8876 = vmatprep.subr.mxu0 0.0
    %v8877 = vand.u32 %v8369, 4294901760
    %v8878 = vsub.f32 %v8369, %v8877
    %v8879 = vand.u32 %v8878, 4294901760
    %8880 = vmatpush1.msra.mxu0 %v8879
    %8881 = vmatprep.subr.mxu0 0.0
    %v8882 = vand.u32 %v8370, 4294901760
    %v8883 = vsub.f32 %v8370, %v8882
    %v8884 = vand.u32 %v8883, 4294901760
    %8885 = vmatpush1.msra.mxu0 %v8884
    %8886 = vmatprep.subr.mxu0 0.0
    %v8887 = vand.u32 %v8371, 4294901760
    %v8888 = vsub.f32 %v8371, %v8887
    %v8889 = vand.u32 %v8888, 4294901760
    %8890 = vmatpush1.msra.mxu0 %v8889
    %8891 = vmatprep.subr.mxu0 0.0
    %v8892 = vand.u32 %v8372, 4294901760
    %v8893 = vsub.f32 %v8372, %v8892
    %v8894 = vand.u32 %v8893, 4294901760
    %8895 = vmatpush1.msra.mxu0 %v8894
    %8896 = vmatprep.subr.mxu0 0.0
    %v8897 = vand.u32 %v8373, 4294901760
    %v8898 = vsub.f32 %v8373, %v8897
    %v8899 = vand.u32 %v8898, 4294901760
    %8900 = vmatpush1.msra.mxu0 %v8899
    %8901 = vmatprep.subr.mxu0 0.0
    %v8902 = vand.u32 %v8374, 4294901760
    %v8903 = vsub.f32 %v8374, %v8902
    %v8904 = vand.u32 %v8903, 4294901760
    %8905 = vmatpush1.msra.mxu0 %v8904
    %8906 = vmatprep.subr.mxu0 0.0
    %v8907 = vand.u32 %v8375, 4294901760
    %v8908 = vsub.f32 %v8375, %v8907
    %v8909 = vand.u32 %v8908, 4294901760
    %8910 = vmatpush1.msra.mxu0 %v8909
    %8911 = vmatprep.subr.mxu0 0.0
    %v8912 = vand.u32 %v8376, 4294901760
    %v8913 = vsub.f32 %v8376, %v8912
    %v8914 = vand.u32 %v8913, 4294901760
    %8915 = vmatpush1.msra.mxu0 %v8914
    %8916 = vmatprep.subr.mxu0 0.0
    %8917 = vmatpush1.msra.mxu0 0.0
    %8918 = vmatprep.subr.mxu0 0.0
    %8919 = vmatpush1.msra.mxu0 0.0
    %8920 = vmatprep.subr.mxu0 0.0
    %8921 = vmatpush1.msra.mxu0 0.0
    %8922 = vmatprep.subr.mxu0 0.0
    %8923 = vmatpush1.msra.mxu0 0.0
    %8924 = vmatprep.subr.mxu0 0.0
    %8925 = vmatpush1.msra.mxu0 0.0
    %8926 = vmatprep.subr.mxu0 0.0
    %8927 = vmatpush1.msra.mxu0 0.0
    %8928 = vmatprep.subr.mxu0 0.0
    %8929 = vmatpush1.msra.mxu0 0.0
    %8930 = vmatprep.subr.mxu0 0.0
    %8931 = vmatpush1.msra.mxu0 0.0
    %8932 = vmatprep.subr.mxu0 0.0
    %8933 = vmatpush1.msra.mxu0 0.0
    %8934 = vmatprep.subr.mxu0 0.0
    %8935 = vmatpush1.msra.mxu0 0.0
    %8936 = vmatprep.subr.mxu0 0.0
    %8937 = vmatpush1.msra.mxu0 0.0
    %8938 = vmatprep.subr.mxu0 0.0
    %8939 = vmatpush1.msra.mxu0 0.0
    %8940 = vmatprep.subr.mxu0 0.0
    %8941 = vmatpush1.msra.mxu0 0.0
    %8942 = vmatprep.subr.mxu0 0.0
    %8943 = vmatpush1.msra.mxu0 0.0
    %8944 = vmatprep.subr.mxu0 0.0
    %8945 = vmatpush1.msra.mxu0 0.0
    %8946 = vmatprep.subr.mxu0 0.0
    %8947 = vmatpush1.msra.mxu0 0.0
    %8948 = vmatprep.subr.mxu0 0.0
    %8949 = vmatpush1.msra.mxu0 0.0
    %8950 = vmatprep.subr.mxu0 0.0
    %8951 = vmatpush1.msra.mxu0 0.0
    %8952 = vmatprep.subr.mxu0 0.0
    %8953 = vmatpush1.msra.mxu0 0.0
    %8954 = vmatprep.subr.mxu0 0.0
    %8955 = vmatpush1.msra.mxu0 0.0
    %8956 = vmatprep.mubr.f32.mxu0 0.0
    %v8957 = vand.u32 %v8421, 4294901760
    %8958 = vmatmul.mubr.f32.gmra.mrb[0].mxu0 %v8957
    %v8959 = vpop.f32.mrb[0].mxu0
    %v8960 = vadd.f32 %v8845, %v8959
    %v8961 = vpop.f32.mrb[0].mxu0
    %8962 = vmatprep.mubr.f32.mxu0 0.0
    %v8963 = vand.u32 %v8424, 4294901760
    %8964 = vmatmul.mubr.f32.gmra.mrb[0].mxu0 %v8963
    %v8965 = vpop.f32.mrb[0].mxu0
    %v8966 = vadd.f32 %v8853, %v8965
    %v8967 = vpop.f32.mrb[0].mxu0
    %8968 = vdwg.mxu0
    %8969 = vmatprep.subr.mxu0 0.0
    %v8970 = vand.u32 %v8365, 4294901760
    %8971 = vmatpush1.msra.mxu0 %v8970
    %8972 = vmatprep.subr.mxu0 0.0
    %v8973 = vand.u32 %v8366, 4294901760
    %8974 = vmatpush1.msra.mxu0 %v8973
    %8975 = vmatprep.subr.mxu0 0.0
    %v8976 = vand.u32 %v8367, 4294901760
    %8977 = vmatpush1.msra.mxu0 %v8976
    %8978 = vmatprep.subr.mxu0 0.0
    %v8979 = vand.u32 %v8368, 4294901760
    %8980 = vmatpush1.msra.mxu0 %v8979
    %8981 = vmatprep.subr.mxu0 0.0
    %v8982 = vand.u32 %v8369, 4294901760
    %8983 = vmatpush1.msra.mxu0 %v8982
    %8984 = vmatprep.subr.mxu0 0.0
    %v8985 = vand.u32 %v8370, 4294901760
    %8986 = vmatpush1.msra.mxu0 %v8985
    %8987 = vmatprep.subr.mxu0 0.0
    %v8988 = vand.u32 %v8371, 4294901760
    %8989 = vmatpush1.msra.mxu0 %v8988
    %8990 = vmatprep.subr.mxu0 0.0
    %v8991 = vand.u32 %v8372, 4294901760
    %8992 = vmatpush1.msra.mxu0 %v8991
    %8993 = vmatprep.subr.mxu0 0.0
    %v8994 = vand.u32 %v8373, 4294901760
    %8995 = vmatpush1.msra.mxu0 %v8994
    %8996 = vmatprep.subr.mxu0 0.0
    %v8997 = vand.u32 %v8374, 4294901760
    %8998 = vmatpush1.msra.mxu0 %v8997
    %8999 = vmatprep.subr.mxu0 0.0
    %v9000 = vand.u32 %v8375, 4294901760
    %9001 = vmatpush1.msra.mxu0 %v9000
    %9002 = vmatprep.subr.mxu0 0.0
    %v9003 = vand.u32 %v8376, 4294901760
    %9004 = vmatpush1.msra.mxu0 %v9003
    %9005 = vmatprep.subr.mxu0 0.0
    %9006 = vmatpush1.msra.mxu0 0.0
    %9007 = vmatprep.subr.mxu0 0.0
    %9008 = vmatpush1.msra.mxu0 0.0
    %9009 = vmatprep.subr.mxu0 0.0
    %9010 = vmatpush1.msra.mxu0 0.0
    %9011 = vmatprep.subr.mxu0 0.0
    %9012 = vmatpush1.msra.mxu0 0.0
    %9013 = vmatprep.subr.mxu0 0.0
    %9014 = vmatpush1.msra.mxu0 0.0
    %9015 = vmatprep.subr.mxu0 0.0
    %9016 = vmatpush1.msra.mxu0 0.0
    %9017 = vmatprep.subr.mxu0 0.0
    %9018 = vmatpush1.msra.mxu0 0.0
    %9019 = vmatprep.subr.mxu0 0.0
    %9020 = vmatpush1.msra.mxu0 0.0
    %9021 = vmatprep.subr.mxu0 0.0
    %9022 = vmatpush1.msra.mxu0 0.0
    %9023 = vmatprep.subr.mxu0 0.0
    %9024 = vmatpush1.msra.mxu0 0.0
    %9025 = vmatprep.subr.mxu0 0.0
    %9026 = vmatpush1.msra.mxu0 0.0
    %9027 = vmatprep.subr.mxu0 0.0
    %9028 = vmatpush1.msra.mxu0 0.0
    %9029 = vmatprep.subr.mxu0 0.0
    %9030 = vmatpush1.msra.mxu0 0.0
    %9031 = vmatprep.subr.mxu0 0.0
    %9032 = vmatpush1.msra.mxu0 0.0
    %9033 = vmatprep.subr.mxu0 0.0
    %9034 = vmatpush1.msra.mxu0 0.0
    %9035 = vmatprep.subr.mxu0 0.0
    %9036 = vmatpush1.msra.mxu0 0.0
    %9037 = vmatprep.subr.mxu0 0.0
    %9038 = vmatpush1.msra.mxu0 0.0
    %9039 = vmatprep.subr.mxu0 0.0
    %9040 = vmatpush1.msra.mxu0 0.0
    %9041 = vmatprep.subr.mxu0 0.0
    %9042 = vmatpush1.msra.mxu0 0.0
    %9043 = vmatprep.subr.mxu0 0.0
    %9044 = vmatpush1.msra.mxu0 0.0
    %9045 = vmatprep.mubr.f32.mxu0 0.0
    %v9046 = vand.u32 %v8421, 4294901760
    %9047 = vmatmul.mubr.f32.gmra.mrb[0].mxu0 %v9046
    %v9048 = vpop.f32.mrb[0].mxu0
    %v9049 = vadd.f32 %v8960, %v9048
    %v9050 = vpop.f32.mrb[0].mxu0
    %9051 = vmatprep.mubr.f32.mxu0 0.0
    %v9052 = vand.u32 %v8424, 4294901760
    %9053 = vmatmul.mubr.f32.gmra.mrb[0].mxu0 %v9052
    %v9054 = vpop.f32.mrb[0].mxu0
    %v9055 = vadd.f32 %v8966, %v9054
    %v9056 = vpop.f32.mrb[0].mxu0
    %9057 = vdwg.mxu0
    %v9058 = vsel %vm570, %v9049, 0.0
    %v9059 = vsel %vm570, %v9055, 0.0
    %v9060 = vadd.f32 %v9058, %v9059
    %v9061 = vrot.slane %v9060, 4
    %v9062 = vadd.f32 %v9060, %v9061
    %v9063 = vrot.slane %v9062, 2
    %v9064 = vadd.f32 %v9062, %v9063
    %v9065 = vrot.slane %v9064, 1
    %v9066 = vadd.f32 %v9064, %v9065
    %v9067 = vrcp.pop 16.0
    %v9068 = vmul.f32 %v9066, %v9067
    %v9069 = vsub.f32 %v9049, %v9068
    %v9070 = vsub.f32 %v9055, %v9068
    %v9071 = vmul.f32 %v9069, %v9069
    %v9072 = vmul.f32 %v9070, %v9070
    %v9073 = vsel %vm570, %v9071, 0.0
    %v9074 = vsel %vm570, %v9072, 0.0
    %v9075 = vadd.f32 %v9073, %v9074
    %v9076 = vrot.slane %v9075, 4
    %v9077 = vadd.f32 %v9075, %v9076
    %v9078 = vrot.slane %v9077, 2
    %v9079 = vadd.f32 %v9077, %v9078
    %v9080 = vrot.slane %v9079, 1
    %v9081 = vadd.f32 %v9079, %v9080
    %v9082 = vmul.f32 %v9081, %v9067
    %v9083 = vadd.f32 %v9082, 1e-05
    %v9084 = vrsqrt.pop %v9083
    %v9085 = vmul.f32 %v9069, %v9084
    %v9086 = vmul.f32 %v9070, %v9084
    %v9088 = vlaneseq
    %v9089 = vshrl.u32 %v9088, 7
    %v9090 = vsub.s32 0, %v9089
    %v9091 = vrot.slane %v8378, %v9090
    %v9093 = vmul.f32 %v9085, %v9091
    %v9094 = vmul.f32 %v9086, %v9091
    %v9096 = vlaneseq
    %v9097 = vshrl.u32 %v9096, 7
    %v9098 = vsub.s32 0, %v9097
    %v9099 = vrot.slane %v8379, %v9098
    %v9101 = vadd.f32 %v9093, %v9099
    %v9102 = vadd.f32 %v9094, %v9099
    %9103 = vst.msk [vmem:[%s109] sm:$0xff] %vm570, %v9101
    %9104 = vst.msk [vmem:[%s109 + $0x8] sm:$0xff] %vm570, %v9102
    // Predicated region
    $region322: #{forward.1} parent=1 // pred_check
      _
    $region323: #{forward.1} parent=1 // pred_check_branch
      %9106 = sbr.rel (0) target = $region325
    $region324: #{forward.1} parent=1 // pred_region
      %s9108 = ssub.s32 32, 32
      %9109 = vsyncadd [#allocation4], %s9108
      %s9111 = sshll.u32 [#allocation47], 4
      %s9112 = int_to_ptr.vmem [resolvable:$true] %s9111
      %9114 = dma.vmem_to_hbm [thread:$0]  %s9112, 32, %s103, [#allocation4]
    $region325: #{forward.1} parent=1 // pred_fallthru
      _
    // Predicated region
    $region326: #{forward.1} parent=1 // pred_check
      _
    $region327: #{forward.1} parent=1 // pred_check_branch
      %9116 = sbr.rel (0) target = $region329
    $region328: #{forward.1} parent=1 // pred_region
      _
    $region329: #{forward.1} parent=1 // pred_fallthru
      _
    // Predicated region
    $region330: #{forward.1} parent=1 // pred_check
      _
    $region331: #{forward.1} parent=1 // pred_check_branch
      %9118 = sbr.rel (0) target = $region333
    $region332: #{forward.1} parent=1 // pred_region
      _
    $region333: #{forward.1} parent=1 // pred_fallthru
      _
    // Predicated region
    $region334: #{forward.1} parent=1 // pred_check
      _
    $region335: #{forward.1} parent=1 // pred_check_branch
      %9120 = sbr.rel (0) target = $region337
    $region336: #{forward.1} parent=1 // pred_region
      _
    $region337: #{forward.1} parent=1 // pred_fallthru
      _
    // Predicated region
    $region338: #{forward.1} parent=1 // pred_check
      _
    $region339: #{forward.1} parent=1 // pred_check_branch
      %9122 = sbr.rel (0) target = $region341
    $region340: #{forward.1} parent=1 // pred_region
      %9123 = dma.done [#allocation4], 32
    $region341: #{forward.1} parent=1 // pred_fallthru
      _
    // Predicated region
    $region342: #{forward.1} parent=1 // pred_check
      _
    $region343: #{forward.1} parent=1 // pred_check_branch
      %9125 = sbr.rel (0) target = $region345
    $region344: #{forward.1} parent=1 // pred_region
      _
    $region345: #{forward.1} parent=1 // pred_fallthru
      _
    // Predicated region
    $region346: #{forward.1} parent=1 // pred_check
      _
    $region347: #{forward.1} parent=1 // pred_check_branch
      %9127 = sbr.rel (0) target = $region349
    $region348: #{forward.1} parent=1 // pred_region
      _
    $region349: #{forward.1} parent=1 // pred_fallthru
      _
    // Predicated region
    $region350: #{forward.1} parent=1 // pred_check
      _
    $region351: #{forward.1} parent=1 // pred_check_branch
      %9129 = sbr.rel (0) target = $region353
    $region352: #{forward.1} parent=1 // pred_region
      _
    $region353: #{forward.1} parent=1 // pred_fallthru
      _
    %9130 = vsyncpa [#allocation3], 1
    %9131 = vsyncpa [#allocation6], 1
    %9132 = vsyncpa [#allocation9], 1
    %9133 = vsyncpa [#allocation12], 1
    %9134 = vsyncpa [#allocation15], 1
    %9135 = vsyncpa [#allocation18], 1
    %9136 = vsyncpa [#allocation21], 1
    %9137 = vsyncpa [#allocation24], 1
    %9138 = vsyncpa [#allocation27], 1
    %9139 = vsyncpa [#allocation30], 1
    %9140 = vsyncpa [#allocation33], 1
    %9141 = vsyncpa [#allocation36], 1
    %9142 = vsyncpa [#allocation39], 1
    %9143 = vsyncpa [#allocation42], 1
    %9144 = vsyncpa [#allocation45], 1
    %9145 = vsyncpa [#allocation4], 1

</llo_original>
